<compile_context>
chip_gen: v7x
topology: tpu7x:2x2x1
jax: 0.10.0
libtpu: 0.0.40
codegen_flags: <defaults>
</compile_context>

<pallas_src>
import jax
import jax.numpy as jnp
from jax.experimental import pallas as pl
from jax.experimental.pallas import tpu as pltpu


# ----------------------------------------------------------------------------
# Pallas kernels
# ----------------------------------------------------------------------------
def mm_stats_kernel(a_ref, b_ref, o_ref, psum_ref, psq_ref):
    """Per-phase single-K-tile matmul with fused BN column statistics.

    a_ref: (1, tm, Kp) bf16, b_ref: (1, Kp, tn) bf16, o_ref: (1, tm, tn) f32,
    psum_ref / psq_ref: (1, 1, 1, tn) f32 per-row-tile partial sums.
    """
    y = jnp.dot(a_ref[0], b_ref[0], preferred_element_type=jnp.float32)
    o_ref[0] = y
    yv = o_ref[0]   # re-read from VMEM so y and y*y are not both vreg-live
    psum_ref[0, 0] = jnp.sum(yv, axis=0, keepdims=True)
    psq_ref[0, 0] = jnp.sum(yv * yv, axis=0, keepdims=True)


def mm_bias_tanh_kernel(a_ref, b_ref, bias_ref, o_ref):
    """Per-phase matmul with fused bias + tanh epilogue, bf16 output store."""
    y = jnp.dot(a_ref[0], b_ref[0], preferred_element_type=jnp.float32)
    o_ref[0] = jnp.tanh(y + bias_ref[...]).astype(o_ref.dtype)


def affine_relu_kernel(x_ref, sc_ref, sh_ref, o_ref):
    """y = relu(x * scale + shift), per-column scale/shift, bf16 output."""
    y = x_ref[0] * sc_ref[...] + sh_ref[...]
    o_ref[0] = jnp.maximum(y, 0.0).astype(o_ref.dtype)


# ----------------------------------------------------------------------------
# Small helpers
# ----------------------------------------------------------------------------
def _round_up(x, m):
    return (x + m - 1) // m * m


def _pad_last2(x, m0, m1):
    p0 = (-x.shape[-2]) % m0
    p1 = (-x.shape[-1]) % m1
    if p0 or p1:
        pad = [(0, 0)] * (x.ndim - 2) + [(0, p0), (0, p1)]
        x = jnp.pad(x, pad)
    return x


def _row_tile(m, target=512):
    """Largest divisor of m that is <= target and a multiple of 8 (else m)."""
    if m <= target:
        return m
    t = target - target % 8
    while t > 8 and m % t:
        t -= 8
    return t if (t > 0 and m % t == 0) else m


# ----------------------------------------------------------------------------
# Pallas wrappers (phase-stacked matmuls; K is always a single tile <= 2048)
# ----------------------------------------------------------------------------
def pallas_phase_matmul_bn_stats(A, Wm, tn=128):
    """Y[p] = A[p] @ Wm[p] (bf16 in, f32 MXU acc) + fused per-tile column stats.

    A: (P, M, Kc), Wm: (P, Kc, N).
    Returns (Y[P, Mp, Np] f32, psum[P, Gm, 1, Np], psq[P, Gm, 1, Np],
             (M, N, Mp, Np)).
    """
    P, M, Kc = A.shape
    N = Wm.shape[-1]
    tm = min(256, _round_up(M, 8))       # no wasteful M padding on tiny layers
    Kp = _round_up(Kc, 128)              # single K tile (max 2048 in this net)
    Np = _round_up(N, tn)

    ap = _pad_last2(A.astype(jnp.bfloat16), tm, Kp)
    bp = _pad_last2(Wm.astype(jnp.bfloat16), Kp, tn)
    Mp = ap.shape[1]
    Gm, Gn = Mp // tm, Np // tn

    y, psum, psq = pl.pallas_call(
        mm_stats_kernel,
        out_shape=(jax.ShapeDtypeStruct((P, Mp, Np), jnp.float32),
                   jax.ShapeDtypeStruct((P, Gm, 1, Np), jnp.float32),
                   jax.ShapeDtypeStruct((P, Gm, 1, Np), jnp.float32)),
        grid_spec=pltpu.PrefetchScalarGridSpec(
            num_scalar_prefetch=0,
            grid=(P, Gm, Gn),
            in_specs=[pl.BlockSpec((1, tm, Kp), lambda p, i, j: (p, i, 0)),
                      pl.BlockSpec((1, Kp, tn), lambda p, i, j: (p, 0, j))],
            out_specs=[pl.BlockSpec((1, tm, tn), lambda p, i, j: (p, i, j)),
                       pl.BlockSpec((1, 1, 1, tn), lambda p, i, j: (p, i, 0, j)),
                       pl.BlockSpec((1, 1, 1, tn), lambda p, i, j: (p, i, 0, j))]),
        compiler_params=pltpu.CompilerParams(
            dimension_semantics=("parallel", "parallel", "parallel")),
    )(ap, bp)
    return y, psum, psq, (M, N, Mp, Np)


def pallas_phase_matmul_bias_tanh(A, Wm, bias, tn=128):
    """Y[p] = tanh(A[p] @ Wm[p] + bias), fully fused, bf16 output."""
    P, M, Kc = A.shape
    N = Wm.shape[-1]
    tm = min(256, _round_up(M, 8))
    Kp = _round_up(Kc, 128)
    Np = _round_up(N, tn)

    ap = _pad_last2(A.astype(jnp.bfloat16), tm, Kp)
    bp = _pad_last2(Wm.astype(jnp.bfloat16), Kp, tn)
    Mp = ap.shape[1]
    Gm, Gn = Mp // tm, Np // tn
    bias_p = jnp.pad(bias.astype(jnp.float32), (0, Np - N)).reshape(1, Np)

    y = pl.pallas_call(
        mm_bias_tanh_kernel,
        out_shape=jax.ShapeDtypeStruct((P, Mp, Np), jnp.bfloat16),
        grid_spec=pltpu.PrefetchScalarGridSpec(
            num_scalar_prefetch=0,
            grid=(P, Gm, Gn),
            in_specs=[pl.BlockSpec((1, tm, Kp), lambda p, i, j: (p, i, 0)),
                      pl.BlockSpec((1, Kp, tn), lambda p, i, j: (p, 0, j)),
                      pl.BlockSpec((1, tn), lambda p, i, j: (0, j))],
            out_specs=pl.BlockSpec((1, tm, tn), lambda p, i, j: (p, i, j))),
        compiler_params=pltpu.CompilerParams(
            dimension_semantics=("parallel", "parallel", "parallel")),
    )(ap, bp, bias_p)
    return y[:, :M, :N]


def pallas_affine_relu(y, scale_cols, shift_cols, target_rows=512):
    """relu(y * scale + shift) with per-column scale/shift -> bf16.

    y: (P, Mp, Np) f32; scale_cols/shift_cols: (Np,) f32.
    """
    P, Mp, Np = y.shape
    tr = _row_tile(Mp, target_rows)
    sc = scale_cols.reshape(1, Np)
    sh = shift_cols.reshape(1, Np)
    return pl.pallas_call(
        affine_relu_kernel,
        out_shape=jax.ShapeDtypeStruct((P, Mp, Np), jnp.bfloat16),
        grid_spec=pltpu.PrefetchScalarGridSpec(
            num_scalar_prefetch=0,
            grid=(P, Mp // tr),
            in_specs=[pl.BlockSpec((1, tr, Np), lambda p, i: (p, i, 0)),
                      pl.BlockSpec((1, Np), lambda p, i: (0, 0)),
                      pl.BlockSpec((1, Np), lambda p, i: (0, 0))],
            out_specs=pl.BlockSpec((1, tr, Np), lambda p, i: (p, i, 0))),
        compiler_params=pltpu.CompilerParams(
            dimension_semantics=("parallel", "parallel")),
    )(y, sc, sh)


# ----------------------------------------------------------------------------
# Phase-decomposed ConvTranspose2d(k=4, s=2, p=1), channel-last activations
# ----------------------------------------------------------------------------
# For k=4, s=2, p=1 each output pixel (2m+pr, 2n+pc) reads exactly a 2x2 window
# of the (zero-padded-by-1) input starting at (m+pr, n+pc); the kernel tap used
# by window offset (dy, dx) in phase (pr, pc) is (ky, kx) = (3-pr-2dy, 3-pc-2dx).

def _convT_s2_phase_patches(x):
    """x: (B, H, W, Cin) bf16 -> A (4, B*H*W, 4*Cin); phases (pr, pc) row-major,
    patch columns ordered (dy, dx, ci)."""
    B, H, W, Cin = x.shape
    xp = jnp.pad(x, ((0, 0), (1, 1), (1, 1), (0, 0)))
    phases = []
    for pr in range(2):
        for pc in range(2):
            cols = [xp[:, pr + dy: pr + dy + H, pc + dx: pc + dx + W, :]
                    for dy in range(2) for dx in range(2)]
            a = jnp.concatenate(cols, axis=-1).reshape(B * H * W, 4 * Cin)
            phases.append(a)
    return jnp.stack(phases, axis=0), (B, H, W)


def _convT_s2_phase_weights(W):
    """W: (Cin, Cout, 4, 4) PyTorch ConvTranspose2d layout ->
    (4, 4*Cin, Cout) per-phase matmul weights matching _convT_s2_phase_patches."""
    Cin, Cout, K, _ = W.shape
    assert K == 4
    mats = []
    for pr in range(2):
        for pc in range(2):
            rows = []
            for dy in range(2):
                for dx in range(2):
                    ky = 3 - pr - 2 * dy
                    kx = 3 - pc - 2 * dx
                    rows.append(W[:, :, ky, kx])           # (Cin, Cout)
            mats.append(jnp.concatenate(rows, axis=0))     # (4*Cin, Cout)
    return jnp.stack(mats, axis=0)


def _assemble_phases(yp, B, H, W, C):
    """yp: (4, B*H*W, C), phase order (pr, pc) -> (B, 2H, 2W, C)."""
    z = yp.reshape(2, 2, B, H, W, C)
    z = jnp.transpose(z, (2, 3, 0, 4, 1, 5))   # (B, H, pr, W, pc, C)
    return z.reshape(B, 2 * H, 2 * W, C)


def convT_s2_bn_relu(x_nhwc, W, gamma, beta, eps=1e-5):
    Cout = W.shape[1]
    tn = 256 if Cout >= 256 else 128
    A, (B, H, Wd) = _convT_s2_phase_patches(x_nhwc)
    Wm = _convT_s2_phase_weights(W)
    Y, psum, psq, (M, N, Mp, Np) = pallas_phase_matmul_bn_stats(A, Wm, tn=tn)

    # BN batch stats over all 4*M output pixels; padded rows contribute 0.
    tot = 4 * M
    s = psum.sum(axis=(0, 1))[0, :N]
    sq = psq.sum(axis=(0, 1))[0, :N]
    mean = s / tot
    var = jnp.maximum(sq / tot - mean * mean, 0.0)
    scale = gamma * jax.lax.rsqrt(var + eps)
    shift = beta - mean * scale

    scale_p = jnp.pad(scale.astype(jnp.float32), (0, Np - N))
    shift_p = jnp.pad(shift.astype(jnp.float32), (0, Np - N))
    Ya = pallas_affine_relu(Y, scale_p, shift_p)[:, :M, :N]     # bf16
    return _assemble_phases(Ya, B, H, Wd, N)


def convT_s2_bias_tanh(x_nhwc, W, bias):
    Cout = W.shape[1]
    A, (B, H, Wd) = _convT_s2_phase_patches(x_nhwc)
    Wm = _convT_s2_phase_weights(W)
    Y = pallas_phase_matmul_bias_tanh(A, Wm, bias, tn=128)      # (4, M, Cout) bf16
    return _assemble_phases(Y, B, H, Wd, Cout)


# ----------------------------------------------------------------------------
# Fused input layers: two ConvT(·, 256, 4, 1, 0)+BN+ReLU on 1x1 inputs
# ----------------------------------------------------------------------------
def fused_input_layers(noise_vec, label_vec, Wn, gn, bn, Wl, gl, bl, eps=1e-5):
    """ConvT on a 1x1 input is x(B, Cin) @ W.reshape(Cin, K*K*Cout); both input
    branches run as ONE matmul with a block-diagonal weight, then one BN
    affine+ReLU pass on the concatenated channels.  Returns (B, 4, 4, 512) bf16."""
    B, Cn = noise_vec.shape
    Cl = label_vec.shape[1]
    Co = Wn.shape[1]
    K = Wn.shape[2]
    N = K * K * 2 * Co

    # Columns ordered (ky, kx, channel); channels = [noise 0..Co) | label Co..2Co).
    Wn_m = jnp.transpose(Wn, (0, 2, 3, 1))                  # (Cn, K, K, Co)
    Wl_m = jnp.transpose(Wl, (0, 2, 3, 1))                  # (Cl, K, K, Co)
    Wbig = jnp.zeros((Cn + Cl, K, K, 2 * Co), jnp.float32)
    Wbig = Wbig.at[:Cn, :, :, :Co].set(Wn_m)
    Wbig = Wbig.at[Cn:, :, :, Co:].set(Wl_m)
    Wbig = Wbig.reshape(Cn + Cl, N)

    x = jnp.concatenate([noise_vec, label_vec], axis=1)     # (B, Cn+Cl)
    tn = 512 if N % 512 == 0 else 128
    Y, psum, psq, (M, Nn, Mp, Np) = pallas_phase_matmul_bn_stats(
        x[None].astype(jnp.bfloat16), Wbig[None], tn=tn)

    # Per-channel BN stats: reduce the K*K spatial positions of the column sums.
    tot = M * K * K
    s = psum.sum(axis=(0, 1))[0, :N].reshape(K * K, 2 * Co).sum(axis=0)
    sq = psq.sum(axis=(0, 1))[0, :N].reshape(K * K, 2 * Co).sum(axis=0)
    mean = s / tot
    var = jnp.maximum(sq / tot - mean * mean, 0.0)
    gamma = jnp.concatenate([gn, gl])
    beta = jnp.concatenate([bn, bl])
    scale = gamma * jax.lax.rsqrt(var + eps)
    shift = beta - mean * scale

    scale_cols = jnp.pad(jnp.tile(scale, K * K).astype(jnp.float32), (0, Np - N))
    shift_cols = jnp.pad(jnp.tile(shift, K * K).astype(jnp.float32), (0, Np - N))
    Ya = pallas_affine_relu(Y, scale_cols, shift_cols)[0, :M, :N]   # (B, N) bf16
    return Ya.reshape(B, K, K, 2 * Co)                               # (B,4,4,512)


# ----------------------------------------------------------------------------
# Generator (MNIST branch): noise/labels (B, C, 1, 1) -> image (B, out_dim, 32, 32)
# ----------------------------------------------------------------------------
def init_generator_params(key, input_dim, output_dim, label_dim):
    ks = jax.random.split(key, 8)
    n = lambda k, shape: 0.02 * jax.random.normal(k, shape, jnp.float32)
    return {
        "Wn": n(ks[0], (input_dim, 256, 4, 4)),
        "gn": 1.0 + n(ks[1], (256,)), "bn": jnp.zeros((256,), jnp.float32),
        "Wl": n(ks[2], (label_dim, 256, 4, 4)),
        "gl": 1.0 + n(ks[3], (256,)), "bl": jnp.zeros((256,), jnp.float32),
        "W2": n(ks[4], (512, 256, 4, 4)),
        "g2": 1.0 + n(ks[5], (256,)), "b2": jnp.zeros((256,), jnp.float32),
        "W3": n(ks[6], (256, 128, 4, 4)),
        "g3": 1.0 + n(ks[7], (128,)), "b3": jnp.zeros((128,), jnp.float32),
        "W4": n(jax.random.fold_in(key, 99), (128, output_dim, 4, 4)),
        "bias4": jnp.zeros((output_dim,), jnp.float32),
    }


@jax.jit
def generator_forward(params, noise, labels):
    B = noise.shape[0]
    nz = noise.reshape(B, -1)                        # (B, input_dim), 1x1 spatial
    lb = labels.reshape(B, -1)                       # (B, label_dim)
    x = fused_input_layers(nz, lb, params["Wn"], params["gn"], params["bn"],
                           params["Wl"], params["gl"], params["bl"])   # (B,4,4,512)
    x = convT_s2_bn_relu(x, params["W2"], params["g2"], params["b2"])  # (B,8,8,256)
    x = convT_s2_bn_relu(x, params["W3"], params["g3"], params["b3"])  # (B,16,16,128)
    y = convT_s2_bias_tanh(x, params["W4"], params["bias4"])           # (B,32,32,out)
    return jnp.transpose(y.astype(jnp.float32), (0, 3, 1, 2))          # NCHW


# ----------------------------------------------------------------------------
# Pure-JAX reference (f32, lax conv) for correctness check
# ----------------------------------------------------------------------------
def _convT_ref(x_nhwc, W, stride, padding):
    K = W.shape[2]
    kern = jnp.transpose(jnp.flip(W, (2, 3)), (2, 3, 0, 1))   # HWIO
    return jax.lax.conv_general_dilated(
        x_nhwc, kern, window_strides=(1, 1),
        padding=[(K - 1 - padding, K - 1 - padding)] * 2,
        lhs_dilation=(stride, stride),
        dimension_numbers=("NHWC", "HWIO", "NHWC"))


def _bn_relu_ref(y, gamma, beta, eps=1e-5):
    mean = y.mean(axis=(0, 1, 2))
    var = y.var(axis=(0, 1, 2))
    return jnp.maximum((y - mean) * (gamma * jax.lax.rsqrt(var + eps)) + beta, 0.0)


def generator_forward_ref(params, noise, labels):
    nz = jnp.transpose(noise, (0, 2, 3, 1))
    lb = jnp.transpose(labels, (0, 2, 3, 1))
    h1 = _bn_relu_ref(_convT_ref(nz, params["Wn"], 1, 0), params["gn"], params["bn"])
    h2 = _bn_relu_ref(_convT_ref(lb, params["Wl"], 1, 0), params["gl"], params["bl"])
    x = jnp.concatenate([h1, h2], axis=-1)
    x = _bn_relu_ref(_convT_ref(x, params["W2"], 2, 1), params["g2"], params["b2"])
    x = _bn_relu_ref(_convT_ref(x, params["W3"], 2, 1), params["g3"], params["b3"])
    y = jnp.tanh(_convT_ref(x, params["W4"], 2, 1) + params["bias4"])
    return jnp.transpose(y, (0, 3, 1, 2))


if __name__ == "__main__":
    B, input_dim, label_dim, output_dim = 2, 32, 10, 1

    key = jax.random.PRNGKey(0)
    k_p, k_n, k_l = jax.random.split(key, 3)
    params = init_generator_params(k_p, input_dim, output_dim, label_dim)

    noise = jax.random.normal(k_n, (B, input_dim, 1, 1), jnp.float32)
    label_idx = jax.random.randint(k_l, (B,), 0, label_dim)
    labels = jax.nn.one_hot(label_idx, label_dim).reshape(B, label_dim, 1, 1)

    out = jax.block_until_ready(generator_forward(params, noise, labels))

    assert out.shape == (B, output_dim, 32, 32), out.shape
    assert bool(jnp.all(jnp.isfinite(out)))
    assert bool(jnp.all(jnp.abs(out) <= 1.0 + 1e-5))   # tanh range

    # Compare against a pure-JAX reference (bf16 MXU feeds -> loose tolerance).
    ref = jax.block_until_ready(generator_forward_ref(params, noise, labels))
    max_err = float(jnp.max(jnp.abs(out - ref)))
    assert max_err < 0.1, f"max abs err vs reference: {max_err}"

    print("KERNEL_OK")
</pallas_src>

<mosaic_0001>
module attributes {stable_mosaic.version = 11 : i64} {
  func.func @mm_stats_kernel(%arg0: i32, %arg1: i32, %arg2: i32, %arg3: memref<1x8x128xbf16, #tpu.memory_space<vmem>>, %arg4: memref<1x128x512xbf16, #tpu.memory_space<vmem>>, %arg5: memref<1x8x512xf32, #tpu.memory_space<vmem>>, %arg6: memref<1x1x1x512xf32, #tpu.memory_space<vmem>>, %arg7: memref<1x1x1x512xf32, #tpu.memory_space<vmem>>) attributes {dimension_semantics = [#tpu.dimension_semantics<parallel>, #tpu.dimension_semantics<parallel>, #tpu.dimension_semantics<parallel>], iteration_bounds = array<i64: 1, 1, 16>, scalar_prefetch = 0 : i64, scratch_operands = 0 : i64, tpu.core_type = #tpu.core_type<tc>, window_params = [{transform_indices = @transform_0, window_bounds = array<i64: 1, 8, 128>}, {transform_indices = @transform_1, window_bounds = array<i64: 1, 128, 512>}, {transform_indices = @transform_2, window_bounds = array<i64: 1, 8, 512>}, {transform_indices = @transform_3, window_bounds = array<i64: 1, 1, 1, 512>}, {transform_indices = @transform_4, window_bounds = array<i64: 1, 1, 1, 512>}]} {
    %c0 = arith.constant 0 : index
    %c0_0 = arith.constant 0 : index
    %c0_1 = arith.constant 0 : index
    %0 = vector.load %arg3[%c0, %c0_0, %c0_1] : memref<1x8x128xbf16, #tpu.memory_space<vmem>>, vector<1x8x128xbf16>
    %1 = vector.shape_cast %0 : vector<1x8x128xbf16> to vector<8x128xbf16>
    %c0_2 = arith.constant 0 : index
    %c0_3 = arith.constant 0 : index
    %c0_4 = arith.constant 0 : index
    %2 = vector.load %arg4[%c0_2, %c0_3, %c0_4] : memref<1x128x512xbf16, #tpu.memory_space<vmem>>, vector<1x128x512xbf16>
    %3 = vector.shape_cast %2 : vector<1x128x512xbf16> to vector<128x512xbf16>
    %cst = arith.constant dense<0.000000e+00> : vector<8x512xf32>
    %4 = tpu.matmul %1, %3, %cst {dimension_numbers = #tpu.dot_dimension_numbers<[1], [0], [0], [1], [0, 0, 1, 1], [], []>} : vector<8x128xbf16>, vector<128x512xbf16>, vector<8x512xf32> -> vector<8x512xf32>
    %c0_5 = arith.constant 0 : index
    %c0_6 = arith.constant 0 : index
    %c0_7 = arith.constant 0 : index
    %5 = vector.load %arg5[%c0_5, %c0_6, %c0_7] : memref<1x8x512xf32, #tpu.memory_space<vmem>>, vector<1x8x512xf32>
    %6 = vector.shape_cast %5 : vector<1x8x512xf32> to vector<8x512xf32>
    %7 = vector.shape_cast %4 : vector<8x512xf32> to vector<1x8x512xf32>
    tpu.vector_store %arg5[%c0_5, %c0_6, %c0_7], %7 {strides = array<i32>} : memref<1x8x512xf32, #tpu.memory_space<vmem>>, vector<1x8x512xf32>,
    %c0_8 = arith.constant 0 : index
    %c0_9 = arith.constant 0 : index
    %c0_10 = arith.constant 0 : index
    %8 = vector.load %arg5[%c0_8, %c0_9, %c0_10] : memref<1x8x512xf32, #tpu.memory_space<vmem>>, vector<1x8x512xf32>
    %9 = vector.shape_cast %8 : vector<1x8x512xf32> to vector<8x512xf32>
    %cst_11 = arith.constant dense<0.000000e+00> : vector<512xf32>
    %10 = vector.multi_reduction <add>, %9, %cst_11 [0] : vector<8x512xf32> to vector<512xf32>
    %11 = vector.shape_cast %10 : vector<512xf32> to vector<1x512xf32>
    %c0_12 = arith.constant 0 : index
    %c0_13 = arith.constant 0 : index
    %c0_14 = arith.constant 0 : index
    %c0_15 = arith.constant 0 : index
    %12 = vector.load %arg6[%c0_12, %c0_13, %c0_14, %c0_15] : memref<1x1x1x512xf32, #tpu.memory_space<vmem>>, vector<1x1x1x512xf32>
    %13 = vector.shape_cast %12 : vector<1x1x1x512xf32> to vector<1x512xf32>
    %14 = vector.shape_cast %11 : vector<1x512xf32> to vector<1x1x1x512xf32>
    tpu.vector_store %arg6[%c0_12, %c0_13, %c0_14, %c0_15], %14 {strides = array<i32>} : memref<1x1x1x512xf32, #tpu.memory_space<vmem>>, vector<1x1x1x512xf32>,
    %15 = arith.mulf %9, %9 : vector<8x512xf32>
    %cst_16 = arith.constant dense<0.000000e+00> : vector<512xf32>
    %16 = vector.multi_reduction <add>, %15, %cst_16 [0] : vector<8x512xf32> to vector<512xf32>
    %17 = vector.shape_cast %16 : vector<512xf32> to vector<1x512xf32>
    %c0_17 = arith.constant 0 : index
    %c0_18 = arith.constant 0 : index
    %c0_19 = arith.constant 0 : index
    %c0_20 = arith.constant 0 : index
    %18 = vector.load %arg7[%c0_17, %c0_18, %c0_19, %c0_20] : memref<1x1x1x512xf32, #tpu.memory_space<vmem>>, vector<1x1x1x512xf32>
    %19 = vector.shape_cast %18 : vector<1x1x1x512xf32> to vector<1x512xf32>
    %20 = vector.shape_cast %17 : vector<1x512xf32> to vector<1x1x1x512xf32>
    tpu.vector_store %arg7[%c0_17, %c0_18, %c0_19, %c0_20], %20 {strides = array<i32>} : memref<1x1x1x512xf32, #tpu.memory_space<vmem>>, vector<1x1x1x512xf32>,
    return
  }
  func.func @transform_0(%arg0: i32, %arg1: i32, %arg2: i32) -> (i32, i32, i32) {
    %c0_i32 = arith.constant 0 : i32
    %c0_i32_0 = arith.constant 0 : i32
    return %arg0, %arg1, %c0_i32 : i32, i32, i32
  }
  func.func @transform_1(%arg0: i32, %arg1: i32, %arg2: i32) -> (i32, i32, i32) {
    %c0_i32 = arith.constant 0 : i32
    %c0_i32_0 = arith.constant 0 : i32
    return %arg0, %c0_i32, %arg2 : i32, i32, i32
  }
  func.func @transform_2(%arg0: i32, %arg1: i32, %arg2: i32) -> (i32, i32, i32) {
    %c0_i32 = arith.constant 0 : i32
    return %arg0, %arg1, %arg2 : i32, i32, i32
  }
  func.func @transform_3(%arg0: i32, %arg1: i32, %arg2: i32) -> (i32, i32, i32, i32) {
    %c0_i32 = arith.constant 0 : i32
    %c0_i32_0 = arith.constant 0 : i32
    return %arg0, %arg1, %c0_i32, %arg2 : i32, i32, i32, i32
  }
  func.func @transform_4(%arg0: i32, %arg1: i32, %arg2: i32) -> (i32, i32, i32, i32) {
    %c0_i32 = arith.constant 0 : i32
    %c0_i32_0 = arith.constant 0 : i32
    return %arg0, %arg1, %c0_i32, %arg2 : i32, i32, i32, i32
  }
}

module attributes {stable_mosaic.version = 11 : i64} {
  func.func @affine_relu_kernel(%arg0: i32, %arg1: i32, %arg2: memref<1x8x8192xf32, #tpu.memory_space<vmem>>, %arg3: memref<1x8192xf32, #tpu.memory_space<vmem>>, %arg4: memref<1x8192xf32, #tpu.memory_space<vmem>>, %arg5: memref<1x8x8192xbf16, #tpu.memory_space<vmem>>) attributes {dimension_semantics = [#tpu.dimension_semantics<parallel>, #tpu.dimension_semantics<parallel>], iteration_bounds = array<i64: 1, 1>, scalar_prefetch = 0 : i64, scratch_operands = 0 : i64, tpu.core_type = #tpu.core_type<tc>, window_params = [{transform_indices = @transform_0, window_bounds = array<i64: 1, 8, 8192>}, {pipeline_mode = #tpu.pipeline_mode<synchronous>, transform_indices = @transform_1, window_bounds = array<i64: 1, 8192>}, {pipeline_mode = #tpu.pipeline_mode<synchronous>, transform_indices = @transform_2, window_bounds = array<i64: 1, 8192>}, {transform_indices = @transform_3, window_bounds = array<i64: 1, 8, 8192>}]} {
    %c0 = arith.constant 0 : index
    %c0_0 = arith.constant 0 : index
    %c0_1 = arith.constant 0 : index
    %0 = vector.load %arg2[%c0, %c0_0, %c0_1] : memref<1x8x8192xf32, #tpu.memory_space<vmem>>, vector<1x8x8192xf32>
    %1 = vector.shape_cast %0 : vector<1x8x8192xf32> to vector<8x8192xf32>
    %c0_2 = arith.constant 0 : index
    %c0_3 = arith.constant 0 : index
    %2 = vector.load %arg3[%c0_2, %c0_3] : memref<1x8192xf32, #tpu.memory_space<vmem>>, vector<1x8192xf32>
    %3 = vector.broadcast %2 : vector<1x8192xf32> to vector<8x8192xf32>
    %4 = arith.mulf %1, %3 : vector<8x8192xf32>
    %c0_4 = arith.constant 0 : index
    %c0_5 = arith.constant 0 : index
    %5 = vector.load %arg4[%c0_4, %c0_5] : memref<1x8192xf32, #tpu.memory_space<vmem>>, vector<1x8192xf32>
    %6 = vector.broadcast %5 : vector<1x8192xf32> to vector<8x8192xf32>
    %7 = arith.addf %4, %6 : vector<8x8192xf32>
    %cst = arith.constant 0.000000e+00 : f32
    %8 = vector.broadcast %cst : f32 to vector<8x8192xf32>
    %9 = arith.maximumf %7, %8 : vector<8x8192xf32>
    %10 = arith.truncf %9 : vector<8x8192xf32> to vector<8x8192xbf16>
    %c0_6 = arith.constant 0 : index
    %c0_7 = arith.constant 0 : index
    %c0_8 = arith.constant 0 : index
    %11 = vector.load %arg5[%c0_6, %c0_7, %c0_8] : memref<1x8x8192xbf16, #tpu.memory_space<vmem>>, vector<1x8x8192xbf16>
    %12 = vector.shape_cast %11 : vector<1x8x8192xbf16> to vector<8x8192xbf16>
    %13 = vector.shape_cast %10 : vector<8x8192xbf16> to vector<1x8x8192xbf16>
    tpu.vector_store %arg5[%c0_6, %c0_7, %c0_8], %13 {strides = array<i32>} : memref<1x8x8192xbf16, #tpu.memory_space<vmem>>, vector<1x8x8192xbf16>,
    return
  }
  func.func @transform_0(%arg0: i32, %arg1: i32) -> (i32, i32, i32) {
    %c0_i32 = arith.constant 0 : i32
    %c0_i32_0 = arith.constant 0 : i32
    return %arg0, %arg1, %c0_i32 : i32, i32, i32
  }
  func.func @transform_1(%arg0: i32, %arg1: i32) -> (i32, i32) {
    %c0_i32 = arith.constant 0 : i32
    %c0_i32_0 = arith.constant 0 : i32
    %c0_i32_1 = arith.constant 0 : i32
    return %c0_i32, %c0_i32_0 : i32, i32
  }
  func.func @transform_2(%arg0: i32, %arg1: i32) -> (i32, i32) {
    %c0_i32 = arith.constant 0 : i32
    %c0_i32_0 = arith.constant 0 : i32
    %c0_i32_1 = arith.constant 0 : i32
    return %c0_i32, %c0_i32_0 : i32, i32
  }
  func.func @transform_3(%arg0: i32, %arg1: i32) -> (i32, i32, i32) {
    %c0_i32 = arith.constant 0 : i32
    %c0_i32_0 = arith.constant 0 : i32
    return %arg0, %arg1, %c0_i32 : i32, i32, i32
  }
}

module attributes {stable_mosaic.version = 11 : i64} {
  func.func @mm_stats_kernel(%arg0: i32, %arg1: i32, %arg2: i32, %arg3: memref<1x32x2048xbf16, #tpu.memory_space<vmem>>, %arg4: memref<1x2048x256xbf16, #tpu.memory_space<vmem>>, %arg5: memref<1x32x256xf32, #tpu.memory_space<vmem>>, %arg6: memref<1x1x1x256xf32, #tpu.memory_space<vmem>>, %arg7: memref<1x1x1x256xf32, #tpu.memory_space<vmem>>) attributes {dimension_semantics = [#tpu.dimension_semantics<parallel>, #tpu.dimension_semantics<parallel>, #tpu.dimension_semantics<parallel>], iteration_bounds = array<i64: 4, 1, 1>, scalar_prefetch = 0 : i64, scratch_operands = 0 : i64, tpu.core_type = #tpu.core_type<tc>, window_params = [{transform_indices = @transform_0, window_bounds = array<i64: 1, 32, 2048>}, {transform_indices = @transform_1, window_bounds = array<i64: 1, 2048, 256>}, {transform_indices = @transform_2, window_bounds = array<i64: 1, 32, 256>}, {transform_indices = @transform_3, window_bounds = array<i64: 1, 1, 1, 256>}, {transform_indices = @transform_4, window_bounds = array<i64: 1, 1, 1, 256>}]} {
    %c0 = arith.constant 0 : index
    %c0_0 = arith.constant 0 : index
    %c0_1 = arith.constant 0 : index
    %0 = vector.load %arg3[%c0, %c0_0, %c0_1] : memref<1x32x2048xbf16, #tpu.memory_space<vmem>>, vector<1x32x2048xbf16>
    %1 = vector.shape_cast %0 : vector<1x32x2048xbf16> to vector<32x2048xbf16>
    %c0_2 = arith.constant 0 : index
    %c0_3 = arith.constant 0 : index
    %c0_4 = arith.constant 0 : index
    %2 = vector.load %arg4[%c0_2, %c0_3, %c0_4] : memref<1x2048x256xbf16, #tpu.memory_space<vmem>>, vector<1x2048x256xbf16>
    %3 = vector.shape_cast %2 : vector<1x2048x256xbf16> to vector<2048x256xbf16>
    %cst = arith.constant dense<0.000000e+00> : vector<32x256xf32>
    %4 = tpu.matmul %1, %3, %cst {dimension_numbers = #tpu.dot_dimension_numbers<[1], [0], [0], [1], [0, 0, 1, 1], [], []>} : vector<32x2048xbf16>, vector<2048x256xbf16>, vector<32x256xf32> -> vector<32x256xf32>
    %c0_5 = arith.constant 0 : index
    %c0_6 = arith.constant 0 : index
    %c0_7 = arith.constant 0 : index
    %5 = vector.load %arg5[%c0_5, %c0_6, %c0_7] : memref<1x32x256xf32, #tpu.memory_space<vmem>>, vector<1x32x256xf32>
    %6 = vector.shape_cast %5 : vector<1x32x256xf32> to vector<32x256xf32>
    %7 = vector.shape_cast %4 : vector<32x256xf32> to vector<1x32x256xf32>
    tpu.vector_store %arg5[%c0_5, %c0_6, %c0_7], %7 {strides = array<i32>} : memref<1x32x256xf32, #tpu.memory_space<vmem>>, vector<1x32x256xf32>,
    %c0_8 = arith.constant 0 : index
    %c0_9 = arith.constant 0 : index
    %c0_10 = arith.constant 0 : index
    %8 = vector.load %arg5[%c0_8, %c0_9, %c0_10] : memref<1x32x256xf32, #tpu.memory_space<vmem>>, vector<1x32x256xf32>
    %9 = vector.shape_cast %8 : vector<1x32x256xf32> to vector<32x256xf32>
    %cst_11 = arith.constant dense<0.000000e+00> : vector<256xf32>
    %10 = vector.multi_reduction <add>, %9, %cst_11 [0] : vector<32x256xf32> to vector<256xf32>
    %11 = vector.shape_cast %10 : vector<256xf32> to vector<1x256xf32>
    %c0_12 = arith.constant 0 : index
    %c0_13 = arith.constant 0 : index
    %c0_14 = arith.constant 0 : index
    %c0_15 = arith.constant 0 : index
    %12 = vector.load %arg6[%c0_12, %c0_13, %c0_14, %c0_15] : memref<1x1x1x256xf32, #tpu.memory_space<vmem>>, vector<1x1x1x256xf32>
    %13 = vector.shape_cast %12 : vector<1x1x1x256xf32> to vector<1x256xf32>
    %14 = vector.shape_cast %11 : vector<1x256xf32> to vector<1x1x1x256xf32>
    tpu.vector_store %arg6[%c0_12, %c0_13, %c0_14, %c0_15], %14 {strides = array<i32>} : memref<1x1x1x256xf32, #tpu.memory_space<vmem>>, vector<1x1x1x256xf32>,
    %15 = arith.mulf %9, %9 : vector<32x256xf32>
    %cst_16 = arith.constant dense<0.000000e+00> : vector<256xf32>
    %16 = vector.multi_reduction <add>, %15, %cst_16 [0] : vector<32x256xf32> to vector<256xf32>
    %17 = vector.shape_cast %16 : vector<256xf32> to vector<1x256xf32>
    %c0_17 = arith.constant 0 : index
    %c0_18 = arith.constant 0 : index
    %c0_19 = arith.constant 0 : index
    %c0_20 = arith.constant 0 : index
    %18 = vector.load %arg7[%c0_17, %c0_18, %c0_19, %c0_20] : memref<1x1x1x256xf32, #tpu.memory_space<vmem>>, vector<1x1x1x256xf32>
    %19 = vector.shape_cast %18 : vector<1x1x1x256xf32> to vector<1x256xf32>
    %20 = vector.shape_cast %17 : vector<1x256xf32> to vector<1x1x1x256xf32>
    tpu.vector_store %arg7[%c0_17, %c0_18, %c0_19, %c0_20], %20 {strides = array<i32>} : memref<1x1x1x256xf32, #tpu.memory_space<vmem>>, vector<1x1x1x256xf32>,
    return
  }
  func.func @transform_0(%arg0: i32, %arg1: i32, %arg2: i32) -> (i32, i32, i32) {
    %c0_i32 = arith.constant 0 : i32
    %c0_i32_0 = arith.constant 0 : i32
    return %arg0, %arg1, %c0_i32 : i32, i32, i32
  }
  func.func @transform_1(%arg0: i32, %arg1: i32, %arg2: i32) -> (i32, i32, i32) {
    %c0_i32 = arith.constant 0 : i32
    %c0_i32_0 = arith.constant 0 : i32
    return %arg0, %c0_i32, %arg2 : i32, i32, i32
  }
  func.func @transform_2(%arg0: i32, %arg1: i32, %arg2: i32) -> (i32, i32, i32) {
    %c0_i32 = arith.constant 0 : i32
    return %arg0, %arg1, %arg2 : i32, i32, i32
  }
  func.func @transform_3(%arg0: i32, %arg1: i32, %arg2: i32) -> (i32, i32, i32, i32) {
    %c0_i32 = arith.constant 0 : i32
    %c0_i32_0 = arith.constant 0 : i32
    return %arg0, %arg1, %c0_i32, %arg2 : i32, i32, i32, i32
  }
  func.func @transform_4(%arg0: i32, %arg1: i32, %arg2: i32) -> (i32, i32, i32, i32) {
    %c0_i32 = arith.constant 0 : i32
    %c0_i32_0 = arith.constant 0 : i32
    return %arg0, %arg1, %c0_i32, %arg2 : i32, i32, i32, i32
  }
}

module attributes {stable_mosaic.version = 11 : i64} {
  func.func @affine_relu_kernel(%arg0: i32, %arg1: i32, %arg2: memref<1x32x256xf32, #tpu.memory_space<vmem>>, %arg3: memref<1x256xf32, #tpu.memory_space<vmem>>, %arg4: memref<1x256xf32, #tpu.memory_space<vmem>>, %arg5: memref<1x32x256xbf16, #tpu.memory_space<vmem>>) attributes {dimension_semantics = [#tpu.dimension_semantics<parallel>, #tpu.dimension_semantics<parallel>], iteration_bounds = array<i64: 4, 1>, scalar_prefetch = 0 : i64, scratch_operands = 0 : i64, tpu.core_type = #tpu.core_type<tc>, window_params = [{transform_indices = @transform_0, window_bounds = array<i64: 1, 32, 256>}, {pipeline_mode = #tpu.pipeline_mode<synchronous>, transform_indices = @transform_1, window_bounds = array<i64: 1, 256>}, {pipeline_mode = #tpu.pipeline_mode<synchronous>, transform_indices = @transform_2, window_bounds = array<i64: 1, 256>}, {transform_indices = @transform_3, window_bounds = array<i64: 1, 32, 256>}]} {
    %c0 = arith.constant 0 : index
    %c0_0 = arith.constant 0 : index
    %c0_1 = arith.constant 0 : index
    %0 = vector.load %arg2[%c0, %c0_0, %c0_1] : memref<1x32x256xf32, #tpu.memory_space<vmem>>, vector<1x32x256xf32>
    %1 = vector.shape_cast %0 : vector<1x32x256xf32> to vector<32x256xf32>
    %c0_2 = arith.constant 0 : index
    %c0_3 = arith.constant 0 : index
    %2 = vector.load %arg3[%c0_2, %c0_3] : memref<1x256xf32, #tpu.memory_space<vmem>>, vector<1x256xf32>
    %3 = vector.broadcast %2 : vector<1x256xf32> to vector<32x256xf32>
    %4 = arith.mulf %1, %3 : vector<32x256xf32>
    %c0_4 = arith.constant 0 : index
    %c0_5 = arith.constant 0 : index
    %5 = vector.load %arg4[%c0_4, %c0_5] : memref<1x256xf32, #tpu.memory_space<vmem>>, vector<1x256xf32>
    %6 = vector.broadcast %5 : vector<1x256xf32> to vector<32x256xf32>
    %7 = arith.addf %4, %6 : vector<32x256xf32>
    %cst = arith.constant 0.000000e+00 : f32
    %8 = vector.broadcast %cst : f32 to vector<32x256xf32>
    %9 = arith.maximumf %7, %8 : vector<32x256xf32>
    %10 = arith.truncf %9 : vector<32x256xf32> to vector<32x256xbf16>
    %c0_6 = arith.constant 0 : index
    %c0_7 = arith.constant 0 : index
    %c0_8 = arith.constant 0 : index
    %11 = vector.load %arg5[%c0_6, %c0_7, %c0_8] : memref<1x32x256xbf16, #tpu.memory_space<vmem>>, vector<1x32x256xbf16>
    %12 = vector.shape_cast %11 : vector<1x32x256xbf16> to vector<32x256xbf16>
    %13 = vector.shape_cast %10 : vector<32x256xbf16> to vector<1x32x256xbf16>
    tpu.vector_store %arg5[%c0_6, %c0_7, %c0_8], %13 {strides = array<i32>} : memref<1x32x256xbf16, #tpu.memory_space<vmem>>, vector<1x32x256xbf16>,
    return
  }
  func.func @transform_0(%arg0: i32, %arg1: i32) -> (i32, i32, i32) {
    %c0_i32 = arith.constant 0 : i32
    %c0_i32_0 = arith.constant 0 : i32
    return %arg0, %arg1, %c0_i32 : i32, i32, i32
  }
  func.func @transform_1(%arg0: i32, %arg1: i32) -> (i32, i32) {
    %c0_i32 = arith.constant 0 : i32
    %c0_i32_0 = arith.constant 0 : i32
    %c0_i32_1 = arith.constant 0 : i32
    return %c0_i32, %c0_i32_0 : i32, i32
  }
  func.func @transform_2(%arg0: i32, %arg1: i32) -> (i32, i32) {
    %c0_i32 = arith.constant 0 : i32
    %c0_i32_0 = arith.constant 0 : i32
    %c0_i32_1 = arith.constant 0 : i32
    return %c0_i32, %c0_i32_0 : i32, i32
  }
  func.func @transform_3(%arg0: i32, %arg1: i32) -> (i32, i32, i32) {
    %c0_i32 = arith.constant 0 : i32
    %c0_i32_0 = arith.constant 0 : i32
    return %arg0, %arg1, %c0_i32 : i32, i32, i32
  }
}

module attributes {stable_mosaic.version = 11 : i64} {
  func.func @mm_stats_kernel(%arg0: i32, %arg1: i32, %arg2: i32, %arg3: memref<1x128x1024xbf16, #tpu.memory_space<vmem>>, %arg4: memref<1x1024x128xbf16, #tpu.memory_space<vmem>>, %arg5: memref<1x128x128xf32, #tpu.memory_space<vmem>>, %arg6: memref<1x1x1x128xf32, #tpu.memory_space<vmem>>, %arg7: memref<1x1x1x128xf32, #tpu.memory_space<vmem>>) attributes {dimension_semantics = [#tpu.dimension_semantics<parallel>, #tpu.dimension_semantics<parallel>, #tpu.dimension_semantics<parallel>], iteration_bounds = array<i64: 4, 1, 1>, scalar_prefetch = 0 : i64, scratch_operands = 0 : i64, tpu.core_type = #tpu.core_type<tc>, window_params = [{transform_indices = @transform_0, window_bounds = array<i64: 1, 128, 1024>}, {transform_indices = @transform_1, window_bounds = array<i64: 1, 1024, 128>}, {transform_indices = @transform_2, window_bounds = array<i64: 1, 128, 128>}, {transform_indices = @transform_3, window_bounds = array<i64: 1, 1, 1, 128>}, {transform_indices = @transform_4, window_bounds = array<i64: 1, 1, 1, 128>}]} {
    %c0 = arith.constant 0 : index
    %c0_0 = arith.constant 0 : index
    %c0_1 = arith.constant 0 : index
    %0 = vector.load %arg3[%c0, %c0_0, %c0_1] : memref<1x128x1024xbf16, #tpu.memory_space<vmem>>, vector<1x128x1024xbf16>
    %1 = vector.shape_cast %0 : vector<1x128x1024xbf16> to vector<128x1024xbf16>
    %c0_2 = arith.constant 0 : index
    %c0_3 = arith.constant 0 : index
    %c0_4 = arith.constant 0 : index
    %2 = vector.load %arg4[%c0_2, %c0_3, %c0_4] : memref<1x1024x128xbf16, #tpu.memory_space<vmem>>, vector<1x1024x128xbf16>
    %3 = vector.shape_cast %2 : vector<1x1024x128xbf16> to vector<1024x128xbf16>
    %cst = arith.constant dense<0.000000e+00> : vector<128x128xf32>
    %4 = tpu.matmul %1, %3, %cst {dimension_numbers = #tpu.dot_dimension_numbers<[1], [0], [0], [1], [0, 0, 1, 1], [], []>} : vector<128x1024xbf16>, vector<1024x128xbf16>, vector<128x128xf32> -> vector<128x128xf32>
    %c0_5 = arith.constant 0 : index
    %c0_6 = arith.constant 0 : index
    %c0_7 = arith.constant 0 : index
    %5 = vector.load %arg5[%c0_5, %c0_6, %c0_7] : memref<1x128x128xf32, #tpu.memory_space<vmem>>, vector<1x128x128xf32>
    %6 = vector.shape_cast %5 : vector<1x128x128xf32> to vector<128x128xf32>
    %7 = vector.shape_cast %4 : vector<128x128xf32> to vector<1x128x128xf32>
    tpu.vector_store %arg5[%c0_5, %c0_6, %c0_7], %7 {strides = array<i32>} : memref<1x128x128xf32, #tpu.memory_space<vmem>>, vector<1x128x128xf32>,
    %c0_8 = arith.constant 0 : index
    %c0_9 = arith.constant 0 : index
    %c0_10 = arith.constant 0 : index
    %8 = vector.load %arg5[%c0_8, %c0_9, %c0_10] : memref<1x128x128xf32, #tpu.memory_space<vmem>>, vector<1x128x128xf32>
    %9 = vector.shape_cast %8 : vector<1x128x128xf32> to vector<128x128xf32>
    %cst_11 = arith.constant dense<0.000000e+00> : vector<128xf32>
    %10 = vector.multi_reduction <add>, %9, %cst_11 [0] : vector<128x128xf32> to vector<128xf32>
    %11 = vector.shape_cast %10 : vector<128xf32> to vector<1x128xf32>
    %c0_12 = arith.constant 0 : index
    %c0_13 = arith.constant 0 : index
    %c0_14 = arith.constant 0 : index
    %c0_15 = arith.constant 0 : index
    %12 = vector.load %arg6[%c0_12, %c0_13, %c0_14, %c0_15] : memref<1x1x1x128xf32, #tpu.memory_space<vmem>>, vector<1x1x1x128xf32>
    %13 = vector.shape_cast %12 : vector<1x1x1x128xf32> to vector<1x128xf32>
    %14 = vector.shape_cast %11 : vector<1x128xf32> to vector<1x1x1x128xf32>
    tpu.vector_store %arg6[%c0_12, %c0_13, %c0_14, %c0_15], %14 {strides = array<i32>} : memref<1x1x1x128xf32, #tpu.memory_space<vmem>>, vector<1x1x1x128xf32>,
    %15 = arith.mulf %9, %9 : vector<128x128xf32>
    %cst_16 = arith.constant dense<0.000000e+00> : vector<128xf32>
    %16 = vector.multi_reduction <add>, %15, %cst_16 [0] : vector<128x128xf32> to vector<128xf32>
    %17 = vector.shape_cast %16 : vector<128xf32> to vector<1x128xf32>
    %c0_17 = arith.constant 0 : index
    %c0_18 = arith.constant 0 : index
    %c0_19 = arith.constant 0 : index
    %c0_20 = arith.constant 0 : index
    %18 = vector.load %arg7[%c0_17, %c0_18, %c0_19, %c0_20] : memref<1x1x1x128xf32, #tpu.memory_space<vmem>>, vector<1x1x1x128xf32>
    %19 = vector.shape_cast %18 : vector<1x1x1x128xf32> to vector<1x128xf32>
    %20 = vector.shape_cast %17 : vector<1x128xf32> to vector<1x1x1x128xf32>
    tpu.vector_store %arg7[%c0_17, %c0_18, %c0_19, %c0_20], %20 {strides = array<i32>} : memref<1x1x1x128xf32, #tpu.memory_space<vmem>>, vector<1x1x1x128xf32>,
    return
  }
  func.func @transform_0(%arg0: i32, %arg1: i32, %arg2: i32) -> (i32, i32, i32) {
    %c0_i32 = arith.constant 0 : i32
    %c0_i32_0 = arith.constant 0 : i32
    return %arg0, %arg1, %c0_i32 : i32, i32, i32
  }
  func.func @transform_1(%arg0: i32, %arg1: i32, %arg2: i32) -> (i32, i32, i32) {
    %c0_i32 = arith.constant 0 : i32
    %c0_i32_0 = arith.constant 0 : i32
    return %arg0, %c0_i32, %arg2 : i32, i32, i32
  }
  func.func @transform_2(%arg0: i32, %arg1: i32, %arg2: i32) -> (i32, i32, i32) {
    %c0_i32 = arith.constant 0 : i32
    return %arg0, %arg1, %arg2 : i32, i32, i32
  }
  func.func @transform_3(%arg0: i32, %arg1: i32, %arg2: i32) -> (i32, i32, i32, i32) {
    %c0_i32 = arith.constant 0 : i32
    %c0_i32_0 = arith.constant 0 : i32
    return %arg0, %arg1, %c0_i32, %arg2 : i32, i32, i32, i32
  }
  func.func @transform_4(%arg0: i32, %arg1: i32, %arg2: i32) -> (i32, i32, i32, i32) {
    %c0_i32 = arith.constant 0 : i32
    %c0_i32_0 = arith.constant 0 : i32
    return %arg0, %arg1, %c0_i32, %arg2 : i32, i32, i32, i32
  }
}

module attributes {stable_mosaic.version = 11 : i64} {
  func.func @affine_relu_kernel(%arg0: i32, %arg1: i32, %arg2: memref<1x128x128xf32, #tpu.memory_space<vmem>>, %arg3: memref<1x128xf32, #tpu.memory_space<vmem>>, %arg4: memref<1x128xf32, #tpu.memory_space<vmem>>, %arg5: memref<1x128x128xbf16, #tpu.memory_space<vmem>>) attributes {dimension_semantics = [#tpu.dimension_semantics<parallel>, #tpu.dimension_semantics<parallel>], iteration_bounds = array<i64: 4, 1>, scalar_prefetch = 0 : i64, scratch_operands = 0 : i64, tpu.core_type = #tpu.core_type<tc>, window_params = [{transform_indices = @transform_0, window_bounds = array<i64: 1, 128, 128>}, {pipeline_mode = #tpu.pipeline_mode<synchronous>, transform_indices = @transform_1, window_bounds = array<i64: 1, 128>}, {pipeline_mode = #tpu.pipeline_mode<synchronous>, transform_indices = @transform_2, window_bounds = array<i64: 1, 128>}, {transform_indices = @transform_3, window_bounds = array<i64: 1, 128, 128>}]} {
    %c0 = arith.constant 0 : index
    %c0_0 = arith.constant 0 : index
    %c0_1 = arith.constant 0 : index
    %0 = vector.load %arg2[%c0, %c0_0, %c0_1] : memref<1x128x128xf32, #tpu.memory_space<vmem>>, vector<1x128x128xf32>
    %1 = vector.shape_cast %0 : vector<1x128x128xf32> to vector<128x128xf32>
    %c0_2 = arith.constant 0 : index
    %c0_3 = arith.constant 0 : index
    %2 = vector.load %arg3[%c0_2, %c0_3] : memref<1x128xf32, #tpu.memory_space<vmem>>, vector<1x128xf32>
    %3 = vector.broadcast %2 : vector<1x128xf32> to vector<128x128xf32>
    %4 = arith.mulf %1, %3 : vector<128x128xf32>
    %c0_4 = arith.constant 0 : index
    %c0_5 = arith.constant 0 : index
    %5 = vector.load %arg4[%c0_4, %c0_5] : memref<1x128xf32, #tpu.memory_space<vmem>>, vector<1x128xf32>
    %6 = vector.broadcast %5 : vector<1x128xf32> to vector<128x128xf32>
    %7 = arith.addf %4, %6 : vector<128x128xf32>
    %cst = arith.constant 0.000000e+00 : f32
    %8 = vector.broadcast %cst : f32 to vector<128x128xf32>
    %9 = arith.maximumf %7, %8 : vector<128x128xf32>
    %10 = arith.truncf %9 : vector<128x128xf32> to vector<128x128xbf16>
    %c0_6 = arith.constant 0 : index
    %c0_7 = arith.constant 0 : index
    %c0_8 = arith.constant 0 : index
    %11 = vector.load %arg5[%c0_6, %c0_7, %c0_8] : memref<1x128x128xbf16, #tpu.memory_space<vmem>>, vector<1x128x128xbf16>
    %12 = vector.shape_cast %11 : vector<1x128x128xbf16> to vector<128x128xbf16>
    %13 = vector.shape_cast %10 : vector<128x128xbf16> to vector<1x128x128xbf16>
    tpu.vector_store %arg5[%c0_6, %c0_7, %c0_8], %13 {strides = array<i32>} : memref<1x128x128xbf16, #tpu.memory_space<vmem>>, vector<1x128x128xbf16>,
    return
  }
  func.func @transform_0(%arg0: i32, %arg1: i32) -> (i32, i32, i32) {
    %c0_i32 = arith.constant 0 : i32
    %c0_i32_0 = arith.constant 0 : i32
    return %arg0, %arg1, %c0_i32 : i32, i32, i32
  }
  func.func @transform_1(%arg0: i32, %arg1: i32) -> (i32, i32) {
    %c0_i32 = arith.constant 0 : i32
    %c0_i32_0 = arith.constant 0 : i32
    %c0_i32_1 = arith.constant 0 : i32
    return %c0_i32, %c0_i32_0 : i32, i32
  }
  func.func @transform_2(%arg0: i32, %arg1: i32) -> (i32, i32) {
    %c0_i32 = arith.constant 0 : i32
    %c0_i32_0 = arith.constant 0 : i32
    %c0_i32_1 = arith.constant 0 : i32
    return %c0_i32, %c0_i32_0 : i32, i32
  }
  func.func @transform_3(%arg0: i32, %arg1: i32) -> (i32, i32, i32) {
    %c0_i32 = arith.constant 0 : i32
    %c0_i32_0 = arith.constant 0 : i32
    return %arg0, %arg1, %c0_i32 : i32, i32, i32
  }
}

module attributes {stable_mosaic.version = 11 : i64} {
  func.func @mm_bias_tanh_kernel(%arg0: i32, %arg1: i32, %arg2: i32, %arg3: memref<1x256x512xbf16, #tpu.memory_space<vmem>>, %arg4: memref<1x512x128xbf16, #tpu.memory_space<vmem>>, %arg5: memref<1x128xf32, #tpu.memory_space<vmem>>, %arg6: memref<1x256x128xbf16, #tpu.memory_space<vmem>>) attributes {dimension_semantics = [#tpu.dimension_semantics<parallel>, #tpu.dimension_semantics<parallel>, #tpu.dimension_semantics<parallel>], iteration_bounds = array<i64: 4, 2, 1>, scalar_prefetch = 0 : i64, scratch_operands = 0 : i64, tpu.core_type = #tpu.core_type<tc>, window_params = [{transform_indices = @transform_0, window_bounds = array<i64: 1, 256, 512>}, {transform_indices = @transform_1, window_bounds = array<i64: 1, 512, 128>}, {transform_indices = @transform_2, window_bounds = array<i64: 1, 128>}, {transform_indices = @transform_3, window_bounds = array<i64: 1, 256, 128>}]} {
    %c0 = arith.constant 0 : index
    %c0_0 = arith.constant 0 : index
    %c0_1 = arith.constant 0 : index
    %0 = vector.load %arg3[%c0, %c0_0, %c0_1] : memref<1x256x512xbf16, #tpu.memory_space<vmem>>, vector<1x256x512xbf16>
    %1 = vector.shape_cast %0 : vector<1x256x512xbf16> to vector<256x512xbf16>
    %c0_2 = arith.constant 0 : index
    %c0_3 = arith.constant 0 : index
    %c0_4 = arith.constant 0 : index
    %2 = vector.load %arg4[%c0_2, %c0_3, %c0_4] : memref<1x512x128xbf16, #tpu.memory_space<vmem>>, vector<1x512x128xbf16>
    %3 = vector.shape_cast %2 : vector<1x512x128xbf16> to vector<512x128xbf16>
    %cst = arith.constant dense<0.000000e+00> : vector<256x128xf32>
    %4 = tpu.matmul %1, %3, %cst {dimension_numbers = #tpu.dot_dimension_numbers<[1], [0], [0], [1], [0, 0, 1, 1], [], []>} : vector<256x512xbf16>, vector<512x128xbf16>, vector<256x128xf32> -> vector<256x128xf32>
    %c0_5 = arith.constant 0 : index
    %c0_6 = arith.constant 0 : index
    %5 = vector.load %arg5[%c0_5, %c0_6] : memref<1x128xf32, #tpu.memory_space<vmem>>, vector<1x128xf32>
    %6 = vector.broadcast %5 : vector<1x128xf32> to vector<256x128xf32>
    %7 = arith.addf %4, %6 : vector<256x128xf32>
    %8 = math.tanh %7 : vector<256x128xf32>
    %9 = arith.truncf %8 : vector<256x128xf32> to vector<256x128xbf16>
    %c0_7 = arith.constant 0 : index
    %c0_8 = arith.constant 0 : index
    %c0_9 = arith.constant 0 : index
    %10 = vector.load %arg6[%c0_7, %c0_8, %c0_9] : memref<1x256x128xbf16, #tpu.memory_space<vmem>>, vector<1x256x128xbf16>
    %11 = vector.shape_cast %10 : vector<1x256x128xbf16> to vector<256x128xbf16>
    %12 = vector.shape_cast %9 : vector<256x128xbf16> to vector<1x256x128xbf16>
    tpu.vector_store %arg6[%c0_7, %c0_8, %c0_9], %12 {strides = array<i32>} : memref<1x256x128xbf16, #tpu.memory_space<vmem>>, vector<1x256x128xbf16>,
    return
  }
  func.func @transform_0(%arg0: i32, %arg1: i32, %arg2: i32) -> (i32, i32, i32) {
    %c0_i32 = arith.constant 0 : i32
    %c0_i32_0 = arith.constant 0 : i32
    return %arg0, %arg1, %c0_i32 : i32, i32, i32
  }
  func.func @transform_1(%arg0: i32, %arg1: i32, %arg2: i32) -> (i32, i32, i32) {
    %c0_i32 = arith.constant 0 : i32
    %c0_i32_0 = arith.constant 0 : i32
    return %arg0, %c0_i32, %arg2 : i32, i32, i32
  }
  func.func @transform_2(%arg0: i32, %arg1: i32, %arg2: i32) -> (i32, i32) {
    %c0_i32 = arith.constant 0 : i32
    %c0_i32_0 = arith.constant 0 : i32
    return %c0_i32, %arg2 : i32, i32
  }
  func.func @transform_3(%arg0: i32, %arg1: i32, %arg2: i32) -> (i32, i32, i32) {
    %c0_i32 = arith.constant 0 : i32
    return %arg0, %arg1, %arg2 : i32, i32, i32
  }
}

</mosaic_0001>

<llo_original>
// kernel: squeeze.55
$region0: #{squeeze.55}
  %s0 = inlined_call_operand.vmem [shape: f32[8192], index: 0, kind: input, shape index: {}]
  %s1 = inlined_call_operand.vmem [shape: f32[16,512], index: 1, kind: output, shape index: {}]
  %v2 = vld [vmem:[%s0] sm:$0xff]
  %3 = vst [vmem:[%s1] ss:$8 sm:$0xf] %v2
  %s4 = scalar_lea.vmem %s1, 4294967265
  %5 = vst [vmem:[%s4] ss:$8 sm:$0xf0] %v2
  %s6 = scalar_lea.vmem %s0, 8
  %v7 = vld [vmem:[%s6] sm:$0xff]
  %s8 = scalar_lea.vmem %s1, 2
  %9 = vst [vmem:[%s8] ss:$8 sm:$0xf] %v7
  %s10 = scalar_lea.vmem %s1, 4294967267
  %11 = vst [vmem:[%s10] ss:$8 sm:$0xf0] %v7
  %s12 = scalar_lea.vmem %s0, 16
  %v13 = vld [vmem:[%s12] sm:$0xff]
  %s14 = scalar_lea.vmem %s1, 4
  %15 = vst [vmem:[%s14] ss:$8 sm:$0xf] %v13
  %s16 = scalar_lea.vmem %s1, 4294967269
  %17 = vst [vmem:[%s16] ss:$8 sm:$0xf0] %v13
  %s18 = scalar_lea.vmem %s0, 24
  %v19 = vld [vmem:[%s18] sm:$0xff]
  %s20 = scalar_lea.vmem %s1, 6
  %21 = vst [vmem:[%s20] ss:$8 sm:$0xf] %v19
  %s22 = scalar_lea.vmem %s1, 4294967271
  %23 = vst [vmem:[%s22] ss:$8 sm:$0xf0] %v19
  %s24 = scalar_lea.vmem %s0, 32
  %v25 = vld [vmem:[%s24] sm:$0xff]
  %s26 = scalar_lea.vmem %s1, 32
  %27 = vst [vmem:[%s26] ss:$8 sm:$0xf] %v25
  %s28 = scalar_lea.vmem %s1, 1
  %29 = vst [vmem:[%s28] ss:$8 sm:$0xf0] %v25
  %s30 = scalar_lea.vmem %s0, 40
  %v31 = vld [vmem:[%s30] sm:$0xff]
  %s32 = scalar_lea.vmem %s1, 34
  %33 = vst [vmem:[%s32] ss:$8 sm:$0xf] %v31
  %s34 = scalar_lea.vmem %s1, 3
  %35 = vst [vmem:[%s34] ss:$8 sm:$0xf0] %v31
  %s36 = scalar_lea.vmem %s0, 48
  %v37 = vld [vmem:[%s36] sm:$0xff]
  %s38 = scalar_lea.vmem %s1, 36
  %39 = vst [vmem:[%s38] ss:$8 sm:$0xf] %v37
  %s40 = scalar_lea.vmem %s1, 5
  %41 = vst [vmem:[%s40] ss:$8 sm:$0xf0] %v37
  %s42 = scalar_lea.vmem %s0, 56
  %v43 = vld [vmem:[%s42] sm:$0xff]
  %s44 = scalar_lea.vmem %s1, 38
  %45 = vst [vmem:[%s44] ss:$8 sm:$0xf] %v43
  %s46 = scalar_lea.vmem %s1, 7
  %47 = vst [vmem:[%s46] ss:$8 sm:$0xf0] %v43

// kernel: generator_forward.7
$region0: #{generator_forward.7}
  #allocation0 [shape = 'u32[]', space=smem, size = 0x4, offset = 0x4, fixed_abs, tag = 'smem constant byte address 0x4 - core index']
  #allocation1 [shape = 'u32[144,128]{1,0:T(1,128)}', space=vmem, size = 0x12000, scoped, tag = 'internal scratch']
  %s0 = inlined_call_operand.vmem [shape: bf16[1,8,128], index: 0, kind: input, shape index: {}]
  %s1 = inlined_call_operand.vmem [shape: bf16[1,128,8192], index: 1, kind: input, shape index: {}]
  %s2 = inlined_call_operand.vmem [shape: f32[1,8,8192], index: 2, kind: output, shape index: {0}]
  %s3 = inlined_call_operand.vmem [shape: f32[1,1,1,8192], index: 3, kind: output, shape index: {1}]
  %s4 = inlined_call_operand.vmem [shape: f32[1,1,1,8192], index: 4, kind: output, shape index: {2}]
  %5 = xla_tuple %s2, %s3, %s4
  %s6 = sld [smem:[#allocation0]]
  $region80: #{generator_forward.7} parent=0
    _
  %s8 = ssub.s32 1, %s6
  %s9 = scalar_select 0, %s8, %s6
  $region1: #{generator_forward.7} parent=0
    #allocation2 [shape = 'u8[262144]{0}', space=vmem, size = 0x40000, scoped, tag = 'input window, operand 1']
    loop: start=0, step=1, limit=18
    $region2: #{generator_forward.7} parent=1 // loop_pre_header
      _
    $region3: #{generator_forward.7} parent=1 // loop_header
      %s11 = sphi 0, %s15
      %p12 = scmp.ge.s32.totalorder %s11, 18
      %s18 = sphi 0, %s37
      %s19 = sphi 0, %s33
      %s20 = sphi 0, %s29
      %s21 = sphi 0, %s18
      %s22 = sphi 0, %s19
      %s23 = sphi 0, %s20
      %s24 = sphi 0, %s21
      %s25 = sphi 0, %s22
      %s26 = sphi 0, %s23
      %s42 = sphi 0, %s44
      %s45 = sphi 0, %s42
      %s46 = sphi 0, %s45
      %s62 = sphi 0, %s46
      %s70 = sphi 0, %s72
      %s73 = sphi 0, %s70
      %s74 = sphi 0, %s73
      %s90 = sphi 0, %s74
      %s100 = sphi 0, %s102
      %s103 = sphi 0, %s100
      %s104 = sphi 0, %s103
      %s120 = sphi 0, %s104
      %s130 = sphi 0, %s132
      %s133 = sphi 0, %s130
      %s134 = sphi 0, %s133
      %s150 = sphi 0, %s134
      %s160 = sphi 0, %s162
      %s163 = sphi 0, %s160
      %s164 = sphi 0, %s163
      %s180 = sphi 0, %s164
    $region4: #{generator_forward.7} parent=1 // loop_header_branch
      %14 = sbr.rel (%p12) target = $region8
    $region5: #{generator_forward.7} parent=1 // loop_body
      %s16 = ssub.s32 %s11, 1
      %s17 = ssub.s32 %s11, 2
      %s27 = sadd.s32 1, %s20
      %p28 = scmp.ge.s32.totalorder %s27, 16
      %s29 = scalar_select %p28, 0, %s27
      %s30 = sadd.s32 1, %s19
      %s31 = scalar_select %p28, %s30, %s19
      %p32 = scmp.ge.s32.totalorder %s31, 1
      %s33 = scalar_select %p32, 0, %s31
      %s34 = sadd.s32 1, %s18
      %s35 = scalar_select %p32, %s34, %s18
      %p36 = scmp.ge.s32.totalorder %s35, 1
      %s37 = scalar_select %p36, 0, %s35
      %s38 = ssub.s32 %s18, %s37
      %s39 = ssub.s32 %s19, %s33
      %s40 = sor.u32 %s38, %s39
      %p41 = scmp.eq.s32.totalorder %s40, 0
      %s43 = sadd.s32 %s42, 1
      %s44 = scalar_select %p41, %s42, %s43
      %p47 = pneg %p41
      %p48 = scmp.eq.s32.totalorder %s11, 15
      %p49 = por %p47, %p48
      %p50 = scmp.ne.s32.totalorder %s42, %s45
      %p51 = scmp.eq.s32.totalorder %s11, 0
      %p52 = por %p50, %p51
      %p53 = scmp.ne.s32.totalorder %s42, %s45
      %p54 = scmp.eq.s32.totalorder %s16, 15
      %p55 = por %p53, %p54
      %p56 = scmp.ne.s32.totalorder %s45, %s46
      %p57 = scmp.eq.s32.totalorder %s16, 0
      %p58 = por %p56, %p57
      %p59 = scmp.ne.s32.totalorder %s45, %s46
      %p60 = scmp.eq.s32.totalorder %s17, 15
      %p61 = por %p59, %p60
      %p63 = scmp.ne.s32.totalorder %s46, %s62
      %p64 = scmp.eq.s32.totalorder %s17, 0
      %p65 = por %p63, %p64
      %s66 = ssub.s32 %s18, %s37
      %s67 = ssub.s32 %s20, %s29
      %s68 = sor.u32 %s66, %s67
      %p69 = scmp.eq.s32.totalorder %s68, 0
      %s71 = sadd.s32 %s70, 1
      %s72 = scalar_select %p69, %s70, %s71
      %p75 = pneg %p69
      %p76 = scmp.eq.s32.totalorder %s11, 15
      %p77 = por %p75, %p76
      %p78 = scmp.ne.s32.totalorder %s70, %s73
      %p79 = scmp.eq.s32.totalorder %s11, 0
      %p80 = por %p78, %p79
      %p81 = scmp.ne.s32.totalorder %s70, %s73
      %p82 = scmp.eq.s32.totalorder %s16, 15
      %p83 = por %p81, %p82
      %p84 = scmp.ne.s32.totalorder %s73, %s74
      %p85 = scmp.eq.s32.totalorder %s16, 0
      %p86 = por %p84, %p85
      %p87 = scmp.ne.s32.totalorder %s73, %s74
      %p88 = scmp.eq.s32.totalorder %s17, 15
      %p89 = por %p87, %p88
      %p91 = scmp.ne.s32.totalorder %s74, %s90
      %p92 = scmp.eq.s32.totalorder %s17, 0
      %p93 = por %p91, %p92
      %s94 = ssub.s32 %s18, %s37
      %s95 = ssub.s32 %s19, %s33
      %s96 = sor.u32 %s94, %s95
      %s97 = ssub.s32 %s20, %s29
      %s98 = sor.u32 %s96, %s97
      %p99 = scmp.eq.s32.totalorder %s98, 0
      %s101 = sadd.s32 %s100, 1
      %s102 = scalar_select %p99, %s100, %s101
      %p105 = pneg %p99
      %p106 = scmp.eq.s32.totalorder %s11, 15
      %p107 = por %p105, %p106
      %p108 = scmp.ne.s32.totalorder %s100, %s103
      %p109 = scmp.eq.s32.totalorder %s11, 0
      %p110 = por %p108, %p109
      %p111 = scmp.ne.s32.totalorder %s100, %s103
      %p112 = scmp.eq.s32.totalorder %s16, 15
      %p113 = por %p111, %p112
      %p114 = scmp.ne.s32.totalorder %s103, %s104
      %p115 = scmp.eq.s32.totalorder %s16, 0
      %p116 = por %p114, %p115
      %p117 = scmp.ne.s32.totalorder %s103, %s104
      %p118 = scmp.eq.s32.totalorder %s17, 15
      %p119 = por %p117, %p118
      %p121 = scmp.ne.s32.totalorder %s104, %s120
      %p122 = scmp.eq.s32.totalorder %s17, 0
      %p123 = por %p121, %p122
      %s124 = ssub.s32 %s18, %s37
      %s125 = ssub.s32 %s19, %s33
      %s126 = sor.u32 %s124, %s125
      %s127 = ssub.s32 %s20, %s29
      %s128 = sor.u32 %s126, %s127
      %p129 = scmp.eq.s32.totalorder %s128, 0
      %s131 = sadd.s32 %s130, 1
      %s132 = scalar_select %p129, %s130, %s131
      %p135 = pneg %p129
      %p136 = scmp.eq.s32.totalorder %s11, 15
      %p137 = por %p135, %p136
      %p138 = scmp.ne.s32.totalorder %s130, %s133
      %p139 = scmp.eq.s32.totalorder %s11, 0
      %p140 = por %p138, %p139
      %p141 = scmp.ne.s32.totalorder %s130, %s133
      %p142 = scmp.eq.s32.totalorder %s16, 15
      %p143 = por %p141, %p142
      %p144 = scmp.ne.s32.totalorder %s133, %s134
      %p145 = scmp.eq.s32.totalorder %s16, 0
      %p146 = por %p144, %p145
      %p147 = scmp.ne.s32.totalorder %s133, %s134
      %p148 = scmp.eq.s32.totalorder %s17, 15
      %p149 = por %p147, %p148
      %p151 = scmp.ne.s32.totalorder %s134, %s150
      %p152 = scmp.eq.s32.totalorder %s17, 0
      %p153 = por %p151, %p152
      %s154 = ssub.s32 %s18, %s37
      %s155 = ssub.s32 %s19, %s33
      %s156 = sor.u32 %s154, %s155
      %s157 = ssub.s32 %s20, %s29
      %s158 = sor.u32 %s156, %s157
      %p159 = scmp.eq.s32.totalorder %s158, 0
      %s161 = sadd.s32 %s160, 1
      %s162 = scalar_select %p159, %s160, %s161
      %p165 = pneg %p159
      %p166 = scmp.eq.s32.totalorder %s11, 15
      %p167 = por %p165, %p166
      %p168 = scmp.ne.s32.totalorder %s160, %s163
      %p169 = scmp.eq.s32.totalorder %s11, 0
      %p170 = por %p168, %p169
      %p171 = scmp.ne.s32.totalorder %s160, %s163
      %p172 = scmp.eq.s32.totalorder %s16, 15
      %p173 = por %p171, %p172
      %p174 = scmp.ne.s32.totalorder %s163, %s164
      %p175 = scmp.eq.s32.totalorder %s16, 0
      %p176 = por %p174, %p175
      %p177 = scmp.ne.s32.totalorder %s163, %s164
      %p178 = scmp.eq.s32.totalorder %s17, 15
      %p179 = por %p177, %p178
      %p181 = scmp.ne.s32.totalorder %s164, %s180
      %p182 = scmp.eq.s32.totalorder %s17, 0
      %p183 = por %p181, %p182
      %p184 = scmp.le.s32.totalorder 1, %s11
      %p185 = scmp.lt.s32.totalorder %s11, 17
      %p186 = pnand %p184, %p185
      %p187 = pneg %p186
      // Predicated region
      $region9: #{generator_forward.7} parent=5 // pred_check
        _
      $region10: #{generator_forward.7} parent=5 // pred_check_branch
        %189 = sbr.rel (%p186) target = $region12
      $region11: #{generator_forward.7} parent=5 // pred_region
        %s190 = ssub.s32 %s11, 1
        // Predicated region
        $region13: #{generator_forward.7} parent=11 // pred_check
          %p191 = pneg %p58
        $region14: #{generator_forward.7} parent=11 // pred_check_branch
          %193 = sbr.rel (%p191) target = $region16
        $region15: #{generator_forward.7} parent=11 // pred_region
          %p194 = scmp.lt.s32.totalorder %s21, 0
          %s195 = scalar_select %p194, %s21, 0
          %p196 = scmp.lt.s32.totalorder %s22, 0
          %s197 = scalar_select %p196, %s22, 0
          %s198 = sadd.s32 %s197, %s195
          %s199 = smul.addr %s198, 4
          %s200 = scalar_lea.vmem %s0, %s199
        $region16: #{generator_forward.7} parent=11 // pred_fallthru
          _
      $region12: #{generator_forward.7} parent=5 // pred_fallthru
        _
      %p201 = scmp.lt.s32.totalorder %s11, 16
      // Predicated region
      $region17: #{generator_forward.7} parent=5 // pred_check
        %p202 = pneg %p201
      $region18: #{generator_forward.7} parent=5 // pred_check_branch
        %204 = sbr.rel (%p202) target = $region20
      $region19: #{generator_forward.7} parent=5 // pred_region
        // Predicated region
        $region21: #{generator_forward.7} parent=19 // pred_check
          %p205 = pneg %p80
        $region22: #{generator_forward.7} parent=19 // pred_check_branch
          %207 = sbr.rel (%p205) target = $region24
        $region23: #{generator_forward.7} parent=19 // pred_region
          %s208 = sand.u32 %s70, 1
          %s209 = sand.u32 %s70, 1
          %s210 = smul.addr %s209, 256
          %s211 = scalar_lea.vmem [#allocation2], %s210
          %s212 = smul.u32 4, %s20
          %s213 = smul.addr %s18, 1024
          %s214 = sadd.s32 %s212, %s213
          %s215 = smul.addr %s214, 4
          %s216 = scalar_lea.vmem %s1, %s215
          // Predicated region
          $region25: #{generator_forward.7} parent=23 // pred_check
            _
          $region26: #{generator_forward.7} parent=23 // pred_check_branch
            %218 = sbr.rel (0) target = $region28
          $region27: #{generator_forward.7} parent=23 // pred_region
            // Predicated region
            $region29: #{generator_forward.7} parent=27 // pred_check
              _
            $region30: #{generator_forward.7} parent=27 // pred_check_branch
              %220 = sbr.rel (0) target = $region32
            $region31: #{generator_forward.7} parent=27 // pred_region
              loop: start=0, step=1, limit=1
              $region33: #{generator_forward.7} parent=31 // loop_pre_header
                _
              $region34: #{generator_forward.7} parent=31 // loop_header
                %s222 = sphi 0, %s226
                %p223 = scmp.ge.s32.totalorder %s222, 1
                %s227 = sphi %s216, %s216
                %s228 = sphi %s211, %s211
              $region35: #{generator_forward.7} parent=31 // loop_header_branch
                %225 = sbr.rel (%p223) target = $region39
              $region36: #{generator_forward.7} parent=31 // loop_body
                %v229 = vld [vmem:[%s227] sm:$0xff]
                %230 = vst [vmem:[%s228] sm:$0xff] %v229
                %v231 = vld [vmem:[%s227 + $0x8] sm:$0xff]
                %232 = vst [vmem:[%s228 + $0x8] sm:$0xff] %v231
                %v233 = vld [vmem:[%s227 + $0x100] sm:$0xff]
                %234 = vst [vmem:[%s228 + $0x10] sm:$0xff] %v233
                %v235 = vld [vmem:[%s227 + $0x108] sm:$0xff]
                %236 = vst [vmem:[%s228 + $0x18] sm:$0xff] %v235
                %v237 = vld [vmem:[%s227 + $0x200] sm:$0xff]
                %238 = vst [vmem:[%s228 + $0x20] sm:$0xff] %v237
                %v239 = vld [vmem:[%s227 + $0x208] sm:$0xff]
                %240 = vst [vmem:[%s228 + $0x28] sm:$0xff] %v239
                %v241 = vld [vmem:[%s227 + $0x300] sm:$0xff]
                %242 = vst [vmem:[%s228 + $0x30] sm:$0xff] %v241
                %v243 = vld [vmem:[%s227 + $0x308] sm:$0xff]
                %244 = vst [vmem:[%s228 + $0x38] sm:$0xff] %v243
                %v245 = vld [vmem:[%s227 + $0x400] sm:$0xff]
                %246 = vst [vmem:[%s228 + $0x40] sm:$0xff] %v245
                %v247 = vld [vmem:[%s227 + $0x408] sm:$0xff]
                %248 = vst [vmem:[%s228 + $0x48] sm:$0xff] %v247
                %v249 = vld [vmem:[%s227 + $0x500] sm:$0xff]
                %250 = vst [vmem:[%s228 + $0x50] sm:$0xff] %v249
                %v251 = vld [vmem:[%s227 + $0x508] sm:$0xff]
                %252 = vst [vmem:[%s228 + $0x58] sm:$0xff] %v251
                %v253 = vld [vmem:[%s227 + $0x600] sm:$0xff]
                %254 = vst [vmem:[%s228 + $0x60] sm:$0xff] %v253
                %v255 = vld [vmem:[%s227 + $0x608] sm:$0xff]
                %256 = vst [vmem:[%s228 + $0x68] sm:$0xff] %v255
                %v257 = vld [vmem:[%s227 + $0x700] sm:$0xff]
                %258 = vst [vmem:[%s228 + $0x70] sm:$0xff] %v257
                %v259 = vld [vmem:[%s227 + $0x708] sm:$0xff]
                %260 = vst [vmem:[%s228 + $0x78] sm:$0xff] %v259
                %v261 = vld [vmem:[%s227 + $0x800] sm:$0xff]
                %262 = vst [vmem:[%s228 + $0x80] sm:$0xff] %v261
                %v263 = vld [vmem:[%s227 + $0x808] sm:$0xff]
                %264 = vst [vmem:[%s228 + $0x88] sm:$0xff] %v263
                %v265 = vld [vmem:[%s227 + $0x900] sm:$0xff]
                %266 = vst [vmem:[%s228 + $0x90] sm:$0xff] %v265
                %v267 = vld [vmem:[%s227 + $0x908] sm:$0xff]
                %268 = vst [vmem:[%s228 + $0x98] sm:$0xff] %v267
                %v269 = vld [vmem:[%s227 + $0xa00] sm:$0xff]
                %270 = vst [vmem:[%s228 + $0xa0] sm:$0xff] %v269
                %v271 = vld [vmem:[%s227 + $0xa08] sm:$0xff]
                %272 = vst [vmem:[%s228 + $0xa8] sm:$0xff] %v271
                %v273 = vld [vmem:[%s227 + $0xb00] sm:$0xff]
                %274 = vst [vmem:[%s228 + $0xb0] sm:$0xff] %v273
                %v275 = vld [vmem:[%s227 + $0xb08] sm:$0xff]
                %276 = vst [vmem:[%s228 + $0xb8] sm:$0xff] %v275
                %v277 = vld [vmem:[%s227 + $0xc00] sm:$0xff]
                %278 = vst [vmem:[%s228 + $0xc0] sm:$0xff] %v277
                %v279 = vld [vmem:[%s227 + $0xc08] sm:$0xff]
                %280 = vst [vmem:[%s228 + $0xc8] sm:$0xff] %v279
                %v281 = vld [vmem:[%s227 + $0xd00] sm:$0xff]
                %282 = vst [vmem:[%s228 + $0xd0] sm:$0xff] %v281
                %v283 = vld [vmem:[%s227 + $0xd08] sm:$0xff]
                %284 = vst [vmem:[%s228 + $0xd8] sm:$0xff] %v283
                %v285 = vld [vmem:[%s227 + $0xe00] sm:$0xff]
                %286 = vst [vmem:[%s228 + $0xe0] sm:$0xff] %v285
                %v287 = vld [vmem:[%s227 + $0xe08] sm:$0xff]
                %288 = vst [vmem:[%s228 + $0xe8] sm:$0xff] %v287
                %v289 = vld [vmem:[%s227 + $0xf00] sm:$0xff]
                %290 = vst [vmem:[%s228 + $0xf0] sm:$0xff] %v289
                %v291 = vld [vmem:[%s227 + $0xf08] sm:$0xff]
                %292 = vst [vmem:[%s228 + $0xf8] sm:$0xff] %v291
              $region37: #{generator_forward.7} parent=31 // loop_footer
                %s226 = sadd.s32 1, %s222
              $region38: #{generator_forward.7} parent=31 // loop_footer_branch
                %221 = sbr.rel target = $region34
              $region39: #{generator_forward.7} parent=31 // loop_exit
                _
            $region32: #{generator_forward.7} parent=27 // pred_fallthru
              _
            // Predicated region
            $region40: #{generator_forward.7} parent=27 // pred_check
              _
            $region41: #{generator_forward.7} parent=27 // pred_check_branch
              %294 = sbr.rel target = $region43
            $region42: #{generator_forward.7} parent=27 // pred_region
              _
            $region43: #{generator_forward.7} parent=27 // pred_fallthru
              _
          $region28: #{generator_forward.7} parent=23 // pred_fallthru
            _
          %295 = vnop
        $region24: #{generator_forward.7} parent=19 // pred_fallthru
          _
      $region20: #{generator_forward.7} parent=5 // pred_fallthru
        _
      %p296 = scmp.le.s32.totalorder 1, %s11
      %p297 = scmp.lt.s32.totalorder %s11, 17
      %p298 = pnand %p296, %p297
      %p299 = pneg %p298
      // Predicated region
      $region44: #{generator_forward.7} parent=5 // pred_check
        _
      $region45: #{generator_forward.7} parent=5 // pred_check_branch
        %301 = sbr.rel (%p298) target = $region47
      $region46: #{generator_forward.7} parent=5 // pred_region
        %s302 = ssub.s32 %s11, 1
        %s303 = sand.u32 %s73, 1
        %s304 = sand.u32 %s73, 1
        %s305 = smul.addr %s304, 256
        %s306 = scalar_lea.vmem [#allocation2], %s305
        // Predicated region
        $region48: #{generator_forward.7} parent=46 // pred_check
          %p307 = pneg %p86
        $region49: #{generator_forward.7} parent=46 // pred_check_branch
          %309 = sbr.rel (%p307) target = $region51
        $region50: #{generator_forward.7} parent=46 // pred_region
          _
        $region51: #{generator_forward.7} parent=46 // pred_fallthru
          _
        %p310 = scmp.lt.s32.totalorder %s21, 0
        %s311 = scalar_select %p310, %s21, 0
        %p312 = scmp.lt.s32.totalorder %s22, 0
        %s313 = scalar_select %p312, %s22, 0
        %s314 = sadd.s32 %s313, %s311
        %s315 = smul.addr %s314, 4
        %s316 = scalar_lea.vmem %s0, %s315
        %p317 = pneg %p58
        %p318 = pneg %p55
        %s319 = sand.u32 %s73, 1
        %s320 = sand.u32 %s73, 1
        %s321 = smul.addr %s320, 256
        %s322 = scalar_lea.vmem [#allocation2], %s321
        %p323 = pneg %p86
        %p324 = pneg %p83
        %p325 = pneg %p116
        %p326 = pneg %p113
        %s327 = smul.u32 4, %s23
        %p328 = scmp.lt.s32.totalorder %s21, 0
        %s329 = scalar_select %p328, %s21, 0
        %p330 = scmp.lt.s32.totalorder %s22, 0
        %s331 = scalar_select %p330, %s22, 0
        %p332 = scmp.lt.s32.totalorder %s327, 63
        %s333 = scalar_select %p332, %s327, 63
        %s334 = smul.addr %s331, 64
        %s335 = sadd.s32 %s333, %s334
        %s336 = smul.addr %s329, 64
        %s337 = sadd.s32 %s335, %s336
        %s338 = smul.addr %s337, 8
        %s339 = scalar_lea.vmem %s2, %s338
        %p340 = pneg %p146
        %p341 = pneg %p143
        %s342 = smul.u32 4, %s23
        %p343 = scmp.lt.s32.totalorder %s21, 0
        %s344 = scalar_select %p343, %s21, 0
        %p345 = scmp.lt.s32.totalorder %s22, 0
        %s346 = scalar_select %p345, %s22, 0
        %p347 = scmp.lt.s32.totalorder %s342, 63
        %s348 = scalar_select %p347, %s342, 63
        %s349 = smul.addr %s346, 64
        %s350 = sadd.s32 %s348, %s349
        %s351 = smul.addr %s344, 64
        %s352 = sadd.s32 %s350, %s351
        %s353 = scalar_lea.vmem %s3, %s352
        %p354 = pneg %p176
        %p355 = pneg %p173
        %s356 = smul.u32 4, %s23
        %p357 = scmp.lt.s32.totalorder %s21, 0
        %s358 = scalar_select %p357, %s21, 0
        %p359 = scmp.lt.s32.totalorder %s22, 0
        %s360 = scalar_select %p359, %s22, 0
        %p361 = scmp.lt.s32.totalorder %s356, 63
        %s362 = scalar_select %p361, %s356, 63
        %s363 = smul.addr %s360, 64
        %s364 = sadd.s32 %s362, %s363
        %s365 = smul.addr %s358, 64
        %s366 = sadd.s32 %s364, %s365
        %s367 = scalar_lea.vmem %s4, %s366
        %p368 = scmp.lt.s32.totalorder %s21, 0
        %s369 = scalar_select %p368, %s21, 0
        %p370 = scmp.lt.s32.totalorder %s22, 0
        %s371 = scalar_select %p370, %s22, 0
        %s372 = sadd.s32 %s371, %s369
        %s373 = smul.addr %s372, 4
        %s374 = scalar_lea.vmem %s0, %s373
        %s375 = smul.u32 4, %s23
        %s376 = smul.u32 4, %s23
        %p377 = scmp.lt.s32.totalorder %s21, 0
        %s378 = scalar_select %p377, %s21, 0
        %p379 = scmp.lt.s32.totalorder %s22, 0
        %s380 = scalar_select %p379, %s22, 0
        %p381 = scmp.lt.s32.totalorder %s376, 63
        %s382 = scalar_select %p381, %s376, 63
        %s383 = smul.addr %s380, 64
        %s384 = sadd.s32 %s382, %s383
        %s385 = smul.addr %s378, 64
        %s386 = sadd.s32 %s384, %s385
        %s387 = smul.addr %s386, 8
        %s388 = scalar_lea.vmem %s2, %s387
        %s389 = smul.u32 4, %s23
        %s390 = smul.u32 4, %s23
        %p391 = scmp.lt.s32.totalorder %s21, 0
        %s392 = scalar_select %p391, %s21, 0
        %p393 = scmp.lt.s32.totalorder %s22, 0
        %s394 = scalar_select %p393, %s22, 0
        %p395 = scmp.lt.s32.totalorder %s390, 63
        %s396 = scalar_select %p395, %s390, 63
        %s397 = smul.addr %s394, 64
        %s398 = sadd.s32 %s396, %s397
        %s399 = smul.addr %s392, 64
        %s400 = sadd.s32 %s398, %s399
        %s401 = scalar_lea.vmem %s3, %s400
        %s402 = smul.u32 4, %s23
        %s403 = smul.u32 4, %s23
        %p404 = scmp.lt.s32.totalorder %s21, 0
        %s405 = scalar_select %p404, %s21, 0
        %p406 = scmp.lt.s32.totalorder %s22, 0
        %s407 = scalar_select %p406, %s22, 0
        %p408 = scmp.lt.s32.totalorder %s403, 63
        %s409 = scalar_select %p408, %s403, 63
        %s410 = smul.addr %s407, 64
        %s411 = sadd.s32 %s409, %s410
        %s412 = smul.addr %s405, 64
        %s413 = sadd.s32 %s411, %s412
        %s414 = scalar_lea.vmem %s4, %s413
        %s415 = smul.u32 4, %s23
        %v417 = vld [vmem:[%s374] sm:$0xf]
        %v418 = vld [vmem:[%s306] sm:$0xff]
        %v419 = vld [vmem:[%s306 + $0x8] sm:$0xff]
        %v420 = vld [vmem:[%s306 + $0x10] sm:$0xff]
        %v421 = vld [vmem:[%s306 + $0x18] sm:$0xff]
        %v422 = vld [vmem:[%s306 + $0x20] sm:$0xff]
        %v423 = vld [vmem:[%s306 + $0x28] sm:$0xff]
        %v424 = vld [vmem:[%s306 + $0x30] sm:$0xff]
        %v425 = vld [vmem:[%s306 + $0x38] sm:$0xff]
        %v426 = vld [vmem:[%s306 + $0x40] sm:$0xff]
        %v427 = vld [vmem:[%s306 + $0x48] sm:$0xff]
        %v428 = vld [vmem:[%s306 + $0x50] sm:$0xff]
        %v429 = vld [vmem:[%s306 + $0x58] sm:$0xff]
        %v430 = vld [vmem:[%s306 + $0x60] sm:$0xff]
        %v431 = vld [vmem:[%s306 + $0x68] sm:$0xff]
        %v432 = vld [vmem:[%s306 + $0x70] sm:$0xff]
        %v433 = vld [vmem:[%s306 + $0x78] sm:$0xff]
        %v434 = vld [vmem:[%s306 + $0x80] sm:$0xff]
        %v435 = vld [vmem:[%s306 + $0x88] sm:$0xff]
        %v436 = vld [vmem:[%s306 + $0x90] sm:$0xff]
        %v437 = vld [vmem:[%s306 + $0x98] sm:$0xff]
        %v438 = vld [vmem:[%s306 + $0xa0] sm:$0xff]
        %v439 = vld [vmem:[%s306 + $0xa8] sm:$0xff]
        %v440 = vld [vmem:[%s306 + $0xb0] sm:$0xff]
        %v441 = vld [vmem:[%s306 + $0xb8] sm:$0xff]
        %v442 = vld [vmem:[%s306 + $0xc0] sm:$0xff]
        %v443 = vld [vmem:[%s306 + $0xc8] sm:$0xff]
        %v444 = vld [vmem:[%s306 + $0xd0] sm:$0xff]
        %v445 = vld [vmem:[%s306 + $0xd8] sm:$0xff]
        %v446 = vld [vmem:[%s306 + $0xe0] sm:$0xff]
        %v447 = vld [vmem:[%s306 + $0xe8] sm:$0xff]
        %v448 = vld [vmem:[%s306 + $0xf0] sm:$0xff]
        %v449 = vld [vmem:[%s306 + $0xf8] sm:$0xff]
        %v482 = vunpack.c.l.b16 %v418
        %v483 = vunpack.c.h.b16 %v418
        %v484 = vunpack.c.l.b16 %v419
        %v485 = vunpack.c.h.b16 %v419
        %v486 = vunpack.c.l.b16 %v420
        %v487 = vunpack.c.h.b16 %v420
        %v488 = vunpack.c.l.b16 %v421
        %v489 = vunpack.c.h.b16 %v421
        %v490 = vunpack.c.l.b16 %v422
        %v491 = vunpack.c.h.b16 %v422
        %v492 = vunpack.c.l.b16 %v423
        %v493 = vunpack.c.h.b16 %v423
        %v494 = vunpack.c.l.b16 %v424
        %v495 = vunpack.c.h.b16 %v424
        %v496 = vunpack.c.l.b16 %v425
        %v497 = vunpack.c.h.b16 %v425
        %v498 = vunpack.c.l.b16 %v426
        %v499 = vunpack.c.h.b16 %v426
        %v500 = vunpack.c.l.b16 %v427
        %v501 = vunpack.c.h.b16 %v427
        %v502 = vunpack.c.l.b16 %v428
        %v503 = vunpack.c.h.b16 %v428
        %v504 = vunpack.c.l.b16 %v429
        %v505 = vunpack.c.h.b16 %v429
        %v506 = vunpack.c.l.b16 %v430
        %v507 = vunpack.c.h.b16 %v430
        %v508 = vunpack.c.l.b16 %v431
        %v509 = vunpack.c.h.b16 %v431
        %v510 = vunpack.c.l.b16 %v432
        %v511 = vunpack.c.h.b16 %v432
        %v512 = vunpack.c.l.b16 %v433
        %v513 = vunpack.c.h.b16 %v433
        %v514 = vunpack.c.l.b16 %v434
        %v515 = vunpack.c.h.b16 %v434
        %v516 = vunpack.c.l.b16 %v435
        %v517 = vunpack.c.h.b16 %v435
        %v518 = vunpack.c.l.b16 %v436
        %v519 = vunpack.c.h.b16 %v436
        %v520 = vunpack.c.l.b16 %v437
        %v521 = vunpack.c.h.b16 %v437
        %v522 = vunpack.c.l.b16 %v438
        %v523 = vunpack.c.h.b16 %v438
        %v524 = vunpack.c.l.b16 %v439
        %v525 = vunpack.c.h.b16 %v439
        %v526 = vunpack.c.l.b16 %v440
        %v527 = vunpack.c.h.b16 %v440
        %v528 = vunpack.c.l.b16 %v441
        %v529 = vunpack.c.h.b16 %v441
        %v530 = vunpack.c.l.b16 %v442
        %v531 = vunpack.c.h.b16 %v442
        %v532 = vunpack.c.l.b16 %v443
        %v533 = vunpack.c.h.b16 %v443
        %v534 = vunpack.c.l.b16 %v444
        %v535 = vunpack.c.h.b16 %v444
        %v536 = vunpack.c.l.b16 %v445
        %v537 = vunpack.c.h.b16 %v445
        %v538 = vunpack.c.l.b16 %v446
        %v539 = vunpack.c.h.b16 %v446
        %v540 = vunpack.c.l.b16 %v447
        %v541 = vunpack.c.h.b16 %v447
        %v542 = vunpack.c.l.b16 %v448
        %v543 = vunpack.c.h.b16 %v448
        %v544 = vunpack.c.l.b16 %v449
        %v545 = vunpack.c.h.b16 %v449
        %v546 = vpack.c.b16 %v486, %v482
        %v547 = vpack.c.b16 %v487, %v483
        %v548 = vpack.c.b16 %v488, %v484
        %v549 = vpack.c.b16 %v489, %v485
        %v550 = vpack.c.b16 %v494, %v490
        %v551 = vpack.c.b16 %v495, %v491
        %v552 = vpack.c.b16 %v496, %v492
        %v553 = vpack.c.b16 %v497, %v493
        %v554 = vpack.c.b16 %v502, %v498
        %v555 = vpack.c.b16 %v503, %v499
        %v556 = vpack.c.b16 %v504, %v500
        %v557 = vpack.c.b16 %v505, %v501
        %v558 = vpack.c.b16 %v510, %v506
        %v559 = vpack.c.b16 %v511, %v507
        %v560 = vpack.c.b16 %v512, %v508
        %v561 = vpack.c.b16 %v513, %v509
        %v562 = vpack.c.b16 %v518, %v514
        %v563 = vpack.c.b16 %v519, %v515
        %v564 = vpack.c.b16 %v520, %v516
        %v565 = vpack.c.b16 %v521, %v517
        %v566 = vpack.c.b16 %v526, %v522
        %v567 = vpack.c.b16 %v527, %v523
        %v568 = vpack.c.b16 %v528, %v524
        %v569 = vpack.c.b16 %v529, %v525
        %v570 = vpack.c.b16 %v534, %v530
        %v571 = vpack.c.b16 %v535, %v531
        %v572 = vpack.c.b16 %v536, %v532
        %v573 = vpack.c.b16 %v537, %v533
        %v574 = vpack.c.b16 %v542, %v538
        %v575 = vpack.c.b16 %v543, %v539
        %v576 = vpack.c.b16 %v544, %v540
        %v577 = vpack.c.b16 %v545, %v541
        %610 = vmatprep.subr.bf16.mxu0 %v547
        %611 = vmatpush1.bf16.msra.mxu0 %v546
        %612 = vmatprep.subr.bf16.mxu0 %v551
        %613 = vmatpush1.bf16.msra.mxu0 %v550
        %614 = vmatprep.subr.bf16.mxu0 %v555
        %615 = vmatpush1.bf16.msra.mxu0 %v554
        %616 = vmatprep.subr.bf16.mxu0 %v559
        %617 = vmatpush1.bf16.msra.mxu0 %v558
        %618 = vmatprep.subr.bf16.mxu0 %v563
        %619 = vmatpush1.bf16.msra.mxu0 %v562
        %620 = vmatprep.subr.bf16.mxu0 %v567
        %621 = vmatpush1.bf16.msra.mxu0 %v566
        %622 = vmatprep.subr.bf16.mxu0 %v571
        %623 = vmatpush1.bf16.msra.mxu0 %v570
        %624 = vmatprep.subr.bf16.mxu0 %v575
        %625 = vmatpush1.bf16.msra.mxu0 %v574
        %626 = vmatprep.subr.bf16.mxu0 0
        %627 = vmatpush1.bf16.msra.mxu0 0
        %628 = vmatprep.subr.bf16.mxu0 0
        %629 = vmatpush1.bf16.msra.mxu0 0
        %630 = vmatprep.subr.bf16.mxu0 0
        %631 = vmatpush1.bf16.msra.mxu0 0
        %632 = vmatprep.subr.bf16.mxu0 0
        %633 = vmatpush1.bf16.msra.mxu0 0
        %634 = vmatprep.subr.bf16.mxu0 0
        %635 = vmatpush1.bf16.msra.mxu0 0
        %636 = vmatprep.subr.bf16.mxu0 0
        %637 = vmatpush1.bf16.msra.mxu0 0
        %638 = vmatprep.subr.bf16.mxu0 0
        %639 = vmatpush1.bf16.msra.mxu0 0
        %640 = vmatprep.subr.bf16.mxu0 0
        %641 = vmatpush1.bf16.msra.mxu0 0
        %642 = vmatprep.mubr.bf16.mxu0 0
        %643 = vmatmul.mubr.bf16.gmra.mrb[0].mxu0 %v417
        %v644 = vpop.f32.mrb[0].mxu0
        %v645 = vadd.f32 0.0, %v644
        %v646 = vpop.f32.mrb[0].mxu0
        %v647 = vadd.f32 0.0, %v646
        %v648 = vpop.f32.mrb[0].mxu0
        %v649 = vpop.f32.mrb[0].mxu0
        %650 = vdwg.mxu0
        %651 = vmatprep.subr.bf16.mxu0 %v549
        %652 = vmatpush1.bf16.msra.mxu0 %v548
        %653 = vmatprep.subr.bf16.mxu0 %v553
        %654 = vmatpush1.bf16.msra.mxu0 %v552
        %655 = vmatprep.subr.bf16.mxu0 %v557
        %656 = vmatpush1.bf16.msra.mxu0 %v556
        %657 = vmatprep.subr.bf16.mxu0 %v561
        %658 = vmatpush1.bf16.msra.mxu0 %v560
        %659 = vmatprep.subr.bf16.mxu0 %v565
        %660 = vmatpush1.bf16.msra.mxu0 %v564
        %661 = vmatprep.subr.bf16.mxu0 %v569
        %662 = vmatpush1.bf16.msra.mxu0 %v568
        %663 = vmatprep.subr.bf16.mxu0 %v573
        %664 = vmatpush1.bf16.msra.mxu0 %v572
        %665 = vmatprep.subr.bf16.mxu0 %v577
        %666 = vmatpush1.bf16.msra.mxu0 %v576
        %667 = vmatprep.subr.bf16.mxu0 0
        %668 = vmatpush1.bf16.msra.mxu0 0
        %669 = vmatprep.subr.bf16.mxu0 0
        %670 = vmatpush1.bf16.msra.mxu0 0
        %671 = vmatprep.subr.bf16.mxu0 0
        %672 = vmatpush1.bf16.msra.mxu0 0
        %673 = vmatprep.subr.bf16.mxu0 0
        %674 = vmatpush1.bf16.msra.mxu0 0
        %675 = vmatprep.subr.bf16.mxu0 0
        %676 = vmatpush1.bf16.msra.mxu0 0
        %677 = vmatprep.subr.bf16.mxu0 0
        %678 = vmatpush1.bf16.msra.mxu0 0
        %679 = vmatprep.subr.bf16.mxu0 0
        %680 = vmatpush1.bf16.msra.mxu0 0
        %681 = vmatprep.subr.bf16.mxu0 0
        %682 = vmatpush1.bf16.msra.mxu0 0
        %683 = vmatprep.mubr.bf16.mxu0 0
        %684 = vmatmul.mubr.bf16.gmra.mrb[0].mxu0 %v417
        %v685 = vpop.f32.mrb[0].mxu0
        %v686 = vadd.f32 0.0, %v685
        %v687 = vpop.f32.mrb[0].mxu0
        %v688 = vadd.f32 0.0, %v687
        %v689 = vpop.f32.mrb[0].mxu0
        %v690 = vpop.f32.mrb[0].mxu0
        %691 = vdwg.mxu0
        %692 = vst [vmem:[%s388] sm:$0xff] %v645
        %693 = vst [vmem:[%s388 + $0x8] sm:$0xff] %v647
        %694 = vst [vmem:[%s388 + $0x10] sm:$0xff] %v686
        %695 = vst [vmem:[%s388 + $0x18] sm:$0xff] %v688
        %v696 = vld [vmem:[%s388] sm:$0xff]
        %v697 = vld [vmem:[%s388 + $0x8] sm:$0xff]
        %v698 = vld [vmem:[%s388 + $0x10] sm:$0xff]
        %v699 = vld [vmem:[%s388 + $0x18] sm:$0xff]
        %v700 = vrot.slane %v696, 4
        %v701 = vadd.f32 %v696, %v700
        %v702 = vrot.slane %v701, 2
        %v703 = vadd.f32 %v701, %v702
        %v704 = vrot.slane %v703, 1
        %v705 = vadd.f32 %v703, %v704
        %v706 = vrot.slane %v697, 4
        %v707 = vadd.f32 %v697, %v706
        %v708 = vrot.slane %v707, 2
        %v709 = vadd.f32 %v707, %v708
        %v710 = vrot.slane %v709, 1
        %v711 = vadd.f32 %v709, %v710
        %v712 = vrot.slane %v698, 4
        %v713 = vadd.f32 %v698, %v712
        %v714 = vrot.slane %v713, 2
        %v715 = vadd.f32 %v713, %v714
        %v716 = vrot.slane %v715, 1
        %v717 = vadd.f32 %v715, %v716
        %v718 = vrot.slane %v699, 4
        %v719 = vadd.f32 %v699, %v718
        %v720 = vrot.slane %v719, 2
        %v721 = vadd.f32 %v719, %v720
        %v722 = vrot.slane %v721, 1
        %v723 = vadd.f32 %v721, %v722
        %v728 = vcombine.low %v705, %v711
        %v729 = vcombine.low %v717, %v723
        %v731 = vunpack.c.l.s4 1966171168
        %v732 = vunpack.c.0.s8 %v731
        %v733 = vlaneseq
        %v734 = vshrl.u32 %v733, 7
        %v735 = vsub.s32 %v732, %v734
        %v736 = vrot.slane %v728, %v735
        %v738 = vunpack.c.l.s4 1966171168
        %v739 = vunpack.c.0.s8 %v738
        %v740 = vlaneseq
        %v741 = vshrl.u32 %v740, 7
        %v742 = vsub.s32 %v739, %v741
        %v743 = vrot.slane %v729, %v742
        %v744 = vcombine.low %v736, %v743
        %v746 = vunpack.c.l.s4 1966171168
        %v747 = vunpack.c.0.s8 %v746
        %v748 = vlaneseq
        %v749 = vshrl.u32 %v748, 7
        %v750 = vsub.s32 %v747, %v749
        %v751 = vrot.slane %v744, %v750
        %v753 = vlaneseq
        %vm754 = vcmp.ge.s32.totalorder %v753, 0
        %vm755 = vcmp.lt.s32.totalorder %v753, 512
        %vm756 = vmand %vm754, %vm755
        %757 = vst.msk [vmem:[%s401] sm:$0xf] %vm756, %v751
        %v758 = vmul.f32 %v696, %v696
        %v759 = vmul.f32 %v697, %v697
        %v760 = vmul.f32 %v698, %v698
        %v761 = vmul.f32 %v699, %v699
        %v762 = vrot.slane %v758, 4
        %v763 = vadd.f32 %v758, %v762
        %v764 = vrot.slane %v763, 2
        %v765 = vadd.f32 %v763, %v764
        %v766 = vrot.slane %v765, 1
        %v767 = vadd.f32 %v765, %v766
        %v768 = vrot.slane %v759, 4
        %v769 = vadd.f32 %v759, %v768
        %v770 = vrot.slane %v769, 2
        %v771 = vadd.f32 %v769, %v770
        %v772 = vrot.slane %v771, 1
        %v773 = vadd.f32 %v771, %v772
        %v774 = vrot.slane %v760, 4
        %v775 = vadd.f32 %v760, %v774
        %v776 = vrot.slane %v775, 2
        %v777 = vadd.f32 %v775, %v776
        %v778 = vrot.slane %v777, 1
        %v779 = vadd.f32 %v777, %v778
        %v780 = vrot.slane %v761, 4
        %v781 = vadd.f32 %v761, %v780
        %v782 = vrot.slane %v781, 2
        %v783 = vadd.f32 %v781, %v782
        %v784 = vrot.slane %v783, 1
        %v785 = vadd.f32 %v783, %v784
        %v790 = vcombine.low %v767, %v773
        %v791 = vcombine.low %v779, %v785
        %v793 = vunpack.c.l.s4 1966171168
        %v794 = vunpack.c.0.s8 %v793
        %v795 = vlaneseq
        %v796 = vshrl.u32 %v795, 7
        %v797 = vsub.s32 %v794, %v796
        %v798 = vrot.slane %v790, %v797
        %v800 = vunpack.c.l.s4 1966171168
        %v801 = vunpack.c.0.s8 %v800
        %v802 = vlaneseq
        %v803 = vshrl.u32 %v802, 7
        %v804 = vsub.s32 %v801, %v803
        %v805 = vrot.slane %v791, %v804
        %v806 = vcombine.low %v798, %v805
        %v808 = vunpack.c.l.s4 1966171168
        %v809 = vunpack.c.0.s8 %v808
        %v810 = vlaneseq
        %v811 = vshrl.u32 %v810, 7
        %v812 = vsub.s32 %v809, %v811
        %v813 = vrot.slane %v806, %v812
        %815 = vst.msk [vmem:[%s414] sm:$0xf] %vm756, %v813
        %s816 = smul.u32 4, %s23
        %p817 = scmp.lt.s32.totalorder %s21, 0
        %s818 = scalar_select %p817, %s21, 0
        %p819 = scmp.lt.s32.totalorder %s22, 0
        %s820 = scalar_select %p819, %s22, 0
        %p821 = scmp.lt.s32.totalorder %s816, 63
        %s822 = scalar_select %p821, %s816, 63
        %s823 = smul.addr %s820, 64
        %s824 = sadd.s32 %s822, %s823
        %s825 = smul.addr %s818, 64
        %s826 = sadd.s32 %s824, %s825
        %s827 = smul.addr %s826, 8
        %s828 = scalar_lea.vmem %s2, %s827
        %s829 = smul.u32 4, %s23
        %p830 = scmp.lt.s32.totalorder %s21, 0
        %s831 = scalar_select %p830, %s21, 0
        %p832 = scmp.lt.s32.totalorder %s22, 0
        %s833 = scalar_select %p832, %s22, 0
        %p834 = scmp.lt.s32.totalorder %s829, 63
        %s835 = scalar_select %p834, %s829, 63
        %s836 = smul.addr %s833, 64
        %s837 = sadd.s32 %s835, %s836
        %s838 = smul.addr %s831, 64
        %s839 = sadd.s32 %s837, %s838
        %s840 = scalar_lea.vmem %s3, %s839
        %s841 = smul.u32 4, %s23
        %p842 = scmp.lt.s32.totalorder %s21, 0
        %s843 = scalar_select %p842, %s21, 0
        %p844 = scmp.lt.s32.totalorder %s22, 0
        %s845 = scalar_select %p844, %s22, 0
        %p846 = scmp.lt.s32.totalorder %s841, 63
        %s847 = scalar_select %p846, %s841, 63
        %s848 = smul.addr %s845, 64
        %s849 = sadd.s32 %s847, %s848
        %s850 = smul.addr %s843, 64
        %s851 = sadd.s32 %s849, %s850
        %s852 = scalar_lea.vmem %s4, %s851
        // Predicated region
        $region52: #{generator_forward.7} parent=46 // pred_check
          %p853 = pneg %p113
        $region53: #{generator_forward.7} parent=46 // pred_check_branch
          %855 = sbr.rel (%p853) target = $region55
        $region54: #{generator_forward.7} parent=46 // pred_region
          %s856 = smul.u32 4, %s23
        $region55: #{generator_forward.7} parent=46 // pred_fallthru
          _
        // Predicated region
        $region56: #{generator_forward.7} parent=46 // pred_check
          %p857 = pneg %p143
        $region57: #{generator_forward.7} parent=46 // pred_check_branch
          %859 = sbr.rel (%p857) target = $region59
        $region58: #{generator_forward.7} parent=46 // pred_region
          %s860 = smul.u32 4, %s23
        $region59: #{generator_forward.7} parent=46 // pred_fallthru
          _
        // Predicated region
        $region60: #{generator_forward.7} parent=46 // pred_check
          %p861 = pneg %p173
        $region61: #{generator_forward.7} parent=46 // pred_check_branch
          %863 = sbr.rel (%p861) target = $region63
        $region62: #{generator_forward.7} parent=46 // pred_region
          %s864 = smul.u32 4, %s23
        $region63: #{generator_forward.7} parent=46 // pred_fallthru
          _
      $region47: #{generator_forward.7} parent=5 // pred_fallthru
        _
      %p865 = scmp.le.s32.totalorder 2, %s11
      // Predicated region
      $region64: #{generator_forward.7} parent=5 // pred_check
        %p866 = pneg %p865
      $region65: #{generator_forward.7} parent=5 // pred_check_branch
        %868 = sbr.rel (%p866) target = $region67
      $region66: #{generator_forward.7} parent=5 // pred_region
        %s869 = ssub.s32 %s11, 2
        // Predicated region
        $region68: #{generator_forward.7} parent=66 // pred_check
          %p870 = pneg %p119
        $region69: #{generator_forward.7} parent=66 // pred_check_branch
          %872 = sbr.rel (%p870) target = $region71
        $region70: #{generator_forward.7} parent=66 // pred_region
          %s873 = smul.u32 4, %s26
          %p874 = scmp.lt.s32.totalorder %s24, 0
          %s875 = scalar_select %p874, %s24, 0
          %p876 = scmp.lt.s32.totalorder %s25, 0
          %s877 = scalar_select %p876, %s25, 0
          %p878 = scmp.lt.s32.totalorder %s873, 63
          %s879 = scalar_select %p878, %s873, 63
          %s880 = smul.addr %s877, 64
          %s881 = sadd.s32 %s879, %s880
          %s882 = smul.addr %s875, 64
          %s883 = sadd.s32 %s881, %s882
          %s884 = smul.addr %s883, 8
          %s885 = scalar_lea.vmem %s2, %s884
        $region71: #{generator_forward.7} parent=66 // pred_fallthru
          _
        // Predicated region
        $region72: #{generator_forward.7} parent=66 // pred_check
          %p886 = pneg %p149
        $region73: #{generator_forward.7} parent=66 // pred_check_branch
          %888 = sbr.rel (%p886) target = $region75
        $region74: #{generator_forward.7} parent=66 // pred_region
          %s889 = smul.u32 4, %s26
          %p890 = scmp.lt.s32.totalorder %s24, 0
          %s891 = scalar_select %p890, %s24, 0
          %p892 = scmp.lt.s32.totalorder %s25, 0
          %s893 = scalar_select %p892, %s25, 0
          %p894 = scmp.lt.s32.totalorder %s889, 63
          %s895 = scalar_select %p894, %s889, 63
          %s896 = smul.addr %s893, 64
          %s897 = sadd.s32 %s895, %s896
          %s898 = smul.addr %s891, 64
          %s899 = sadd.s32 %s897, %s898
          %s900 = scalar_lea.vmem %s3, %s899
        $region75: #{generator_forward.7} parent=66 // pred_fallthru
          _
        // Predicated region
        $region76: #{generator_forward.7} parent=66 // pred_check
          %p901 = pneg %p179
        $region77: #{generator_forward.7} parent=66 // pred_check_branch
          %903 = sbr.rel (%p901) target = $region79
        $region78: #{generator_forward.7} parent=66 // pred_region
          %s904 = smul.u32 4, %s26
          %p905 = scmp.lt.s32.totalorder %s24, 0
          %s906 = scalar_select %p905, %s24, 0
          %p907 = scmp.lt.s32.totalorder %s25, 0
          %s908 = scalar_select %p907, %s25, 0
          %p909 = scmp.lt.s32.totalorder %s904, 63
          %s910 = scalar_select %p909, %s904, 63
          %s911 = smul.addr %s908, 64
          %s912 = sadd.s32 %s910, %s911
          %s913 = smul.addr %s906, 64
          %s914 = sadd.s32 %s912, %s913
          %s915 = scalar_lea.vmem %s4, %s914
        $region79: #{generator_forward.7} parent=66 // pred_fallthru
          _
      $region67: #{generator_forward.7} parent=5 // pred_fallthru
        _
    $region6: #{generator_forward.7} parent=1 // loop_footer
      %s15 = sadd.s32 1, %s11
    $region7: #{generator_forward.7} parent=1 // loop_footer_branch
      %10 = sbr.rel target = $region3
    $region8: #{generator_forward.7} parent=1 // loop_exit
      _

// kernel: squeeze.57
$region0: #{squeeze.57}
  %s0 = inlined_call_operand.vmem [shape: bf16[1,2,8192], index: 0, kind: input, shape index: {}]
  %s1 = inlined_call_operand.vmem [shape: bf16[2,4,4,512], index: 1, kind: output, shape index: {}]
  $region1: #{squeeze.57} parent=0
    #allocation0 [shape = 'u8[131072]{0}', space=vmem, size = 0x20000, scoped, tag = 'scoped mem for output reshape']
    #allocation1 [shape = 'u8[262144]{0}', space=vmem, size = 0x40000, scoped, tag = 'scoped mem for input reshape']
    %s3 = smul.u32 1, 2
    %s4 = sshllo.u32 0, %s3
    %s5 = smul.addr 1, 63
    %s6 = scalar_lea.vmem %s0, %s5
    %s7 = sshrl.u32 %s4, 1
    %s8 = sor.u32 %s4, %s7
    %s9 = sand.u32 %s8, 85
    %s10 = sshrl.u32 %s9, 1
    %s11 = sor.u32 %s9, %s10
    %s12 = sand.u32 51, %s11
    %s13 = sshrl.u32 %s12, 2
    %s14 = sor.u32 %s12, %s13
    %s15 = sand.u32 15, %s14
    %v16 = vld [vmem:[%s6] sm:%s15]
    %v17 = vunpack.c.l.bf16 %v16
    %v18 = vunpack.c.h.bf16 %v16
    %s19 = scalar_lea.vmem [#allocation1], 504
    %20 = vst [vmem:[%s19] sm:%s4] %v17
    %s21 = smul.addr 1, 62
    %s22 = scalar_lea.vmem %s0, %s21
    %s23 = sshrl.u32 %s4, 1
    %s24 = sor.u32 %s4, %s23
    %s25 = sand.u32 %s24, 85
    %s26 = sshrl.u32 %s25, 1
    %s27 = sor.u32 %s25, %s26
    %s28 = sand.u32 51, %s27
    %s29 = sshrl.u32 %s28, 2
    %s30 = sor.u32 %s28, %s29
    %s31 = sand.u32 15, %s30
    %v32 = vld [vmem:[%s22] sm:%s31]
    %v33 = vunpack.c.l.bf16 %v32
    %v34 = vunpack.c.h.bf16 %v32
    %s35 = scalar_lea.vmem [#allocation1], 496
    %36 = vst [vmem:[%s35] sm:%s4] %v33
    %s37 = smul.addr 1, 61
    %s38 = scalar_lea.vmem %s0, %s37
    %s39 = sshrl.u32 %s4, 1
    %s40 = sor.u32 %s4, %s39
    %s41 = sand.u32 %s40, 85
    %s42 = sshrl.u32 %s41, 1
    %s43 = sor.u32 %s41, %s42
    %s44 = sand.u32 51, %s43
    %s45 = sshrl.u32 %s44, 2
    %s46 = sor.u32 %s44, %s45
    %s47 = sand.u32 15, %s46
    %v48 = vld [vmem:[%s38] sm:%s47]
    %v49 = vunpack.c.l.bf16 %v48
    %v50 = vunpack.c.h.bf16 %v48
    %s51 = scalar_lea.vmem [#allocation1], 488
    %52 = vst [vmem:[%s51] sm:%s4] %v49
    %s53 = smul.addr 1, 60
    %s54 = scalar_lea.vmem %s0, %s53
    %s55 = sshrl.u32 %s4, 1
    %s56 = sor.u32 %s4, %s55
    %s57 = sand.u32 %s56, 85
    %s58 = sshrl.u32 %s57, 1
    %s59 = sor.u32 %s57, %s58
    %s60 = sand.u32 51, %s59
    %s61 = sshrl.u32 %s60, 2
    %s62 = sor.u32 %s60, %s61
    %s63 = sand.u32 15, %s62
    %v64 = vld [vmem:[%s54] sm:%s63]
    %v65 = vunpack.c.l.bf16 %v64
    %v66 = vunpack.c.h.bf16 %v64
    %s67 = scalar_lea.vmem [#allocation1], 480
    %68 = vst [vmem:[%s67] sm:%s4] %v65
    %s69 = smul.addr 1, 59
    %s70 = scalar_lea.vmem %s0, %s69
    %s71 = sshrl.u32 %s4, 1
    %s72 = sor.u32 %s4, %s71
    %s73 = sand.u32 %s72, 85
    %s74 = sshrl.u32 %s73, 1
    %s75 = sor.u32 %s73, %s74
    %s76 = sand.u32 51, %s75
    %s77 = sshrl.u32 %s76, 2
    %s78 = sor.u32 %s76, %s77
    %s79 = sand.u32 15, %s78
    %v80 = vld [vmem:[%s70] sm:%s79]
    %v81 = vunpack.c.l.bf16 %v80
    %v82 = vunpack.c.h.bf16 %v80
    %s83 = scalar_lea.vmem [#allocation1], 472
    %84 = vst [vmem:[%s83] sm:%s4] %v81
    %s85 = smul.addr 1, 58
    %s86 = scalar_lea.vmem %s0, %s85
    %s87 = sshrl.u32 %s4, 1
    %s88 = sor.u32 %s4, %s87
    %s89 = sand.u32 %s88, 85
    %s90 = sshrl.u32 %s89, 1
    %s91 = sor.u32 %s89, %s90
    %s92 = sand.u32 51, %s91
    %s93 = sshrl.u32 %s92, 2
    %s94 = sor.u32 %s92, %s93
    %s95 = sand.u32 15, %s94
    %v96 = vld [vmem:[%s86] sm:%s95]
    %v97 = vunpack.c.l.bf16 %v96
    %v98 = vunpack.c.h.bf16 %v96
    %s99 = scalar_lea.vmem [#allocation1], 464
    %100 = vst [vmem:[%s99] sm:%s4] %v97
    %s101 = smul.addr 1, 57
    %s102 = scalar_lea.vmem %s0, %s101
    %s103 = sshrl.u32 %s4, 1
    %s104 = sor.u32 %s4, %s103
    %s105 = sand.u32 %s104, 85
    %s106 = sshrl.u32 %s105, 1
    %s107 = sor.u32 %s105, %s106
    %s108 = sand.u32 51, %s107
    %s109 = sshrl.u32 %s108, 2
    %s110 = sor.u32 %s108, %s109
    %s111 = sand.u32 15, %s110
    %v112 = vld [vmem:[%s102] sm:%s111]
    %v113 = vunpack.c.l.bf16 %v112
    %v114 = vunpack.c.h.bf16 %v112
    %s115 = scalar_lea.vmem [#allocation1], 456
    %116 = vst [vmem:[%s115] sm:%s4] %v113
    %s117 = smul.addr 1, 56
    %s118 = scalar_lea.vmem %s0, %s117
    %s119 = sshrl.u32 %s4, 1
    %s120 = sor.u32 %s4, %s119
    %s121 = sand.u32 %s120, 85
    %s122 = sshrl.u32 %s121, 1
    %s123 = sor.u32 %s121, %s122
    %s124 = sand.u32 51, %s123
    %s125 = sshrl.u32 %s124, 2
    %s126 = sor.u32 %s124, %s125
    %s127 = sand.u32 15, %s126
    %v128 = vld [vmem:[%s118] sm:%s127]
    %v129 = vunpack.c.l.bf16 %v128
    %v130 = vunpack.c.h.bf16 %v128
    %s131 = scalar_lea.vmem [#allocation1], 448
    %132 = vst [vmem:[%s131] sm:%s4] %v129
    %s133 = smul.addr 1, 55
    %s134 = scalar_lea.vmem %s0, %s133
    %s135 = sshrl.u32 %s4, 1
    %s136 = sor.u32 %s4, %s135
    %s137 = sand.u32 %s136, 85
    %s138 = sshrl.u32 %s137, 1
    %s139 = sor.u32 %s137, %s138
    %s140 = sand.u32 51, %s139
    %s141 = sshrl.u32 %s140, 2
    %s142 = sor.u32 %s140, %s141
    %s143 = sand.u32 15, %s142
    %v144 = vld [vmem:[%s134] sm:%s143]
    %v145 = vunpack.c.l.bf16 %v144
    %v146 = vunpack.c.h.bf16 %v144
    %s147 = scalar_lea.vmem [#allocation1], 440
    %148 = vst [vmem:[%s147] sm:%s4] %v145
    %s149 = smul.addr 1, 54
    %s150 = scalar_lea.vmem %s0, %s149
    %s151 = sshrl.u32 %s4, 1
    %s152 = sor.u32 %s4, %s151
    %s153 = sand.u32 %s152, 85
    %s154 = sshrl.u32 %s153, 1
    %s155 = sor.u32 %s153, %s154
    %s156 = sand.u32 51, %s155
    %s157 = sshrl.u32 %s156, 2
    %s158 = sor.u32 %s156, %s157
    %s159 = sand.u32 15, %s158
    %v160 = vld [vmem:[%s150] sm:%s159]
    %v161 = vunpack.c.l.bf16 %v160
    %v162 = vunpack.c.h.bf16 %v160
    %s163 = scalar_lea.vmem [#allocation1], 432
    %164 = vst [vmem:[%s163] sm:%s4] %v161
    %s165 = smul.addr 1, 53
    %s166 = scalar_lea.vmem %s0, %s165
    %s167 = sshrl.u32 %s4, 1
    %s168 = sor.u32 %s4, %s167
    %s169 = sand.u32 %s168, 85
    %s170 = sshrl.u32 %s169, 1
    %s171 = sor.u32 %s169, %s170
    %s172 = sand.u32 51, %s171
    %s173 = sshrl.u32 %s172, 2
    %s174 = sor.u32 %s172, %s173
    %s175 = sand.u32 15, %s174
    %v176 = vld [vmem:[%s166] sm:%s175]
    %v177 = vunpack.c.l.bf16 %v176
    %v178 = vunpack.c.h.bf16 %v176
    %s179 = scalar_lea.vmem [#allocation1], 424
    %180 = vst [vmem:[%s179] sm:%s4] %v177
    %s181 = smul.addr 1, 52
    %s182 = scalar_lea.vmem %s0, %s181
    %s183 = sshrl.u32 %s4, 1
    %s184 = sor.u32 %s4, %s183
    %s185 = sand.u32 %s184, 85
    %s186 = sshrl.u32 %s185, 1
    %s187 = sor.u32 %s185, %s186
    %s188 = sand.u32 51, %s187
    %s189 = sshrl.u32 %s188, 2
    %s190 = sor.u32 %s188, %s189
    %s191 = sand.u32 15, %s190
    %v192 = vld [vmem:[%s182] sm:%s191]
    %v193 = vunpack.c.l.bf16 %v192
    %v194 = vunpack.c.h.bf16 %v192
    %s195 = scalar_lea.vmem [#allocation1], 416
    %196 = vst [vmem:[%s195] sm:%s4] %v193
    %s197 = smul.addr 1, 51
    %s198 = scalar_lea.vmem %s0, %s197
    %s199 = sshrl.u32 %s4, 1
    %s200 = sor.u32 %s4, %s199
    %s201 = sand.u32 %s200, 85
    %s202 = sshrl.u32 %s201, 1
    %s203 = sor.u32 %s201, %s202
    %s204 = sand.u32 51, %s203
    %s205 = sshrl.u32 %s204, 2
    %s206 = sor.u32 %s204, %s205
    %s207 = sand.u32 15, %s206
    %v208 = vld [vmem:[%s198] sm:%s207]
    %v209 = vunpack.c.l.bf16 %v208
    %v210 = vunpack.c.h.bf16 %v208
    %s211 = scalar_lea.vmem [#allocation1], 408
    %212 = vst [vmem:[%s211] sm:%s4] %v209
    %s213 = smul.addr 1, 50
    %s214 = scalar_lea.vmem %s0, %s213
    %s215 = sshrl.u32 %s4, 1
    %s216 = sor.u32 %s4, %s215
    %s217 = sand.u32 %s216, 85
    %s218 = sshrl.u32 %s217, 1
    %s219 = sor.u32 %s217, %s218
    %s220 = sand.u32 51, %s219
    %s221 = sshrl.u32 %s220, 2
    %s222 = sor.u32 %s220, %s221
    %s223 = sand.u32 15, %s222
    %v224 = vld [vmem:[%s214] sm:%s223]
    %v225 = vunpack.c.l.bf16 %v224
    %v226 = vunpack.c.h.bf16 %v224
    %s227 = scalar_lea.vmem [#allocation1], 400
    %228 = vst [vmem:[%s227] sm:%s4] %v225
    %s229 = smul.addr 1, 49
    %s230 = scalar_lea.vmem %s0, %s229
    %s231 = sshrl.u32 %s4, 1
    %s232 = sor.u32 %s4, %s231
    %s233 = sand.u32 %s232, 85
    %s234 = sshrl.u32 %s233, 1
    %s235 = sor.u32 %s233, %s234
    %s236 = sand.u32 51, %s235
    %s237 = sshrl.u32 %s236, 2
    %s238 = sor.u32 %s236, %s237
    %s239 = sand.u32 15, %s238
    %v240 = vld [vmem:[%s230] sm:%s239]
    %v241 = vunpack.c.l.bf16 %v240
    %v242 = vunpack.c.h.bf16 %v240
    %s243 = scalar_lea.vmem [#allocation1], 392
    %244 = vst [vmem:[%s243] sm:%s4] %v241
    %s245 = smul.addr 1, 48
    %s246 = scalar_lea.vmem %s0, %s245
    %s247 = sshrl.u32 %s4, 1
    %s248 = sor.u32 %s4, %s247
    %s249 = sand.u32 %s248, 85
    %s250 = sshrl.u32 %s249, 1
    %s251 = sor.u32 %s249, %s250
    %s252 = sand.u32 51, %s251
    %s253 = sshrl.u32 %s252, 2
    %s254 = sor.u32 %s252, %s253
    %s255 = sand.u32 15, %s254
    %v256 = vld [vmem:[%s246] sm:%s255]
    %v257 = vunpack.c.l.bf16 %v256
    %v258 = vunpack.c.h.bf16 %v256
    %s259 = scalar_lea.vmem [#allocation1], 384
    %260 = vst [vmem:[%s259] sm:%s4] %v257
    %s261 = smul.addr 1, 47
    %s262 = scalar_lea.vmem %s0, %s261
    %s263 = sshrl.u32 %s4, 1
    %s264 = sor.u32 %s4, %s263
    %s265 = sand.u32 %s264, 85
    %s266 = sshrl.u32 %s265, 1
    %s267 = sor.u32 %s265, %s266
    %s268 = sand.u32 51, %s267
    %s269 = sshrl.u32 %s268, 2
    %s270 = sor.u32 %s268, %s269
    %s271 = sand.u32 15, %s270
    %v272 = vld [vmem:[%s262] sm:%s271]
    %v273 = vunpack.c.l.bf16 %v272
    %v274 = vunpack.c.h.bf16 %v272
    %s275 = scalar_lea.vmem [#allocation1], 376
    %276 = vst [vmem:[%s275] sm:%s4] %v273
    %s277 = smul.addr 1, 46
    %s278 = scalar_lea.vmem %s0, %s277
    %s279 = sshrl.u32 %s4, 1
    %s280 = sor.u32 %s4, %s279
    %s281 = sand.u32 %s280, 85
    %s282 = sshrl.u32 %s281, 1
    %s283 = sor.u32 %s281, %s282
    %s284 = sand.u32 51, %s283
    %s285 = sshrl.u32 %s284, 2
    %s286 = sor.u32 %s284, %s285
    %s287 = sand.u32 15, %s286
    %v288 = vld [vmem:[%s278] sm:%s287]
    %v289 = vunpack.c.l.bf16 %v288
    %v290 = vunpack.c.h.bf16 %v288
    %s291 = scalar_lea.vmem [#allocation1], 368
    %292 = vst [vmem:[%s291] sm:%s4] %v289
    %s293 = smul.addr 1, 45
    %s294 = scalar_lea.vmem %s0, %s293
    %s295 = sshrl.u32 %s4, 1
    %s296 = sor.u32 %s4, %s295
    %s297 = sand.u32 %s296, 85
    %s298 = sshrl.u32 %s297, 1
    %s299 = sor.u32 %s297, %s298
    %s300 = sand.u32 51, %s299
    %s301 = sshrl.u32 %s300, 2
    %s302 = sor.u32 %s300, %s301
    %s303 = sand.u32 15, %s302
    %v304 = vld [vmem:[%s294] sm:%s303]
    %v305 = vunpack.c.l.bf16 %v304
    %v306 = vunpack.c.h.bf16 %v304
    %s307 = scalar_lea.vmem [#allocation1], 360
    %308 = vst [vmem:[%s307] sm:%s4] %v305
    %s309 = smul.addr 1, 44
    %s310 = scalar_lea.vmem %s0, %s309
    %s311 = sshrl.u32 %s4, 1
    %s312 = sor.u32 %s4, %s311
    %s313 = sand.u32 %s312, 85
    %s314 = sshrl.u32 %s313, 1
    %s315 = sor.u32 %s313, %s314
    %s316 = sand.u32 51, %s315
    %s317 = sshrl.u32 %s316, 2
    %s318 = sor.u32 %s316, %s317
    %s319 = sand.u32 15, %s318
    %v320 = vld [vmem:[%s310] sm:%s319]
    %v321 = vunpack.c.l.bf16 %v320
    %v322 = vunpack.c.h.bf16 %v320
    %s323 = scalar_lea.vmem [#allocation1], 352
    %324 = vst [vmem:[%s323] sm:%s4] %v321
    %s325 = smul.addr 1, 43
    %s326 = scalar_lea.vmem %s0, %s325
    %s327 = sshrl.u32 %s4, 1
    %s328 = sor.u32 %s4, %s327
    %s329 = sand.u32 %s328, 85
    %s330 = sshrl.u32 %s329, 1
    %s331 = sor.u32 %s329, %s330
    %s332 = sand.u32 51, %s331
    %s333 = sshrl.u32 %s332, 2
    %s334 = sor.u32 %s332, %s333
    %s335 = sand.u32 15, %s334
    %v336 = vld [vmem:[%s326] sm:%s335]
    %v337 = vunpack.c.l.bf16 %v336
    %v338 = vunpack.c.h.bf16 %v336
    %s339 = scalar_lea.vmem [#allocation1], 344
    %340 = vst [vmem:[%s339] sm:%s4] %v337
    %s341 = smul.addr 1, 42
    %s342 = scalar_lea.vmem %s0, %s341
    %s343 = sshrl.u32 %s4, 1
    %s344 = sor.u32 %s4, %s343
    %s345 = sand.u32 %s344, 85
    %s346 = sshrl.u32 %s345, 1
    %s347 = sor.u32 %s345, %s346
    %s348 = sand.u32 51, %s347
    %s349 = sshrl.u32 %s348, 2
    %s350 = sor.u32 %s348, %s349
    %s351 = sand.u32 15, %s350
    %v352 = vld [vmem:[%s342] sm:%s351]
    %v353 = vunpack.c.l.bf16 %v352
    %v354 = vunpack.c.h.bf16 %v352
    %s355 = scalar_lea.vmem [#allocation1], 336
    %356 = vst [vmem:[%s355] sm:%s4] %v353
    %s357 = smul.addr 1, 41
    %s358 = scalar_lea.vmem %s0, %s357
    %s359 = sshrl.u32 %s4, 1
    %s360 = sor.u32 %s4, %s359
    %s361 = sand.u32 %s360, 85
    %s362 = sshrl.u32 %s361, 1
    %s363 = sor.u32 %s361, %s362
    %s364 = sand.u32 51, %s363
    %s365 = sshrl.u32 %s364, 2
    %s366 = sor.u32 %s364, %s365
    %s367 = sand.u32 15, %s366
    %v368 = vld [vmem:[%s358] sm:%s367]
    %v369 = vunpack.c.l.bf16 %v368
    %v370 = vunpack.c.h.bf16 %v368
    %s371 = scalar_lea.vmem [#allocation1], 328
    %372 = vst [vmem:[%s371] sm:%s4] %v369
    %s373 = smul.addr 1, 40
    %s374 = scalar_lea.vmem %s0, %s373
    %s375 = sshrl.u32 %s4, 1
    %s376 = sor.u32 %s4, %s375
    %s377 = sand.u32 %s376, 85
    %s378 = sshrl.u32 %s377, 1
    %s379 = sor.u32 %s377, %s378
    %s380 = sand.u32 51, %s379
    %s381 = sshrl.u32 %s380, 2
    %s382 = sor.u32 %s380, %s381
    %s383 = sand.u32 15, %s382
    %v384 = vld [vmem:[%s374] sm:%s383]
    %v385 = vunpack.c.l.bf16 %v384
    %v386 = vunpack.c.h.bf16 %v384
    %s387 = scalar_lea.vmem [#allocation1], 320
    %388 = vst [vmem:[%s387] sm:%s4] %v385
    %s389 = smul.addr 1, 39
    %s390 = scalar_lea.vmem %s0, %s389
    %s391 = sshrl.u32 %s4, 1
    %s392 = sor.u32 %s4, %s391
    %s393 = sand.u32 %s392, 85
    %s394 = sshrl.u32 %s393, 1
    %s395 = sor.u32 %s393, %s394
    %s396 = sand.u32 51, %s395
    %s397 = sshrl.u32 %s396, 2
    %s398 = sor.u32 %s396, %s397
    %s399 = sand.u32 15, %s398
    %v400 = vld [vmem:[%s390] sm:%s399]
    %v401 = vunpack.c.l.bf16 %v400
    %v402 = vunpack.c.h.bf16 %v400
    %s403 = scalar_lea.vmem [#allocation1], 312
    %404 = vst [vmem:[%s403] sm:%s4] %v401
    %s405 = smul.addr 1, 38
    %s406 = scalar_lea.vmem %s0, %s405
    %s407 = sshrl.u32 %s4, 1
    %s408 = sor.u32 %s4, %s407
    %s409 = sand.u32 %s408, 85
    %s410 = sshrl.u32 %s409, 1
    %s411 = sor.u32 %s409, %s410
    %s412 = sand.u32 51, %s411
    %s413 = sshrl.u32 %s412, 2
    %s414 = sor.u32 %s412, %s413
    %s415 = sand.u32 15, %s414
    %v416 = vld [vmem:[%s406] sm:%s415]
    %v417 = vunpack.c.l.bf16 %v416
    %v418 = vunpack.c.h.bf16 %v416
    %s419 = scalar_lea.vmem [#allocation1], 304
    %420 = vst [vmem:[%s419] sm:%s4] %v417
    %s421 = smul.addr 1, 37
    %s422 = scalar_lea.vmem %s0, %s421
    %s423 = sshrl.u32 %s4, 1
    %s424 = sor.u32 %s4, %s423
    %s425 = sand.u32 %s424, 85
    %s426 = sshrl.u32 %s425, 1
    %s427 = sor.u32 %s425, %s426
    %s428 = sand.u32 51, %s427
    %s429 = sshrl.u32 %s428, 2
    %s430 = sor.u32 %s428, %s429
    %s431 = sand.u32 15, %s430
    %v432 = vld [vmem:[%s422] sm:%s431]
    %v433 = vunpack.c.l.bf16 %v432
    %v434 = vunpack.c.h.bf16 %v432
    %s435 = scalar_lea.vmem [#allocation1], 296
    %436 = vst [vmem:[%s435] sm:%s4] %v433
    %s437 = smul.addr 1, 36
    %s438 = scalar_lea.vmem %s0, %s437
    %s439 = sshrl.u32 %s4, 1
    %s440 = sor.u32 %s4, %s439
    %s441 = sand.u32 %s440, 85
    %s442 = sshrl.u32 %s441, 1
    %s443 = sor.u32 %s441, %s442
    %s444 = sand.u32 51, %s443
    %s445 = sshrl.u32 %s444, 2
    %s446 = sor.u32 %s444, %s445
    %s447 = sand.u32 15, %s446
    %v448 = vld [vmem:[%s438] sm:%s447]
    %v449 = vunpack.c.l.bf16 %v448
    %v450 = vunpack.c.h.bf16 %v448
    %s451 = scalar_lea.vmem [#allocation1], 288
    %452 = vst [vmem:[%s451] sm:%s4] %v449
    %s453 = smul.addr 1, 35
    %s454 = scalar_lea.vmem %s0, %s453
    %s455 = sshrl.u32 %s4, 1
    %s456 = sor.u32 %s4, %s455
    %s457 = sand.u32 %s456, 85
    %s458 = sshrl.u32 %s457, 1
    %s459 = sor.u32 %s457, %s458
    %s460 = sand.u32 51, %s459
    %s461 = sshrl.u32 %s460, 2
    %s462 = sor.u32 %s460, %s461
    %s463 = sand.u32 15, %s462
    %v464 = vld [vmem:[%s454] sm:%s463]
    %v465 = vunpack.c.l.bf16 %v464
    %v466 = vunpack.c.h.bf16 %v464
    %s467 = scalar_lea.vmem [#allocation1], 280
    %468 = vst [vmem:[%s467] sm:%s4] %v465
    %s469 = smul.addr 1, 34
    %s470 = scalar_lea.vmem %s0, %s469
    %s471 = sshrl.u32 %s4, 1
    %s472 = sor.u32 %s4, %s471
    %s473 = sand.u32 %s472, 85
    %s474 = sshrl.u32 %s473, 1
    %s475 = sor.u32 %s473, %s474
    %s476 = sand.u32 51, %s475
    %s477 = sshrl.u32 %s476, 2
    %s478 = sor.u32 %s476, %s477
    %s479 = sand.u32 15, %s478
    %v480 = vld [vmem:[%s470] sm:%s479]
    %v481 = vunpack.c.l.bf16 %v480
    %v482 = vunpack.c.h.bf16 %v480
    %s483 = scalar_lea.vmem [#allocation1], 272
    %484 = vst [vmem:[%s483] sm:%s4] %v481
    %s485 = smul.addr 1, 33
    %s486 = scalar_lea.vmem %s0, %s485
    %s487 = sshrl.u32 %s4, 1
    %s488 = sor.u32 %s4, %s487
    %s489 = sand.u32 %s488, 85
    %s490 = sshrl.u32 %s489, 1
    %s491 = sor.u32 %s489, %s490
    %s492 = sand.u32 51, %s491
    %s493 = sshrl.u32 %s492, 2
    %s494 = sor.u32 %s492, %s493
    %s495 = sand.u32 15, %s494
    %v496 = vld [vmem:[%s486] sm:%s495]
    %v497 = vunpack.c.l.bf16 %v496
    %v498 = vunpack.c.h.bf16 %v496
    %s499 = scalar_lea.vmem [#allocation1], 264
    %500 = vst [vmem:[%s499] sm:%s4] %v497
    %s501 = smul.addr 1, 32
    %s502 = scalar_lea.vmem %s0, %s501
    %s503 = sshrl.u32 %s4, 1
    %s504 = sor.u32 %s4, %s503
    %s505 = sand.u32 %s504, 85
    %s506 = sshrl.u32 %s505, 1
    %s507 = sor.u32 %s505, %s506
    %s508 = sand.u32 51, %s507
    %s509 = sshrl.u32 %s508, 2
    %s510 = sor.u32 %s508, %s509
    %s511 = sand.u32 15, %s510
    %v512 = vld [vmem:[%s502] sm:%s511]
    %v513 = vunpack.c.l.bf16 %v512
    %v514 = vunpack.c.h.bf16 %v512
    %s515 = scalar_lea.vmem [#allocation1], 256
    %516 = vst [vmem:[%s515] sm:%s4] %v513
    %s517 = smul.addr 1, 31
    %s518 = scalar_lea.vmem %s0, %s517
    %s519 = sshrl.u32 %s4, 1
    %s520 = sor.u32 %s4, %s519
    %s521 = sand.u32 %s520, 85
    %s522 = sshrl.u32 %s521, 1
    %s523 = sor.u32 %s521, %s522
    %s524 = sand.u32 51, %s523
    %s525 = sshrl.u32 %s524, 2
    %s526 = sor.u32 %s524, %s525
    %s527 = sand.u32 15, %s526
    %v528 = vld [vmem:[%s518] sm:%s527]
    %v529 = vunpack.c.l.bf16 %v528
    %v530 = vunpack.c.h.bf16 %v528
    %s531 = scalar_lea.vmem [#allocation1], 248
    %532 = vst [vmem:[%s531] sm:%s4] %v529
    %s533 = smul.addr 1, 30
    %s534 = scalar_lea.vmem %s0, %s533
    %s535 = sshrl.u32 %s4, 1
    %s536 = sor.u32 %s4, %s535
    %s537 = sand.u32 %s536, 85
    %s538 = sshrl.u32 %s537, 1
    %s539 = sor.u32 %s537, %s538
    %s540 = sand.u32 51, %s539
    %s541 = sshrl.u32 %s540, 2
    %s542 = sor.u32 %s540, %s541
    %s543 = sand.u32 15, %s542
    %v544 = vld [vmem:[%s534] sm:%s543]
    %v545 = vunpack.c.l.bf16 %v544
    %v546 = vunpack.c.h.bf16 %v544
    %s547 = scalar_lea.vmem [#allocation1], 240
    %548 = vst [vmem:[%s547] sm:%s4] %v545
    %s549 = smul.addr 1, 29
    %s550 = scalar_lea.vmem %s0, %s549
    %s551 = sshrl.u32 %s4, 1
    %s552 = sor.u32 %s4, %s551
    %s553 = sand.u32 %s552, 85
    %s554 = sshrl.u32 %s553, 1
    %s555 = sor.u32 %s553, %s554
    %s556 = sand.u32 51, %s555
    %s557 = sshrl.u32 %s556, 2
    %s558 = sor.u32 %s556, %s557
    %s559 = sand.u32 15, %s558
    %v560 = vld [vmem:[%s550] sm:%s559]
    %v561 = vunpack.c.l.bf16 %v560
    %v562 = vunpack.c.h.bf16 %v560
    %s563 = scalar_lea.vmem [#allocation1], 232
    %564 = vst [vmem:[%s563] sm:%s4] %v561
    %s565 = smul.addr 1, 28
    %s566 = scalar_lea.vmem %s0, %s565
    %s567 = sshrl.u32 %s4, 1
    %s568 = sor.u32 %s4, %s567
    %s569 = sand.u32 %s568, 85
    %s570 = sshrl.u32 %s569, 1
    %s571 = sor.u32 %s569, %s570
    %s572 = sand.u32 51, %s571
    %s573 = sshrl.u32 %s572, 2
    %s574 = sor.u32 %s572, %s573
    %s575 = sand.u32 15, %s574
    %v576 = vld [vmem:[%s566] sm:%s575]
    %v577 = vunpack.c.l.bf16 %v576
    %v578 = vunpack.c.h.bf16 %v576
    %s579 = scalar_lea.vmem [#allocation1], 224
    %580 = vst [vmem:[%s579] sm:%s4] %v577
    %s581 = smul.addr 1, 27
    %s582 = scalar_lea.vmem %s0, %s581
    %s583 = sshrl.u32 %s4, 1
    %s584 = sor.u32 %s4, %s583
    %s585 = sand.u32 %s584, 85
    %s586 = sshrl.u32 %s585, 1
    %s587 = sor.u32 %s585, %s586
    %s588 = sand.u32 51, %s587
    %s589 = sshrl.u32 %s588, 2
    %s590 = sor.u32 %s588, %s589
    %s591 = sand.u32 15, %s590
    %v592 = vld [vmem:[%s582] sm:%s591]
    %v593 = vunpack.c.l.bf16 %v592
    %v594 = vunpack.c.h.bf16 %v592
    %s595 = scalar_lea.vmem [#allocation1], 216
    %596 = vst [vmem:[%s595] sm:%s4] %v593
    %s597 = smul.addr 1, 26
    %s598 = scalar_lea.vmem %s0, %s597
    %s599 = sshrl.u32 %s4, 1
    %s600 = sor.u32 %s4, %s599
    %s601 = sand.u32 %s600, 85
    %s602 = sshrl.u32 %s601, 1
    %s603 = sor.u32 %s601, %s602
    %s604 = sand.u32 51, %s603
    %s605 = sshrl.u32 %s604, 2
    %s606 = sor.u32 %s604, %s605
    %s607 = sand.u32 15, %s606
    %v608 = vld [vmem:[%s598] sm:%s607]
    %v609 = vunpack.c.l.bf16 %v608
    %v610 = vunpack.c.h.bf16 %v608
    %s611 = scalar_lea.vmem [#allocation1], 208
    %612 = vst [vmem:[%s611] sm:%s4] %v609
    %s613 = smul.addr 1, 25
    %s614 = scalar_lea.vmem %s0, %s613
    %s615 = sshrl.u32 %s4, 1
    %s616 = sor.u32 %s4, %s615
    %s617 = sand.u32 %s616, 85
    %s618 = sshrl.u32 %s617, 1
    %s619 = sor.u32 %s617, %s618
    %s620 = sand.u32 51, %s619
    %s621 = sshrl.u32 %s620, 2
    %s622 = sor.u32 %s620, %s621
    %s623 = sand.u32 15, %s622
    %v624 = vld [vmem:[%s614] sm:%s623]
    %v625 = vunpack.c.l.bf16 %v624
    %v626 = vunpack.c.h.bf16 %v624
    %s627 = scalar_lea.vmem [#allocation1], 200
    %628 = vst [vmem:[%s627] sm:%s4] %v625
    %s629 = smul.addr 1, 24
    %s630 = scalar_lea.vmem %s0, %s629
    %s631 = sshrl.u32 %s4, 1
    %s632 = sor.u32 %s4, %s631
    %s633 = sand.u32 %s632, 85
    %s634 = sshrl.u32 %s633, 1
    %s635 = sor.u32 %s633, %s634
    %s636 = sand.u32 51, %s635
    %s637 = sshrl.u32 %s636, 2
    %s638 = sor.u32 %s636, %s637
    %s639 = sand.u32 15, %s638
    %v640 = vld [vmem:[%s630] sm:%s639]
    %v641 = vunpack.c.l.bf16 %v640
    %v642 = vunpack.c.h.bf16 %v640
    %s643 = scalar_lea.vmem [#allocation1], 192
    %644 = vst [vmem:[%s643] sm:%s4] %v641
    %s645 = smul.addr 1, 23
    %s646 = scalar_lea.vmem %s0, %s645
    %s647 = sshrl.u32 %s4, 1
    %s648 = sor.u32 %s4, %s647
    %s649 = sand.u32 %s648, 85
    %s650 = sshrl.u32 %s649, 1
    %s651 = sor.u32 %s649, %s650
    %s652 = sand.u32 51, %s651
    %s653 = sshrl.u32 %s652, 2
    %s654 = sor.u32 %s652, %s653
    %s655 = sand.u32 15, %s654
    %v656 = vld [vmem:[%s646] sm:%s655]
    %v657 = vunpack.c.l.bf16 %v656
    %v658 = vunpack.c.h.bf16 %v656
    %s659 = scalar_lea.vmem [#allocation1], 184
    %660 = vst [vmem:[%s659] sm:%s4] %v657
    %s661 = smul.addr 1, 22
    %s662 = scalar_lea.vmem %s0, %s661
    %s663 = sshrl.u32 %s4, 1
    %s664 = sor.u32 %s4, %s663
    %s665 = sand.u32 %s664, 85
    %s666 = sshrl.u32 %s665, 1
    %s667 = sor.u32 %s665, %s666
    %s668 = sand.u32 51, %s667
    %s669 = sshrl.u32 %s668, 2
    %s670 = sor.u32 %s668, %s669
    %s671 = sand.u32 15, %s670
    %v672 = vld [vmem:[%s662] sm:%s671]
    %v673 = vunpack.c.l.bf16 %v672
    %v674 = vunpack.c.h.bf16 %v672
    %s675 = scalar_lea.vmem [#allocation1], 176
    %676 = vst [vmem:[%s675] sm:%s4] %v673
    %s677 = smul.addr 1, 21
    %s678 = scalar_lea.vmem %s0, %s677
    %s679 = sshrl.u32 %s4, 1
    %s680 = sor.u32 %s4, %s679
    %s681 = sand.u32 %s680, 85
    %s682 = sshrl.u32 %s681, 1
    %s683 = sor.u32 %s681, %s682
    %s684 = sand.u32 51, %s683
    %s685 = sshrl.u32 %s684, 2
    %s686 = sor.u32 %s684, %s685
    %s687 = sand.u32 15, %s686
    %v688 = vld [vmem:[%s678] sm:%s687]
    %v689 = vunpack.c.l.bf16 %v688
    %v690 = vunpack.c.h.bf16 %v688
    %s691 = scalar_lea.vmem [#allocation1], 168
    %692 = vst [vmem:[%s691] sm:%s4] %v689
    %s693 = smul.addr 1, 20
    %s694 = scalar_lea.vmem %s0, %s693
    %s695 = sshrl.u32 %s4, 1
    %s696 = sor.u32 %s4, %s695
    %s697 = sand.u32 %s696, 85
    %s698 = sshrl.u32 %s697, 1
    %s699 = sor.u32 %s697, %s698
    %s700 = sand.u32 51, %s699
    %s701 = sshrl.u32 %s700, 2
    %s702 = sor.u32 %s700, %s701
    %s703 = sand.u32 15, %s702
    %v704 = vld [vmem:[%s694] sm:%s703]
    %v705 = vunpack.c.l.bf16 %v704
    %v706 = vunpack.c.h.bf16 %v704
    %s707 = scalar_lea.vmem [#allocation1], 160
    %708 = vst [vmem:[%s707] sm:%s4] %v705
    %s709 = smul.addr 1, 19
    %s710 = scalar_lea.vmem %s0, %s709
    %s711 = sshrl.u32 %s4, 1
    %s712 = sor.u32 %s4, %s711
    %s713 = sand.u32 %s712, 85
    %s714 = sshrl.u32 %s713, 1
    %s715 = sor.u32 %s713, %s714
    %s716 = sand.u32 51, %s715
    %s717 = sshrl.u32 %s716, 2
    %s718 = sor.u32 %s716, %s717
    %s719 = sand.u32 15, %s718
    %v720 = vld [vmem:[%s710] sm:%s719]
    %v721 = vunpack.c.l.bf16 %v720
    %v722 = vunpack.c.h.bf16 %v720
    %s723 = scalar_lea.vmem [#allocation1], 152
    %724 = vst [vmem:[%s723] sm:%s4] %v721
    %s725 = smul.addr 1, 18
    %s726 = scalar_lea.vmem %s0, %s725
    %s727 = sshrl.u32 %s4, 1
    %s728 = sor.u32 %s4, %s727
    %s729 = sand.u32 %s728, 85
    %s730 = sshrl.u32 %s729, 1
    %s731 = sor.u32 %s729, %s730
    %s732 = sand.u32 51, %s731
    %s733 = sshrl.u32 %s732, 2
    %s734 = sor.u32 %s732, %s733
    %s735 = sand.u32 15, %s734
    %v736 = vld [vmem:[%s726] sm:%s735]
    %v737 = vunpack.c.l.bf16 %v736
    %v738 = vunpack.c.h.bf16 %v736
    %s739 = scalar_lea.vmem [#allocation1], 144
    %740 = vst [vmem:[%s739] sm:%s4] %v737
    %s741 = smul.addr 1, 17
    %s742 = scalar_lea.vmem %s0, %s741
    %s743 = sshrl.u32 %s4, 1
    %s744 = sor.u32 %s4, %s743
    %s745 = sand.u32 %s744, 85
    %s746 = sshrl.u32 %s745, 1
    %s747 = sor.u32 %s745, %s746
    %s748 = sand.u32 51, %s747
    %s749 = sshrl.u32 %s748, 2
    %s750 = sor.u32 %s748, %s749
    %s751 = sand.u32 15, %s750
    %v752 = vld [vmem:[%s742] sm:%s751]
    %v753 = vunpack.c.l.bf16 %v752
    %v754 = vunpack.c.h.bf16 %v752
    %s755 = scalar_lea.vmem [#allocation1], 136
    %756 = vst [vmem:[%s755] sm:%s4] %v753
    %s757 = smul.addr 1, 16
    %s758 = scalar_lea.vmem %s0, %s757
    %s759 = sshrl.u32 %s4, 1
    %s760 = sor.u32 %s4, %s759
    %s761 = sand.u32 %s760, 85
    %s762 = sshrl.u32 %s761, 1
    %s763 = sor.u32 %s761, %s762
    %s764 = sand.u32 51, %s763
    %s765 = sshrl.u32 %s764, 2
    %s766 = sor.u32 %s764, %s765
    %s767 = sand.u32 15, %s766
    %v768 = vld [vmem:[%s758] sm:%s767]
    %v769 = vunpack.c.l.bf16 %v768
    %v770 = vunpack.c.h.bf16 %v768
    %s771 = scalar_lea.vmem [#allocation1], 128
    %772 = vst [vmem:[%s771] sm:%s4] %v769
    %s773 = smul.addr 1, 15
    %s774 = scalar_lea.vmem %s0, %s773
    %s775 = sshrl.u32 %s4, 1
    %s776 = sor.u32 %s4, %s775
    %s777 = sand.u32 %s776, 85
    %s778 = sshrl.u32 %s777, 1
    %s779 = sor.u32 %s777, %s778
    %s780 = sand.u32 51, %s779
    %s781 = sshrl.u32 %s780, 2
    %s782 = sor.u32 %s780, %s781
    %s783 = sand.u32 15, %s782
    %v784 = vld [vmem:[%s774] sm:%s783]
    %v785 = vunpack.c.l.bf16 %v784
    %v786 = vunpack.c.h.bf16 %v784
    %s787 = scalar_lea.vmem [#allocation1], 120
    %788 = vst [vmem:[%s787] sm:%s4] %v785
    %s789 = smul.addr 1, 14
    %s790 = scalar_lea.vmem %s0, %s789
    %s791 = sshrl.u32 %s4, 1
    %s792 = sor.u32 %s4, %s791
    %s793 = sand.u32 %s792, 85
    %s794 = sshrl.u32 %s793, 1
    %s795 = sor.u32 %s793, %s794
    %s796 = sand.u32 51, %s795
    %s797 = sshrl.u32 %s796, 2
    %s798 = sor.u32 %s796, %s797
    %s799 = sand.u32 15, %s798
    %v800 = vld [vmem:[%s790] sm:%s799]
    %v801 = vunpack.c.l.bf16 %v800
    %v802 = vunpack.c.h.bf16 %v800
    %s803 = scalar_lea.vmem [#allocation1], 112
    %804 = vst [vmem:[%s803] sm:%s4] %v801
    %s805 = smul.addr 1, 13
    %s806 = scalar_lea.vmem %s0, %s805
    %s807 = sshrl.u32 %s4, 1
    %s808 = sor.u32 %s4, %s807
    %s809 = sand.u32 %s808, 85
    %s810 = sshrl.u32 %s809, 1
    %s811 = sor.u32 %s809, %s810
    %s812 = sand.u32 51, %s811
    %s813 = sshrl.u32 %s812, 2
    %s814 = sor.u32 %s812, %s813
    %s815 = sand.u32 15, %s814
    %v816 = vld [vmem:[%s806] sm:%s815]
    %v817 = vunpack.c.l.bf16 %v816
    %v818 = vunpack.c.h.bf16 %v816
    %s819 = scalar_lea.vmem [#allocation1], 104
    %820 = vst [vmem:[%s819] sm:%s4] %v817
    %s821 = smul.addr 1, 12
    %s822 = scalar_lea.vmem %s0, %s821
    %s823 = sshrl.u32 %s4, 1
    %s824 = sor.u32 %s4, %s823
    %s825 = sand.u32 %s824, 85
    %s826 = sshrl.u32 %s825, 1
    %s827 = sor.u32 %s825, %s826
    %s828 = sand.u32 51, %s827
    %s829 = sshrl.u32 %s828, 2
    %s830 = sor.u32 %s828, %s829
    %s831 = sand.u32 15, %s830
    %v832 = vld [vmem:[%s822] sm:%s831]
    %v833 = vunpack.c.l.bf16 %v832
    %v834 = vunpack.c.h.bf16 %v832
    %s835 = scalar_lea.vmem [#allocation1], 96
    %836 = vst [vmem:[%s835] sm:%s4] %v833
    %s837 = smul.addr 1, 11
    %s838 = scalar_lea.vmem %s0, %s837
    %s839 = sshrl.u32 %s4, 1
    %s840 = sor.u32 %s4, %s839
    %s841 = sand.u32 %s840, 85
    %s842 = sshrl.u32 %s841, 1
    %s843 = sor.u32 %s841, %s842
    %s844 = sand.u32 51, %s843
    %s845 = sshrl.u32 %s844, 2
    %s846 = sor.u32 %s844, %s845
    %s847 = sand.u32 15, %s846
    %v848 = vld [vmem:[%s838] sm:%s847]
    %v849 = vunpack.c.l.bf16 %v848
    %v850 = vunpack.c.h.bf16 %v848
    %s851 = scalar_lea.vmem [#allocation1], 88
    %852 = vst [vmem:[%s851] sm:%s4] %v849
    %s853 = smul.addr 1, 10
    %s854 = scalar_lea.vmem %s0, %s853
    %s855 = sshrl.u32 %s4, 1
    %s856 = sor.u32 %s4, %s855
    %s857 = sand.u32 %s856, 85
    %s858 = sshrl.u32 %s857, 1
    %s859 = sor.u32 %s857, %s858
    %s860 = sand.u32 51, %s859
    %s861 = sshrl.u32 %s860, 2
    %s862 = sor.u32 %s860, %s861
    %s863 = sand.u32 15, %s862
    %v864 = vld [vmem:[%s854] sm:%s863]
    %v865 = vunpack.c.l.bf16 %v864
    %v866 = vunpack.c.h.bf16 %v864
    %s867 = scalar_lea.vmem [#allocation1], 80
    %868 = vst [vmem:[%s867] sm:%s4] %v865
    %s869 = smul.addr 1, 9
    %s870 = scalar_lea.vmem %s0, %s869
    %s871 = sshrl.u32 %s4, 1
    %s872 = sor.u32 %s4, %s871
    %s873 = sand.u32 %s872, 85
    %s874 = sshrl.u32 %s873, 1
    %s875 = sor.u32 %s873, %s874
    %s876 = sand.u32 51, %s875
    %s877 = sshrl.u32 %s876, 2
    %s878 = sor.u32 %s876, %s877
    %s879 = sand.u32 15, %s878
    %v880 = vld [vmem:[%s870] sm:%s879]
    %v881 = vunpack.c.l.bf16 %v880
    %v882 = vunpack.c.h.bf16 %v880
    %s883 = scalar_lea.vmem [#allocation1], 72
    %884 = vst [vmem:[%s883] sm:%s4] %v881
    %s885 = smul.addr 1, 8
    %s886 = scalar_lea.vmem %s0, %s885
    %s887 = sshrl.u32 %s4, 1
    %s888 = sor.u32 %s4, %s887
    %s889 = sand.u32 %s888, 85
    %s890 = sshrl.u32 %s889, 1
    %s891 = sor.u32 %s889, %s890
    %s892 = sand.u32 51, %s891
    %s893 = sshrl.u32 %s892, 2
    %s894 = sor.u32 %s892, %s893
    %s895 = sand.u32 15, %s894
    %v896 = vld [vmem:[%s886] sm:%s895]
    %v897 = vunpack.c.l.bf16 %v896
    %v898 = vunpack.c.h.bf16 %v896
    %s899 = scalar_lea.vmem [#allocation1], 64
    %900 = vst [vmem:[%s899] sm:%s4] %v897
    %s901 = smul.addr 1, 7
    %s902 = scalar_lea.vmem %s0, %s901
    %s903 = sshrl.u32 %s4, 1
    %s904 = sor.u32 %s4, %s903
    %s905 = sand.u32 %s904, 85
    %s906 = sshrl.u32 %s905, 1
    %s907 = sor.u32 %s905, %s906
    %s908 = sand.u32 51, %s907
    %s909 = sshrl.u32 %s908, 2
    %s910 = sor.u32 %s908, %s909
    %s911 = sand.u32 15, %s910
    %v912 = vld [vmem:[%s902] sm:%s911]
    %v913 = vunpack.c.l.bf16 %v912
    %v914 = vunpack.c.h.bf16 %v912
    %s915 = scalar_lea.vmem [#allocation1], 56
    %916 = vst [vmem:[%s915] sm:%s4] %v913
    %s917 = smul.addr 1, 6
    %s918 = scalar_lea.vmem %s0, %s917
    %s919 = sshrl.u32 %s4, 1
    %s920 = sor.u32 %s4, %s919
    %s921 = sand.u32 %s920, 85
    %s922 = sshrl.u32 %s921, 1
    %s923 = sor.u32 %s921, %s922
    %s924 = sand.u32 51, %s923
    %s925 = sshrl.u32 %s924, 2
    %s926 = sor.u32 %s924, %s925
    %s927 = sand.u32 15, %s926
    %v928 = vld [vmem:[%s918] sm:%s927]
    %v929 = vunpack.c.l.bf16 %v928
    %v930 = vunpack.c.h.bf16 %v928
    %s931 = scalar_lea.vmem [#allocation1], 48
    %932 = vst [vmem:[%s931] sm:%s4] %v929
    %s933 = smul.addr 1, 5
    %s934 = scalar_lea.vmem %s0, %s933
    %s935 = sshrl.u32 %s4, 1
    %s936 = sor.u32 %s4, %s935
    %s937 = sand.u32 %s936, 85
    %s938 = sshrl.u32 %s937, 1
    %s939 = sor.u32 %s937, %s938
    %s940 = sand.u32 51, %s939
    %s941 = sshrl.u32 %s940, 2
    %s942 = sor.u32 %s940, %s941
    %s943 = sand.u32 15, %s942
    %v944 = vld [vmem:[%s934] sm:%s943]
    %v945 = vunpack.c.l.bf16 %v944
    %v946 = vunpack.c.h.bf16 %v944
    %s947 = scalar_lea.vmem [#allocation1], 40
    %948 = vst [vmem:[%s947] sm:%s4] %v945
    %s949 = smul.addr 1, 4
    %s950 = scalar_lea.vmem %s0, %s949
    %s951 = sshrl.u32 %s4, 1
    %s952 = sor.u32 %s4, %s951
    %s953 = sand.u32 %s952, 85
    %s954 = sshrl.u32 %s953, 1
    %s955 = sor.u32 %s953, %s954
    %s956 = sand.u32 51, %s955
    %s957 = sshrl.u32 %s956, 2
    %s958 = sor.u32 %s956, %s957
    %s959 = sand.u32 15, %s958
    %v960 = vld [vmem:[%s950] sm:%s959]
    %v961 = vunpack.c.l.bf16 %v960
    %v962 = vunpack.c.h.bf16 %v960
    %s963 = scalar_lea.vmem [#allocation1], 32
    %964 = vst [vmem:[%s963] sm:%s4] %v961
    %s965 = smul.addr 1, 3
    %s966 = scalar_lea.vmem %s0, %s965
    %s967 = sshrl.u32 %s4, 1
    %s968 = sor.u32 %s4, %s967
    %s969 = sand.u32 %s968, 85
    %s970 = sshrl.u32 %s969, 1
    %s971 = sor.u32 %s969, %s970
    %s972 = sand.u32 51, %s971
    %s973 = sshrl.u32 %s972, 2
    %s974 = sor.u32 %s972, %s973
    %s975 = sand.u32 15, %s974
    %v976 = vld [vmem:[%s966] sm:%s975]
    %v977 = vunpack.c.l.bf16 %v976
    %v978 = vunpack.c.h.bf16 %v976
    %s979 = scalar_lea.vmem [#allocation1], 24
    %980 = vst [vmem:[%s979] sm:%s4] %v977
    %s981 = smul.addr 1, 2
    %s982 = scalar_lea.vmem %s0, %s981
    %s983 = sshrl.u32 %s4, 1
    %s984 = sor.u32 %s4, %s983
    %s985 = sand.u32 %s984, 85
    %s986 = sshrl.u32 %s985, 1
    %s987 = sor.u32 %s985, %s986
    %s988 = sand.u32 51, %s987
    %s989 = sshrl.u32 %s988, 2
    %s990 = sor.u32 %s988, %s989
    %s991 = sand.u32 15, %s990
    %v992 = vld [vmem:[%s982] sm:%s991]
    %v993 = vunpack.c.l.bf16 %v992
    %v994 = vunpack.c.h.bf16 %v992
    %s995 = scalar_lea.vmem [#allocation1], 16
    %996 = vst [vmem:[%s995] sm:%s4] %v993
    %s997 = scalar_lea.vmem %s0, 1
    %s998 = sshrl.u32 %s4, 1
    %s999 = sor.u32 %s4, %s998
    %s1000 = sand.u32 %s999, 85
    %s1001 = sshrl.u32 %s1000, 1
    %s1002 = sor.u32 %s1000, %s1001
    %s1003 = sand.u32 51, %s1002
    %s1004 = sshrl.u32 %s1003, 2
    %s1005 = sor.u32 %s1003, %s1004
    %s1006 = sand.u32 15, %s1005
    %v1007 = vld [vmem:[%s997] sm:%s1006]
    %v1008 = vunpack.c.l.bf16 %v1007
    %v1009 = vunpack.c.h.bf16 %v1007
    %s1010 = scalar_lea.vmem [#allocation1], 8
    %1011 = vst [vmem:[%s1010] sm:%s4] %v1008
    %s1012 = sshrl.u32 %s4, 1
    %s1013 = sor.u32 %s4, %s1012
    %s1014 = sand.u32 %s1013, 85
    %s1015 = sshrl.u32 %s1014, 1
    %s1016 = sor.u32 %s1014, %s1015
    %s1017 = sand.u32 51, %s1016
    %s1018 = sshrl.u32 %s1017, 2
    %s1019 = sor.u32 %s1017, %s1018
    %s1020 = sand.u32 15, %s1019
    %v1021 = vld [vmem:[%s0] sm:%s1020]
    %v1022 = vunpack.c.l.bf16 %v1021
    %v1023 = vunpack.c.h.bf16 %v1021
    %1024 = vst [vmem:[#allocation1] sm:%s4] %v1022
    %v1025 = vld [vmem:[#allocation1] sm:$0x3]
    %1026 = vst [vmem:[#allocation0] sm:$0x1] %v1025
    %s1027 = scalar_lea.vmem [#allocation0], 127
    %1028 = vst [vmem:[%s1027] sm:$0x2] %v1025
    %s1029 = scalar_lea.vmem [#allocation1], 8
    %v1030 = vld [vmem:[%s1029] sm:$0x3]
    %s1031 = scalar_lea.vmem [#allocation0], 8
    %1032 = vst [vmem:[%s1031] sm:$0x1] %v1030
    %s1033 = scalar_lea.vmem [#allocation0], 135
    %1034 = vst [vmem:[%s1033] sm:$0x2] %v1030
    %s1035 = scalar_lea.vmem [#allocation1], 16
    %v1036 = vld [vmem:[%s1035] sm:$0x3]
    %s1037 = scalar_lea.vmem [#allocation0], 16
    %1038 = vst [vmem:[%s1037] sm:$0x1] %v1036
    %s1039 = scalar_lea.vmem [#allocation0], 143
    %1040 = vst [vmem:[%s1039] sm:$0x2] %v1036
    %s1041 = scalar_lea.vmem [#allocation1], 24
    %v1042 = vld [vmem:[%s1041] sm:$0x3]
    %s1043 = scalar_lea.vmem [#allocation0], 24
    %1044 = vst [vmem:[%s1043] sm:$0x1] %v1042
    %s1045 = scalar_lea.vmem [#allocation0], 151
    %1046 = vst [vmem:[%s1045] sm:$0x2] %v1042
    %s1047 = scalar_lea.vmem [#allocation1], 32
    %v1048 = vld [vmem:[%s1047] sm:$0x3]
    %s1049 = scalar_lea.vmem [#allocation0], 1
    %1050 = vst [vmem:[%s1049] sm:$0x1] %v1048
    %s1051 = scalar_lea.vmem [#allocation0], 128
    %1052 = vst [vmem:[%s1051] sm:$0x2] %v1048
    %s1053 = scalar_lea.vmem [#allocation1], 40
    %v1054 = vld [vmem:[%s1053] sm:$0x3]
    %s1055 = scalar_lea.vmem [#allocation0], 9
    %1056 = vst [vmem:[%s1055] sm:$0x1] %v1054
    %s1057 = scalar_lea.vmem [#allocation0], 136
    %1058 = vst [vmem:[%s1057] sm:$0x2] %v1054
    %s1059 = scalar_lea.vmem [#allocation1], 48
    %v1060 = vld [vmem:[%s1059] sm:$0x3]
    %s1061 = scalar_lea.vmem [#allocation0], 17
    %1062 = vst [vmem:[%s1061] sm:$0x1] %v1060
    %s1063 = scalar_lea.vmem [#allocation0], 144
    %1064 = vst [vmem:[%s1063] sm:$0x2] %v1060
    %s1065 = scalar_lea.vmem [#allocation1], 56
    %v1066 = vld [vmem:[%s1065] sm:$0x3]
    %s1067 = scalar_lea.vmem [#allocation0], 25
    %1068 = vst [vmem:[%s1067] sm:$0x1] %v1066
    %s1069 = scalar_lea.vmem [#allocation0], 152
    %1070 = vst [vmem:[%s1069] sm:$0x2] %v1066
    %s1071 = scalar_lea.vmem [#allocation1], 64
    %v1072 = vld [vmem:[%s1071] sm:$0x3]
    %s1073 = scalar_lea.vmem [#allocation0], 2
    %1074 = vst [vmem:[%s1073] sm:$0x1] %v1072
    %s1075 = scalar_lea.vmem [#allocation0], 129
    %1076 = vst [vmem:[%s1075] sm:$0x2] %v1072
    %s1077 = scalar_lea.vmem [#allocation1], 72
    %v1078 = vld [vmem:[%s1077] sm:$0x3]
    %s1079 = scalar_lea.vmem [#allocation0], 10
    %1080 = vst [vmem:[%s1079] sm:$0x1] %v1078
    %s1081 = scalar_lea.vmem [#allocation0], 137
    %1082 = vst [vmem:[%s1081] sm:$0x2] %v1078
    %s1083 = scalar_lea.vmem [#allocation1], 80
    %v1084 = vld [vmem:[%s1083] sm:$0x3]
    %s1085 = scalar_lea.vmem [#allocation0], 18
    %1086 = vst [vmem:[%s1085] sm:$0x1] %v1084
    %s1087 = scalar_lea.vmem [#allocation0], 145
    %1088 = vst [vmem:[%s1087] sm:$0x2] %v1084
    %s1089 = scalar_lea.vmem [#allocation1], 88
    %v1090 = vld [vmem:[%s1089] sm:$0x3]
    %s1091 = scalar_lea.vmem [#allocation0], 26
    %1092 = vst [vmem:[%s1091] sm:$0x1] %v1090
    %s1093 = scalar_lea.vmem [#allocation0], 153
    %1094 = vst [vmem:[%s1093] sm:$0x2] %v1090
    %s1095 = scalar_lea.vmem [#allocation1], 96
    %v1096 = vld [vmem:[%s1095] sm:$0x3]
    %s1097 = scalar_lea.vmem [#allocation0], 3
    %1098 = vst [vmem:[%s1097] sm:$0x1] %v1096
    %s1099 = scalar_lea.vmem [#allocation0], 130
    %1100 = vst [vmem:[%s1099] sm:$0x2] %v1096
    %s1101 = scalar_lea.vmem [#allocation1], 104
    %v1102 = vld [vmem:[%s1101] sm:$0x3]
    %s1103 = scalar_lea.vmem [#allocation0], 11
    %1104 = vst [vmem:[%s1103] sm:$0x1] %v1102
    %s1105 = scalar_lea.vmem [#allocation0], 138
    %1106 = vst [vmem:[%s1105] sm:$0x2] %v1102
    %s1107 = scalar_lea.vmem [#allocation1], 112
    %v1108 = vld [vmem:[%s1107] sm:$0x3]
    %s1109 = scalar_lea.vmem [#allocation0], 19
    %1110 = vst [vmem:[%s1109] sm:$0x1] %v1108
    %s1111 = scalar_lea.vmem [#allocation0], 146
    %1112 = vst [vmem:[%s1111] sm:$0x2] %v1108
    %s1113 = scalar_lea.vmem [#allocation1], 120
    %v1114 = vld [vmem:[%s1113] sm:$0x3]
    %s1115 = scalar_lea.vmem [#allocation0], 27
    %1116 = vst [vmem:[%s1115] sm:$0x1] %v1114
    %s1117 = scalar_lea.vmem [#allocation0], 154
    %1118 = vst [vmem:[%s1117] sm:$0x2] %v1114
    %s1119 = scalar_lea.vmem [#allocation1], 128
    %v1120 = vld [vmem:[%s1119] sm:$0x3]
    %s1121 = scalar_lea.vmem [#allocation0], 32
    %1122 = vst [vmem:[%s1121] sm:$0x1] %v1120
    %s1123 = scalar_lea.vmem [#allocation0], 159
    %1124 = vst [vmem:[%s1123] sm:$0x2] %v1120
    %s1125 = scalar_lea.vmem [#allocation1], 136
    %v1126 = vld [vmem:[%s1125] sm:$0x3]
    %s1127 = scalar_lea.vmem [#allocation0], 40
    %1128 = vst [vmem:[%s1127] sm:$0x1] %v1126
    %s1129 = scalar_lea.vmem [#allocation0], 167
    %1130 = vst [vmem:[%s1129] sm:$0x2] %v1126
    %s1131 = scalar_lea.vmem [#allocation1], 144
    %v1132 = vld [vmem:[%s1131] sm:$0x3]
    %s1133 = scalar_lea.vmem [#allocation0], 48
    %1134 = vst [vmem:[%s1133] sm:$0x1] %v1132
    %s1135 = scalar_lea.vmem [#allocation0], 175
    %1136 = vst [vmem:[%s1135] sm:$0x2] %v1132
    %s1137 = scalar_lea.vmem [#allocation1], 152
    %v1138 = vld [vmem:[%s1137] sm:$0x3]
    %s1139 = scalar_lea.vmem [#allocation0], 56
    %1140 = vst [vmem:[%s1139] sm:$0x1] %v1138
    %s1141 = scalar_lea.vmem [#allocation0], 183
    %1142 = vst [vmem:[%s1141] sm:$0x2] %v1138
    %s1143 = scalar_lea.vmem [#allocation1], 160
    %v1144 = vld [vmem:[%s1143] sm:$0x3]
    %s1145 = scalar_lea.vmem [#allocation0], 33
    %1146 = vst [vmem:[%s1145] sm:$0x1] %v1144
    %s1147 = scalar_lea.vmem [#allocation0], 160
    %1148 = vst [vmem:[%s1147] sm:$0x2] %v1144
    %s1149 = scalar_lea.vmem [#allocation1], 168
    %v1150 = vld [vmem:[%s1149] sm:$0x3]
    %s1151 = scalar_lea.vmem [#allocation0], 41
    %1152 = vst [vmem:[%s1151] sm:$0x1] %v1150
    %s1153 = scalar_lea.vmem [#allocation0], 168
    %1154 = vst [vmem:[%s1153] sm:$0x2] %v1150
    %s1155 = scalar_lea.vmem [#allocation1], 176
    %v1156 = vld [vmem:[%s1155] sm:$0x3]
    %s1157 = scalar_lea.vmem [#allocation0], 49
    %1158 = vst [vmem:[%s1157] sm:$0x1] %v1156
    %s1159 = scalar_lea.vmem [#allocation0], 176
    %1160 = vst [vmem:[%s1159] sm:$0x2] %v1156
    %s1161 = scalar_lea.vmem [#allocation1], 184
    %v1162 = vld [vmem:[%s1161] sm:$0x3]
    %s1163 = scalar_lea.vmem [#allocation0], 57
    %1164 = vst [vmem:[%s1163] sm:$0x1] %v1162
    %s1165 = scalar_lea.vmem [#allocation0], 184
    %1166 = vst [vmem:[%s1165] sm:$0x2] %v1162
    %s1167 = scalar_lea.vmem [#allocation1], 192
    %v1168 = vld [vmem:[%s1167] sm:$0x3]
    %s1169 = scalar_lea.vmem [#allocation0], 34
    %1170 = vst [vmem:[%s1169] sm:$0x1] %v1168
    %s1171 = scalar_lea.vmem [#allocation0], 161
    %1172 = vst [vmem:[%s1171] sm:$0x2] %v1168
    %s1173 = scalar_lea.vmem [#allocation1], 200
    %v1174 = vld [vmem:[%s1173] sm:$0x3]
    %s1175 = scalar_lea.vmem [#allocation0], 42
    %1176 = vst [vmem:[%s1175] sm:$0x1] %v1174
    %s1177 = scalar_lea.vmem [#allocation0], 169
    %1178 = vst [vmem:[%s1177] sm:$0x2] %v1174
    %s1179 = scalar_lea.vmem [#allocation1], 208
    %v1180 = vld [vmem:[%s1179] sm:$0x3]
    %s1181 = scalar_lea.vmem [#allocation0], 50
    %1182 = vst [vmem:[%s1181] sm:$0x1] %v1180
    %s1183 = scalar_lea.vmem [#allocation0], 177
    %1184 = vst [vmem:[%s1183] sm:$0x2] %v1180
    %s1185 = scalar_lea.vmem [#allocation1], 216
    %v1186 = vld [vmem:[%s1185] sm:$0x3]
    %s1187 = scalar_lea.vmem [#allocation0], 58
    %1188 = vst [vmem:[%s1187] sm:$0x1] %v1186
    %s1189 = scalar_lea.vmem [#allocation0], 185
    %1190 = vst [vmem:[%s1189] sm:$0x2] %v1186
    %s1191 = scalar_lea.vmem [#allocation1], 224
    %v1192 = vld [vmem:[%s1191] sm:$0x3]
    %s1193 = scalar_lea.vmem [#allocation0], 35
    %1194 = vst [vmem:[%s1193] sm:$0x1] %v1192
    %s1195 = scalar_lea.vmem [#allocation0], 162
    %1196 = vst [vmem:[%s1195] sm:$0x2] %v1192
    %s1197 = scalar_lea.vmem [#allocation1], 232
    %v1198 = vld [vmem:[%s1197] sm:$0x3]
    %s1199 = scalar_lea.vmem [#allocation0], 43
    %1200 = vst [vmem:[%s1199] sm:$0x1] %v1198
    %s1201 = scalar_lea.vmem [#allocation0], 170
    %1202 = vst [vmem:[%s1201] sm:$0x2] %v1198
    %s1203 = scalar_lea.vmem [#allocation1], 240
    %v1204 = vld [vmem:[%s1203] sm:$0x3]
    %s1205 = scalar_lea.vmem [#allocation0], 51
    %1206 = vst [vmem:[%s1205] sm:$0x1] %v1204
    %s1207 = scalar_lea.vmem [#allocation0], 178
    %1208 = vst [vmem:[%s1207] sm:$0x2] %v1204
    %s1209 = scalar_lea.vmem [#allocation1], 248
    %v1210 = vld [vmem:[%s1209] sm:$0x3]
    %s1211 = scalar_lea.vmem [#allocation0], 59
    %1212 = vst [vmem:[%s1211] sm:$0x1] %v1210
    %s1213 = scalar_lea.vmem [#allocation0], 186
    %1214 = vst [vmem:[%s1213] sm:$0x2] %v1210
    %s1215 = scalar_lea.vmem [#allocation1], 256
    %v1216 = vld [vmem:[%s1215] sm:$0x3]
    %s1217 = scalar_lea.vmem [#allocation0], 64
    %1218 = vst [vmem:[%s1217] sm:$0x1] %v1216
    %s1219 = scalar_lea.vmem [#allocation0], 191
    %1220 = vst [vmem:[%s1219] sm:$0x2] %v1216
    %s1221 = scalar_lea.vmem [#allocation1], 264
    %v1222 = vld [vmem:[%s1221] sm:$0x3]
    %s1223 = scalar_lea.vmem [#allocation0], 72
    %1224 = vst [vmem:[%s1223] sm:$0x1] %v1222
    %s1225 = scalar_lea.vmem [#allocation0], 199
    %1226 = vst [vmem:[%s1225] sm:$0x2] %v1222
    %s1227 = scalar_lea.vmem [#allocation1], 272
    %v1228 = vld [vmem:[%s1227] sm:$0x3]
    %s1229 = scalar_lea.vmem [#allocation0], 80
    %1230 = vst [vmem:[%s1229] sm:$0x1] %v1228
    %s1231 = scalar_lea.vmem [#allocation0], 207
    %1232 = vst [vmem:[%s1231] sm:$0x2] %v1228
    %s1233 = scalar_lea.vmem [#allocation1], 280
    %v1234 = vld [vmem:[%s1233] sm:$0x3]
    %s1235 = scalar_lea.vmem [#allocation0], 88
    %1236 = vst [vmem:[%s1235] sm:$0x1] %v1234
    %s1237 = scalar_lea.vmem [#allocation0], 215
    %1238 = vst [vmem:[%s1237] sm:$0x2] %v1234
    %s1239 = scalar_lea.vmem [#allocation1], 288
    %v1240 = vld [vmem:[%s1239] sm:$0x3]
    %s1241 = scalar_lea.vmem [#allocation0], 65
    %1242 = vst [vmem:[%s1241] sm:$0x1] %v1240
    %s1243 = scalar_lea.vmem [#allocation0], 192
    %1244 = vst [vmem:[%s1243] sm:$0x2] %v1240
    %s1245 = scalar_lea.vmem [#allocation1], 296
    %v1246 = vld [vmem:[%s1245] sm:$0x3]
    %s1247 = scalar_lea.vmem [#allocation0], 73
    %1248 = vst [vmem:[%s1247] sm:$0x1] %v1246
    %s1249 = scalar_lea.vmem [#allocation0], 200
    %1250 = vst [vmem:[%s1249] sm:$0x2] %v1246
    %s1251 = scalar_lea.vmem [#allocation1], 304
    %v1252 = vld [vmem:[%s1251] sm:$0x3]
    %s1253 = scalar_lea.vmem [#allocation0], 81
    %1254 = vst [vmem:[%s1253] sm:$0x1] %v1252
    %s1255 = scalar_lea.vmem [#allocation0], 208
    %1256 = vst [vmem:[%s1255] sm:$0x2] %v1252
    %s1257 = scalar_lea.vmem [#allocation1], 312
    %v1258 = vld [vmem:[%s1257] sm:$0x3]
    %s1259 = scalar_lea.vmem [#allocation0], 89
    %1260 = vst [vmem:[%s1259] sm:$0x1] %v1258
    %s1261 = scalar_lea.vmem [#allocation0], 216
    %1262 = vst [vmem:[%s1261] sm:$0x2] %v1258
    %s1263 = scalar_lea.vmem [#allocation1], 320
    %v1264 = vld [vmem:[%s1263] sm:$0x3]
    %s1265 = scalar_lea.vmem [#allocation0], 66
    %1266 = vst [vmem:[%s1265] sm:$0x1] %v1264
    %s1267 = scalar_lea.vmem [#allocation0], 193
    %1268 = vst [vmem:[%s1267] sm:$0x2] %v1264
    %s1269 = scalar_lea.vmem [#allocation1], 328
    %v1270 = vld [vmem:[%s1269] sm:$0x3]
    %s1271 = scalar_lea.vmem [#allocation0], 74
    %1272 = vst [vmem:[%s1271] sm:$0x1] %v1270
    %s1273 = scalar_lea.vmem [#allocation0], 201
    %1274 = vst [vmem:[%s1273] sm:$0x2] %v1270
    %s1275 = scalar_lea.vmem [#allocation1], 336
    %v1276 = vld [vmem:[%s1275] sm:$0x3]
    %s1277 = scalar_lea.vmem [#allocation0], 82
    %1278 = vst [vmem:[%s1277] sm:$0x1] %v1276
    %s1279 = scalar_lea.vmem [#allocation0], 209
    %1280 = vst [vmem:[%s1279] sm:$0x2] %v1276
    %s1281 = scalar_lea.vmem [#allocation1], 344
    %v1282 = vld [vmem:[%s1281] sm:$0x3]
    %s1283 = scalar_lea.vmem [#allocation0], 90
    %1284 = vst [vmem:[%s1283] sm:$0x1] %v1282
    %s1285 = scalar_lea.vmem [#allocation0], 217
    %1286 = vst [vmem:[%s1285] sm:$0x2] %v1282
    %s1287 = scalar_lea.vmem [#allocation1], 352
    %v1288 = vld [vmem:[%s1287] sm:$0x3]
    %s1289 = scalar_lea.vmem [#allocation0], 67
    %1290 = vst [vmem:[%s1289] sm:$0x1] %v1288
    %s1291 = scalar_lea.vmem [#allocation0], 194
    %1292 = vst [vmem:[%s1291] sm:$0x2] %v1288
    %s1293 = scalar_lea.vmem [#allocation1], 360
    %v1294 = vld [vmem:[%s1293] sm:$0x3]
    %s1295 = scalar_lea.vmem [#allocation0], 75
    %1296 = vst [vmem:[%s1295] sm:$0x1] %v1294
    %s1297 = scalar_lea.vmem [#allocation0], 202
    %1298 = vst [vmem:[%s1297] sm:$0x2] %v1294
    %s1299 = scalar_lea.vmem [#allocation1], 368
    %v1300 = vld [vmem:[%s1299] sm:$0x3]
    %s1301 = scalar_lea.vmem [#allocation0], 83
    %1302 = vst [vmem:[%s1301] sm:$0x1] %v1300
    %s1303 = scalar_lea.vmem [#allocation0], 210
    %1304 = vst [vmem:[%s1303] sm:$0x2] %v1300
    %s1305 = scalar_lea.vmem [#allocation1], 376
    %v1306 = vld [vmem:[%s1305] sm:$0x3]
    %s1307 = scalar_lea.vmem [#allocation0], 91
    %1308 = vst [vmem:[%s1307] sm:$0x1] %v1306
    %s1309 = scalar_lea.vmem [#allocation0], 218
    %1310 = vst [vmem:[%s1309] sm:$0x2] %v1306
    %s1311 = scalar_lea.vmem [#allocation1], 384
    %v1312 = vld [vmem:[%s1311] sm:$0x3]
    %s1313 = scalar_lea.vmem [#allocation0], 96
    %1314 = vst [vmem:[%s1313] sm:$0x1] %v1312
    %s1315 = scalar_lea.vmem [#allocation0], 223
    %1316 = vst [vmem:[%s1315] sm:$0x2] %v1312
    %s1317 = scalar_lea.vmem [#allocation1], 392
    %v1318 = vld [vmem:[%s1317] sm:$0x3]
    %s1319 = scalar_lea.vmem [#allocation0], 104
    %1320 = vst [vmem:[%s1319] sm:$0x1] %v1318
    %s1321 = scalar_lea.vmem [#allocation0], 231
    %1322 = vst [vmem:[%s1321] sm:$0x2] %v1318
    %s1323 = scalar_lea.vmem [#allocation1], 400
    %v1324 = vld [vmem:[%s1323] sm:$0x3]
    %s1325 = scalar_lea.vmem [#allocation0], 112
    %1326 = vst [vmem:[%s1325] sm:$0x1] %v1324
    %s1327 = scalar_lea.vmem [#allocation0], 239
    %1328 = vst [vmem:[%s1327] sm:$0x2] %v1324
    %s1329 = scalar_lea.vmem [#allocation1], 408
    %v1330 = vld [vmem:[%s1329] sm:$0x3]
    %s1331 = scalar_lea.vmem [#allocation0], 120
    %1332 = vst [vmem:[%s1331] sm:$0x1] %v1330
    %s1333 = scalar_lea.vmem [#allocation0], 247
    %1334 = vst [vmem:[%s1333] sm:$0x2] %v1330
    %s1335 = scalar_lea.vmem [#allocation1], 416
    %v1336 = vld [vmem:[%s1335] sm:$0x3]
    %s1337 = scalar_lea.vmem [#allocation0], 97
    %1338 = vst [vmem:[%s1337] sm:$0x1] %v1336
    %s1339 = scalar_lea.vmem [#allocation0], 224
    %1340 = vst [vmem:[%s1339] sm:$0x2] %v1336
    %s1341 = scalar_lea.vmem [#allocation1], 424
    %v1342 = vld [vmem:[%s1341] sm:$0x3]
    %s1343 = scalar_lea.vmem [#allocation0], 105
    %1344 = vst [vmem:[%s1343] sm:$0x1] %v1342
    %s1345 = scalar_lea.vmem [#allocation0], 232
    %1346 = vst [vmem:[%s1345] sm:$0x2] %v1342
    %s1347 = scalar_lea.vmem [#allocation1], 432
    %v1348 = vld [vmem:[%s1347] sm:$0x3]
    %s1349 = scalar_lea.vmem [#allocation0], 113
    %1350 = vst [vmem:[%s1349] sm:$0x1] %v1348
    %s1351 = scalar_lea.vmem [#allocation0], 240
    %1352 = vst [vmem:[%s1351] sm:$0x2] %v1348
    %s1353 = scalar_lea.vmem [#allocation1], 440
    %v1354 = vld [vmem:[%s1353] sm:$0x3]
    %s1355 = scalar_lea.vmem [#allocation0], 121
    %1356 = vst [vmem:[%s1355] sm:$0x1] %v1354
    %s1357 = scalar_lea.vmem [#allocation0], 248
    %1358 = vst [vmem:[%s1357] sm:$0x2] %v1354
    %s1359 = scalar_lea.vmem [#allocation1], 448
    %v1360 = vld [vmem:[%s1359] sm:$0x3]
    %s1361 = scalar_lea.vmem [#allocation0], 98
    %1362 = vst [vmem:[%s1361] sm:$0x1] %v1360
    %s1363 = scalar_lea.vmem [#allocation0], 225
    %1364 = vst [vmem:[%s1363] sm:$0x2] %v1360
    %s1365 = scalar_lea.vmem [#allocation1], 456
    %v1366 = vld [vmem:[%s1365] sm:$0x3]
    %s1367 = scalar_lea.vmem [#allocation0], 106
    %1368 = vst [vmem:[%s1367] sm:$0x1] %v1366
    %s1369 = scalar_lea.vmem [#allocation0], 233
    %1370 = vst [vmem:[%s1369] sm:$0x2] %v1366
    %s1371 = scalar_lea.vmem [#allocation1], 464
    %v1372 = vld [vmem:[%s1371] sm:$0x3]
    %s1373 = scalar_lea.vmem [#allocation0], 114
    %1374 = vst [vmem:[%s1373] sm:$0x1] %v1372
    %s1375 = scalar_lea.vmem [#allocation0], 241
    %1376 = vst [vmem:[%s1375] sm:$0x2] %v1372
    %s1377 = scalar_lea.vmem [#allocation1], 472
    %v1378 = vld [vmem:[%s1377] sm:$0x3]
    %s1379 = scalar_lea.vmem [#allocation0], 122
    %1380 = vst [vmem:[%s1379] sm:$0x1] %v1378
    %s1381 = scalar_lea.vmem [#allocation0], 249
    %1382 = vst [vmem:[%s1381] sm:$0x2] %v1378
    %s1383 = scalar_lea.vmem [#allocation1], 480
    %v1384 = vld [vmem:[%s1383] sm:$0x3]
    %s1385 = scalar_lea.vmem [#allocation0], 99
    %1386 = vst [vmem:[%s1385] sm:$0x1] %v1384
    %s1387 = scalar_lea.vmem [#allocation0], 226
    %1388 = vst [vmem:[%s1387] sm:$0x2] %v1384
    %s1389 = scalar_lea.vmem [#allocation1], 488
    %v1390 = vld [vmem:[%s1389] sm:$0x3]
    %s1391 = scalar_lea.vmem [#allocation0], 107
    %1392 = vst [vmem:[%s1391] sm:$0x1] %v1390
    %s1393 = scalar_lea.vmem [#allocation0], 234
    %1394 = vst [vmem:[%s1393] sm:$0x2] %v1390
    %s1395 = scalar_lea.vmem [#allocation1], 496
    %v1396 = vld [vmem:[%s1395] sm:$0x3]
    %s1397 = scalar_lea.vmem [#allocation0], 115
    %1398 = vst [vmem:[%s1397] sm:$0x1] %v1396
    %s1399 = scalar_lea.vmem [#allocation0], 242
    %1400 = vst [vmem:[%s1399] sm:$0x2] %v1396
    %s1401 = scalar_lea.vmem [#allocation1], 504
    %v1402 = vld [vmem:[%s1401] sm:$0x3]
    %s1403 = scalar_lea.vmem [#allocation0], 123
    %1404 = vst [vmem:[%s1403] sm:$0x1] %v1402
    %s1405 = scalar_lea.vmem [#allocation0], 250
    %1406 = vst [vmem:[%s1405] sm:$0x2] %v1402
    %s1408 = smul.u32 2, 2
    %s1409 = sshllo.u32 0, %s1408
    %s1410 = sshrl.u32 %s1408, 1
    %v1411 = vld [vmem:[#allocation0] sm:%s1409]
    %v1412 = vpack.c.bf16 0.0, %v1411
    %s1413 = sshllo.u32 0, %s1410
    %1414 = vst [vmem:[%s1] sm:%s1413] %v1412
    %s1415 = scalar_lea.vmem [#allocation0], 8
    %v1416 = vld [vmem:[%s1415] sm:%s1409]
    %v1417 = vpack.c.bf16 0.0, %v1416
    %s1418 = sshllo.u32 0, %s1410
    %s1419 = scalar_lea.vmem %s1, 2
    %1420 = vst [vmem:[%s1419] sm:%s1418] %v1417
    %s1421 = scalar_lea.vmem [#allocation0], 16
    %v1422 = vld [vmem:[%s1421] sm:%s1409]
    %v1423 = vpack.c.bf16 0.0, %v1422
    %s1424 = sshllo.u32 0, %s1410
    %s1425 = smul.addr 2, 2
    %s1426 = scalar_lea.vmem %s1, %s1425
    %1427 = vst [vmem:[%s1426] sm:%s1424] %v1423
    %s1428 = scalar_lea.vmem [#allocation0], 24
    %v1429 = vld [vmem:[%s1428] sm:%s1409]
    %v1430 = vpack.c.bf16 0.0, %v1429
    %s1431 = sshllo.u32 0, %s1410
    %s1432 = smul.addr 2, 3
    %s1433 = scalar_lea.vmem %s1, %s1432
    %1434 = vst [vmem:[%s1433] sm:%s1431] %v1430
    %s1435 = scalar_lea.vmem [#allocation0], 32
    %v1436 = vld [vmem:[%s1435] sm:%s1409]
    %v1437 = vpack.c.bf16 0.0, %v1436
    %s1438 = sshllo.u32 0, %s1410
    %s1439 = smul.addr 2, 4
    %s1440 = scalar_lea.vmem %s1, %s1439
    %1441 = vst [vmem:[%s1440] sm:%s1438] %v1437
    %s1442 = scalar_lea.vmem [#allocation0], 40
    %v1443 = vld [vmem:[%s1442] sm:%s1409]
    %v1444 = vpack.c.bf16 0.0, %v1443
    %s1445 = sshllo.u32 0, %s1410
    %s1446 = smul.addr 2, 5
    %s1447 = scalar_lea.vmem %s1, %s1446
    %1448 = vst [vmem:[%s1447] sm:%s1445] %v1444
    %s1449 = scalar_lea.vmem [#allocation0], 48
    %v1450 = vld [vmem:[%s1449] sm:%s1409]
    %v1451 = vpack.c.bf16 0.0, %v1450
    %s1452 = sshllo.u32 0, %s1410
    %s1453 = smul.addr 2, 6
    %s1454 = scalar_lea.vmem %s1, %s1453
    %1455 = vst [vmem:[%s1454] sm:%s1452] %v1451
    %s1456 = scalar_lea.vmem [#allocation0], 56
    %v1457 = vld [vmem:[%s1456] sm:%s1409]
    %v1458 = vpack.c.bf16 0.0, %v1457
    %s1459 = sshllo.u32 0, %s1410
    %s1460 = smul.addr 2, 7
    %s1461 = scalar_lea.vmem %s1, %s1460
    %1462 = vst [vmem:[%s1461] sm:%s1459] %v1458
    %s1463 = scalar_lea.vmem [#allocation0], 64
    %v1464 = vld [vmem:[%s1463] sm:%s1409]
    %v1465 = vpack.c.bf16 0.0, %v1464
    %s1466 = sshllo.u32 0, %s1410
    %s1467 = smul.addr 2, 8
    %s1468 = scalar_lea.vmem %s1, %s1467
    %1469 = vst [vmem:[%s1468] sm:%s1466] %v1465
    %s1470 = scalar_lea.vmem [#allocation0], 72
    %v1471 = vld [vmem:[%s1470] sm:%s1409]
    %v1472 = vpack.c.bf16 0.0, %v1471
    %s1473 = sshllo.u32 0, %s1410
    %s1474 = smul.addr 2, 9
    %s1475 = scalar_lea.vmem %s1, %s1474
    %1476 = vst [vmem:[%s1475] sm:%s1473] %v1472
    %s1477 = scalar_lea.vmem [#allocation0], 80
    %v1478 = vld [vmem:[%s1477] sm:%s1409]
    %v1479 = vpack.c.bf16 0.0, %v1478
    %s1480 = sshllo.u32 0, %s1410
    %s1481 = smul.addr 2, 10
    %s1482 = scalar_lea.vmem %s1, %s1481
    %1483 = vst [vmem:[%s1482] sm:%s1480] %v1479
    %s1484 = scalar_lea.vmem [#allocation0], 88
    %v1485 = vld [vmem:[%s1484] sm:%s1409]
    %v1486 = vpack.c.bf16 0.0, %v1485
    %s1487 = sshllo.u32 0, %s1410
    %s1488 = smul.addr 2, 11
    %s1489 = scalar_lea.vmem %s1, %s1488
    %1490 = vst [vmem:[%s1489] sm:%s1487] %v1486
    %s1491 = scalar_lea.vmem [#allocation0], 96
    %v1492 = vld [vmem:[%s1491] sm:%s1409]
    %v1493 = vpack.c.bf16 0.0, %v1492
    %s1494 = sshllo.u32 0, %s1410
    %s1495 = smul.addr 2, 12
    %s1496 = scalar_lea.vmem %s1, %s1495
    %1497 = vst [vmem:[%s1496] sm:%s1494] %v1493
    %s1498 = scalar_lea.vmem [#allocation0], 104
    %v1499 = vld [vmem:[%s1498] sm:%s1409]
    %v1500 = vpack.c.bf16 0.0, %v1499
    %s1501 = sshllo.u32 0, %s1410
    %s1502 = smul.addr 2, 13
    %s1503 = scalar_lea.vmem %s1, %s1502
    %1504 = vst [vmem:[%s1503] sm:%s1501] %v1500
    %s1505 = scalar_lea.vmem [#allocation0], 112
    %v1506 = vld [vmem:[%s1505] sm:%s1409]
    %v1507 = vpack.c.bf16 0.0, %v1506
    %s1508 = sshllo.u32 0, %s1410
    %s1509 = smul.addr 2, 14
    %s1510 = scalar_lea.vmem %s1, %s1509
    %1511 = vst [vmem:[%s1510] sm:%s1508] %v1507
    %s1512 = scalar_lea.vmem [#allocation0], 120
    %v1513 = vld [vmem:[%s1512] sm:%s1409]
    %v1514 = vpack.c.bf16 0.0, %v1513
    %s1515 = sshllo.u32 0, %s1410
    %s1516 = smul.addr 2, 15
    %s1517 = scalar_lea.vmem %s1, %s1516
    %1518 = vst [vmem:[%s1517] sm:%s1515] %v1514
    %s1519 = scalar_lea.vmem [#allocation0], 128
    %v1520 = vld [vmem:[%s1519] sm:%s1409]
    %v1521 = vpack.c.bf16 0.0, %v1520
    %s1522 = sshllo.u32 0, %s1410
    %s1523 = smul.addr 2, 16
    %s1524 = scalar_lea.vmem %s1, %s1523
    %1525 = vst [vmem:[%s1524] sm:%s1522] %v1521
    %s1526 = scalar_lea.vmem [#allocation0], 136
    %v1527 = vld [vmem:[%s1526] sm:%s1409]
    %v1528 = vpack.c.bf16 0.0, %v1527
    %s1529 = sshllo.u32 0, %s1410
    %s1530 = smul.addr 2, 17
    %s1531 = scalar_lea.vmem %s1, %s1530
    %1532 = vst [vmem:[%s1531] sm:%s1529] %v1528
    %s1533 = scalar_lea.vmem [#allocation0], 144
    %v1534 = vld [vmem:[%s1533] sm:%s1409]
    %v1535 = vpack.c.bf16 0.0, %v1534
    %s1536 = sshllo.u32 0, %s1410
    %s1537 = smul.addr 2, 18
    %s1538 = scalar_lea.vmem %s1, %s1537
    %1539 = vst [vmem:[%s1538] sm:%s1536] %v1535
    %s1540 = scalar_lea.vmem [#allocation0], 152
    %v1541 = vld [vmem:[%s1540] sm:%s1409]
    %v1542 = vpack.c.bf16 0.0, %v1541
    %s1543 = sshllo.u32 0, %s1410
    %s1544 = smul.addr 2, 19
    %s1545 = scalar_lea.vmem %s1, %s1544
    %1546 = vst [vmem:[%s1545] sm:%s1543] %v1542
    %s1547 = scalar_lea.vmem [#allocation0], 160
    %v1548 = vld [vmem:[%s1547] sm:%s1409]
    %v1549 = vpack.c.bf16 0.0, %v1548
    %s1550 = sshllo.u32 0, %s1410
    %s1551 = smul.addr 2, 20
    %s1552 = scalar_lea.vmem %s1, %s1551
    %1553 = vst [vmem:[%s1552] sm:%s1550] %v1549
    %s1554 = scalar_lea.vmem [#allocation0], 168
    %v1555 = vld [vmem:[%s1554] sm:%s1409]
    %v1556 = vpack.c.bf16 0.0, %v1555
    %s1557 = sshllo.u32 0, %s1410
    %s1558 = smul.addr 2, 21
    %s1559 = scalar_lea.vmem %s1, %s1558
    %1560 = vst [vmem:[%s1559] sm:%s1557] %v1556
    %s1561 = scalar_lea.vmem [#allocation0], 176
    %v1562 = vld [vmem:[%s1561] sm:%s1409]
    %v1563 = vpack.c.bf16 0.0, %v1562
    %s1564 = sshllo.u32 0, %s1410
    %s1565 = smul.addr 2, 22
    %s1566 = scalar_lea.vmem %s1, %s1565
    %1567 = vst [vmem:[%s1566] sm:%s1564] %v1563
    %s1568 = scalar_lea.vmem [#allocation0], 184
    %v1569 = vld [vmem:[%s1568] sm:%s1409]
    %v1570 = vpack.c.bf16 0.0, %v1569
    %s1571 = sshllo.u32 0, %s1410
    %s1572 = smul.addr 2, 23
    %s1573 = scalar_lea.vmem %s1, %s1572
    %1574 = vst [vmem:[%s1573] sm:%s1571] %v1570
    %s1575 = scalar_lea.vmem [#allocation0], 192
    %v1576 = vld [vmem:[%s1575] sm:%s1409]
    %v1577 = vpack.c.bf16 0.0, %v1576
    %s1578 = sshllo.u32 0, %s1410
    %s1579 = smul.addr 2, 24
    %s1580 = scalar_lea.vmem %s1, %s1579
    %1581 = vst [vmem:[%s1580] sm:%s1578] %v1577
    %s1582 = scalar_lea.vmem [#allocation0], 200
    %v1583 = vld [vmem:[%s1582] sm:%s1409]
    %v1584 = vpack.c.bf16 0.0, %v1583
    %s1585 = sshllo.u32 0, %s1410
    %s1586 = smul.addr 2, 25
    %s1587 = scalar_lea.vmem %s1, %s1586
    %1588 = vst [vmem:[%s1587] sm:%s1585] %v1584
    %s1589 = scalar_lea.vmem [#allocation0], 208
    %v1590 = vld [vmem:[%s1589] sm:%s1409]
    %v1591 = vpack.c.bf16 0.0, %v1590
    %s1592 = sshllo.u32 0, %s1410
    %s1593 = smul.addr 2, 26
    %s1594 = scalar_lea.vmem %s1, %s1593
    %1595 = vst [vmem:[%s1594] sm:%s1592] %v1591
    %s1596 = scalar_lea.vmem [#allocation0], 216
    %v1597 = vld [vmem:[%s1596] sm:%s1409]
    %v1598 = vpack.c.bf16 0.0, %v1597
    %s1599 = sshllo.u32 0, %s1410
    %s1600 = smul.addr 2, 27
    %s1601 = scalar_lea.vmem %s1, %s1600
    %1602 = vst [vmem:[%s1601] sm:%s1599] %v1598
    %s1603 = scalar_lea.vmem [#allocation0], 224
    %v1604 = vld [vmem:[%s1603] sm:%s1409]
    %v1605 = vpack.c.bf16 0.0, %v1604
    %s1606 = sshllo.u32 0, %s1410
    %s1607 = smul.addr 2, 28
    %s1608 = scalar_lea.vmem %s1, %s1607
    %1609 = vst [vmem:[%s1608] sm:%s1606] %v1605
    %s1610 = scalar_lea.vmem [#allocation0], 232
    %v1611 = vld [vmem:[%s1610] sm:%s1409]
    %v1612 = vpack.c.bf16 0.0, %v1611
    %s1613 = sshllo.u32 0, %s1410
    %s1614 = smul.addr 2, 29
    %s1615 = scalar_lea.vmem %s1, %s1614
    %1616 = vst [vmem:[%s1615] sm:%s1613] %v1612
    %s1617 = scalar_lea.vmem [#allocation0], 240
    %v1618 = vld [vmem:[%s1617] sm:%s1409]
    %v1619 = vpack.c.bf16 0.0, %v1618
    %s1620 = sshllo.u32 0, %s1410
    %s1621 = smul.addr 2, 30
    %s1622 = scalar_lea.vmem %s1, %s1621
    %1623 = vst [vmem:[%s1622] sm:%s1620] %v1619
    %s1624 = scalar_lea.vmem [#allocation0], 248
    %v1625 = vld [vmem:[%s1624] sm:%s1409]
    %v1626 = vpack.c.bf16 0.0, %v1625
    %s1627 = sshllo.u32 0, %s1410
    %s1628 = smul.addr 2, 31
    %s1629 = scalar_lea.vmem %s1, %s1628
    %1630 = vst [vmem:[%s1629] sm:%s1627] %v1626

// kernel: generator_forward.8
$region0: #{generator_forward.8}
  #allocation0 [shape = 'u32[]', space=smem, size = 0x4, offset = 0x4, fixed_abs, tag = 'smem constant byte address 0x4 - core index']
  #allocation1 [shape = 'u32[144,128]{1,0:T(1,128)}', space=vmem, size = 0x12000, scoped, tag = 'internal scratch']
  %s0 = inlined_call_operand.vmem [shape: f32[1,8,8192], index: 0, kind: input, shape index: {}]
  %s1 = inlined_call_operand.vmem [shape: f32[1,8192], index: 1, kind: input, shape index: {}]
  %s2 = inlined_call_operand.vmem [shape: f32[1,8192], index: 2, kind: input, shape index: {}]
  %s3 = inlined_call_operand.vmem [shape: bf16[1,8,8192], index: 3, kind: output, shape index: {}]
  %s4 = sld [smem:[#allocation0]]
  $region22: #{generator_forward.8} parent=0
    _
  %s6 = ssub.s32 1, %s4
  %s7 = scalar_select 0, %s6, %s4
  // Predicated region
  $region2: #{generator_forward.8} parent=0 // pred_check
    _
  $region3: #{generator_forward.8} parent=0 // pred_check_branch
    %9 = sbr.rel (0) target = $region5
  $region4: #{generator_forward.8} parent=0 // pred_region
    _
  $region5: #{generator_forward.8} parent=0 // pred_fallthru
    _
  // Predicated region
  $region6: #{generator_forward.8} parent=0 // pred_check
    _
  $region7: #{generator_forward.8} parent=0 // pred_check_branch
    %11 = sbr.rel (0) target = $region9
  $region8: #{generator_forward.8} parent=0 // pred_region
    _
  $region9: #{generator_forward.8} parent=0 // pred_fallthru
    _
  // Predicated region
  $region10: #{generator_forward.8} parent=0 // pred_check
    _
  $region11: #{generator_forward.8} parent=0 // pred_check_branch
    %13 = sbr.rel (0) target = $region13
  $region12: #{generator_forward.8} parent=0 // pred_region
    _
  $region13: #{generator_forward.8} parent=0 // pred_fallthru
    _
  %v14 = vld [vmem:[%s0] sm:$0xff]
  %v15 = vld [vmem:[%s0 + $0x8] sm:$0xff]
  %v16 = vld [vmem:[%s0 + $0x10] sm:$0xff]
  %v17 = vld [vmem:[%s0 + $0x18] sm:$0xff]
  %v18 = vld [vmem:[%s0 + $0x20] sm:$0xff]
  %v19 = vld [vmem:[%s0 + $0x28] sm:$0xff]
  %v20 = vld [vmem:[%s0 + $0x30] sm:$0xff]
  %v21 = vld [vmem:[%s0 + $0x38] sm:$0xff]
  %v22 = vld [vmem:[%s0 + $0x40] sm:$0xff]
  %v23 = vld [vmem:[%s0 + $0x48] sm:$0xff]
  %v24 = vld [vmem:[%s0 + $0x50] sm:$0xff]
  %v25 = vld [vmem:[%s0 + $0x58] sm:$0xff]
  %v26 = vld [vmem:[%s0 + $0x60] sm:$0xff]
  %v27 = vld [vmem:[%s0 + $0x68] sm:$0xff]
  %v28 = vld [vmem:[%s0 + $0x70] sm:$0xff]
  %v29 = vld [vmem:[%s0 + $0x78] sm:$0xff]
  %v30 = vld [vmem:[%s0 + $0x80] sm:$0xff]
  %v31 = vld [vmem:[%s0 + $0x88] sm:$0xff]
  %v32 = vld [vmem:[%s0 + $0x90] sm:$0xff]
  %v33 = vld [vmem:[%s0 + $0x98] sm:$0xff]
  %v34 = vld [vmem:[%s0 + $0xa0] sm:$0xff]
  %v35 = vld [vmem:[%s0 + $0xa8] sm:$0xff]
  %v36 = vld [vmem:[%s0 + $0xb0] sm:$0xff]
  %v37 = vld [vmem:[%s0 + $0xb8] sm:$0xff]
  %v38 = vld [vmem:[%s0 + $0xc0] sm:$0xff]
  %v39 = vld [vmem:[%s0 + $0xc8] sm:$0xff]
  %v40 = vld [vmem:[%s0 + $0xd0] sm:$0xff]
  %v41 = vld [vmem:[%s0 + $0xd8] sm:$0xff]
  %v42 = vld [vmem:[%s0 + $0xe0] sm:$0xff]
  %v43 = vld [vmem:[%s0 + $0xe8] sm:$0xff]
  %v44 = vld [vmem:[%s0 + $0xf0] sm:$0xff]
  %v45 = vld [vmem:[%s0 + $0xf8] sm:$0xff]
  %v46 = vld [vmem:[%s0 + $0x100] sm:$0xff]
  %v47 = vld [vmem:[%s0 + $0x108] sm:$0xff]
  %v48 = vld [vmem:[%s0 + $0x110] sm:$0xff]
  %v49 = vld [vmem:[%s0 + $0x118] sm:$0xff]
  %v50 = vld [vmem:[%s0 + $0x120] sm:$0xff]
  %v51 = vld [vmem:[%s0 + $0x128] sm:$0xff]
  %v52 = vld [vmem:[%s0 + $0x130] sm:$0xff]
  %v53 = vld [vmem:[%s0 + $0x138] sm:$0xff]
  %v54 = vld [vmem:[%s0 + $0x140] sm:$0xff]
  %v55 = vld [vmem:[%s0 + $0x148] sm:$0xff]
  %v56 = vld [vmem:[%s0 + $0x150] sm:$0xff]
  %v57 = vld [vmem:[%s0 + $0x158] sm:$0xff]
  %v58 = vld [vmem:[%s0 + $0x160] sm:$0xff]
  %v59 = vld [vmem:[%s0 + $0x168] sm:$0xff]
  %v60 = vld [vmem:[%s0 + $0x170] sm:$0xff]
  %v61 = vld [vmem:[%s0 + $0x178] sm:$0xff]
  %v62 = vld [vmem:[%s0 + $0x180] sm:$0xff]
  %v63 = vld [vmem:[%s0 + $0x188] sm:$0xff]
  %v64 = vld [vmem:[%s0 + $0x190] sm:$0xff]
  %v65 = vld [vmem:[%s0 + $0x198] sm:$0xff]
  %v66 = vld [vmem:[%s0 + $0x1a0] sm:$0xff]
  %v67 = vld [vmem:[%s0 + $0x1a8] sm:$0xff]
  %v68 = vld [vmem:[%s0 + $0x1b0] sm:$0xff]
  %v69 = vld [vmem:[%s0 + $0x1b8] sm:$0xff]
  %v70 = vld [vmem:[%s0 + $0x1c0] sm:$0xff]
  %v71 = vld [vmem:[%s0 + $0x1c8] sm:$0xff]
  %v72 = vld [vmem:[%s0 + $0x1d0] sm:$0xff]
  %v73 = vld [vmem:[%s0 + $0x1d8] sm:$0xff]
  %v74 = vld [vmem:[%s0 + $0x1e0] sm:$0xff]
  %v75 = vld [vmem:[%s0 + $0x1e8] sm:$0xff]
  %v76 = vld [vmem:[%s0 + $0x1f0] sm:$0xff]
  %v77 = vld [vmem:[%s0 + $0x1f8] sm:$0xff]
  %v78 = vld [vmem:[%s1] sm:$0xff]
  %v79 = vld [vmem:[%s1 + $0x8] sm:$0xff]
  %v80 = vld [vmem:[%s1 + $0x10] sm:$0xff]
  %v81 = vld [vmem:[%s1 + $0x18] sm:$0xff]
  %v82 = vld [vmem:[%s1 + $0x20] sm:$0xff]
  %v83 = vld [vmem:[%s1 + $0x28] sm:$0xff]
  %v84 = vld [vmem:[%s1 + $0x30] sm:$0xff]
  %v85 = vld [vmem:[%s1 + $0x38] sm:$0xff]
  %v94 = vlaneseq
  %v95 = vshrl.u32 %v94, 7
  %v96 = vsub.s32 0, %v95
  %v97 = vrot.slane %v78, %v96
  %v98 = vlaneseq
  %v99 = vshrl.u32 %v98, 7
  %v100 = vsub.s32 1, %v99
  %v101 = vrot.slane %v78, %v100
  %v102 = vlaneseq
  %v103 = vshrl.u32 %v102, 7
  %v104 = vsub.s32 2, %v103
  %v105 = vrot.slane %v78, %v104
  %v106 = vlaneseq
  %v107 = vshrl.u32 %v106, 7
  %v108 = vsub.s32 3, %v107
  %v109 = vrot.slane %v78, %v108
  %v110 = vlaneseq
  %v111 = vshrl.u32 %v110, 7
  %v112 = vsub.s32 4, %v111
  %v113 = vrot.slane %v78, %v112
  %v114 = vlaneseq
  %v115 = vshrl.u32 %v114, 7
  %v116 = vsub.s32 5, %v115
  %v117 = vrot.slane %v78, %v116
  %v118 = vlaneseq
  %v119 = vshrl.u32 %v118, 7
  %v120 = vsub.s32 6, %v119
  %v121 = vrot.slane %v78, %v120
  %v122 = vlaneseq
  %v123 = vshrl.u32 %v122, 7
  %v124 = vsub.s32 7, %v123
  %v125 = vrot.slane %v78, %v124
  %v126 = vlaneseq
  %v127 = vshrl.u32 %v126, 7
  %v128 = vsub.s32 0, %v127
  %v129 = vrot.slane %v79, %v128
  %v130 = vlaneseq
  %v131 = vshrl.u32 %v130, 7
  %v132 = vsub.s32 1, %v131
  %v133 = vrot.slane %v79, %v132
  %v134 = vlaneseq
  %v135 = vshrl.u32 %v134, 7
  %v136 = vsub.s32 2, %v135
  %v137 = vrot.slane %v79, %v136
  %v138 = vlaneseq
  %v139 = vshrl.u32 %v138, 7
  %v140 = vsub.s32 3, %v139
  %v141 = vrot.slane %v79, %v140
  %v142 = vlaneseq
  %v143 = vshrl.u32 %v142, 7
  %v144 = vsub.s32 4, %v143
  %v145 = vrot.slane %v79, %v144
  %v146 = vlaneseq
  %v147 = vshrl.u32 %v146, 7
  %v148 = vsub.s32 5, %v147
  %v149 = vrot.slane %v79, %v148
  %v150 = vlaneseq
  %v151 = vshrl.u32 %v150, 7
  %v152 = vsub.s32 6, %v151
  %v153 = vrot.slane %v79, %v152
  %v154 = vlaneseq
  %v155 = vshrl.u32 %v154, 7
  %v156 = vsub.s32 7, %v155
  %v157 = vrot.slane %v79, %v156
  %v158 = vlaneseq
  %v159 = vshrl.u32 %v158, 7
  %v160 = vsub.s32 0, %v159
  %v161 = vrot.slane %v80, %v160
  %v162 = vlaneseq
  %v163 = vshrl.u32 %v162, 7
  %v164 = vsub.s32 1, %v163
  %v165 = vrot.slane %v80, %v164
  %v166 = vlaneseq
  %v167 = vshrl.u32 %v166, 7
  %v168 = vsub.s32 2, %v167
  %v169 = vrot.slane %v80, %v168
  %v170 = vlaneseq
  %v171 = vshrl.u32 %v170, 7
  %v172 = vsub.s32 3, %v171
  %v173 = vrot.slane %v80, %v172
  %v174 = vlaneseq
  %v175 = vshrl.u32 %v174, 7
  %v176 = vsub.s32 4, %v175
  %v177 = vrot.slane %v80, %v176
  %v178 = vlaneseq
  %v179 = vshrl.u32 %v178, 7
  %v180 = vsub.s32 5, %v179
  %v181 = vrot.slane %v80, %v180
  %v182 = vlaneseq
  %v183 = vshrl.u32 %v182, 7
  %v184 = vsub.s32 6, %v183
  %v185 = vrot.slane %v80, %v184
  %v186 = vlaneseq
  %v187 = vshrl.u32 %v186, 7
  %v188 = vsub.s32 7, %v187
  %v189 = vrot.slane %v80, %v188
  %v190 = vlaneseq
  %v191 = vshrl.u32 %v190, 7
  %v192 = vsub.s32 0, %v191
  %v193 = vrot.slane %v81, %v192
  %v194 = vlaneseq
  %v195 = vshrl.u32 %v194, 7
  %v196 = vsub.s32 1, %v195
  %v197 = vrot.slane %v81, %v196
  %v198 = vlaneseq
  %v199 = vshrl.u32 %v198, 7
  %v200 = vsub.s32 2, %v199
  %v201 = vrot.slane %v81, %v200
  %v202 = vlaneseq
  %v203 = vshrl.u32 %v202, 7
  %v204 = vsub.s32 3, %v203
  %v205 = vrot.slane %v81, %v204
  %v206 = vlaneseq
  %v207 = vshrl.u32 %v206, 7
  %v208 = vsub.s32 4, %v207
  %v209 = vrot.slane %v81, %v208
  %v210 = vlaneseq
  %v211 = vshrl.u32 %v210, 7
  %v212 = vsub.s32 5, %v211
  %v213 = vrot.slane %v81, %v212
  %v214 = vlaneseq
  %v215 = vshrl.u32 %v214, 7
  %v216 = vsub.s32 6, %v215
  %v217 = vrot.slane %v81, %v216
  %v218 = vlaneseq
  %v219 = vshrl.u32 %v218, 7
  %v220 = vsub.s32 7, %v219
  %v221 = vrot.slane %v81, %v220
  %v222 = vlaneseq
  %v223 = vshrl.u32 %v222, 7
  %v224 = vsub.s32 0, %v223
  %v225 = vrot.slane %v82, %v224
  %v226 = vlaneseq
  %v227 = vshrl.u32 %v226, 7
  %v228 = vsub.s32 1, %v227
  %v229 = vrot.slane %v82, %v228
  %v230 = vlaneseq
  %v231 = vshrl.u32 %v230, 7
  %v232 = vsub.s32 2, %v231
  %v233 = vrot.slane %v82, %v232
  %v234 = vlaneseq
  %v235 = vshrl.u32 %v234, 7
  %v236 = vsub.s32 3, %v235
  %v237 = vrot.slane %v82, %v236
  %v238 = vlaneseq
  %v239 = vshrl.u32 %v238, 7
  %v240 = vsub.s32 4, %v239
  %v241 = vrot.slane %v82, %v240
  %v242 = vlaneseq
  %v243 = vshrl.u32 %v242, 7
  %v244 = vsub.s32 5, %v243
  %v245 = vrot.slane %v82, %v244
  %v246 = vlaneseq
  %v247 = vshrl.u32 %v246, 7
  %v248 = vsub.s32 6, %v247
  %v249 = vrot.slane %v82, %v248
  %v250 = vlaneseq
  %v251 = vshrl.u32 %v250, 7
  %v252 = vsub.s32 7, %v251
  %v253 = vrot.slane %v82, %v252
  %v254 = vlaneseq
  %v255 = vshrl.u32 %v254, 7
  %v256 = vsub.s32 0, %v255
  %v257 = vrot.slane %v83, %v256
  %v258 = vlaneseq
  %v259 = vshrl.u32 %v258, 7
  %v260 = vsub.s32 1, %v259
  %v261 = vrot.slane %v83, %v260
  %v262 = vlaneseq
  %v263 = vshrl.u32 %v262, 7
  %v264 = vsub.s32 2, %v263
  %v265 = vrot.slane %v83, %v264
  %v266 = vlaneseq
  %v267 = vshrl.u32 %v266, 7
  %v268 = vsub.s32 3, %v267
  %v269 = vrot.slane %v83, %v268
  %v270 = vlaneseq
  %v271 = vshrl.u32 %v270, 7
  %v272 = vsub.s32 4, %v271
  %v273 = vrot.slane %v83, %v272
  %v274 = vlaneseq
  %v275 = vshrl.u32 %v274, 7
  %v276 = vsub.s32 5, %v275
  %v277 = vrot.slane %v83, %v276
  %v278 = vlaneseq
  %v279 = vshrl.u32 %v278, 7
  %v280 = vsub.s32 6, %v279
  %v281 = vrot.slane %v83, %v280
  %v282 = vlaneseq
  %v283 = vshrl.u32 %v282, 7
  %v284 = vsub.s32 7, %v283
  %v285 = vrot.slane %v83, %v284
  %v286 = vlaneseq
  %v287 = vshrl.u32 %v286, 7
  %v288 = vsub.s32 0, %v287
  %v289 = vrot.slane %v84, %v288
  %v290 = vlaneseq
  %v291 = vshrl.u32 %v290, 7
  %v292 = vsub.s32 1, %v291
  %v293 = vrot.slane %v84, %v292
  %v294 = vlaneseq
  %v295 = vshrl.u32 %v294, 7
  %v296 = vsub.s32 2, %v295
  %v297 = vrot.slane %v84, %v296
  %v298 = vlaneseq
  %v299 = vshrl.u32 %v298, 7
  %v300 = vsub.s32 3, %v299
  %v301 = vrot.slane %v84, %v300
  %v302 = vlaneseq
  %v303 = vshrl.u32 %v302, 7
  %v304 = vsub.s32 4, %v303
  %v305 = vrot.slane %v84, %v304
  %v306 = vlaneseq
  %v307 = vshrl.u32 %v306, 7
  %v308 = vsub.s32 5, %v307
  %v309 = vrot.slane %v84, %v308
  %v310 = vlaneseq
  %v311 = vshrl.u32 %v310, 7
  %v312 = vsub.s32 6, %v311
  %v313 = vrot.slane %v84, %v312
  %v314 = vlaneseq
  %v315 = vshrl.u32 %v314, 7
  %v316 = vsub.s32 7, %v315
  %v317 = vrot.slane %v84, %v316
  %v318 = vlaneseq
  %v319 = vshrl.u32 %v318, 7
  %v320 = vsub.s32 0, %v319
  %v321 = vrot.slane %v85, %v320
  %v322 = vlaneseq
  %v323 = vshrl.u32 %v322, 7
  %v324 = vsub.s32 1, %v323
  %v325 = vrot.slane %v85, %v324
  %v326 = vlaneseq
  %v327 = vshrl.u32 %v326, 7
  %v328 = vsub.s32 2, %v327
  %v329 = vrot.slane %v85, %v328
  %v330 = vlaneseq
  %v331 = vshrl.u32 %v330, 7
  %v332 = vsub.s32 3, %v331
  %v333 = vrot.slane %v85, %v332
  %v334 = vlaneseq
  %v335 = vshrl.u32 %v334, 7
  %v336 = vsub.s32 4, %v335
  %v337 = vrot.slane %v85, %v336
  %v338 = vlaneseq
  %v339 = vshrl.u32 %v338, 7
  %v340 = vsub.s32 5, %v339
  %v341 = vrot.slane %v85, %v340
  %v342 = vlaneseq
  %v343 = vshrl.u32 %v342, 7
  %v344 = vsub.s32 6, %v343
  %v345 = vrot.slane %v85, %v344
  %v346 = vlaneseq
  %v347 = vshrl.u32 %v346, 7
  %v348 = vsub.s32 7, %v347
  %v349 = vrot.slane %v85, %v348
  %v414 = vmul.f32 %v14, %v97
  %v415 = vmul.f32 %v15, %v101
  %v416 = vmul.f32 %v16, %v105
  %v417 = vmul.f32 %v17, %v109
  %v418 = vmul.f32 %v18, %v113
  %v419 = vmul.f32 %v19, %v117
  %v420 = vmul.f32 %v20, %v121
  %v421 = vmul.f32 %v21, %v125
  %v422 = vmul.f32 %v22, %v129
  %v423 = vmul.f32 %v23, %v133
  %v424 = vmul.f32 %v24, %v137
  %v425 = vmul.f32 %v25, %v141
  %v426 = vmul.f32 %v26, %v145
  %v427 = vmul.f32 %v27, %v149
  %v428 = vmul.f32 %v28, %v153
  %v429 = vmul.f32 %v29, %v157
  %v430 = vmul.f32 %v30, %v161
  %v431 = vmul.f32 %v31, %v165
  %v432 = vmul.f32 %v32, %v169
  %v433 = vmul.f32 %v33, %v173
  %v434 = vmul.f32 %v34, %v177
  %v435 = vmul.f32 %v35, %v181
  %v436 = vmul.f32 %v36, %v185
  %v437 = vmul.f32 %v37, %v189
  %v438 = vmul.f32 %v38, %v193
  %v439 = vmul.f32 %v39, %v197
  %v440 = vmul.f32 %v40, %v201
  %v441 = vmul.f32 %v41, %v205
  %v442 = vmul.f32 %v42, %v209
  %v443 = vmul.f32 %v43, %v213
  %v444 = vmul.f32 %v44, %v217
  %v445 = vmul.f32 %v45, %v221
  %v446 = vmul.f32 %v46, %v225
  %v447 = vmul.f32 %v47, %v229
  %v448 = vmul.f32 %v48, %v233
  %v449 = vmul.f32 %v49, %v237
  %v450 = vmul.f32 %v50, %v241
  %v451 = vmul.f32 %v51, %v245
  %v452 = vmul.f32 %v52, %v249
  %v453 = vmul.f32 %v53, %v253
  %v454 = vmul.f32 %v54, %v257
  %v455 = vmul.f32 %v55, %v261
  %v456 = vmul.f32 %v56, %v265
  %v457 = vmul.f32 %v57, %v269
  %v458 = vmul.f32 %v58, %v273
  %v459 = vmul.f32 %v59, %v277
  %v460 = vmul.f32 %v60, %v281
  %v461 = vmul.f32 %v61, %v285
  %v462 = vmul.f32 %v62, %v289
  %v463 = vmul.f32 %v63, %v293
  %v464 = vmul.f32 %v64, %v297
  %v465 = vmul.f32 %v65, %v301
  %v466 = vmul.f32 %v66, %v305
  %v467 = vmul.f32 %v67, %v309
  %v468 = vmul.f32 %v68, %v313
  %v469 = vmul.f32 %v69, %v317
  %v470 = vmul.f32 %v70, %v321
  %v471 = vmul.f32 %v71, %v325
  %v472 = vmul.f32 %v72, %v329
  %v473 = vmul.f32 %v73, %v333
  %v474 = vmul.f32 %v74, %v337
  %v475 = vmul.f32 %v75, %v341
  %v476 = vmul.f32 %v76, %v345
  %v477 = vmul.f32 %v77, %v349
  %v478 = vld [vmem:[%s2] sm:$0xff]
  %v479 = vld [vmem:[%s2 + $0x8] sm:$0xff]
  %v480 = vld [vmem:[%s2 + $0x10] sm:$0xff]
  %v481 = vld [vmem:[%s2 + $0x18] sm:$0xff]
  %v482 = vld [vmem:[%s2 + $0x20] sm:$0xff]
  %v483 = vld [vmem:[%s2 + $0x28] sm:$0xff]
  %v484 = vld [vmem:[%s2 + $0x30] sm:$0xff]
  %v485 = vld [vmem:[%s2 + $0x38] sm:$0xff]
  %v494 = vlaneseq
  %v495 = vshrl.u32 %v494, 7
  %v496 = vsub.s32 0, %v495
  %v497 = vrot.slane %v478, %v496
  %v498 = vlaneseq
  %v499 = vshrl.u32 %v498, 7
  %v500 = vsub.s32 1, %v499
  %v501 = vrot.slane %v478, %v500
  %v502 = vlaneseq
  %v503 = vshrl.u32 %v502, 7
  %v504 = vsub.s32 2, %v503
  %v505 = vrot.slane %v478, %v504
  %v506 = vlaneseq
  %v507 = vshrl.u32 %v506, 7
  %v508 = vsub.s32 3, %v507
  %v509 = vrot.slane %v478, %v508
  %v510 = vlaneseq
  %v511 = vshrl.u32 %v510, 7
  %v512 = vsub.s32 4, %v511
  %v513 = vrot.slane %v478, %v512
  %v514 = vlaneseq
  %v515 = vshrl.u32 %v514, 7
  %v516 = vsub.s32 5, %v515
  %v517 = vrot.slane %v478, %v516
  %v518 = vlaneseq
  %v519 = vshrl.u32 %v518, 7
  %v520 = vsub.s32 6, %v519
  %v521 = vrot.slane %v478, %v520
  %v522 = vlaneseq
  %v523 = vshrl.u32 %v522, 7
  %v524 = vsub.s32 7, %v523
  %v525 = vrot.slane %v478, %v524
  %v526 = vlaneseq
  %v527 = vshrl.u32 %v526, 7
  %v528 = vsub.s32 0, %v527
  %v529 = vrot.slane %v479, %v528
  %v530 = vlaneseq
  %v531 = vshrl.u32 %v530, 7
  %v532 = vsub.s32 1, %v531
  %v533 = vrot.slane %v479, %v532
  %v534 = vlaneseq
  %v535 = vshrl.u32 %v534, 7
  %v536 = vsub.s32 2, %v535
  %v537 = vrot.slane %v479, %v536
  %v538 = vlaneseq
  %v539 = vshrl.u32 %v538, 7
  %v540 = vsub.s32 3, %v539
  %v541 = vrot.slane %v479, %v540
  %v542 = vlaneseq
  %v543 = vshrl.u32 %v542, 7
  %v544 = vsub.s32 4, %v543
  %v545 = vrot.slane %v479, %v544
  %v546 = vlaneseq
  %v547 = vshrl.u32 %v546, 7
  %v548 = vsub.s32 5, %v547
  %v549 = vrot.slane %v479, %v548
  %v550 = vlaneseq
  %v551 = vshrl.u32 %v550, 7
  %v552 = vsub.s32 6, %v551
  %v553 = vrot.slane %v479, %v552
  %v554 = vlaneseq
  %v555 = vshrl.u32 %v554, 7
  %v556 = vsub.s32 7, %v555
  %v557 = vrot.slane %v479, %v556
  %v558 = vlaneseq
  %v559 = vshrl.u32 %v558, 7
  %v560 = vsub.s32 0, %v559
  %v561 = vrot.slane %v480, %v560
  %v562 = vlaneseq
  %v563 = vshrl.u32 %v562, 7
  %v564 = vsub.s32 1, %v563
  %v565 = vrot.slane %v480, %v564
  %v566 = vlaneseq
  %v567 = vshrl.u32 %v566, 7
  %v568 = vsub.s32 2, %v567
  %v569 = vrot.slane %v480, %v568
  %v570 = vlaneseq
  %v571 = vshrl.u32 %v570, 7
  %v572 = vsub.s32 3, %v571
  %v573 = vrot.slane %v480, %v572
  %v574 = vlaneseq
  %v575 = vshrl.u32 %v574, 7
  %v576 = vsub.s32 4, %v575
  %v577 = vrot.slane %v480, %v576
  %v578 = vlaneseq
  %v579 = vshrl.u32 %v578, 7
  %v580 = vsub.s32 5, %v579
  %v581 = vrot.slane %v480, %v580
  %v582 = vlaneseq
  %v583 = vshrl.u32 %v582, 7
  %v584 = vsub.s32 6, %v583
  %v585 = vrot.slane %v480, %v584
  %v586 = vlaneseq
  %v587 = vshrl.u32 %v586, 7
  %v588 = vsub.s32 7, %v587
  %v589 = vrot.slane %v480, %v588
  %v590 = vlaneseq
  %v591 = vshrl.u32 %v590, 7
  %v592 = vsub.s32 0, %v591
  %v593 = vrot.slane %v481, %v592
  %v594 = vlaneseq
  %v595 = vshrl.u32 %v594, 7
  %v596 = vsub.s32 1, %v595
  %v597 = vrot.slane %v481, %v596
  %v598 = vlaneseq
  %v599 = vshrl.u32 %v598, 7
  %v600 = vsub.s32 2, %v599
  %v601 = vrot.slane %v481, %v600
  %v602 = vlaneseq
  %v603 = vshrl.u32 %v602, 7
  %v604 = vsub.s32 3, %v603
  %v605 = vrot.slane %v481, %v604
  %v606 = vlaneseq
  %v607 = vshrl.u32 %v606, 7
  %v608 = vsub.s32 4, %v607
  %v609 = vrot.slane %v481, %v608
  %v610 = vlaneseq
  %v611 = vshrl.u32 %v610, 7
  %v612 = vsub.s32 5, %v611
  %v613 = vrot.slane %v481, %v612
  %v614 = vlaneseq
  %v615 = vshrl.u32 %v614, 7
  %v616 = vsub.s32 6, %v615
  %v617 = vrot.slane %v481, %v616
  %v618 = vlaneseq
  %v619 = vshrl.u32 %v618, 7
  %v620 = vsub.s32 7, %v619
  %v621 = vrot.slane %v481, %v620
  %v622 = vlaneseq
  %v623 = vshrl.u32 %v622, 7
  %v624 = vsub.s32 0, %v623
  %v625 = vrot.slane %v482, %v624
  %v626 = vlaneseq
  %v627 = vshrl.u32 %v626, 7
  %v628 = vsub.s32 1, %v627
  %v629 = vrot.slane %v482, %v628
  %v630 = vlaneseq
  %v631 = vshrl.u32 %v630, 7
  %v632 = vsub.s32 2, %v631
  %v633 = vrot.slane %v482, %v632
  %v634 = vlaneseq
  %v635 = vshrl.u32 %v634, 7
  %v636 = vsub.s32 3, %v635
  %v637 = vrot.slane %v482, %v636
  %v638 = vlaneseq
  %v639 = vshrl.u32 %v638, 7
  %v640 = vsub.s32 4, %v639
  %v641 = vrot.slane %v482, %v640
  %v642 = vlaneseq
  %v643 = vshrl.u32 %v642, 7
  %v644 = vsub.s32 5, %v643
  %v645 = vrot.slane %v482, %v644
  %v646 = vlaneseq
  %v647 = vshrl.u32 %v646, 7
  %v648 = vsub.s32 6, %v647
  %v649 = vrot.slane %v482, %v648
  %v650 = vlaneseq
  %v651 = vshrl.u32 %v650, 7
  %v652 = vsub.s32 7, %v651
  %v653 = vrot.slane %v482, %v652
  %v654 = vlaneseq
  %v655 = vshrl.u32 %v654, 7
  %v656 = vsub.s32 0, %v655
  %v657 = vrot.slane %v483, %v656
  %v658 = vlaneseq
  %v659 = vshrl.u32 %v658, 7
  %v660 = vsub.s32 1, %v659
  %v661 = vrot.slane %v483, %v660
  %v662 = vlaneseq
  %v663 = vshrl.u32 %v662, 7
  %v664 = vsub.s32 2, %v663
  %v665 = vrot.slane %v483, %v664
  %v666 = vlaneseq
  %v667 = vshrl.u32 %v666, 7
  %v668 = vsub.s32 3, %v667
  %v669 = vrot.slane %v483, %v668
  %v670 = vlaneseq
  %v671 = vshrl.u32 %v670, 7
  %v672 = vsub.s32 4, %v671
  %v673 = vrot.slane %v483, %v672
  %v674 = vlaneseq
  %v675 = vshrl.u32 %v674, 7
  %v676 = vsub.s32 5, %v675
  %v677 = vrot.slane %v483, %v676
  %v678 = vlaneseq
  %v679 = vshrl.u32 %v678, 7
  %v680 = vsub.s32 6, %v679
  %v681 = vrot.slane %v483, %v680
  %v682 = vlaneseq
  %v683 = vshrl.u32 %v682, 7
  %v684 = vsub.s32 7, %v683
  %v685 = vrot.slane %v483, %v684
  %v686 = vlaneseq
  %v687 = vshrl.u32 %v686, 7
  %v688 = vsub.s32 0, %v687
  %v689 = vrot.slane %v484, %v688
  %v690 = vlaneseq
  %v691 = vshrl.u32 %v690, 7
  %v692 = vsub.s32 1, %v691
  %v693 = vrot.slane %v484, %v692
  %v694 = vlaneseq
  %v695 = vshrl.u32 %v694, 7
  %v696 = vsub.s32 2, %v695
  %v697 = vrot.slane %v484, %v696
  %v698 = vlaneseq
  %v699 = vshrl.u32 %v698, 7
  %v700 = vsub.s32 3, %v699
  %v701 = vrot.slane %v484, %v700
  %v702 = vlaneseq
  %v703 = vshrl.u32 %v702, 7
  %v704 = vsub.s32 4, %v703
  %v705 = vrot.slane %v484, %v704
  %v706 = vlaneseq
  %v707 = vshrl.u32 %v706, 7
  %v708 = vsub.s32 5, %v707
  %v709 = vrot.slane %v484, %v708
  %v710 = vlaneseq
  %v711 = vshrl.u32 %v710, 7
  %v712 = vsub.s32 6, %v711
  %v713 = vrot.slane %v484, %v712
  %v714 = vlaneseq
  %v715 = vshrl.u32 %v714, 7
  %v716 = vsub.s32 7, %v715
  %v717 = vrot.slane %v484, %v716
  %v718 = vlaneseq
  %v719 = vshrl.u32 %v718, 7
  %v720 = vsub.s32 0, %v719
  %v721 = vrot.slane %v485, %v720
  %v722 = vlaneseq
  %v723 = vshrl.u32 %v722, 7
  %v724 = vsub.s32 1, %v723
  %v725 = vrot.slane %v485, %v724
  %v726 = vlaneseq
  %v727 = vshrl.u32 %v726, 7
  %v728 = vsub.s32 2, %v727
  %v729 = vrot.slane %v485, %v728
  %v730 = vlaneseq
  %v731 = vshrl.u32 %v730, 7
  %v732 = vsub.s32 3, %v731
  %v733 = vrot.slane %v485, %v732
  %v734 = vlaneseq
  %v735 = vshrl.u32 %v734, 7
  %v736 = vsub.s32 4, %v735
  %v737 = vrot.slane %v485, %v736
  %v738 = vlaneseq
  %v739 = vshrl.u32 %v738, 7
  %v740 = vsub.s32 5, %v739
  %v741 = vrot.slane %v485, %v740
  %v742 = vlaneseq
  %v743 = vshrl.u32 %v742, 7
  %v744 = vsub.s32 6, %v743
  %v745 = vrot.slane %v485, %v744
  %v746 = vlaneseq
  %v747 = vshrl.u32 %v746, 7
  %v748 = vsub.s32 7, %v747
  %v749 = vrot.slane %v485, %v748
  %v814 = vadd.f32 %v414, %v497
  %v815 = vadd.f32 %v415, %v501
  %v816 = vadd.f32 %v416, %v505
  %v817 = vadd.f32 %v417, %v509
  %v818 = vadd.f32 %v418, %v513
  %v819 = vadd.f32 %v419, %v517
  %v820 = vadd.f32 %v420, %v521
  %v821 = vadd.f32 %v421, %v525
  %v822 = vadd.f32 %v422, %v529
  %v823 = vadd.f32 %v423, %v533
  %v824 = vadd.f32 %v424, %v537
  %v825 = vadd.f32 %v425, %v541
  %v826 = vadd.f32 %v426, %v545
  %v827 = vadd.f32 %v427, %v549
  %v828 = vadd.f32 %v428, %v553
  %v829 = vadd.f32 %v429, %v557
  %v830 = vadd.f32 %v430, %v561
  %v831 = vadd.f32 %v431, %v565
  %v832 = vadd.f32 %v432, %v569
  %v833 = vadd.f32 %v433, %v573
  %v834 = vadd.f32 %v434, %v577
  %v835 = vadd.f32 %v435, %v581
  %v836 = vadd.f32 %v436, %v585
  %v837 = vadd.f32 %v437, %v589
  %v838 = vadd.f32 %v438, %v593
  %v839 = vadd.f32 %v439, %v597
  %v840 = vadd.f32 %v440, %v601
  %v841 = vadd.f32 %v441, %v605
  %v842 = vadd.f32 %v442, %v609
  %v843 = vadd.f32 %v443, %v613
  %v844 = vadd.f32 %v444, %v617
  %v845 = vadd.f32 %v445, %v621
  %v846 = vadd.f32 %v446, %v625
  %v847 = vadd.f32 %v447, %v629
  %v848 = vadd.f32 %v448, %v633
  %v849 = vadd.f32 %v449, %v637
  %v850 = vadd.f32 %v450, %v641
  %v851 = vadd.f32 %v451, %v645
  %v852 = vadd.f32 %v452, %v649
  %v853 = vadd.f32 %v453, %v653
  %v854 = vadd.f32 %v454, %v657
  %v855 = vadd.f32 %v455, %v661
  %v856 = vadd.f32 %v456, %v665
  %v857 = vadd.f32 %v457, %v669
  %v858 = vadd.f32 %v458, %v673
  %v859 = vadd.f32 %v459, %v677
  %v860 = vadd.f32 %v460, %v681
  %v861 = vadd.f32 %v461, %v685
  %v862 = vadd.f32 %v462, %v689
  %v863 = vadd.f32 %v463, %v693
  %v864 = vadd.f32 %v464, %v697
  %v865 = vadd.f32 %v465, %v701
  %v866 = vadd.f32 %v466, %v705
  %v867 = vadd.f32 %v467, %v709
  %v868 = vadd.f32 %v468, %v713
  %v869 = vadd.f32 %v469, %v717
  %v870 = vadd.f32 %v470, %v721
  %v871 = vadd.f32 %v471, %v725
  %v872 = vadd.f32 %v472, %v729
  %v873 = vadd.f32 %v473, %v733
  %v874 = vadd.f32 %v474, %v737
  %v875 = vadd.f32 %v475, %v741
  %v876 = vadd.f32 %v476, %v745
  %v877 = vadd.f32 %v477, %v749
  %v878 = vmax.f32 %v814, 0.0
  %v879 = vmax.f32 %v815, 0.0
  %v880 = vmax.f32 %v816, 0.0
  %v881 = vmax.f32 %v817, 0.0
  %v882 = vmax.f32 %v818, 0.0
  %v883 = vmax.f32 %v819, 0.0
  %v884 = vmax.f32 %v820, 0.0
  %v885 = vmax.f32 %v821, 0.0
  %v886 = vmax.f32 %v822, 0.0
  %v887 = vmax.f32 %v823, 0.0
  %v888 = vmax.f32 %v824, 0.0
  %v889 = vmax.f32 %v825, 0.0
  %v890 = vmax.f32 %v826, 0.0
  %v891 = vmax.f32 %v827, 0.0
  %v892 = vmax.f32 %v828, 0.0
  %v893 = vmax.f32 %v829, 0.0
  %v894 = vmax.f32 %v830, 0.0
  %v895 = vmax.f32 %v831, 0.0
  %v896 = vmax.f32 %v832, 0.0
  %v897 = vmax.f32 %v833, 0.0
  %v898 = vmax.f32 %v834, 0.0
  %v899 = vmax.f32 %v835, 0.0
  %v900 = vmax.f32 %v836, 0.0
  %v901 = vmax.f32 %v837, 0.0
  %v902 = vmax.f32 %v838, 0.0
  %v903 = vmax.f32 %v839, 0.0
  %v904 = vmax.f32 %v840, 0.0
  %v905 = vmax.f32 %v841, 0.0
  %v906 = vmax.f32 %v842, 0.0
  %v907 = vmax.f32 %v843, 0.0
  %v908 = vmax.f32 %v844, 0.0
  %v909 = vmax.f32 %v845, 0.0
  %v910 = vmax.f32 %v846, 0.0
  %v911 = vmax.f32 %v847, 0.0
  %v912 = vmax.f32 %v848, 0.0
  %v913 = vmax.f32 %v849, 0.0
  %v914 = vmax.f32 %v850, 0.0
  %v915 = vmax.f32 %v851, 0.0
  %v916 = vmax.f32 %v852, 0.0
  %v917 = vmax.f32 %v853, 0.0
  %v918 = vmax.f32 %v854, 0.0
  %v919 = vmax.f32 %v855, 0.0
  %v920 = vmax.f32 %v856, 0.0
  %v921 = vmax.f32 %v857, 0.0
  %v922 = vmax.f32 %v858, 0.0
  %v923 = vmax.f32 %v859, 0.0
  %v924 = vmax.f32 %v860, 0.0
  %v925 = vmax.f32 %v861, 0.0
  %v926 = vmax.f32 %v862, 0.0
  %v927 = vmax.f32 %v863, 0.0
  %v928 = vmax.f32 %v864, 0.0
  %v929 = vmax.f32 %v865, 0.0
  %v930 = vmax.f32 %v866, 0.0
  %v931 = vmax.f32 %v867, 0.0
  %v932 = vmax.f32 %v868, 0.0
  %v933 = vmax.f32 %v869, 0.0
  %v934 = vmax.f32 %v870, 0.0
  %v935 = vmax.f32 %v871, 0.0
  %v936 = vmax.f32 %v872, 0.0
  %v937 = vmax.f32 %v873, 0.0
  %v938 = vmax.f32 %v874, 0.0
  %v939 = vmax.f32 %v875, 0.0
  %v940 = vmax.f32 %v876, 0.0
  %v941 = vmax.f32 %v877, 0.0
  %v942 = vpack.c.bf16 %v878, %v878
  %v943 = vpack.c.bf16 %v879, %v879
  %v944 = vpack.c.bf16 %v880, %v880
  %v945 = vpack.c.bf16 %v881, %v881
  %v946 = vpack.c.bf16 %v882, %v882
  %v947 = vpack.c.bf16 %v883, %v883
  %v948 = vpack.c.bf16 %v884, %v884
  %v949 = vpack.c.bf16 %v885, %v885
  %v950 = vpack.c.bf16 %v886, %v886
  %v951 = vpack.c.bf16 %v887, %v887
  %v952 = vpack.c.bf16 %v888, %v888
  %v953 = vpack.c.bf16 %v889, %v889
  %v954 = vpack.c.bf16 %v890, %v890
  %v955 = vpack.c.bf16 %v891, %v891
  %v956 = vpack.c.bf16 %v892, %v892
  %v957 = vpack.c.bf16 %v893, %v893
  %v958 = vpack.c.bf16 %v894, %v894
  %v959 = vpack.c.bf16 %v895, %v895
  %v960 = vpack.c.bf16 %v896, %v896
  %v961 = vpack.c.bf16 %v897, %v897
  %v962 = vpack.c.bf16 %v898, %v898
  %v963 = vpack.c.bf16 %v899, %v899
  %v964 = vpack.c.bf16 %v900, %v900
  %v965 = vpack.c.bf16 %v901, %v901
  %v966 = vpack.c.bf16 %v902, %v902
  %v967 = vpack.c.bf16 %v903, %v903
  %v968 = vpack.c.bf16 %v904, %v904
  %v969 = vpack.c.bf16 %v905, %v905
  %v970 = vpack.c.bf16 %v906, %v906
  %v971 = vpack.c.bf16 %v907, %v907
  %v972 = vpack.c.bf16 %v908, %v908
  %v973 = vpack.c.bf16 %v909, %v909
  %v974 = vpack.c.bf16 %v910, %v910
  %v975 = vpack.c.bf16 %v911, %v911
  %v976 = vpack.c.bf16 %v912, %v912
  %v977 = vpack.c.bf16 %v913, %v913
  %v978 = vpack.c.bf16 %v914, %v914
  %v979 = vpack.c.bf16 %v915, %v915
  %v980 = vpack.c.bf16 %v916, %v916
  %v981 = vpack.c.bf16 %v917, %v917
  %v982 = vpack.c.bf16 %v918, %v918
  %v983 = vpack.c.bf16 %v919, %v919
  %v984 = vpack.c.bf16 %v920, %v920
  %v985 = vpack.c.bf16 %v921, %v921
  %v986 = vpack.c.bf16 %v922, %v922
  %v987 = vpack.c.bf16 %v923, %v923
  %v988 = vpack.c.bf16 %v924, %v924
  %v989 = vpack.c.bf16 %v925, %v925
  %v990 = vpack.c.bf16 %v926, %v926
  %v991 = vpack.c.bf16 %v927, %v927
  %v992 = vpack.c.bf16 %v928, %v928
  %v993 = vpack.c.bf16 %v929, %v929
  %v994 = vpack.c.bf16 %v930, %v930
  %v995 = vpack.c.bf16 %v931, %v931
  %v996 = vpack.c.bf16 %v932, %v932
  %v997 = vpack.c.bf16 %v933, %v933
  %v998 = vpack.c.bf16 %v934, %v934
  %v999 = vpack.c.bf16 %v935, %v935
  %v1000 = vpack.c.bf16 %v936, %v936
  %v1001 = vpack.c.bf16 %v937, %v937
  %v1002 = vpack.c.bf16 %v938, %v938
  %v1003 = vpack.c.bf16 %v939, %v939
  %v1004 = vpack.c.bf16 %v940, %v940
  %v1005 = vpack.c.bf16 %v941, %v941
  %v1070 = vunpack.c.l.b16 %v942
  %v1071 = vunpack.c.l.b16 %v943
  %v1072 = vunpack.c.l.b16 %v944
  %v1073 = vunpack.c.l.b16 %v945
  %v1074 = vunpack.c.l.b16 %v946
  %v1075 = vunpack.c.l.b16 %v947
  %v1076 = vunpack.c.l.b16 %v948
  %v1077 = vunpack.c.l.b16 %v949
  %v1078 = vunpack.c.l.b16 %v950
  %v1079 = vunpack.c.l.b16 %v951
  %v1080 = vunpack.c.l.b16 %v952
  %v1081 = vunpack.c.l.b16 %v953
  %v1082 = vunpack.c.l.b16 %v954
  %v1083 = vunpack.c.l.b16 %v955
  %v1084 = vunpack.c.l.b16 %v956
  %v1085 = vunpack.c.l.b16 %v957
  %v1086 = vunpack.c.l.b16 %v958
  %v1087 = vunpack.c.l.b16 %v959
  %v1088 = vunpack.c.l.b16 %v960
  %v1089 = vunpack.c.l.b16 %v961
  %v1090 = vunpack.c.l.b16 %v962
  %v1091 = vunpack.c.l.b16 %v963
  %v1092 = vunpack.c.l.b16 %v964
  %v1093 = vunpack.c.l.b16 %v965
  %v1094 = vunpack.c.l.b16 %v966
  %v1095 = vunpack.c.l.b16 %v967
  %v1096 = vunpack.c.l.b16 %v968
  %v1097 = vunpack.c.l.b16 %v969
  %v1098 = vunpack.c.l.b16 %v970
  %v1099 = vunpack.c.l.b16 %v971
  %v1100 = vunpack.c.l.b16 %v972
  %v1101 = vunpack.c.l.b16 %v973
  %v1102 = vunpack.c.l.b16 %v974
  %v1103 = vunpack.c.l.b16 %v975
  %v1104 = vunpack.c.l.b16 %v976
  %v1105 = vunpack.c.l.b16 %v977
  %v1106 = vunpack.c.l.b16 %v978
  %v1107 = vunpack.c.l.b16 %v979
  %v1108 = vunpack.c.l.b16 %v980
  %v1109 = vunpack.c.l.b16 %v981
  %v1110 = vunpack.c.l.b16 %v982
  %v1111 = vunpack.c.l.b16 %v983
  %v1112 = vunpack.c.l.b16 %v984
  %v1113 = vunpack.c.l.b16 %v985
  %v1114 = vunpack.c.l.b16 %v986
  %v1115 = vunpack.c.l.b16 %v987
  %v1116 = vunpack.c.l.b16 %v988
  %v1117 = vunpack.c.l.b16 %v989
  %v1118 = vunpack.c.l.b16 %v990
  %v1119 = vunpack.c.l.b16 %v991
  %v1120 = vunpack.c.l.b16 %v992
  %v1121 = vunpack.c.l.b16 %v993
  %v1122 = vunpack.c.l.b16 %v994
  %v1123 = vunpack.c.l.b16 %v995
  %v1124 = vunpack.c.l.b16 %v996
  %v1125 = vunpack.c.l.b16 %v997
  %v1126 = vunpack.c.l.b16 %v998
  %v1127 = vunpack.c.l.b16 %v999
  %v1128 = vunpack.c.l.b16 %v1000
  %v1129 = vunpack.c.l.b16 %v1001
  %v1130 = vunpack.c.l.b16 %v1002
  %v1131 = vunpack.c.l.b16 %v1003
  %v1132 = vunpack.c.l.b16 %v1004
  %v1133 = vunpack.c.l.b16 %v1005
  %v1134 = vpack.c.b16 %v1071, %v1070
  %v1135 = vpack.c.b16 %v1073, %v1072
  %v1136 = vpack.c.b16 %v1075, %v1074
  %v1137 = vpack.c.b16 %v1077, %v1076
  %v1138 = vpack.c.b16 %v1079, %v1078
  %v1139 = vpack.c.b16 %v1081, %v1080
  %v1140 = vpack.c.b16 %v1083, %v1082
  %v1141 = vpack.c.b16 %v1085, %v1084
  %v1142 = vpack.c.b16 %v1087, %v1086
  %v1143 = vpack.c.b16 %v1089, %v1088
  %v1144 = vpack.c.b16 %v1091, %v1090
  %v1145 = vpack.c.b16 %v1093, %v1092
  %v1146 = vpack.c.b16 %v1095, %v1094
  %v1147 = vpack.c.b16 %v1097, %v1096
  %v1148 = vpack.c.b16 %v1099, %v1098
  %v1149 = vpack.c.b16 %v1101, %v1100
  %v1150 = vpack.c.b16 %v1103, %v1102
  %v1151 = vpack.c.b16 %v1105, %v1104
  %v1152 = vpack.c.b16 %v1107, %v1106
  %v1153 = vpack.c.b16 %v1109, %v1108
  %v1154 = vpack.c.b16 %v1111, %v1110
  %v1155 = vpack.c.b16 %v1113, %v1112
  %v1156 = vpack.c.b16 %v1115, %v1114
  %v1157 = vpack.c.b16 %v1117, %v1116
  %v1158 = vpack.c.b16 %v1119, %v1118
  %v1159 = vpack.c.b16 %v1121, %v1120
  %v1160 = vpack.c.b16 %v1123, %v1122
  %v1161 = vpack.c.b16 %v1125, %v1124
  %v1162 = vpack.c.b16 %v1127, %v1126
  %v1163 = vpack.c.b16 %v1129, %v1128
  %v1164 = vpack.c.b16 %v1131, %v1130
  %v1165 = vpack.c.b16 %v1133, %v1132
  %1198 = vst [vmem:[%s3] sm:$0xff] %v1134
  %1199 = vst [vmem:[%s3 + $0x8] sm:$0xff] %v1135
  %1200 = vst [vmem:[%s3 + $0x10] sm:$0xff] %v1136
  %1201 = vst [vmem:[%s3 + $0x18] sm:$0xff] %v1137
  %1202 = vst [vmem:[%s3 + $0x20] sm:$0xff] %v1138
  %1203 = vst [vmem:[%s3 + $0x28] sm:$0xff] %v1139
  %1204 = vst [vmem:[%s3 + $0x30] sm:$0xff] %v1140
  %1205 = vst [vmem:[%s3 + $0x38] sm:$0xff] %v1141
  %1206 = vst [vmem:[%s3 + $0x40] sm:$0xff] %v1142
  %1207 = vst [vmem:[%s3 + $0x48] sm:$0xff] %v1143
  %1208 = vst [vmem:[%s3 + $0x50] sm:$0xff] %v1144
  %1209 = vst [vmem:[%s3 + $0x58] sm:$0xff] %v1145
  %1210 = vst [vmem:[%s3 + $0x60] sm:$0xff] %v1146
  %1211 = vst [vmem:[%s3 + $0x68] sm:$0xff] %v1147
  %1212 = vst [vmem:[%s3 + $0x70] sm:$0xff] %v1148
  %1213 = vst [vmem:[%s3 + $0x78] sm:$0xff] %v1149
  %1214 = vst [vmem:[%s3 + $0x80] sm:$0xff] %v1150
  %1215 = vst [vmem:[%s3 + $0x88] sm:$0xff] %v1151
  %1216 = vst [vmem:[%s3 + $0x90] sm:$0xff] %v1152
  %1217 = vst [vmem:[%s3 + $0x98] sm:$0xff] %v1153
  %1218 = vst [vmem:[%s3 + $0xa0] sm:$0xff] %v1154
  %1219 = vst [vmem:[%s3 + $0xa8] sm:$0xff] %v1155
  %1220 = vst [vmem:[%s3 + $0xb0] sm:$0xff] %v1156
  %1221 = vst [vmem:[%s3 + $0xb8] sm:$0xff] %v1157
  %1222 = vst [vmem:[%s3 + $0xc0] sm:$0xff] %v1158
  %1223 = vst [vmem:[%s3 + $0xc8] sm:$0xff] %v1159
  %1224 = vst [vmem:[%s3 + $0xd0] sm:$0xff] %v1160
  %1225 = vst [vmem:[%s3 + $0xd8] sm:$0xff] %v1161
  %1226 = vst [vmem:[%s3 + $0xe0] sm:$0xff] %v1162
  %1227 = vst [vmem:[%s3 + $0xe8] sm:$0xff] %v1163
  %1228 = vst [vmem:[%s3 + $0xf0] sm:$0xff] %v1164
  %1229 = vst [vmem:[%s3 + $0xf8] sm:$0xff] %v1165
  // Predicated region
  $region14: #{generator_forward.8} parent=0 // pred_check
    _
  $region15: #{generator_forward.8} parent=0 // pred_check_branch
    %1231 = sbr.rel (0) target = $region17
  $region16: #{generator_forward.8} parent=0 // pred_region
    _
  $region17: #{generator_forward.8} parent=0 // pred_fallthru
    _
  // Predicated region
  $region18: #{generator_forward.8} parent=0 // pred_check
    _
  $region19: #{generator_forward.8} parent=0 // pred_check_branch
    %1233 = sbr.rel (0) target = $region21
  $region20: #{generator_forward.8} parent=0 // pred_region
    _
  $region21: #{generator_forward.8} parent=0 // pred_fallthru
    _

// kernel: generator_forward.10
$region0: #{generator_forward.10}
  #allocation0 [shape = 'u32[]', space=smem, size = 0x4, offset = 0x4, fixed_abs, tag = 'smem constant byte address 0x4 - core index']
  #allocation1 [shape = 'u32[144,128]{1,0:T(1,128)}', space=vmem, size = 0x12000, scoped, tag = 'internal scratch']
  %s0 = inlined_call_operand.vmem [shape: f32[4,32,256], index: 0, kind: input, shape index: {}]
  %s1 = inlined_call_operand.vmem [shape: f32[1,256], index: 1, kind: input, shape index: {}]
  %s2 = inlined_call_operand.vmem [shape: f32[1,256], index: 2, kind: input, shape index: {}]
  %s3 = inlined_call_operand.vmem [shape: bf16[4,32,256], index: 3, kind: output, shape index: {}]
  %s4 = sld [smem:[#allocation0]]
  $region45: #{generator_forward.10} parent=0
    _
  %s6 = ssub.s32 1, %s4
  %s7 = scalar_select 0, %s6, %s4
  loop: start=0, step=1, limit=6
  $region2: #{generator_forward.10} parent=0 // loop_pre_header
    _
  $region3: #{generator_forward.10} parent=0 // loop_header
    %s9 = sphi 0, %s13
    %p10 = scmp.ge.s32.totalorder %s9, 6
    %s16 = sphi 0, %s28
    %s17 = sphi 0, %s24
    %s18 = sphi 0, %s16
    %s19 = sphi 0, %s17
    %s20 = sphi 0, %s18
    %s21 = sphi 0, %s19
    %s33 = sphi 0, %s35
    %s36 = sphi 0, %s33
    %s37 = sphi 0, %s36
    %s53 = sphi 0, %s37
    %s57 = sphi 0, %s57
    %s59 = sphi 0, %s57
    %s60 = sphi 0, %s59
    %s74 = sphi 0, %s60
    %s78 = sphi 0, %s78
    %s80 = sphi 0, %s78
    %s81 = sphi 0, %s80
    %s95 = sphi 0, %s81
    %s103 = sphi 0, %s105
    %s106 = sphi 0, %s103
    %s107 = sphi 0, %s106
    %s123 = sphi 0, %s107
  $region4: #{generator_forward.10} parent=0 // loop_header_branch
    %12 = sbr.rel (%p10) target = $region8
  $region5: #{generator_forward.10} parent=0 // loop_body
    %s14 = ssub.s32 %s9, 1
    %s15 = ssub.s32 %s9, 2
    %s22 = sadd.s32 1, %s17
    %p23 = scmp.ge.s32.totalorder %s22, 1
    %s24 = scalar_select %p23, 0, %s22
    %s25 = sadd.s32 1, %s16
    %s26 = scalar_select %p23, %s25, %s16
    %p27 = scmp.ge.s32.totalorder %s26, 4
    %s28 = scalar_select %p27, 0, %s26
    %s29 = ssub.s32 %s16, %s28
    %s30 = ssub.s32 %s17, %s24
    %s31 = sor.u32 %s29, %s30
    %p32 = scmp.eq.s32.totalorder %s31, 0
    %s34 = sadd.s32 %s33, 1
    %s35 = scalar_select %p32, %s33, %s34
    %p38 = pneg %p32
    %p39 = scmp.eq.s32.totalorder %s9, 3
    %p40 = por %p38, %p39
    %p41 = scmp.ne.s32.totalorder %s33, %s36
    %p42 = scmp.eq.s32.totalorder %s9, 0
    %p43 = por %p41, %p42
    %p44 = scmp.ne.s32.totalorder %s33, %s36
    %p45 = scmp.eq.s32.totalorder %s14, 3
    %p46 = por %p44, %p45
    %p47 = scmp.ne.s32.totalorder %s36, %s37
    %p48 = scmp.eq.s32.totalorder %s14, 0
    %p49 = por %p47, %p48
    %p50 = scmp.ne.s32.totalorder %s36, %s37
    %p51 = scmp.eq.s32.totalorder %s15, 3
    %p52 = por %p50, %p51
    %p54 = scmp.ne.s32.totalorder %s37, %s53
    %p55 = scmp.eq.s32.totalorder %s15, 0
    %p56 = por %p54, %p55
    %s58 = sadd.s32 %s57, 1
    %p61 = scmp.eq.s32.totalorder %s9, 3
    %p62 = scmp.ne.s32.totalorder %s57, %s59
    %p63 = scmp.eq.s32.totalorder %s9, 0
    %p64 = por %p62, %p63
    %p65 = scmp.ne.s32.totalorder %s57, %s59
    %p66 = scmp.eq.s32.totalorder %s14, 3
    %p67 = por %p65, %p66
    %p68 = scmp.ne.s32.totalorder %s59, %s60
    %p69 = scmp.eq.s32.totalorder %s14, 0
    %p70 = por %p68, %p69
    %p71 = scmp.ne.s32.totalorder %s59, %s60
    %p72 = scmp.eq.s32.totalorder %s15, 3
    %p73 = por %p71, %p72
    %p75 = scmp.ne.s32.totalorder %s60, %s74
    %p76 = scmp.eq.s32.totalorder %s15, 0
    %p77 = por %p75, %p76
    %s79 = sadd.s32 %s78, 1
    %p82 = scmp.eq.s32.totalorder %s9, 3
    %p83 = scmp.ne.s32.totalorder %s78, %s80
    %p84 = scmp.eq.s32.totalorder %s9, 0
    %p85 = por %p83, %p84
    %p86 = scmp.ne.s32.totalorder %s78, %s80
    %p87 = scmp.eq.s32.totalorder %s14, 3
    %p88 = por %p86, %p87
    %p89 = scmp.ne.s32.totalorder %s80, %s81
    %p90 = scmp.eq.s32.totalorder %s14, 0
    %p91 = por %p89, %p90
    %p92 = scmp.ne.s32.totalorder %s80, %s81
    %p93 = scmp.eq.s32.totalorder %s15, 3
    %p94 = por %p92, %p93
    %p96 = scmp.ne.s32.totalorder %s81, %s95
    %p97 = scmp.eq.s32.totalorder %s15, 0
    %p98 = por %p96, %p97
    %s99 = ssub.s32 %s16, %s28
    %s100 = ssub.s32 %s17, %s24
    %s101 = sor.u32 %s99, %s100
    %p102 = scmp.eq.s32.totalorder %s101, 0
    %s104 = sadd.s32 %s103, 1
    %s105 = scalar_select %p102, %s103, %s104
    %p108 = pneg %p102
    %p109 = scmp.eq.s32.totalorder %s9, 3
    %p110 = por %p108, %p109
    %p111 = scmp.ne.s32.totalorder %s103, %s106
    %p112 = scmp.eq.s32.totalorder %s9, 0
    %p113 = por %p111, %p112
    %p114 = scmp.ne.s32.totalorder %s103, %s106
    %p115 = scmp.eq.s32.totalorder %s14, 3
    %p116 = por %p114, %p115
    %p117 = scmp.ne.s32.totalorder %s106, %s107
    %p118 = scmp.eq.s32.totalorder %s14, 0
    %p119 = por %p117, %p118
    %p120 = scmp.ne.s32.totalorder %s106, %s107
    %p121 = scmp.eq.s32.totalorder %s15, 3
    %p122 = por %p120, %p121
    %p124 = scmp.ne.s32.totalorder %s107, %s123
    %p125 = scmp.eq.s32.totalorder %s15, 0
    %p126 = por %p124, %p125
    %p127 = scmp.le.s32.totalorder 1, %s9
    %p128 = scmp.lt.s32.totalorder %s9, 5
    %p129 = pnand %p127, %p128
    %p130 = pneg %p129
    // Predicated region
    $region9: #{generator_forward.10} parent=5 // pred_check
      _
    $region10: #{generator_forward.10} parent=5 // pred_check_branch
      %132 = sbr.rel (%p129) target = $region12
    $region11: #{generator_forward.10} parent=5 // pred_region
      %s133 = ssub.s32 %s9, 1
      // Predicated region
      $region13: #{generator_forward.10} parent=11 // pred_check
        %p134 = pneg %p70
      $region14: #{generator_forward.10} parent=11 // pred_check_branch
        %136 = sbr.rel (%p134) target = $region16
      $region15: #{generator_forward.10} parent=11 // pred_region
        _
      $region16: #{generator_forward.10} parent=11 // pred_fallthru
        _
      // Predicated region
      $region17: #{generator_forward.10} parent=11 // pred_check
        %p137 = pneg %p91
      $region18: #{generator_forward.10} parent=11 // pred_check_branch
        %139 = sbr.rel (%p137) target = $region20
      $region19: #{generator_forward.10} parent=11 // pred_region
        _
      $region20: #{generator_forward.10} parent=11 // pred_fallthru
        _
    $region12: #{generator_forward.10} parent=5 // pred_fallthru
      _
    %p140 = scmp.lt.s32.totalorder %s9, 4
    // Predicated region
    $region21: #{generator_forward.10} parent=5 // pred_check
      %p141 = pneg %p140
    $region22: #{generator_forward.10} parent=5 // pred_check_branch
      %143 = sbr.rel (%p141) target = $region24
    $region23: #{generator_forward.10} parent=5 // pred_region
      // Predicated region
      $region25: #{generator_forward.10} parent=23 // pred_check
        %p144 = pneg %p43
      $region26: #{generator_forward.10} parent=23 // pred_check_branch
        %146 = sbr.rel (%p144) target = $region28
      $region27: #{generator_forward.10} parent=23 // pred_region
        %s147 = smul.u32 4, %s17
        %p148 = scmp.lt.s32.totalorder %s16, 3
        %s149 = scalar_select %p148, %s16, 3
        %p150 = scmp.lt.s32.totalorder %s147, 3
        %s151 = scalar_select %p150, %s147, 3
        %s152 = smul.addr %s151, 2
        %s153 = smul.addr %s149, 8
        %s154 = sadd.s32 %s152, %s153
        %s155 = smul.addr %s154, 8
        %s156 = scalar_lea.vmem %s0, %s155
        %s157 = smul.u32 4, %s17
      $region28: #{generator_forward.10} parent=23 // pred_fallthru
        _
    $region24: #{generator_forward.10} parent=5 // pred_fallthru
      _
    %p158 = scmp.le.s32.totalorder 1, %s9
    %p159 = scmp.lt.s32.totalorder %s9, 5
    %p160 = pnand %p158, %p159
    %p161 = pneg %p160
    // Predicated region
    $region29: #{generator_forward.10} parent=5 // pred_check
      _
    $region30: #{generator_forward.10} parent=5 // pred_check_branch
      %163 = sbr.rel (%p160) target = $region32
    $region31: #{generator_forward.10} parent=5 // pred_region
      %s164 = ssub.s32 %s9, 1
      %s165 = smul.u32 4, %s19
      %p166 = scmp.lt.s32.totalorder %s18, 3
      %s167 = scalar_select %p166, %s18, 3
      %p168 = scmp.lt.s32.totalorder %s165, 3
      %s169 = scalar_select %p168, %s165, 3
      %s170 = smul.addr %s169, 2
      %s171 = smul.addr %s167, 8
      %s172 = sadd.s32 %s170, %s171
      %s173 = smul.addr %s172, 8
      %s174 = scalar_lea.vmem %s0, %s173
      %p175 = pneg %p49
      %p176 = pneg %p46
      %p177 = pneg %p70
      %p178 = pneg %p67
      %p179 = pneg %p91
      %p180 = pneg %p88
      %p181 = pneg %p119
      %p182 = pneg %p116
      %s183 = smul.u32 4, %s19
      %p184 = scmp.lt.s32.totalorder %s18, 3
      %s185 = scalar_select %p184, %s18, 3
      %p186 = scmp.lt.s32.totalorder %s183, 3
      %s187 = scalar_select %p186, %s183, 3
      %s188 = smul.addr %s187, 2
      %s189 = smul.addr %s185, 8
      %s190 = sadd.s32 %s188, %s189
      %s191 = smul.addr %s190, 4
      %s192 = scalar_lea.vmem %s3, %s191
      %s193 = smul.u32 4, %s19
      %p194 = scmp.lt.s32.totalorder %s18, 3
      %s195 = scalar_select %p194, %s18, 3
      %p196 = scmp.lt.s32.totalorder %s193, 3
      %s197 = scalar_select %p196, %s193, 3
      %s198 = smul.addr %s197, 2
      %s199 = smul.addr %s195, 8
      %s200 = sadd.s32 %s198, %s199
      %s201 = smul.addr %s200, 8
      %s202 = scalar_lea.vmem %s0, %s201
      %s203 = smul.u32 4, %s19
      %s204 = smul.u32 4, %s19
      %p205 = scmp.lt.s32.totalorder %s18, 3
      %s206 = scalar_select %p205, %s18, 3
      %p207 = scmp.lt.s32.totalorder %s204, 3
      %s208 = scalar_select %p207, %s204, 3
      %s209 = smul.addr %s208, 2
      %s210 = smul.addr %s206, 8
      %s211 = sadd.s32 %s209, %s210
      %s212 = smul.addr %s211, 4
      %s213 = scalar_lea.vmem %s3, %s212
      %s214 = smul.u32 4, %s19
      %v215 = vld [vmem:[%s202] sm:$0xff]
      %v216 = vld [vmem:[%s202 + $0x8] sm:$0xff]
      %v217 = vld [vmem:[%s202 + $0x10] sm:$0xff]
      %v218 = vld [vmem:[%s202 + $0x18] sm:$0xff]
      %v219 = vld [vmem:[%s202 + $0x20] sm:$0xff]
      %v220 = vld [vmem:[%s202 + $0x28] sm:$0xff]
      %v221 = vld [vmem:[%s202 + $0x30] sm:$0xff]
      %v222 = vld [vmem:[%s202 + $0x38] sm:$0xff]
      %v223 = vld [vmem:[%s1] sm:$0x3]
      %v225 = vlaneseq
      %v226 = vshrl.u32 %v225, 7
      %v227 = vsub.s32 0, %v226
      %v228 = vrot.slane %v223, %v227
      %v229 = vlaneseq
      %v230 = vshrl.u32 %v229, 7
      %v231 = vsub.s32 1, %v230
      %v232 = vrot.slane %v223, %v231
      %v235 = vmul.f32 %v215, %v228
      %v236 = vmul.f32 %v216, %v232
      %v237 = vmul.f32 %v217, %v228
      %v238 = vmul.f32 %v218, %v232
      %v239 = vmul.f32 %v219, %v228
      %v240 = vmul.f32 %v220, %v232
      %v241 = vmul.f32 %v221, %v228
      %v242 = vmul.f32 %v222, %v232
      %v243 = vld [vmem:[%s2] sm:$0x3]
      %v245 = vlaneseq
      %v246 = vshrl.u32 %v245, 7
      %v247 = vsub.s32 0, %v246
      %v248 = vrot.slane %v243, %v247
      %v249 = vlaneseq
      %v250 = vshrl.u32 %v249, 7
      %v251 = vsub.s32 1, %v250
      %v252 = vrot.slane %v243, %v251
      %v255 = vadd.f32 %v235, %v248
      %v256 = vadd.f32 %v236, %v252
      %v257 = vadd.f32 %v237, %v248
      %v258 = vadd.f32 %v238, %v252
      %v259 = vadd.f32 %v239, %v248
      %v260 = vadd.f32 %v240, %v252
      %v261 = vadd.f32 %v241, %v248
      %v262 = vadd.f32 %v242, %v252
      %v263 = vmax.f32 %v255, 0.0
      %v264 = vmax.f32 %v256, 0.0
      %v265 = vmax.f32 %v257, 0.0
      %v266 = vmax.f32 %v258, 0.0
      %v267 = vmax.f32 %v259, 0.0
      %v268 = vmax.f32 %v260, 0.0
      %v269 = vmax.f32 %v261, 0.0
      %v270 = vmax.f32 %v262, 0.0
      %v271 = vpack.c.bf16 %v265, %v263
      %v272 = vpack.c.bf16 %v266, %v264
      %v273 = vpack.c.bf16 %v269, %v267
      %v274 = vpack.c.bf16 %v270, %v268
      %v279 = vunpack.c.l.b16 %v271
      %v280 = vunpack.c.l.b16 %v272
      %v281 = vunpack.c.h.b16 %v271
      %v282 = vunpack.c.h.b16 %v272
      %v283 = vunpack.c.l.b16 %v273
      %v284 = vunpack.c.l.b16 %v274
      %v285 = vunpack.c.h.b16 %v273
      %v286 = vunpack.c.h.b16 %v274
      %v287 = vpack.c.b16 %v280, %v279
      %v288 = vpack.c.b16 %v282, %v281
      %v289 = vpack.c.b16 %v284, %v283
      %v290 = vpack.c.b16 %v286, %v285
      %295 = vst [vmem:[%s213] sm:$0xff] %v287
      %296 = vst [vmem:[%s213 + $0x8] sm:$0xff] %v288
      %297 = vst [vmem:[%s213 + $0x10] sm:$0xff] %v289
      %298 = vst [vmem:[%s213 + $0x18] sm:$0xff] %v290
      %s299 = smul.u32 4, %s19
      %p300 = scmp.lt.s32.totalorder %s18, 3
      %s301 = scalar_select %p300, %s18, 3
      %p302 = scmp.lt.s32.totalorder %s299, 3
      %s303 = scalar_select %p302, %s299, 3
      %s304 = smul.addr %s303, 2
      %s305 = smul.addr %s301, 8
      %s306 = sadd.s32 %s304, %s305
      %s307 = smul.addr %s306, 4
      %s308 = scalar_lea.vmem %s3, %s307
      // Predicated region
      $region33: #{generator_forward.10} parent=31 // pred_check
        %p309 = pneg %p116
      $region34: #{generator_forward.10} parent=31 // pred_check_branch
        %311 = sbr.rel (%p309) target = $region36
      $region35: #{generator_forward.10} parent=31 // pred_region
        %s312 = smul.u32 4, %s19
      $region36: #{generator_forward.10} parent=31 // pred_fallthru
        _
    $region32: #{generator_forward.10} parent=5 // pred_fallthru
      _
    %p313 = scmp.le.s32.totalorder 2, %s9
    // Predicated region
    $region37: #{generator_forward.10} parent=5 // pred_check
      %p314 = pneg %p313
    $region38: #{generator_forward.10} parent=5 // pred_check_branch
      %316 = sbr.rel (%p314) target = $region40
    $region39: #{generator_forward.10} parent=5 // pred_region
      %s317 = ssub.s32 %s9, 2
      // Predicated region
      $region41: #{generator_forward.10} parent=39 // pred_check
        %p318 = pneg %p122
      $region42: #{generator_forward.10} parent=39 // pred_check_branch
        %320 = sbr.rel (%p318) target = $region44
      $region43: #{generator_forward.10} parent=39 // pred_region
        %s321 = smul.u32 4, %s21
        %p322 = scmp.lt.s32.totalorder %s20, 3
        %s323 = scalar_select %p322, %s20, 3
        %p324 = scmp.lt.s32.totalorder %s321, 3
        %s325 = scalar_select %p324, %s321, 3
        %s326 = smul.addr %s325, 2
        %s327 = smul.addr %s323, 8
        %s328 = sadd.s32 %s326, %s327
        %s329 = smul.addr %s328, 4
        %s330 = scalar_lea.vmem %s3, %s329
      $region44: #{generator_forward.10} parent=39 // pred_fallthru
        _
    $region40: #{generator_forward.10} parent=5 // pred_fallthru
      _
  $region6: #{generator_forward.10} parent=0 // loop_footer
    %s13 = sadd.s32 1, %s9
  $region7: #{generator_forward.10} parent=0 // loop_footer_branch
    %8 = sbr.rel target = $region3
  $region8: #{generator_forward.10} parent=0 // loop_exit
    _

// kernel: generator_forward.9
$region0: #{generator_forward.9}
  #allocation0 [shape = 'u32[]', space=smem, size = 0x4, offset = 0x4, fixed_abs, tag = 'smem constant byte address 0x4 - core index']
  #allocation1 [shape = 'u32[144,128]{1,0:T(1,128)}', space=vmem, size = 0x12000, scoped, tag = 'internal scratch']
  %s0 = inlined_call_operand.vmem [shape: bf16[4,32,2048], index: 0, kind: input, shape index: {}]
  %s1 = inlined_call_operand.vmem [shape: bf16[4,2048,256], index: 1, kind: input, shape index: {}]
  %s2 = inlined_call_operand.vmem [shape: f32[4,32,256], index: 2, kind: output, shape index: {0}]
  %s3 = inlined_call_operand.vmem [shape: f32[4,1,1,256], index: 3, kind: output, shape index: {1}]
  %s4 = inlined_call_operand.vmem [shape: f32[4,1,1,256], index: 4, kind: output, shape index: {2}]
  %5 = xla_tuple %s2, %s3, %s4
  %s6 = sld [smem:[#allocation0]]
  $region57: #{generator_forward.9} parent=0
    _
  %s8 = ssub.s32 1, %s6
  %s9 = scalar_select 0, %s8, %s6
  loop: start=0, step=1, limit=6
  $region2: #{generator_forward.9} parent=0 // loop_pre_header
    _
  $region3: #{generator_forward.9} parent=0 // loop_header
    %s11 = sphi 0, %s15
    %p12 = scmp.ge.s32.totalorder %s11, 6
    %s18 = sphi 0, %s37
    %s19 = sphi 0, %s33
    %s20 = sphi 0, %s29
    %s21 = sphi 0, %s18
    %s22 = sphi 0, %s19
    %s23 = sphi 0, %s20
    %s24 = sphi 0, %s21
    %s25 = sphi 0, %s22
    %s26 = sphi 0, %s23
    %s42 = sphi 0, %s44
    %s45 = sphi 0, %s42
    %s46 = sphi 0, %s45
    %s62 = sphi 0, %s46
    %s70 = sphi 0, %s72
    %s73 = sphi 0, %s70
    %s74 = sphi 0, %s73
    %s90 = sphi 0, %s74
    %s100 = sphi 0, %s102
    %s103 = sphi 0, %s100
    %s104 = sphi 0, %s103
    %s120 = sphi 0, %s104
    %s130 = sphi 0, %s132
    %s133 = sphi 0, %s130
    %s134 = sphi 0, %s133
    %s150 = sphi 0, %s134
    %s160 = sphi 0, %s162
    %s163 = sphi 0, %s160
    %s164 = sphi 0, %s163
    %s180 = sphi 0, %s164
  $region4: #{generator_forward.9} parent=0 // loop_header_branch
    %14 = sbr.rel (%p12) target = $region8
  $region5: #{generator_forward.9} parent=0 // loop_body
    %s16 = ssub.s32 %s11, 1
    %s17 = ssub.s32 %s11, 2
    %s27 = sadd.s32 1, %s20
    %p28 = scmp.ge.s32.totalorder %s27, 1
    %s29 = scalar_select %p28, 0, %s27
    %s30 = sadd.s32 1, %s19
    %s31 = scalar_select %p28, %s30, %s19
    %p32 = scmp.ge.s32.totalorder %s31, 1
    %s33 = scalar_select %p32, 0, %s31
    %s34 = sadd.s32 1, %s18
    %s35 = scalar_select %p32, %s34, %s18
    %p36 = scmp.ge.s32.totalorder %s35, 4
    %s37 = scalar_select %p36, 0, %s35
    %s38 = ssub.s32 %s18, %s37
    %s39 = ssub.s32 %s19, %s33
    %s40 = sor.u32 %s38, %s39
    %p41 = scmp.eq.s32.totalorder %s40, 0
    %s43 = sadd.s32 %s42, 1
    %s44 = scalar_select %p41, %s42, %s43
    %p47 = pneg %p41
    %p48 = scmp.eq.s32.totalorder %s11, 3
    %p49 = por %p47, %p48
    %p50 = scmp.ne.s32.totalorder %s42, %s45
    %p51 = scmp.eq.s32.totalorder %s11, 0
    %p52 = por %p50, %p51
    %p53 = scmp.ne.s32.totalorder %s42, %s45
    %p54 = scmp.eq.s32.totalorder %s16, 3
    %p55 = por %p53, %p54
    %p56 = scmp.ne.s32.totalorder %s45, %s46
    %p57 = scmp.eq.s32.totalorder %s16, 0
    %p58 = por %p56, %p57
    %p59 = scmp.ne.s32.totalorder %s45, %s46
    %p60 = scmp.eq.s32.totalorder %s17, 3
    %p61 = por %p59, %p60
    %p63 = scmp.ne.s32.totalorder %s46, %s62
    %p64 = scmp.eq.s32.totalorder %s17, 0
    %p65 = por %p63, %p64
    %s66 = ssub.s32 %s18, %s37
    %s67 = ssub.s32 %s20, %s29
    %s68 = sor.u32 %s66, %s67
    %p69 = scmp.eq.s32.totalorder %s68, 0
    %s71 = sadd.s32 %s70, 1
    %s72 = scalar_select %p69, %s70, %s71
    %p75 = pneg %p69
    %p76 = scmp.eq.s32.totalorder %s11, 3
    %p77 = por %p75, %p76
    %p78 = scmp.ne.s32.totalorder %s70, %s73
    %p79 = scmp.eq.s32.totalorder %s11, 0
    %p80 = por %p78, %p79
    %p81 = scmp.ne.s32.totalorder %s70, %s73
    %p82 = scmp.eq.s32.totalorder %s16, 3
    %p83 = por %p81, %p82
    %p84 = scmp.ne.s32.totalorder %s73, %s74
    %p85 = scmp.eq.s32.totalorder %s16, 0
    %p86 = por %p84, %p85
    %p87 = scmp.ne.s32.totalorder %s73, %s74
    %p88 = scmp.eq.s32.totalorder %s17, 3
    %p89 = por %p87, %p88
    %p91 = scmp.ne.s32.totalorder %s74, %s90
    %p92 = scmp.eq.s32.totalorder %s17, 0
    %p93 = por %p91, %p92
    %s94 = ssub.s32 %s18, %s37
    %s95 = ssub.s32 %s19, %s33
    %s96 = sor.u32 %s94, %s95
    %s97 = ssub.s32 %s20, %s29
    %s98 = sor.u32 %s96, %s97
    %p99 = scmp.eq.s32.totalorder %s98, 0
    %s101 = sadd.s32 %s100, 1
    %s102 = scalar_select %p99, %s100, %s101
    %p105 = pneg %p99
    %p106 = scmp.eq.s32.totalorder %s11, 3
    %p107 = por %p105, %p106
    %p108 = scmp.ne.s32.totalorder %s100, %s103
    %p109 = scmp.eq.s32.totalorder %s11, 0
    %p110 = por %p108, %p109
    %p111 = scmp.ne.s32.totalorder %s100, %s103
    %p112 = scmp.eq.s32.totalorder %s16, 3
    %p113 = por %p111, %p112
    %p114 = scmp.ne.s32.totalorder %s103, %s104
    %p115 = scmp.eq.s32.totalorder %s16, 0
    %p116 = por %p114, %p115
    %p117 = scmp.ne.s32.totalorder %s103, %s104
    %p118 = scmp.eq.s32.totalorder %s17, 3
    %p119 = por %p117, %p118
    %p121 = scmp.ne.s32.totalorder %s104, %s120
    %p122 = scmp.eq.s32.totalorder %s17, 0
    %p123 = por %p121, %p122
    %s124 = ssub.s32 %s18, %s37
    %s125 = ssub.s32 %s19, %s33
    %s126 = sor.u32 %s124, %s125
    %s127 = ssub.s32 %s20, %s29
    %s128 = sor.u32 %s126, %s127
    %p129 = scmp.eq.s32.totalorder %s128, 0
    %s131 = sadd.s32 %s130, 1
    %s132 = scalar_select %p129, %s130, %s131
    %p135 = pneg %p129
    %p136 = scmp.eq.s32.totalorder %s11, 3
    %p137 = por %p135, %p136
    %p138 = scmp.ne.s32.totalorder %s130, %s133
    %p139 = scmp.eq.s32.totalorder %s11, 0
    %p140 = por %p138, %p139
    %p141 = scmp.ne.s32.totalorder %s130, %s133
    %p142 = scmp.eq.s32.totalorder %s16, 3
    %p143 = por %p141, %p142
    %p144 = scmp.ne.s32.totalorder %s133, %s134
    %p145 = scmp.eq.s32.totalorder %s16, 0
    %p146 = por %p144, %p145
    %p147 = scmp.ne.s32.totalorder %s133, %s134
    %p148 = scmp.eq.s32.totalorder %s17, 3
    %p149 = por %p147, %p148
    %p151 = scmp.ne.s32.totalorder %s134, %s150
    %p152 = scmp.eq.s32.totalorder %s17, 0
    %p153 = por %p151, %p152
    %s154 = ssub.s32 %s18, %s37
    %s155 = ssub.s32 %s19, %s33
    %s156 = sor.u32 %s154, %s155
    %s157 = ssub.s32 %s20, %s29
    %s158 = sor.u32 %s156, %s157
    %p159 = scmp.eq.s32.totalorder %s158, 0
    %s161 = sadd.s32 %s160, 1
    %s162 = scalar_select %p159, %s160, %s161
    %p165 = pneg %p159
    %p166 = scmp.eq.s32.totalorder %s11, 3
    %p167 = por %p165, %p166
    %p168 = scmp.ne.s32.totalorder %s160, %s163
    %p169 = scmp.eq.s32.totalorder %s11, 0
    %p170 = por %p168, %p169
    %p171 = scmp.ne.s32.totalorder %s160, %s163
    %p172 = scmp.eq.s32.totalorder %s16, 3
    %p173 = por %p171, %p172
    %p174 = scmp.ne.s32.totalorder %s163, %s164
    %p175 = scmp.eq.s32.totalorder %s16, 0
    %p176 = por %p174, %p175
    %p177 = scmp.ne.s32.totalorder %s163, %s164
    %p178 = scmp.eq.s32.totalorder %s17, 3
    %p179 = por %p177, %p178
    %p181 = scmp.ne.s32.totalorder %s164, %s180
    %p182 = scmp.eq.s32.totalorder %s17, 0
    %p183 = por %p181, %p182
    %p184 = scmp.le.s32.totalorder 1, %s11
    %p185 = scmp.lt.s32.totalorder %s11, 5
    %p186 = pnand %p184, %p185
    %p187 = pneg %p186
    // Predicated region
    $region9: #{generator_forward.9} parent=5 // pred_check
      _
    $region10: #{generator_forward.9} parent=5 // pred_check_branch
      %189 = sbr.rel (%p186) target = $region12
    $region11: #{generator_forward.9} parent=5 // pred_region
      %s190 = ssub.s32 %s11, 1
    $region12: #{generator_forward.9} parent=5 // pred_fallthru
      _
    %p191 = scmp.lt.s32.totalorder %s11, 4
    // Predicated region
    $region13: #{generator_forward.9} parent=5 // pred_check
      %p192 = pneg %p191
    $region14: #{generator_forward.9} parent=5 // pred_check_branch
      %194 = sbr.rel (%p192) target = $region16
    $region15: #{generator_forward.9} parent=5 // pred_region
      // Predicated region
      $region17: #{generator_forward.9} parent=15 // pred_check
        %p195 = pneg %p52
      $region18: #{generator_forward.9} parent=15 // pred_check_branch
        %197 = sbr.rel (%p195) target = $region20
      $region19: #{generator_forward.9} parent=15 // pred_region
        %s198 = smul.u32 4, %s19
        %p199 = scmp.lt.s32.totalorder %s18, 3
        %s200 = scalar_select %p199, %s18, 3
        %p201 = scmp.lt.s32.totalorder %s198, 3
        %s202 = scalar_select %p201, %s198, 3
        %s203 = smul.addr %s202, 16
        %s204 = smul.addr %s200, 64
        %s205 = sadd.s32 %s203, %s204
        %s206 = smul.addr %s205, 4
        %s207 = scalar_lea.vmem %s0, %s206
        %s208 = smul.u32 4, %s19
      $region20: #{generator_forward.9} parent=15 // pred_fallthru
        _
      // Predicated region
      $region21: #{generator_forward.9} parent=15 // pred_check
        %p209 = pneg %p80
      $region22: #{generator_forward.9} parent=15 // pred_check_branch
        %211 = sbr.rel (%p209) target = $region24
      $region23: #{generator_forward.9} parent=15 // pred_region
        %s212 = smul.u32 2, %s20
        %p213 = scmp.lt.s32.totalorder %s18, 3
        %s214 = scalar_select %p213, %s18, 3
        %p215 = scmp.lt.s32.totalorder %s212, 1
        %s216 = scalar_select %p215, %s212, 1
        %s217 = smul.addr %s214, 512
        %s218 = sadd.s32 %s216, %s217
        %s219 = smul.addr %s218, 4
        %s220 = scalar_lea.vmem %s1, %s219
        %s221 = smul.u32 2, %s20
      $region24: #{generator_forward.9} parent=15 // pred_fallthru
        _
    $region16: #{generator_forward.9} parent=5 // pred_fallthru
      _
    %p222 = scmp.le.s32.totalorder 1, %s11
    %p223 = scmp.lt.s32.totalorder %s11, 5
    %p224 = pnand %p222, %p223
    %p225 = pneg %p224
    // Predicated region
    $region25: #{generator_forward.9} parent=5 // pred_check
      _
    $region26: #{generator_forward.9} parent=5 // pred_check_branch
      %227 = sbr.rel (%p224) target = $region28
    $region27: #{generator_forward.9} parent=5 // pred_region
      %s228 = ssub.s32 %s11, 1
      %s229 = smul.u32 4, %s22
      %p230 = scmp.lt.s32.totalorder %s21, 3
      %s231 = scalar_select %p230, %s21, 3
      %p232 = scmp.lt.s32.totalorder %s229, 3
      %s233 = scalar_select %p232, %s229, 3
      %s234 = smul.addr %s233, 16
      %s235 = smul.addr %s231, 64
      %s236 = sadd.s32 %s234, %s235
      %s237 = smul.addr %s236, 4
      %s238 = scalar_lea.vmem %s0, %s237
      %p239 = pneg %p58
      %p240 = pneg %p55
      %s241 = smul.u32 2, %s23
      %p242 = scmp.lt.s32.totalorder %s21, 3
      %s243 = scalar_select %p242, %s21, 3
      %p244 = scmp.lt.s32.totalorder %s241, 1
      %s245 = scalar_select %p244, %s241, 1
      %s246 = smul.addr %s243, 512
      %s247 = sadd.s32 %s245, %s246
      %s248 = smul.addr %s247, 4
      %s249 = scalar_lea.vmem %s1, %s248
      %p250 = pneg %p86
      %p251 = pneg %p83
      %p252 = pneg %p116
      %p253 = pneg %p113
      %s254 = smul.u32 4, %s22
      %s255 = smul.u32 2, %s23
      %p256 = scmp.lt.s32.totalorder %s21, 3
      %s257 = scalar_select %p256, %s21, 3
      %p258 = scmp.lt.s32.totalorder %s254, 3
      %s259 = scalar_select %p258, %s254, 3
      %p260 = scmp.lt.s32.totalorder %s255, 1
      %s261 = scalar_select %p260, %s255, 1
      %s262 = smul.addr %s259, 2
      %s263 = sadd.s32 %s261, %s262
      %s264 = smul.addr %s257, 8
      %s265 = sadd.s32 %s263, %s264
      %s266 = smul.addr %s265, 8
      %s267 = scalar_lea.vmem %s2, %s266
      %p268 = pneg %p146
      %p269 = pneg %p143
      %s270 = smul.u32 2, %s23
      %p271 = scmp.lt.s32.totalorder %s21, 3
      %s272 = scalar_select %p271, %s21, 3
      %p273 = scmp.lt.s32.totalorder %s22, 0
      %s274 = scalar_select %p273, %s22, 0
      %p275 = scmp.lt.s32.totalorder %s270, 1
      %s276 = scalar_select %p275, %s270, 1
      %s277 = smul.addr %s274, 2
      %s278 = sadd.s32 %s276, %s277
      %s279 = smul.addr %s272, 2
      %s280 = sadd.s32 %s278, %s279
      %s281 = scalar_lea.vmem %s3, %s280
      %p282 = pneg %p176
      %p283 = pneg %p173
      %s284 = smul.u32 2, %s23
      %p285 = scmp.lt.s32.totalorder %s21, 3
      %s286 = scalar_select %p285, %s21, 3
      %p287 = scmp.lt.s32.totalorder %s22, 0
      %s288 = scalar_select %p287, %s22, 0
      %p289 = scmp.lt.s32.totalorder %s284, 1
      %s290 = scalar_select %p289, %s284, 1
      %s291 = smul.addr %s288, 2
      %s292 = sadd.s32 %s290, %s291
      %s293 = smul.addr %s286, 2
      %s294 = sadd.s32 %s292, %s293
      %s295 = scalar_lea.vmem %s4, %s294
      %s296 = smul.u32 4, %s22
      %p297 = scmp.lt.s32.totalorder %s21, 3
      %s298 = scalar_select %p297, %s21, 3
      %p299 = scmp.lt.s32.totalorder %s296, 3
      %s300 = scalar_select %p299, %s296, 3
      %s301 = smul.addr %s300, 16
      %s302 = smul.addr %s298, 64
      %s303 = sadd.s32 %s301, %s302
      %s304 = smul.addr %s303, 4
      %s305 = scalar_lea.vmem %s0, %s304
      %s306 = smul.u32 4, %s22
      %s307 = smul.u32 2, %s23
      %p308 = scmp.lt.s32.totalorder %s21, 3
      %s309 = scalar_select %p308, %s21, 3
      %p310 = scmp.lt.s32.totalorder %s307, 1
      %s311 = scalar_select %p310, %s307, 1
      %s312 = smul.addr %s309, 512
      %s313 = sadd.s32 %s311, %s312
      %s314 = smul.addr %s313, 4
      %s315 = scalar_lea.vmem %s1, %s314
      %s316 = smul.u32 2, %s23
      %s317 = smul.u32 4, %s22
      %s318 = smul.u32 2, %s23
      %p319 = scmp.lt.s32.totalorder %s21, 3
      %s320 = scalar_select %p319, %s21, 3
      %p321 = scmp.lt.s32.totalorder %s317, 3
      %s322 = scalar_select %p321, %s317, 3
      %p323 = scmp.lt.s32.totalorder %s318, 1
      %s324 = scalar_select %p323, %s318, 1
      %s325 = smul.addr %s322, 2
      %s326 = sadd.s32 %s324, %s325
      %s327 = smul.addr %s320, 8
      %s328 = sadd.s32 %s326, %s327
      %s329 = smul.addr %s328, 8
      %s330 = scalar_lea.vmem %s2, %s329
      %s331 = smul.u32 4, %s22
      %s332 = smul.u32 2, %s23
      %s333 = smul.u32 2, %s23
      %p334 = scmp.lt.s32.totalorder %s21, 3
      %s335 = scalar_select %p334, %s21, 3
      %p336 = scmp.lt.s32.totalorder %s22, 0
      %s337 = scalar_select %p336, %s22, 0
      %p338 = scmp.lt.s32.totalorder %s333, 1
      %s339 = scalar_select %p338, %s333, 1
      %s340 = smul.addr %s337, 2
      %s341 = sadd.s32 %s339, %s340
      %s342 = smul.addr %s335, 2
      %s343 = sadd.s32 %s341, %s342
      %s344 = scalar_lea.vmem %s3, %s343
      %s345 = smul.u32 2, %s23
      %s346 = smul.u32 2, %s23
      %p347 = scmp.lt.s32.totalorder %s21, 3
      %s348 = scalar_select %p347, %s21, 3
      %p349 = scmp.lt.s32.totalorder %s22, 0
      %s350 = scalar_select %p349, %s22, 0
      %p351 = scmp.lt.s32.totalorder %s346, 1
      %s352 = scalar_select %p351, %s346, 1
      %s353 = smul.addr %s350, 2
      %s354 = sadd.s32 %s352, %s353
      %s355 = smul.addr %s348, 2
      %s356 = sadd.s32 %s354, %s355
      %s357 = scalar_lea.vmem %s4, %s356
      %s358 = smul.u32 2, %s23
      %v359 = vld [vmem:[%s305] sm:$0xff]
      %v360 = vld [vmem:[%s305 + $0x8] sm:$0xff]
      %v361 = vld [vmem:[%s305 + $0x10] sm:$0xff]
      %v362 = vld [vmem:[%s305 + $0x18] sm:$0xff]
      %v363 = vld [vmem:[%s305 + $0x20] sm:$0xff]
      %v364 = vld [vmem:[%s305 + $0x28] sm:$0xff]
      %v365 = vld [vmem:[%s305 + $0x30] sm:$0xff]
      %v366 = vld [vmem:[%s305 + $0x38] sm:$0xff]
      %v367 = vld [vmem:[%s305 + $0x40] sm:$0xff]
      %v368 = vld [vmem:[%s305 + $0x48] sm:$0xff]
      %v369 = vld [vmem:[%s305 + $0x50] sm:$0xff]
      %v370 = vld [vmem:[%s305 + $0x58] sm:$0xff]
      %v371 = vld [vmem:[%s305 + $0x60] sm:$0xff]
      %v372 = vld [vmem:[%s305 + $0x68] sm:$0xff]
      %v373 = vld [vmem:[%s305 + $0x70] sm:$0xff]
      %v374 = vld [vmem:[%s305 + $0x78] sm:$0xff]
      %v375 = vld [vmem:[%s305 + $0x80] sm:$0xff]
      %v376 = vld [vmem:[%s305 + $0x88] sm:$0xff]
      %v377 = vld [vmem:[%s305 + $0x90] sm:$0xff]
      %v378 = vld [vmem:[%s305 + $0x98] sm:$0xff]
      %v379 = vld [vmem:[%s305 + $0xa0] sm:$0xff]
      %v380 = vld [vmem:[%s305 + $0xa8] sm:$0xff]
      %v381 = vld [vmem:[%s305 + $0xb0] sm:$0xff]
      %v382 = vld [vmem:[%s305 + $0xb8] sm:$0xff]
      %v383 = vld [vmem:[%s305 + $0xc0] sm:$0xff]
      %v384 = vld [vmem:[%s305 + $0xc8] sm:$0xff]
      %v385 = vld [vmem:[%s305 + $0xd0] sm:$0xff]
      %v386 = vld [vmem:[%s305 + $0xd8] sm:$0xff]
      %v387 = vld [vmem:[%s305 + $0xe0] sm:$0xff]
      %v388 = vld [vmem:[%s305 + $0xe8] sm:$0xff]
      %v389 = vld [vmem:[%s305 + $0xf0] sm:$0xff]
      %v390 = vld [vmem:[%s305 + $0xf8] sm:$0xff]
      %v391 = vld [vmem:[%s315] sm:$0xff]
      %v392 = vld [vmem:[%s315 + $0x8] sm:$0xff]
      %v393 = vld [vmem:[%s315 + $0x10] sm:$0xff]
      %v394 = vld [vmem:[%s315 + $0x18] sm:$0xff]
      %v395 = vld [vmem:[%s315 + $0x20] sm:$0xff]
      %v396 = vld [vmem:[%s315 + $0x28] sm:$0xff]
      %v397 = vld [vmem:[%s315 + $0x30] sm:$0xff]
      %v398 = vld [vmem:[%s315 + $0x38] sm:$0xff]
      %v399 = vld [vmem:[%s315 + $0x40] sm:$0xff]
      %v400 = vld [vmem:[%s315 + $0x48] sm:$0xff]
      %v401 = vld [vmem:[%s315 + $0x50] sm:$0xff]
      %v402 = vld [vmem:[%s315 + $0x58] sm:$0xff]
      %v403 = vld [vmem:[%s315 + $0x60] sm:$0xff]
      %v404 = vld [vmem:[%s315 + $0x68] sm:$0xff]
      %v405 = vld [vmem:[%s315 + $0x70] sm:$0xff]
      %v406 = vld [vmem:[%s315 + $0x78] sm:$0xff]
      %v407 = vld [vmem:[%s315 + $0x80] sm:$0xff]
      %v408 = vld [vmem:[%s315 + $0x88] sm:$0xff]
      %v409 = vld [vmem:[%s315 + $0x90] sm:$0xff]
      %v410 = vld [vmem:[%s315 + $0x98] sm:$0xff]
      %v411 = vld [vmem:[%s315 + $0xa0] sm:$0xff]
      %v412 = vld [vmem:[%s315 + $0xa8] sm:$0xff]
      %v413 = vld [vmem:[%s315 + $0xb0] sm:$0xff]
      %v414 = vld [vmem:[%s315 + $0xb8] sm:$0xff]
      %v415 = vld [vmem:[%s315 + $0xc0] sm:$0xff]
      %v416 = vld [vmem:[%s315 + $0xc8] sm:$0xff]
      %v417 = vld [vmem:[%s315 + $0xd0] sm:$0xff]
      %v418 = vld [vmem:[%s315 + $0xd8] sm:$0xff]
      %v419 = vld [vmem:[%s315 + $0xe0] sm:$0xff]
      %v420 = vld [vmem:[%s315 + $0xe8] sm:$0xff]
      %v421 = vld [vmem:[%s315 + $0xf0] sm:$0xff]
      %v422 = vld [vmem:[%s315 + $0xf8] sm:$0xff]
      %v423 = vld [vmem:[%s315 + $0x100] sm:$0xff]
      %v424 = vld [vmem:[%s315 + $0x108] sm:$0xff]
      %v425 = vld [vmem:[%s315 + $0x110] sm:$0xff]
      %v426 = vld [vmem:[%s315 + $0x118] sm:$0xff]
      %v427 = vld [vmem:[%s315 + $0x120] sm:$0xff]
      %v428 = vld [vmem:[%s315 + $0x128] sm:$0xff]
      %v429 = vld [vmem:[%s315 + $0x130] sm:$0xff]
      %v430 = vld [vmem:[%s315 + $0x138] sm:$0xff]
      %v431 = vld [vmem:[%s315 + $0x140] sm:$0xff]
      %v432 = vld [vmem:[%s315 + $0x148] sm:$0xff]
      %v433 = vld [vmem:[%s315 + $0x150] sm:$0xff]
      %v434 = vld [vmem:[%s315 + $0x158] sm:$0xff]
      %v435 = vld [vmem:[%s315 + $0x160] sm:$0xff]
      %v436 = vld [vmem:[%s315 + $0x168] sm:$0xff]
      %v437 = vld [vmem:[%s315 + $0x170] sm:$0xff]
      %v438 = vld [vmem:[%s315 + $0x178] sm:$0xff]
      %v439 = vld [vmem:[%s315 + $0x180] sm:$0xff]
      %v440 = vld [vmem:[%s315 + $0x188] sm:$0xff]
      %v441 = vld [vmem:[%s315 + $0x190] sm:$0xff]
      %v442 = vld [vmem:[%s315 + $0x198] sm:$0xff]
      %v443 = vld [vmem:[%s315 + $0x1a0] sm:$0xff]
      %v444 = vld [vmem:[%s315 + $0x1a8] sm:$0xff]
      %v445 = vld [vmem:[%s315 + $0x1b0] sm:$0xff]
      %v446 = vld [vmem:[%s315 + $0x1b8] sm:$0xff]
      %v447 = vld [vmem:[%s315 + $0x1c0] sm:$0xff]
      %v448 = vld [vmem:[%s315 + $0x1c8] sm:$0xff]
      %v449 = vld [vmem:[%s315 + $0x1d0] sm:$0xff]
      %v450 = vld [vmem:[%s315 + $0x1d8] sm:$0xff]
      %v451 = vld [vmem:[%s315 + $0x1e0] sm:$0xff]
      %v452 = vld [vmem:[%s315 + $0x1e8] sm:$0xff]
      %v453 = vld [vmem:[%s315 + $0x1f0] sm:$0xff]
      %v454 = vld [vmem:[%s315 + $0x1f8] sm:$0xff]
      %v455 = vld [vmem:[%s315 + $0x200] sm:$0xff]
      %v456 = vld [vmem:[%s315 + $0x208] sm:$0xff]
      %v457 = vld [vmem:[%s315 + $0x210] sm:$0xff]
      %v458 = vld [vmem:[%s315 + $0x218] sm:$0xff]
      %v459 = vld [vmem:[%s315 + $0x220] sm:$0xff]
      %v460 = vld [vmem:[%s315 + $0x228] sm:$0xff]
      %v461 = vld [vmem:[%s315 + $0x230] sm:$0xff]
      %v462 = vld [vmem:[%s315 + $0x238] sm:$0xff]
      %v463 = vld [vmem:[%s315 + $0x240] sm:$0xff]
      %v464 = vld [vmem:[%s315 + $0x248] sm:$0xff]
      %v465 = vld [vmem:[%s315 + $0x250] sm:$0xff]
      %v466 = vld [vmem:[%s315 + $0x258] sm:$0xff]
      %v467 = vld [vmem:[%s315 + $0x260] sm:$0xff]
      %v468 = vld [vmem:[%s315 + $0x268] sm:$0xff]
      %v469 = vld [vmem:[%s315 + $0x270] sm:$0xff]
      %v470 = vld [vmem:[%s315 + $0x278] sm:$0xff]
      %v471 = vld [vmem:[%s315 + $0x280] sm:$0xff]
      %v472 = vld [vmem:[%s315 + $0x288] sm:$0xff]
      %v473 = vld [vmem:[%s315 + $0x290] sm:$0xff]
      %v474 = vld [vmem:[%s315 + $0x298] sm:$0xff]
      %v475 = vld [vmem:[%s315 + $0x2a0] sm:$0xff]
      %v476 = vld [vmem:[%s315 + $0x2a8] sm:$0xff]
      %v477 = vld [vmem:[%s315 + $0x2b0] sm:$0xff]
      %v478 = vld [vmem:[%s315 + $0x2b8] sm:$0xff]
      %v479 = vld [vmem:[%s315 + $0x2c0] sm:$0xff]
      %v480 = vld [vmem:[%s315 + $0x2c8] sm:$0xff]
      %v481 = vld [vmem:[%s315 + $0x2d0] sm:$0xff]
      %v482 = vld [vmem:[%s315 + $0x2d8] sm:$0xff]
      %v483 = vld [vmem:[%s315 + $0x2e0] sm:$0xff]
      %v484 = vld [vmem:[%s315 + $0x2e8] sm:$0xff]
      %v485 = vld [vmem:[%s315 + $0x2f0] sm:$0xff]
      %v486 = vld [vmem:[%s315 + $0x2f8] sm:$0xff]
      %v487 = vld [vmem:[%s315 + $0x300] sm:$0xff]
      %v488 = vld [vmem:[%s315 + $0x308] sm:$0xff]
      %v489 = vld [vmem:[%s315 + $0x310] sm:$0xff]
      %v490 = vld [vmem:[%s315 + $0x318] sm:$0xff]
      %v491 = vld [vmem:[%s315 + $0x320] sm:$0xff]
      %v492 = vld [vmem:[%s315 + $0x328] sm:$0xff]
      %v493 = vld [vmem:[%s315 + $0x330] sm:$0xff]
      %v494 = vld [vmem:[%s315 + $0x338] sm:$0xff]
      %v495 = vld [vmem:[%s315 + $0x340] sm:$0xff]
      %v496 = vld [vmem:[%s315 + $0x348] sm:$0xff]
      %v497 = vld [vmem:[%s315 + $0x350] sm:$0xff]
      %v498 = vld [vmem:[%s315 + $0x358] sm:$0xff]
      %v499 = vld [vmem:[%s315 + $0x360] sm:$0xff]
      %v500 = vld [vmem:[%s315 + $0x368] sm:$0xff]
      %v501 = vld [vmem:[%s315 + $0x370] sm:$0xff]
      %v502 = vld [vmem:[%s315 + $0x378] sm:$0xff]
      %v503 = vld [vmem:[%s315 + $0x380] sm:$0xff]
      %v504 = vld [vmem:[%s315 + $0x388] sm:$0xff]
      %v505 = vld [vmem:[%s315 + $0x390] sm:$0xff]
      %v506 = vld [vmem:[%s315 + $0x398] sm:$0xff]
      %v507 = vld [vmem:[%s315 + $0x3a0] sm:$0xff]
      %v508 = vld [vmem:[%s315 + $0x3a8] sm:$0xff]
      %v509 = vld [vmem:[%s315 + $0x3b0] sm:$0xff]
      %v510 = vld [vmem:[%s315 + $0x3b8] sm:$0xff]
      %v511 = vld [vmem:[%s315 + $0x3c0] sm:$0xff]
      %v512 = vld [vmem:[%s315 + $0x3c8] sm:$0xff]
      %v513 = vld [vmem:[%s315 + $0x3d0] sm:$0xff]
      %v514 = vld [vmem:[%s315 + $0x3d8] sm:$0xff]
      %v515 = vld [vmem:[%s315 + $0x3e0] sm:$0xff]
      %v516 = vld [vmem:[%s315 + $0x3e8] sm:$0xff]
      %v517 = vld [vmem:[%s315 + $0x3f0] sm:$0xff]
      %v518 = vld [vmem:[%s315 + $0x3f8] sm:$0xff]
      %v519 = vld [vmem:[%s315 + $0x400] sm:$0xff]
      %v520 = vld [vmem:[%s315 + $0x408] sm:$0xff]
      %v521 = vld [vmem:[%s315 + $0x410] sm:$0xff]
      %v522 = vld [vmem:[%s315 + $0x418] sm:$0xff]
      %v523 = vld [vmem:[%s315 + $0x420] sm:$0xff]
      %v524 = vld [vmem:[%s315 + $0x428] sm:$0xff]
      %v525 = vld [vmem:[%s315 + $0x430] sm:$0xff]
      %v526 = vld [vmem:[%s315 + $0x438] sm:$0xff]
      %v527 = vld [vmem:[%s315 + $0x440] sm:$0xff]
      %v528 = vld [vmem:[%s315 + $0x448] sm:$0xff]
      %v529 = vld [vmem:[%s315 + $0x450] sm:$0xff]
      %v530 = vld [vmem:[%s315 + $0x458] sm:$0xff]
      %v531 = vld [vmem:[%s315 + $0x460] sm:$0xff]
      %v532 = vld [vmem:[%s315 + $0x468] sm:$0xff]
      %v533 = vld [vmem:[%s315 + $0x470] sm:$0xff]
      %v534 = vld [vmem:[%s315 + $0x478] sm:$0xff]
      %v535 = vld [vmem:[%s315 + $0x480] sm:$0xff]
      %v536 = vld [vmem:[%s315 + $0x488] sm:$0xff]
      %v537 = vld [vmem:[%s315 + $0x490] sm:$0xff]
      %v538 = vld [vmem:[%s315 + $0x498] sm:$0xff]
      %v539 = vld [vmem:[%s315 + $0x4a0] sm:$0xff]
      %v540 = vld [vmem:[%s315 + $0x4a8] sm:$0xff]
      %v541 = vld [vmem:[%s315 + $0x4b0] sm:$0xff]
      %v542 = vld [vmem:[%s315 + $0x4b8] sm:$0xff]
      %v543 = vld [vmem:[%s315 + $0x4c0] sm:$0xff]
      %v544 = vld [vmem:[%s315 + $0x4c8] sm:$0xff]
      %v545 = vld [vmem:[%s315 + $0x4d0] sm:$0xff]
      %v546 = vld [vmem:[%s315 + $0x4d8] sm:$0xff]
      %v547 = vld [vmem:[%s315 + $0x4e0] sm:$0xff]
      %v548 = vld [vmem:[%s315 + $0x4e8] sm:$0xff]
      %v549 = vld [vmem:[%s315 + $0x4f0] sm:$0xff]
      %v550 = vld [vmem:[%s315 + $0x4f8] sm:$0xff]
      %v551 = vld [vmem:[%s315 + $0x500] sm:$0xff]
      %v552 = vld [vmem:[%s315 + $0x508] sm:$0xff]
      %v553 = vld [vmem:[%s315 + $0x510] sm:$0xff]
      %v554 = vld [vmem:[%s315 + $0x518] sm:$0xff]
      %v555 = vld [vmem:[%s315 + $0x520] sm:$0xff]
      %v556 = vld [vmem:[%s315 + $0x528] sm:$0xff]
      %v557 = vld [vmem:[%s315 + $0x530] sm:$0xff]
      %v558 = vld [vmem:[%s315 + $0x538] sm:$0xff]
      %v559 = vld [vmem:[%s315 + $0x540] sm:$0xff]
      %v560 = vld [vmem:[%s315 + $0x548] sm:$0xff]
      %v561 = vld [vmem:[%s315 + $0x550] sm:$0xff]
      %v562 = vld [vmem:[%s315 + $0x558] sm:$0xff]
      %v563 = vld [vmem:[%s315 + $0x560] sm:$0xff]
      %v564 = vld [vmem:[%s315 + $0x568] sm:$0xff]
      %v565 = vld [vmem:[%s315 + $0x570] sm:$0xff]
      %v566 = vld [vmem:[%s315 + $0x578] sm:$0xff]
      %v567 = vld [vmem:[%s315 + $0x580] sm:$0xff]
      %v568 = vld [vmem:[%s315 + $0x588] sm:$0xff]
      %v569 = vld [vmem:[%s315 + $0x590] sm:$0xff]
      %v570 = vld [vmem:[%s315 + $0x598] sm:$0xff]
      %v571 = vld [vmem:[%s315 + $0x5a0] sm:$0xff]
      %v572 = vld [vmem:[%s315 + $0x5a8] sm:$0xff]
      %v573 = vld [vmem:[%s315 + $0x5b0] sm:$0xff]
      %v574 = vld [vmem:[%s315 + $0x5b8] sm:$0xff]
      %v575 = vld [vmem:[%s315 + $0x5c0] sm:$0xff]
      %v576 = vld [vmem:[%s315 + $0x5c8] sm:$0xff]
      %v577 = vld [vmem:[%s315 + $0x5d0] sm:$0xff]
      %v578 = vld [vmem:[%s315 + $0x5d8] sm:$0xff]
      %v579 = vld [vmem:[%s315 + $0x5e0] sm:$0xff]
      %v580 = vld [vmem:[%s315 + $0x5e8] sm:$0xff]
      %v581 = vld [vmem:[%s315 + $0x5f0] sm:$0xff]
      %v582 = vld [vmem:[%s315 + $0x5f8] sm:$0xff]
      %v583 = vld [vmem:[%s315 + $0x600] sm:$0xff]
      %v584 = vld [vmem:[%s315 + $0x608] sm:$0xff]
      %v585 = vld [vmem:[%s315 + $0x610] sm:$0xff]
      %v586 = vld [vmem:[%s315 + $0x618] sm:$0xff]
      %v587 = vld [vmem:[%s315 + $0x620] sm:$0xff]
      %v588 = vld [vmem:[%s315 + $0x628] sm:$0xff]
      %v589 = vld [vmem:[%s315 + $0x630] sm:$0xff]
      %v590 = vld [vmem:[%s315 + $0x638] sm:$0xff]
      %v591 = vld [vmem:[%s315 + $0x640] sm:$0xff]
      %v592 = vld [vmem:[%s315 + $0x648] sm:$0xff]
      %v593 = vld [vmem:[%s315 + $0x650] sm:$0xff]
      %v594 = vld [vmem:[%s315 + $0x658] sm:$0xff]
      %v595 = vld [vmem:[%s315 + $0x660] sm:$0xff]
      %v596 = vld [vmem:[%s315 + $0x668] sm:$0xff]
      %v597 = vld [vmem:[%s315 + $0x670] sm:$0xff]
      %v598 = vld [vmem:[%s315 + $0x678] sm:$0xff]
      %v599 = vld [vmem:[%s315 + $0x680] sm:$0xff]
      %v600 = vld [vmem:[%s315 + $0x688] sm:$0xff]
      %v601 = vld [vmem:[%s315 + $0x690] sm:$0xff]
      %v602 = vld [vmem:[%s315 + $0x698] sm:$0xff]
      %v603 = vld [vmem:[%s315 + $0x6a0] sm:$0xff]
      %v604 = vld [vmem:[%s315 + $0x6a8] sm:$0xff]
      %v605 = vld [vmem:[%s315 + $0x6b0] sm:$0xff]
      %v606 = vld [vmem:[%s315 + $0x6b8] sm:$0xff]
      %v607 = vld [vmem:[%s315 + $0x6c0] sm:$0xff]
      %v608 = vld [vmem:[%s315 + $0x6c8] sm:$0xff]
      %v609 = vld [vmem:[%s315 + $0x6d0] sm:$0xff]
      %v610 = vld [vmem:[%s315 + $0x6d8] sm:$0xff]
      %v611 = vld [vmem:[%s315 + $0x6e0] sm:$0xff]
      %v612 = vld [vmem:[%s315 + $0x6e8] sm:$0xff]
      %v613 = vld [vmem:[%s315 + $0x6f0] sm:$0xff]
      %v614 = vld [vmem:[%s315 + $0x6f8] sm:$0xff]
      %v615 = vld [vmem:[%s315 + $0x700] sm:$0xff]
      %v616 = vld [vmem:[%s315 + $0x708] sm:$0xff]
      %v617 = vld [vmem:[%s315 + $0x710] sm:$0xff]
      %v618 = vld [vmem:[%s315 + $0x718] sm:$0xff]
      %v619 = vld [vmem:[%s315 + $0x720] sm:$0xff]
      %v620 = vld [vmem:[%s315 + $0x728] sm:$0xff]
      %v621 = vld [vmem:[%s315 + $0x730] sm:$0xff]
      %v622 = vld [vmem:[%s315 + $0x738] sm:$0xff]
      %v623 = vld [vmem:[%s315 + $0x740] sm:$0xff]
      %v624 = vld [vmem:[%s315 + $0x748] sm:$0xff]
      %v625 = vld [vmem:[%s315 + $0x750] sm:$0xff]
      %v626 = vld [vmem:[%s315 + $0x758] sm:$0xff]
      %v627 = vld [vmem:[%s315 + $0x760] sm:$0xff]
      %v628 = vld [vmem:[%s315 + $0x768] sm:$0xff]
      %v629 = vld [vmem:[%s315 + $0x770] sm:$0xff]
      %v630 = vld [vmem:[%s315 + $0x778] sm:$0xff]
      %v631 = vld [vmem:[%s315 + $0x780] sm:$0xff]
      %v632 = vld [vmem:[%s315 + $0x788] sm:$0xff]
      %v633 = vld [vmem:[%s315 + $0x790] sm:$0xff]
      %v634 = vld [vmem:[%s315 + $0x798] sm:$0xff]
      %v635 = vld [vmem:[%s315 + $0x7a0] sm:$0xff]
      %v636 = vld [vmem:[%s315 + $0x7a8] sm:$0xff]
      %v637 = vld [vmem:[%s315 + $0x7b0] sm:$0xff]
      %v638 = vld [vmem:[%s315 + $0x7b8] sm:$0xff]
      %v639 = vld [vmem:[%s315 + $0x7c0] sm:$0xff]
      %v640 = vld [vmem:[%s315 + $0x7c8] sm:$0xff]
      %v641 = vld [vmem:[%s315 + $0x7d0] sm:$0xff]
      %v642 = vld [vmem:[%s315 + $0x7d8] sm:$0xff]
      %v643 = vld [vmem:[%s315 + $0x7e0] sm:$0xff]
      %v644 = vld [vmem:[%s315 + $0x7e8] sm:$0xff]
      %v645 = vld [vmem:[%s315 + $0x7f0] sm:$0xff]
      %v646 = vld [vmem:[%s315 + $0x7f8] sm:$0xff]
      %v679 = vunpack.c.l.b16 %v359
      %v680 = vunpack.c.h.b16 %v359
      %v681 = vunpack.c.l.b16 %v360
      %v682 = vunpack.c.h.b16 %v360
      %v683 = vunpack.c.l.b16 %v361
      %v684 = vunpack.c.h.b16 %v361
      %v685 = vunpack.c.l.b16 %v362
      %v686 = vunpack.c.h.b16 %v362
      %v687 = vunpack.c.l.b16 %v363
      %v688 = vunpack.c.h.b16 %v363
      %v689 = vunpack.c.l.b16 %v364
      %v690 = vunpack.c.h.b16 %v364
      %v691 = vunpack.c.l.b16 %v365
      %v692 = vunpack.c.h.b16 %v365
      %v693 = vunpack.c.l.b16 %v366
      %v694 = vunpack.c.h.b16 %v366
      %v695 = vunpack.c.l.b16 %v367
      %v696 = vunpack.c.h.b16 %v367
      %v697 = vunpack.c.l.b16 %v368
      %v698 = vunpack.c.h.b16 %v368
      %v699 = vunpack.c.l.b16 %v369
      %v700 = vunpack.c.h.b16 %v369
      %v701 = vunpack.c.l.b16 %v370
      %v702 = vunpack.c.h.b16 %v370
      %v703 = vunpack.c.l.b16 %v371
      %v704 = vunpack.c.h.b16 %v371
      %v705 = vunpack.c.l.b16 %v372
      %v706 = vunpack.c.h.b16 %v372
      %v707 = vunpack.c.l.b16 %v373
      %v708 = vunpack.c.h.b16 %v373
      %v709 = vunpack.c.l.b16 %v374
      %v710 = vunpack.c.h.b16 %v374
      %v711 = vunpack.c.l.b16 %v375
      %v712 = vunpack.c.h.b16 %v375
      %v713 = vunpack.c.l.b16 %v376
      %v714 = vunpack.c.h.b16 %v376
      %v715 = vunpack.c.l.b16 %v377
      %v716 = vunpack.c.h.b16 %v377
      %v717 = vunpack.c.l.b16 %v378
      %v718 = vunpack.c.h.b16 %v378
      %v719 = vunpack.c.l.b16 %v379
      %v720 = vunpack.c.h.b16 %v379
      %v721 = vunpack.c.l.b16 %v380
      %v722 = vunpack.c.h.b16 %v380
      %v723 = vunpack.c.l.b16 %v381
      %v724 = vunpack.c.h.b16 %v381
      %v725 = vunpack.c.l.b16 %v382
      %v726 = vunpack.c.h.b16 %v382
      %v727 = vunpack.c.l.b16 %v383
      %v728 = vunpack.c.h.b16 %v383
      %v729 = vunpack.c.l.b16 %v384
      %v730 = vunpack.c.h.b16 %v384
      %v731 = vunpack.c.l.b16 %v385
      %v732 = vunpack.c.h.b16 %v385
      %v733 = vunpack.c.l.b16 %v386
      %v734 = vunpack.c.h.b16 %v386
      %v735 = vunpack.c.l.b16 %v387
      %v736 = vunpack.c.h.b16 %v387
      %v737 = vunpack.c.l.b16 %v388
      %v738 = vunpack.c.h.b16 %v388
      %v739 = vunpack.c.l.b16 %v389
      %v740 = vunpack.c.h.b16 %v389
      %v741 = vunpack.c.l.b16 %v390
      %v742 = vunpack.c.h.b16 %v390
      %v743 = vpack.c.b16 %v695, %v679
      %v744 = vpack.c.b16 %v696, %v680
      %v745 = vpack.c.b16 %v697, %v681
      %v746 = vpack.c.b16 %v698, %v682
      %v747 = vpack.c.b16 %v699, %v683
      %v748 = vpack.c.b16 %v700, %v684
      %v749 = vpack.c.b16 %v701, %v685
      %v750 = vpack.c.b16 %v702, %v686
      %v751 = vpack.c.b16 %v703, %v687
      %v752 = vpack.c.b16 %v704, %v688
      %v753 = vpack.c.b16 %v705, %v689
      %v754 = vpack.c.b16 %v706, %v690
      %v755 = vpack.c.b16 %v707, %v691
      %v756 = vpack.c.b16 %v708, %v692
      %v757 = vpack.c.b16 %v709, %v693
      %v758 = vpack.c.b16 %v710, %v694
      %v759 = vpack.c.b16 %v727, %v711
      %v760 = vpack.c.b16 %v728, %v712
      %v761 = vpack.c.b16 %v729, %v713
      %v762 = vpack.c.b16 %v730, %v714
      %v763 = vpack.c.b16 %v731, %v715
      %v764 = vpack.c.b16 %v732, %v716
      %v765 = vpack.c.b16 %v733, %v717
      %v766 = vpack.c.b16 %v734, %v718
      %v767 = vpack.c.b16 %v735, %v719
      %v768 = vpack.c.b16 %v736, %v720
      %v769 = vpack.c.b16 %v737, %v721
      %v770 = vpack.c.b16 %v738, %v722
      %v771 = vpack.c.b16 %v739, %v723
      %v772 = vpack.c.b16 %v740, %v724
      %v773 = vpack.c.b16 %v741, %v725
      %v774 = vpack.c.b16 %v742, %v726
      %v1063 = vunpack.c.l.b16 %v391
      %v1064 = vunpack.c.h.b16 %v391
      %v1065 = vunpack.c.l.b16 %v392
      %v1066 = vunpack.c.h.b16 %v392
      %v1067 = vunpack.c.l.b16 %v393
      %v1068 = vunpack.c.h.b16 %v393
      %v1069 = vunpack.c.l.b16 %v394
      %v1070 = vunpack.c.h.b16 %v394
      %v1071 = vunpack.c.l.b16 %v395
      %v1072 = vunpack.c.h.b16 %v395
      %v1073 = vunpack.c.l.b16 %v396
      %v1074 = vunpack.c.h.b16 %v396
      %v1075 = vunpack.c.l.b16 %v397
      %v1076 = vunpack.c.h.b16 %v397
      %v1077 = vunpack.c.l.b16 %v398
      %v1078 = vunpack.c.h.b16 %v398
      %v1079 = vunpack.c.l.b16 %v399
      %v1080 = vunpack.c.h.b16 %v399
      %v1081 = vunpack.c.l.b16 %v400
      %v1082 = vunpack.c.h.b16 %v400
      %v1083 = vunpack.c.l.b16 %v401
      %v1084 = vunpack.c.h.b16 %v401
      %v1085 = vunpack.c.l.b16 %v402
      %v1086 = vunpack.c.h.b16 %v402
      %v1087 = vunpack.c.l.b16 %v403
      %v1088 = vunpack.c.h.b16 %v403
      %v1089 = vunpack.c.l.b16 %v404
      %v1090 = vunpack.c.h.b16 %v404
      %v1091 = vunpack.c.l.b16 %v405
      %v1092 = vunpack.c.h.b16 %v405
      %v1093 = vunpack.c.l.b16 %v406
      %v1094 = vunpack.c.h.b16 %v406
      %v1095 = vunpack.c.l.b16 %v407
      %v1096 = vunpack.c.h.b16 %v407
      %v1097 = vunpack.c.l.b16 %v408
      %v1098 = vunpack.c.h.b16 %v408
      %v1099 = vunpack.c.l.b16 %v409
      %v1100 = vunpack.c.h.b16 %v409
      %v1101 = vunpack.c.l.b16 %v410
      %v1102 = vunpack.c.h.b16 %v410
      %v1103 = vunpack.c.l.b16 %v411
      %v1104 = vunpack.c.h.b16 %v411
      %v1105 = vunpack.c.l.b16 %v412
      %v1106 = vunpack.c.h.b16 %v412
      %v1107 = vunpack.c.l.b16 %v413
      %v1108 = vunpack.c.h.b16 %v413
      %v1109 = vunpack.c.l.b16 %v414
      %v1110 = vunpack.c.h.b16 %v414
      %v1111 = vunpack.c.l.b16 %v415
      %v1112 = vunpack.c.h.b16 %v415
      %v1113 = vunpack.c.l.b16 %v416
      %v1114 = vunpack.c.h.b16 %v416
      %v1115 = vunpack.c.l.b16 %v417
      %v1116 = vunpack.c.h.b16 %v417
      %v1117 = vunpack.c.l.b16 %v418
      %v1118 = vunpack.c.h.b16 %v418
      %v1119 = vunpack.c.l.b16 %v419
      %v1120 = vunpack.c.h.b16 %v419
      %v1121 = vunpack.c.l.b16 %v420
      %v1122 = vunpack.c.h.b16 %v420
      %v1123 = vunpack.c.l.b16 %v421
      %v1124 = vunpack.c.h.b16 %v421
      %v1125 = vunpack.c.l.b16 %v422
      %v1126 = vunpack.c.h.b16 %v422
      %v1127 = vunpack.c.l.b16 %v423
      %v1128 = vunpack.c.h.b16 %v423
      %v1129 = vunpack.c.l.b16 %v424
      %v1130 = vunpack.c.h.b16 %v424
      %v1131 = vunpack.c.l.b16 %v425
      %v1132 = vunpack.c.h.b16 %v425
      %v1133 = vunpack.c.l.b16 %v426
      %v1134 = vunpack.c.h.b16 %v426
      %v1135 = vunpack.c.l.b16 %v427
      %v1136 = vunpack.c.h.b16 %v427
      %v1137 = vunpack.c.l.b16 %v428
      %v1138 = vunpack.c.h.b16 %v428
      %v1139 = vunpack.c.l.b16 %v429
      %v1140 = vunpack.c.h.b16 %v429
      %v1141 = vunpack.c.l.b16 %v430
      %v1142 = vunpack.c.h.b16 %v430
      %v1143 = vunpack.c.l.b16 %v431
      %v1144 = vunpack.c.h.b16 %v431
      %v1145 = vunpack.c.l.b16 %v432
      %v1146 = vunpack.c.h.b16 %v432
      %v1147 = vunpack.c.l.b16 %v433
      %v1148 = vunpack.c.h.b16 %v433
      %v1149 = vunpack.c.l.b16 %v434
      %v1150 = vunpack.c.h.b16 %v434
      %v1151 = vunpack.c.l.b16 %v435
      %v1152 = vunpack.c.h.b16 %v435
      %v1153 = vunpack.c.l.b16 %v436
      %v1154 = vunpack.c.h.b16 %v436
      %v1155 = vunpack.c.l.b16 %v437
      %v1156 = vunpack.c.h.b16 %v437
      %v1157 = vunpack.c.l.b16 %v438
      %v1158 = vunpack.c.h.b16 %v438
      %v1159 = vunpack.c.l.b16 %v439
      %v1160 = vunpack.c.h.b16 %v439
      %v1161 = vunpack.c.l.b16 %v440
      %v1162 = vunpack.c.h.b16 %v440
      %v1163 = vunpack.c.l.b16 %v441
      %v1164 = vunpack.c.h.b16 %v441
      %v1165 = vunpack.c.l.b16 %v442
      %v1166 = vunpack.c.h.b16 %v442
      %v1167 = vunpack.c.l.b16 %v443
      %v1168 = vunpack.c.h.b16 %v443
      %v1169 = vunpack.c.l.b16 %v444
      %v1170 = vunpack.c.h.b16 %v444
      %v1171 = vunpack.c.l.b16 %v445
      %v1172 = vunpack.c.h.b16 %v445
      %v1173 = vunpack.c.l.b16 %v446
      %v1174 = vunpack.c.h.b16 %v446
      %v1175 = vunpack.c.l.b16 %v447
      %v1176 = vunpack.c.h.b16 %v447
      %v1177 = vunpack.c.l.b16 %v448
      %v1178 = vunpack.c.h.b16 %v448
      %v1179 = vunpack.c.l.b16 %v449
      %v1180 = vunpack.c.h.b16 %v449
      %v1181 = vunpack.c.l.b16 %v450
      %v1182 = vunpack.c.h.b16 %v450
      %v1183 = vunpack.c.l.b16 %v451
      %v1184 = vunpack.c.h.b16 %v451
      %v1185 = vunpack.c.l.b16 %v452
      %v1186 = vunpack.c.h.b16 %v452
      %v1187 = vunpack.c.l.b16 %v453
      %v1188 = vunpack.c.h.b16 %v453
      %v1189 = vunpack.c.l.b16 %v454
      %v1190 = vunpack.c.h.b16 %v454
      %v1191 = vunpack.c.l.b16 %v455
      %v1192 = vunpack.c.h.b16 %v455
      %v1193 = vunpack.c.l.b16 %v456
      %v1194 = vunpack.c.h.b16 %v456
      %v1195 = vunpack.c.l.b16 %v457
      %v1196 = vunpack.c.h.b16 %v457
      %v1197 = vunpack.c.l.b16 %v458
      %v1198 = vunpack.c.h.b16 %v458
      %v1199 = vunpack.c.l.b16 %v459
      %v1200 = vunpack.c.h.b16 %v459
      %v1201 = vunpack.c.l.b16 %v460
      %v1202 = vunpack.c.h.b16 %v460
      %v1203 = vunpack.c.l.b16 %v461
      %v1204 = vunpack.c.h.b16 %v461
      %v1205 = vunpack.c.l.b16 %v462
      %v1206 = vunpack.c.h.b16 %v462
      %v1207 = vunpack.c.l.b16 %v463
      %v1208 = vunpack.c.h.b16 %v463
      %v1209 = vunpack.c.l.b16 %v464
      %v1210 = vunpack.c.h.b16 %v464
      %v1211 = vunpack.c.l.b16 %v465
      %v1212 = vunpack.c.h.b16 %v465
      %v1213 = vunpack.c.l.b16 %v466
      %v1214 = vunpack.c.h.b16 %v466
      %v1215 = vunpack.c.l.b16 %v467
      %v1216 = vunpack.c.h.b16 %v467
      %v1217 = vunpack.c.l.b16 %v468
      %v1218 = vunpack.c.h.b16 %v468
      %v1219 = vunpack.c.l.b16 %v469
      %v1220 = vunpack.c.h.b16 %v469
      %v1221 = vunpack.c.l.b16 %v470
      %v1222 = vunpack.c.h.b16 %v470
      %v1223 = vunpack.c.l.b16 %v471
      %v1224 = vunpack.c.h.b16 %v471
      %v1225 = vunpack.c.l.b16 %v472
      %v1226 = vunpack.c.h.b16 %v472
      %v1227 = vunpack.c.l.b16 %v473
      %v1228 = vunpack.c.h.b16 %v473
      %v1229 = vunpack.c.l.b16 %v474
      %v1230 = vunpack.c.h.b16 %v474
      %v1231 = vunpack.c.l.b16 %v475
      %v1232 = vunpack.c.h.b16 %v475
      %v1233 = vunpack.c.l.b16 %v476
      %v1234 = vunpack.c.h.b16 %v476
      %v1235 = vunpack.c.l.b16 %v477
      %v1236 = vunpack.c.h.b16 %v477
      %v1237 = vunpack.c.l.b16 %v478
      %v1238 = vunpack.c.h.b16 %v478
      %v1239 = vunpack.c.l.b16 %v479
      %v1240 = vunpack.c.h.b16 %v479
      %v1241 = vunpack.c.l.b16 %v480
      %v1242 = vunpack.c.h.b16 %v480
      %v1243 = vunpack.c.l.b16 %v481
      %v1244 = vunpack.c.h.b16 %v481
      %v1245 = vunpack.c.l.b16 %v482
      %v1246 = vunpack.c.h.b16 %v482
      %v1247 = vunpack.c.l.b16 %v483
      %v1248 = vunpack.c.h.b16 %v483
      %v1249 = vunpack.c.l.b16 %v484
      %v1250 = vunpack.c.h.b16 %v484
      %v1251 = vunpack.c.l.b16 %v485
      %v1252 = vunpack.c.h.b16 %v485
      %v1253 = vunpack.c.l.b16 %v486
      %v1254 = vunpack.c.h.b16 %v486
      %v1255 = vunpack.c.l.b16 %v487
      %v1256 = vunpack.c.h.b16 %v487
      %v1257 = vunpack.c.l.b16 %v488
      %v1258 = vunpack.c.h.b16 %v488
      %v1259 = vunpack.c.l.b16 %v489
      %v1260 = vunpack.c.h.b16 %v489
      %v1261 = vunpack.c.l.b16 %v490
      %v1262 = vunpack.c.h.b16 %v490
      %v1263 = vunpack.c.l.b16 %v491
      %v1264 = vunpack.c.h.b16 %v491
      %v1265 = vunpack.c.l.b16 %v492
      %v1266 = vunpack.c.h.b16 %v492
      %v1267 = vunpack.c.l.b16 %v493
      %v1268 = vunpack.c.h.b16 %v493
      %v1269 = vunpack.c.l.b16 %v494
      %v1270 = vunpack.c.h.b16 %v494
      %v1271 = vunpack.c.l.b16 %v495
      %v1272 = vunpack.c.h.b16 %v495
      %v1273 = vunpack.c.l.b16 %v496
      %v1274 = vunpack.c.h.b16 %v496
      %v1275 = vunpack.c.l.b16 %v497
      %v1276 = vunpack.c.h.b16 %v497
      %v1277 = vunpack.c.l.b16 %v498
      %v1278 = vunpack.c.h.b16 %v498
      %v1279 = vunpack.c.l.b16 %v499
      %v1280 = vunpack.c.h.b16 %v499
      %v1281 = vunpack.c.l.b16 %v500
      %v1282 = vunpack.c.h.b16 %v500
      %v1283 = vunpack.c.l.b16 %v501
      %v1284 = vunpack.c.h.b16 %v501
      %v1285 = vunpack.c.l.b16 %v502
      %v1286 = vunpack.c.h.b16 %v502
      %v1287 = vunpack.c.l.b16 %v503
      %v1288 = vunpack.c.h.b16 %v503
      %v1289 = vunpack.c.l.b16 %v504
      %v1290 = vunpack.c.h.b16 %v504
      %v1291 = vunpack.c.l.b16 %v505
      %v1292 = vunpack.c.h.b16 %v505
      %v1293 = vunpack.c.l.b16 %v506
      %v1294 = vunpack.c.h.b16 %v506
      %v1295 = vunpack.c.l.b16 %v507
      %v1296 = vunpack.c.h.b16 %v507
      %v1297 = vunpack.c.l.b16 %v508
      %v1298 = vunpack.c.h.b16 %v508
      %v1299 = vunpack.c.l.b16 %v509
      %v1300 = vunpack.c.h.b16 %v509
      %v1301 = vunpack.c.l.b16 %v510
      %v1302 = vunpack.c.h.b16 %v510
      %v1303 = vunpack.c.l.b16 %v511
      %v1304 = vunpack.c.h.b16 %v511
      %v1305 = vunpack.c.l.b16 %v512
      %v1306 = vunpack.c.h.b16 %v512
      %v1307 = vunpack.c.l.b16 %v513
      %v1308 = vunpack.c.h.b16 %v513
      %v1309 = vunpack.c.l.b16 %v514
      %v1310 = vunpack.c.h.b16 %v514
      %v1311 = vunpack.c.l.b16 %v515
      %v1312 = vunpack.c.h.b16 %v515
      %v1313 = vunpack.c.l.b16 %v516
      %v1314 = vunpack.c.h.b16 %v516
      %v1315 = vunpack.c.l.b16 %v517
      %v1316 = vunpack.c.h.b16 %v517
      %v1317 = vunpack.c.l.b16 %v518
      %v1318 = vunpack.c.h.b16 %v518
      %v1319 = vunpack.c.l.b16 %v519
      %v1320 = vunpack.c.h.b16 %v519
      %v1321 = vunpack.c.l.b16 %v520
      %v1322 = vunpack.c.h.b16 %v520
      %v1323 = vunpack.c.l.b16 %v521
      %v1324 = vunpack.c.h.b16 %v521
      %v1325 = vunpack.c.l.b16 %v522
      %v1326 = vunpack.c.h.b16 %v522
      %v1327 = vunpack.c.l.b16 %v523
      %v1328 = vunpack.c.h.b16 %v523
      %v1329 = vunpack.c.l.b16 %v524
      %v1330 = vunpack.c.h.b16 %v524
      %v1331 = vunpack.c.l.b16 %v525
      %v1332 = vunpack.c.h.b16 %v525
      %v1333 = vunpack.c.l.b16 %v526
      %v1334 = vunpack.c.h.b16 %v526
      %v1335 = vunpack.c.l.b16 %v527
      %v1336 = vunpack.c.h.b16 %v527
      %v1337 = vunpack.c.l.b16 %v528
      %v1338 = vunpack.c.h.b16 %v528
      %v1339 = vunpack.c.l.b16 %v529
      %v1340 = vunpack.c.h.b16 %v529
      %v1341 = vunpack.c.l.b16 %v530
      %v1342 = vunpack.c.h.b16 %v530
      %v1343 = vunpack.c.l.b16 %v531
      %v1344 = vunpack.c.h.b16 %v531
      %v1345 = vunpack.c.l.b16 %v532
      %v1346 = vunpack.c.h.b16 %v532
      %v1347 = vunpack.c.l.b16 %v533
      %v1348 = vunpack.c.h.b16 %v533
      %v1349 = vunpack.c.l.b16 %v534
      %v1350 = vunpack.c.h.b16 %v534
      %v1351 = vunpack.c.l.b16 %v535
      %v1352 = vunpack.c.h.b16 %v535
      %v1353 = vunpack.c.l.b16 %v536
      %v1354 = vunpack.c.h.b16 %v536
      %v1355 = vunpack.c.l.b16 %v537
      %v1356 = vunpack.c.h.b16 %v537
      %v1357 = vunpack.c.l.b16 %v538
      %v1358 = vunpack.c.h.b16 %v538
      %v1359 = vunpack.c.l.b16 %v539
      %v1360 = vunpack.c.h.b16 %v539
      %v1361 = vunpack.c.l.b16 %v540
      %v1362 = vunpack.c.h.b16 %v540
      %v1363 = vunpack.c.l.b16 %v541
      %v1364 = vunpack.c.h.b16 %v541
      %v1365 = vunpack.c.l.b16 %v542
      %v1366 = vunpack.c.h.b16 %v542
      %v1367 = vunpack.c.l.b16 %v543
      %v1368 = vunpack.c.h.b16 %v543
      %v1369 = vunpack.c.l.b16 %v544
      %v1370 = vunpack.c.h.b16 %v544
      %v1371 = vunpack.c.l.b16 %v545
      %v1372 = vunpack.c.h.b16 %v545
      %v1373 = vunpack.c.l.b16 %v546
      %v1374 = vunpack.c.h.b16 %v546
      %v1375 = vunpack.c.l.b16 %v547
      %v1376 = vunpack.c.h.b16 %v547
      %v1377 = vunpack.c.l.b16 %v548
      %v1378 = vunpack.c.h.b16 %v548
      %v1379 = vunpack.c.l.b16 %v549
      %v1380 = vunpack.c.h.b16 %v549
      %v1381 = vunpack.c.l.b16 %v550
      %v1382 = vunpack.c.h.b16 %v550
      %v1383 = vunpack.c.l.b16 %v551
      %v1384 = vunpack.c.h.b16 %v551
      %v1385 = vunpack.c.l.b16 %v552
      %v1386 = vunpack.c.h.b16 %v552
      %v1387 = vunpack.c.l.b16 %v553
      %v1388 = vunpack.c.h.b16 %v553
      %v1389 = vunpack.c.l.b16 %v554
      %v1390 = vunpack.c.h.b16 %v554
      %v1391 = vunpack.c.l.b16 %v555
      %v1392 = vunpack.c.h.b16 %v555
      %v1393 = vunpack.c.l.b16 %v556
      %v1394 = vunpack.c.h.b16 %v556
      %v1395 = vunpack.c.l.b16 %v557
      %v1396 = vunpack.c.h.b16 %v557
      %v1397 = vunpack.c.l.b16 %v558
      %v1398 = vunpack.c.h.b16 %v558
      %v1399 = vunpack.c.l.b16 %v559
      %v1400 = vunpack.c.h.b16 %v559
      %v1401 = vunpack.c.l.b16 %v560
      %v1402 = vunpack.c.h.b16 %v560
      %v1403 = vunpack.c.l.b16 %v561
      %v1404 = vunpack.c.h.b16 %v561
      %v1405 = vunpack.c.l.b16 %v562
      %v1406 = vunpack.c.h.b16 %v562
      %v1407 = vunpack.c.l.b16 %v563
      %v1408 = vunpack.c.h.b16 %v563
      %v1409 = vunpack.c.l.b16 %v564
      %v1410 = vunpack.c.h.b16 %v564
      %v1411 = vunpack.c.l.b16 %v565
      %v1412 = vunpack.c.h.b16 %v565
      %v1413 = vunpack.c.l.b16 %v566
      %v1414 = vunpack.c.h.b16 %v566
      %v1415 = vunpack.c.l.b16 %v567
      %v1416 = vunpack.c.h.b16 %v567
      %v1417 = vunpack.c.l.b16 %v568
      %v1418 = vunpack.c.h.b16 %v568
      %v1419 = vunpack.c.l.b16 %v569
      %v1420 = vunpack.c.h.b16 %v569
      %v1421 = vunpack.c.l.b16 %v570
      %v1422 = vunpack.c.h.b16 %v570
      %v1423 = vunpack.c.l.b16 %v571
      %v1424 = vunpack.c.h.b16 %v571
      %v1425 = vunpack.c.l.b16 %v572
      %v1426 = vunpack.c.h.b16 %v572
      %v1427 = vunpack.c.l.b16 %v573
      %v1428 = vunpack.c.h.b16 %v573
      %v1429 = vunpack.c.l.b16 %v574
      %v1430 = vunpack.c.h.b16 %v574
      %v1431 = vunpack.c.l.b16 %v575
      %v1432 = vunpack.c.h.b16 %v575
      %v1433 = vunpack.c.l.b16 %v576
      %v1434 = vunpack.c.h.b16 %v576
      %v1435 = vunpack.c.l.b16 %v577
      %v1436 = vunpack.c.h.b16 %v577
      %v1437 = vunpack.c.l.b16 %v578
      %v1438 = vunpack.c.h.b16 %v578
      %v1439 = vunpack.c.l.b16 %v579
      %v1440 = vunpack.c.h.b16 %v579
      %v1441 = vunpack.c.l.b16 %v580
      %v1442 = vunpack.c.h.b16 %v580
      %v1443 = vunpack.c.l.b16 %v581
      %v1444 = vunpack.c.h.b16 %v581
      %v1445 = vunpack.c.l.b16 %v582
      %v1446 = vunpack.c.h.b16 %v582
      %v1447 = vunpack.c.l.b16 %v583
      %v1448 = vunpack.c.h.b16 %v583
      %v1449 = vunpack.c.l.b16 %v584
      %v1450 = vunpack.c.h.b16 %v584
      %v1451 = vunpack.c.l.b16 %v585
      %v1452 = vunpack.c.h.b16 %v585
      %v1453 = vunpack.c.l.b16 %v586
      %v1454 = vunpack.c.h.b16 %v586
      %v1455 = vunpack.c.l.b16 %v587
      %v1456 = vunpack.c.h.b16 %v587
      %v1457 = vunpack.c.l.b16 %v588
      %v1458 = vunpack.c.h.b16 %v588
      %v1459 = vunpack.c.l.b16 %v589
      %v1460 = vunpack.c.h.b16 %v589
      %v1461 = vunpack.c.l.b16 %v590
      %v1462 = vunpack.c.h.b16 %v590
      %v1463 = vunpack.c.l.b16 %v591
      %v1464 = vunpack.c.h.b16 %v591
      %v1465 = vunpack.c.l.b16 %v592
      %v1466 = vunpack.c.h.b16 %v592
      %v1467 = vunpack.c.l.b16 %v593
      %v1468 = vunpack.c.h.b16 %v593
      %v1469 = vunpack.c.l.b16 %v594
      %v1470 = vunpack.c.h.b16 %v594
      %v1471 = vunpack.c.l.b16 %v595
      %v1472 = vunpack.c.h.b16 %v595
      %v1473 = vunpack.c.l.b16 %v596
      %v1474 = vunpack.c.h.b16 %v596
      %v1475 = vunpack.c.l.b16 %v597
      %v1476 = vunpack.c.h.b16 %v597
      %v1477 = vunpack.c.l.b16 %v598
      %v1478 = vunpack.c.h.b16 %v598
      %v1479 = vunpack.c.l.b16 %v599
      %v1480 = vunpack.c.h.b16 %v599
      %v1481 = vunpack.c.l.b16 %v600
      %v1482 = vunpack.c.h.b16 %v600
      %v1483 = vunpack.c.l.b16 %v601
      %v1484 = vunpack.c.h.b16 %v601
      %v1485 = vunpack.c.l.b16 %v602
      %v1486 = vunpack.c.h.b16 %v602
      %v1487 = vunpack.c.l.b16 %v603
      %v1488 = vunpack.c.h.b16 %v603
      %v1489 = vunpack.c.l.b16 %v604
      %v1490 = vunpack.c.h.b16 %v604
      %v1491 = vunpack.c.l.b16 %v605
      %v1492 = vunpack.c.h.b16 %v605
      %v1493 = vunpack.c.l.b16 %v606
      %v1494 = vunpack.c.h.b16 %v606
      %v1495 = vunpack.c.l.b16 %v607
      %v1496 = vunpack.c.h.b16 %v607
      %v1497 = vunpack.c.l.b16 %v608
      %v1498 = vunpack.c.h.b16 %v608
      %v1499 = vunpack.c.l.b16 %v609
      %v1500 = vunpack.c.h.b16 %v609
      %v1501 = vunpack.c.l.b16 %v610
      %v1502 = vunpack.c.h.b16 %v610
      %v1503 = vunpack.c.l.b16 %v611
      %v1504 = vunpack.c.h.b16 %v611
      %v1505 = vunpack.c.l.b16 %v612
      %v1506 = vunpack.c.h.b16 %v612
      %v1507 = vunpack.c.l.b16 %v613
      %v1508 = vunpack.c.h.b16 %v613
      %v1509 = vunpack.c.l.b16 %v614
      %v1510 = vunpack.c.h.b16 %v614
      %v1511 = vunpack.c.l.b16 %v615
      %v1512 = vunpack.c.h.b16 %v615
      %v1513 = vunpack.c.l.b16 %v616
      %v1514 = vunpack.c.h.b16 %v616
      %v1515 = vunpack.c.l.b16 %v617
      %v1516 = vunpack.c.h.b16 %v617
      %v1517 = vunpack.c.l.b16 %v618
      %v1518 = vunpack.c.h.b16 %v618
      %v1519 = vunpack.c.l.b16 %v619
      %v1520 = vunpack.c.h.b16 %v619
      %v1521 = vunpack.c.l.b16 %v620
      %v1522 = vunpack.c.h.b16 %v620
      %v1523 = vunpack.c.l.b16 %v621
      %v1524 = vunpack.c.h.b16 %v621
      %v1525 = vunpack.c.l.b16 %v622
      %v1526 = vunpack.c.h.b16 %v622
      %v1527 = vunpack.c.l.b16 %v623
      %v1528 = vunpack.c.h.b16 %v623
      %v1529 = vunpack.c.l.b16 %v624
      %v1530 = vunpack.c.h.b16 %v624
      %v1531 = vunpack.c.l.b16 %v625
      %v1532 = vunpack.c.h.b16 %v625
      %v1533 = vunpack.c.l.b16 %v626
      %v1534 = vunpack.c.h.b16 %v626
      %v1535 = vunpack.c.l.b16 %v627
      %v1536 = vunpack.c.h.b16 %v627
      %v1537 = vunpack.c.l.b16 %v628
      %v1538 = vunpack.c.h.b16 %v628
      %v1539 = vunpack.c.l.b16 %v629
      %v1540 = vunpack.c.h.b16 %v629
      %v1541 = vunpack.c.l.b16 %v630
      %v1542 = vunpack.c.h.b16 %v630
      %v1543 = vunpack.c.l.b16 %v631
      %v1544 = vunpack.c.h.b16 %v631
      %v1545 = vunpack.c.l.b16 %v632
      %v1546 = vunpack.c.h.b16 %v632
      %v1547 = vunpack.c.l.b16 %v633
      %v1548 = vunpack.c.h.b16 %v633
      %v1549 = vunpack.c.l.b16 %v634
      %v1550 = vunpack.c.h.b16 %v634
      %v1551 = vunpack.c.l.b16 %v635
      %v1552 = vunpack.c.h.b16 %v635
      %v1553 = vunpack.c.l.b16 %v636
      %v1554 = vunpack.c.h.b16 %v636
      %v1555 = vunpack.c.l.b16 %v637
      %v1556 = vunpack.c.h.b16 %v637
      %v1557 = vunpack.c.l.b16 %v638
      %v1558 = vunpack.c.h.b16 %v638
      %v1559 = vunpack.c.l.b16 %v639
      %v1560 = vunpack.c.h.b16 %v639
      %v1561 = vunpack.c.l.b16 %v640
      %v1562 = vunpack.c.h.b16 %v640
      %v1563 = vunpack.c.l.b16 %v641
      %v1564 = vunpack.c.h.b16 %v641
      %v1565 = vunpack.c.l.b16 %v642
      %v1566 = vunpack.c.h.b16 %v642
      %v1567 = vunpack.c.l.b16 %v643
      %v1568 = vunpack.c.h.b16 %v643
      %v1569 = vunpack.c.l.b16 %v644
      %v1570 = vunpack.c.h.b16 %v644
      %v1571 = vunpack.c.l.b16 %v645
      %v1572 = vunpack.c.h.b16 %v645
      %v1573 = vunpack.c.l.b16 %v646
      %v1574 = vunpack.c.h.b16 %v646
      %v1575 = vpack.c.b16 %v1065, %v1063
      %v1576 = vpack.c.b16 %v1066, %v1064
      %v1577 = vpack.c.b16 %v1069, %v1067
      %v1578 = vpack.c.b16 %v1070, %v1068
      %v1579 = vpack.c.b16 %v1073, %v1071
      %v1580 = vpack.c.b16 %v1074, %v1072
      %v1581 = vpack.c.b16 %v1077, %v1075
      %v1582 = vpack.c.b16 %v1078, %v1076
      %v1583 = vpack.c.b16 %v1081, %v1079
      %v1584 = vpack.c.b16 %v1082, %v1080
      %v1585 = vpack.c.b16 %v1085, %v1083
      %v1586 = vpack.c.b16 %v1086, %v1084
      %v1587 = vpack.c.b16 %v1089, %v1087
      %v1588 = vpack.c.b16 %v1090, %v1088
      %v1589 = vpack.c.b16 %v1093, %v1091
      %v1590 = vpack.c.b16 %v1094, %v1092
      %v1591 = vpack.c.b16 %v1097, %v1095
      %v1592 = vpack.c.b16 %v1098, %v1096
      %v1593 = vpack.c.b16 %v1101, %v1099
      %v1594 = vpack.c.b16 %v1102, %v1100
      %v1595 = vpack.c.b16 %v1105, %v1103
      %v1596 = vpack.c.b16 %v1106, %v1104
      %v1597 = vpack.c.b16 %v1109, %v1107
      %v1598 = vpack.c.b16 %v1110, %v1108
      %v1599 = vpack.c.b16 %v1113, %v1111
      %v1600 = vpack.c.b16 %v1114, %v1112
      %v1601 = vpack.c.b16 %v1117, %v1115
      %v1602 = vpack.c.b16 %v1118, %v1116
      %v1603 = vpack.c.b16 %v1121, %v1119
      %v1604 = vpack.c.b16 %v1122, %v1120
      %v1605 = vpack.c.b16 %v1125, %v1123
      %v1606 = vpack.c.b16 %v1126, %v1124
      %v1607 = vpack.c.b16 %v1129, %v1127
      %v1608 = vpack.c.b16 %v1130, %v1128
      %v1609 = vpack.c.b16 %v1133, %v1131
      %v1610 = vpack.c.b16 %v1134, %v1132
      %v1611 = vpack.c.b16 %v1137, %v1135
      %v1612 = vpack.c.b16 %v1138, %v1136
      %v1613 = vpack.c.b16 %v1141, %v1139
      %v1614 = vpack.c.b16 %v1142, %v1140
      %v1615 = vpack.c.b16 %v1145, %v1143
      %v1616 = vpack.c.b16 %v1146, %v1144
      %v1617 = vpack.c.b16 %v1149, %v1147
      %v1618 = vpack.c.b16 %v1150, %v1148
      %v1619 = vpack.c.b16 %v1153, %v1151
      %v1620 = vpack.c.b16 %v1154, %v1152
      %v1621 = vpack.c.b16 %v1157, %v1155
      %v1622 = vpack.c.b16 %v1158, %v1156
      %v1623 = vpack.c.b16 %v1161, %v1159
      %v1624 = vpack.c.b16 %v1162, %v1160
      %v1625 = vpack.c.b16 %v1165, %v1163
      %v1626 = vpack.c.b16 %v1166, %v1164
      %v1627 = vpack.c.b16 %v1169, %v1167
      %v1628 = vpack.c.b16 %v1170, %v1168
      %v1629 = vpack.c.b16 %v1173, %v1171
      %v1630 = vpack.c.b16 %v1174, %v1172
      %v1631 = vpack.c.b16 %v1177, %v1175
      %v1632 = vpack.c.b16 %v1178, %v1176
      %v1633 = vpack.c.b16 %v1181, %v1179
      %v1634 = vpack.c.b16 %v1182, %v1180
      %v1635 = vpack.c.b16 %v1185, %v1183
      %v1636 = vpack.c.b16 %v1186, %v1184
      %v1637 = vpack.c.b16 %v1189, %v1187
      %v1638 = vpack.c.b16 %v1190, %v1188
      %v1639 = vpack.c.b16 %v1193, %v1191
      %v1640 = vpack.c.b16 %v1194, %v1192
      %v1641 = vpack.c.b16 %v1197, %v1195
      %v1642 = vpack.c.b16 %v1198, %v1196
      %v1643 = vpack.c.b16 %v1201, %v1199
      %v1644 = vpack.c.b16 %v1202, %v1200
      %v1645 = vpack.c.b16 %v1205, %v1203
      %v1646 = vpack.c.b16 %v1206, %v1204
      %v1647 = vpack.c.b16 %v1209, %v1207
      %v1648 = vpack.c.b16 %v1210, %v1208
      %v1649 = vpack.c.b16 %v1213, %v1211
      %v1650 = vpack.c.b16 %v1214, %v1212
      %v1651 = vpack.c.b16 %v1217, %v1215
      %v1652 = vpack.c.b16 %v1218, %v1216
      %v1653 = vpack.c.b16 %v1221, %v1219
      %v1654 = vpack.c.b16 %v1222, %v1220
      %v1655 = vpack.c.b16 %v1225, %v1223
      %v1656 = vpack.c.b16 %v1226, %v1224
      %v1657 = vpack.c.b16 %v1229, %v1227
      %v1658 = vpack.c.b16 %v1230, %v1228
      %v1659 = vpack.c.b16 %v1233, %v1231
      %v1660 = vpack.c.b16 %v1234, %v1232
      %v1661 = vpack.c.b16 %v1237, %v1235
      %v1662 = vpack.c.b16 %v1238, %v1236
      %v1663 = vpack.c.b16 %v1241, %v1239
      %v1664 = vpack.c.b16 %v1242, %v1240
      %v1665 = vpack.c.b16 %v1245, %v1243
      %v1666 = vpack.c.b16 %v1246, %v1244
      %v1667 = vpack.c.b16 %v1249, %v1247
      %v1668 = vpack.c.b16 %v1250, %v1248
      %v1669 = vpack.c.b16 %v1253, %v1251
      %v1670 = vpack.c.b16 %v1254, %v1252
      %v1671 = vpack.c.b16 %v1257, %v1255
      %v1672 = vpack.c.b16 %v1258, %v1256
      %v1673 = vpack.c.b16 %v1261, %v1259
      %v1674 = vpack.c.b16 %v1262, %v1260
      %v1675 = vpack.c.b16 %v1265, %v1263
      %v1676 = vpack.c.b16 %v1266, %v1264
      %v1677 = vpack.c.b16 %v1269, %v1267
      %v1678 = vpack.c.b16 %v1270, %v1268
      %v1679 = vpack.c.b16 %v1273, %v1271
      %v1680 = vpack.c.b16 %v1274, %v1272
      %v1681 = vpack.c.b16 %v1277, %v1275
      %v1682 = vpack.c.b16 %v1278, %v1276
      %v1683 = vpack.c.b16 %v1281, %v1279
      %v1684 = vpack.c.b16 %v1282, %v1280
      %v1685 = vpack.c.b16 %v1285, %v1283
      %v1686 = vpack.c.b16 %v1286, %v1284
      %v1687 = vpack.c.b16 %v1289, %v1287
      %v1688 = vpack.c.b16 %v1290, %v1288
      %v1689 = vpack.c.b16 %v1293, %v1291
      %v1690 = vpack.c.b16 %v1294, %v1292
      %v1691 = vpack.c.b16 %v1297, %v1295
      %v1692 = vpack.c.b16 %v1298, %v1296
      %v1693 = vpack.c.b16 %v1301, %v1299
      %v1694 = vpack.c.b16 %v1302, %v1300
      %v1695 = vpack.c.b16 %v1305, %v1303
      %v1696 = vpack.c.b16 %v1306, %v1304
      %v1697 = vpack.c.b16 %v1309, %v1307
      %v1698 = vpack.c.b16 %v1310, %v1308
      %v1699 = vpack.c.b16 %v1313, %v1311
      %v1700 = vpack.c.b16 %v1314, %v1312
      %v1701 = vpack.c.b16 %v1317, %v1315
      %v1702 = vpack.c.b16 %v1318, %v1316
      %v1703 = vpack.c.b16 %v1321, %v1319
      %v1704 = vpack.c.b16 %v1322, %v1320
      %v1705 = vpack.c.b16 %v1325, %v1323
      %v1706 = vpack.c.b16 %v1326, %v1324
      %v1707 = vpack.c.b16 %v1329, %v1327
      %v1708 = vpack.c.b16 %v1330, %v1328
      %v1709 = vpack.c.b16 %v1333, %v1331
      %v1710 = vpack.c.b16 %v1334, %v1332
      %v1711 = vpack.c.b16 %v1337, %v1335
      %v1712 = vpack.c.b16 %v1338, %v1336
      %v1713 = vpack.c.b16 %v1341, %v1339
      %v1714 = vpack.c.b16 %v1342, %v1340
      %v1715 = vpack.c.b16 %v1345, %v1343
      %v1716 = vpack.c.b16 %v1346, %v1344
      %v1717 = vpack.c.b16 %v1349, %v1347
      %v1718 = vpack.c.b16 %v1350, %v1348
      %v1719 = vpack.c.b16 %v1353, %v1351
      %v1720 = vpack.c.b16 %v1354, %v1352
      %v1721 = vpack.c.b16 %v1357, %v1355
      %v1722 = vpack.c.b16 %v1358, %v1356
      %v1723 = vpack.c.b16 %v1361, %v1359
      %v1724 = vpack.c.b16 %v1362, %v1360
      %v1725 = vpack.c.b16 %v1365, %v1363
      %v1726 = vpack.c.b16 %v1366, %v1364
      %v1727 = vpack.c.b16 %v1369, %v1367
      %v1728 = vpack.c.b16 %v1370, %v1368
      %v1729 = vpack.c.b16 %v1373, %v1371
      %v1730 = vpack.c.b16 %v1374, %v1372
      %v1731 = vpack.c.b16 %v1377, %v1375
      %v1732 = vpack.c.b16 %v1378, %v1376
      %v1733 = vpack.c.b16 %v1381, %v1379
      %v1734 = vpack.c.b16 %v1382, %v1380
      %v1735 = vpack.c.b16 %v1385, %v1383
      %v1736 = vpack.c.b16 %v1386, %v1384
      %v1737 = vpack.c.b16 %v1389, %v1387
      %v1738 = vpack.c.b16 %v1390, %v1388
      %v1739 = vpack.c.b16 %v1393, %v1391
      %v1740 = vpack.c.b16 %v1394, %v1392
      %v1741 = vpack.c.b16 %v1397, %v1395
      %v1742 = vpack.c.b16 %v1398, %v1396
      %v1743 = vpack.c.b16 %v1401, %v1399
      %v1744 = vpack.c.b16 %v1402, %v1400
      %v1745 = vpack.c.b16 %v1405, %v1403
      %v1746 = vpack.c.b16 %v1406, %v1404
      %v1747 = vpack.c.b16 %v1409, %v1407
      %v1748 = vpack.c.b16 %v1410, %v1408
      %v1749 = vpack.c.b16 %v1413, %v1411
      %v1750 = vpack.c.b16 %v1414, %v1412
      %v1751 = vpack.c.b16 %v1417, %v1415
      %v1752 = vpack.c.b16 %v1418, %v1416
      %v1753 = vpack.c.b16 %v1421, %v1419
      %v1754 = vpack.c.b16 %v1422, %v1420
      %v1755 = vpack.c.b16 %v1425, %v1423
      %v1756 = vpack.c.b16 %v1426, %v1424
      %v1757 = vpack.c.b16 %v1429, %v1427
      %v1758 = vpack.c.b16 %v1430, %v1428
      %v1759 = vpack.c.b16 %v1433, %v1431
      %v1760 = vpack.c.b16 %v1434, %v1432
      %v1761 = vpack.c.b16 %v1437, %v1435
      %v1762 = vpack.c.b16 %v1438, %v1436
      %v1763 = vpack.c.b16 %v1441, %v1439
      %v1764 = vpack.c.b16 %v1442, %v1440
      %v1765 = vpack.c.b16 %v1445, %v1443
      %v1766 = vpack.c.b16 %v1446, %v1444
      %v1767 = vpack.c.b16 %v1449, %v1447
      %v1768 = vpack.c.b16 %v1450, %v1448
      %v1769 = vpack.c.b16 %v1453, %v1451
      %v1770 = vpack.c.b16 %v1454, %v1452
      %v1771 = vpack.c.b16 %v1457, %v1455
      %v1772 = vpack.c.b16 %v1458, %v1456
      %v1773 = vpack.c.b16 %v1461, %v1459
      %v1774 = vpack.c.b16 %v1462, %v1460
      %v1775 = vpack.c.b16 %v1465, %v1463
      %v1776 = vpack.c.b16 %v1466, %v1464
      %v1777 = vpack.c.b16 %v1469, %v1467
      %v1778 = vpack.c.b16 %v1470, %v1468
      %v1779 = vpack.c.b16 %v1473, %v1471
      %v1780 = vpack.c.b16 %v1474, %v1472
      %v1781 = vpack.c.b16 %v1477, %v1475
      %v1782 = vpack.c.b16 %v1478, %v1476
      %v1783 = vpack.c.b16 %v1481, %v1479
      %v1784 = vpack.c.b16 %v1482, %v1480
      %v1785 = vpack.c.b16 %v1485, %v1483
      %v1786 = vpack.c.b16 %v1486, %v1484
      %v1787 = vpack.c.b16 %v1489, %v1487
      %v1788 = vpack.c.b16 %v1490, %v1488
      %v1789 = vpack.c.b16 %v1493, %v1491
      %v1790 = vpack.c.b16 %v1494, %v1492
      %v1791 = vpack.c.b16 %v1497, %v1495
      %v1792 = vpack.c.b16 %v1498, %v1496
      %v1793 = vpack.c.b16 %v1501, %v1499
      %v1794 = vpack.c.b16 %v1502, %v1500
      %v1795 = vpack.c.b16 %v1505, %v1503
      %v1796 = vpack.c.b16 %v1506, %v1504
      %v1797 = vpack.c.b16 %v1509, %v1507
      %v1798 = vpack.c.b16 %v1510, %v1508
      %v1799 = vpack.c.b16 %v1513, %v1511
      %v1800 = vpack.c.b16 %v1514, %v1512
      %v1801 = vpack.c.b16 %v1517, %v1515
      %v1802 = vpack.c.b16 %v1518, %v1516
      %v1803 = vpack.c.b16 %v1521, %v1519
      %v1804 = vpack.c.b16 %v1522, %v1520
      %v1805 = vpack.c.b16 %v1525, %v1523
      %v1806 = vpack.c.b16 %v1526, %v1524
      %v1807 = vpack.c.b16 %v1529, %v1527
      %v1808 = vpack.c.b16 %v1530, %v1528
      %v1809 = vpack.c.b16 %v1533, %v1531
      %v1810 = vpack.c.b16 %v1534, %v1532
      %v1811 = vpack.c.b16 %v1537, %v1535
      %v1812 = vpack.c.b16 %v1538, %v1536
      %v1813 = vpack.c.b16 %v1541, %v1539
      %v1814 = vpack.c.b16 %v1542, %v1540
      %v1815 = vpack.c.b16 %v1545, %v1543
      %v1816 = vpack.c.b16 %v1546, %v1544
      %v1817 = vpack.c.b16 %v1549, %v1547
      %v1818 = vpack.c.b16 %v1550, %v1548
      %v1819 = vpack.c.b16 %v1553, %v1551
      %v1820 = vpack.c.b16 %v1554, %v1552
      %v1821 = vpack.c.b16 %v1557, %v1555
      %v1822 = vpack.c.b16 %v1558, %v1556
      %v1823 = vpack.c.b16 %v1561, %v1559
      %v1824 = vpack.c.b16 %v1562, %v1560
      %v1825 = vpack.c.b16 %v1565, %v1563
      %v1826 = vpack.c.b16 %v1566, %v1564
      %v1827 = vpack.c.b16 %v1569, %v1567
      %v1828 = vpack.c.b16 %v1570, %v1568
      %v1829 = vpack.c.b16 %v1573, %v1571
      %v1830 = vpack.c.b16 %v1574, %v1572
      %2087 = vmatprep.subr.bf16.mxu0 %v1576
      %2088 = vmatpush1.bf16.msra.mxu0 %v1575
      %2089 = vmatprep.subr.bf16.mxu0 %v1578
      %2090 = vmatpush1.bf16.msra.mxu0 %v1577
      %2091 = vmatprep.subr.bf16.mxu0 %v1580
      %2092 = vmatpush1.bf16.msra.mxu0 %v1579
      %2093 = vmatprep.subr.bf16.mxu0 %v1582
      %2094 = vmatpush1.bf16.msra.mxu0 %v1581
      %2095 = vmatprep.subr.bf16.mxu0 %v1584
      %2096 = vmatpush1.bf16.msra.mxu0 %v1583
      %2097 = vmatprep.subr.bf16.mxu0 %v1586
      %2098 = vmatpush1.bf16.msra.mxu0 %v1585
      %2099 = vmatprep.subr.bf16.mxu0 %v1588
      %2100 = vmatpush1.bf16.msra.mxu0 %v1587
      %2101 = vmatprep.subr.bf16.mxu0 %v1590
      %2102 = vmatpush1.bf16.msra.mxu0 %v1589
      %2103 = vmatprep.subr.bf16.mxu0 %v1592
      %2104 = vmatpush1.bf16.msra.mxu0 %v1591
      %2105 = vmatprep.subr.bf16.mxu0 %v1594
      %2106 = vmatpush1.bf16.msra.mxu0 %v1593
      %2107 = vmatprep.subr.bf16.mxu0 %v1596
      %2108 = vmatpush1.bf16.msra.mxu0 %v1595
      %2109 = vmatprep.subr.bf16.mxu0 %v1598
      %2110 = vmatpush1.bf16.msra.mxu0 %v1597
      %2111 = vmatprep.subr.bf16.mxu0 %v1600
      %2112 = vmatpush1.bf16.msra.mxu0 %v1599
      %2113 = vmatprep.subr.bf16.mxu0 %v1602
      %2114 = vmatpush1.bf16.msra.mxu0 %v1601
      %2115 = vmatprep.subr.bf16.mxu0 %v1604
      %2116 = vmatpush1.bf16.msra.mxu0 %v1603
      %2117 = vmatprep.subr.bf16.mxu0 %v1606
      %2118 = vmatpush1.bf16.msra.mxu0 %v1605
      %2119 = vmatprep.mubr.bf16.mxu0 %v744
      %2120 = vmatmul.mubr.bf16.gmra.mrb[0].mxu0 %v743
      %v2121 = vpop.f32.mrb[0].mxu0
      %v2122 = vadd.f32 0.0, %v2121
      %v2123 = vpop.f32.mrb[0].mxu0
      %v2124 = vadd.f32 0.0, %v2123
      %v2125 = vpop.f32.mrb[0].mxu0
      %v2126 = vadd.f32 0.0, %v2125
      %v2127 = vpop.f32.mrb[0].mxu0
      %v2128 = vadd.f32 0.0, %v2127
      %2129 = vmatprep.mubr.bf16.mxu0 %v760
      %2130 = vmatmul.mubr.bf16.gmra.mrb[0].mxu0 %v759
      %v2131 = vpop.f32.mrb[0].mxu0
      %v2132 = vadd.f32 0.0, %v2131
      %v2133 = vpop.f32.mrb[0].mxu0
      %v2134 = vadd.f32 0.0, %v2133
      %v2135 = vpop.f32.mrb[0].mxu0
      %v2136 = vadd.f32 0.0, %v2135
      %v2137 = vpop.f32.mrb[0].mxu0
      %v2138 = vadd.f32 0.0, %v2137
      %2139 = vdwg.mxu0
      %2140 = vmatprep.subr.bf16.mxu0 %v1608
      %2141 = vmatpush1.bf16.msra.mxu0 %v1607
      %2142 = vmatprep.subr.bf16.mxu0 %v1610
      %2143 = vmatpush1.bf16.msra.mxu0 %v1609
      %2144 = vmatprep.subr.bf16.mxu0 %v1612
      %2145 = vmatpush1.bf16.msra.mxu0 %v1611
      %2146 = vmatprep.subr.bf16.mxu0 %v1614
      %2147 = vmatpush1.bf16.msra.mxu0 %v1613
      %2148 = vmatprep.subr.bf16.mxu0 %v1616
      %2149 = vmatpush1.bf16.msra.mxu0 %v1615
      %2150 = vmatprep.subr.bf16.mxu0 %v1618
      %2151 = vmatpush1.bf16.msra.mxu0 %v1617
      %2152 = vmatprep.subr.bf16.mxu0 %v1620
      %2153 = vmatpush1.bf16.msra.mxu0 %v1619
      %2154 = vmatprep.subr.bf16.mxu0 %v1622
      %2155 = vmatpush1.bf16.msra.mxu0 %v1621
      %2156 = vmatprep.subr.bf16.mxu0 %v1624
      %2157 = vmatpush1.bf16.msra.mxu0 %v1623
      %2158 = vmatprep.subr.bf16.mxu0 %v1626
      %2159 = vmatpush1.bf16.msra.mxu0 %v1625
      %2160 = vmatprep.subr.bf16.mxu0 %v1628
      %2161 = vmatpush1.bf16.msra.mxu0 %v1627
      %2162 = vmatprep.subr.bf16.mxu0 %v1630
      %2163 = vmatpush1.bf16.msra.mxu0 %v1629
      %2164 = vmatprep.subr.bf16.mxu0 %v1632
      %2165 = vmatpush1.bf16.msra.mxu0 %v1631
      %2166 = vmatprep.subr.bf16.mxu0 %v1634
      %2167 = vmatpush1.bf16.msra.mxu0 %v1633
      %2168 = vmatprep.subr.bf16.mxu0 %v1636
      %2169 = vmatpush1.bf16.msra.mxu0 %v1635
      %2170 = vmatprep.subr.bf16.mxu0 %v1638
      %2171 = vmatpush1.bf16.msra.mxu0 %v1637
      %2172 = vmatprep.mubr.bf16.mxu0 %v746
      %2173 = vmatmul.mubr.bf16.gmra.mrb[0].mxu0 %v745
      %v2174 = vpop.f32.mrb[0].mxu0
      %v2175 = vadd.f32 %v2122, %v2174
      %v2176 = vpop.f32.mrb[0].mxu0
      %v2177 = vadd.f32 %v2124, %v2176
      %v2178 = vpop.f32.mrb[0].mxu0
      %v2179 = vadd.f32 %v2126, %v2178
      %v2180 = vpop.f32.mrb[0].mxu0
      %v2181 = vadd.f32 %v2128, %v2180
      %2182 = vmatprep.mubr.bf16.mxu0 %v762
      %2183 = vmatmul.mubr.bf16.gmra.mrb[0].mxu0 %v761
      %v2184 = vpop.f32.mrb[0].mxu0
      %v2185 = vadd.f32 %v2132, %v2184
      %v2186 = vpop.f32.mrb[0].mxu0
      %v2187 = vadd.f32 %v2134, %v2186
      %v2188 = vpop.f32.mrb[0].mxu0
      %v2189 = vadd.f32 %v2136, %v2188
      %v2190 = vpop.f32.mrb[0].mxu0
      %v2191 = vadd.f32 %v2138, %v2190
      %2192 = vdwg.mxu0
      %2193 = vmatprep.subr.bf16.mxu0 %v1640
      %2194 = vmatpush1.bf16.msra.mxu0 %v1639
      %2195 = vmatprep.subr.bf16.mxu0 %v1642
      %2196 = vmatpush1.bf16.msra.mxu0 %v1641
      %2197 = vmatprep.subr.bf16.mxu0 %v1644
      %2198 = vmatpush1.bf16.msra.mxu0 %v1643
      %2199 = vmatprep.subr.bf16.mxu0 %v1646
      %2200 = vmatpush1.bf16.msra.mxu0 %v1645
      %2201 = vmatprep.subr.bf16.mxu0 %v1648
      %2202 = vmatpush1.bf16.msra.mxu0 %v1647
      %2203 = vmatprep.subr.bf16.mxu0 %v1650
      %2204 = vmatpush1.bf16.msra.mxu0 %v1649
      %2205 = vmatprep.subr.bf16.mxu0 %v1652
      %2206 = vmatpush1.bf16.msra.mxu0 %v1651
      %2207 = vmatprep.subr.bf16.mxu0 %v1654
      %2208 = vmatpush1.bf16.msra.mxu0 %v1653
      %2209 = vmatprep.subr.bf16.mxu0 %v1656
      %2210 = vmatpush1.bf16.msra.mxu0 %v1655
      %2211 = vmatprep.subr.bf16.mxu0 %v1658
      %2212 = vmatpush1.bf16.msra.mxu0 %v1657
      %2213 = vmatprep.subr.bf16.mxu0 %v1660
      %2214 = vmatpush1.bf16.msra.mxu0 %v1659
      %2215 = vmatprep.subr.bf16.mxu0 %v1662
      %2216 = vmatpush1.bf16.msra.mxu0 %v1661
      %2217 = vmatprep.subr.bf16.mxu0 %v1664
      %2218 = vmatpush1.bf16.msra.mxu0 %v1663
      %2219 = vmatprep.subr.bf16.mxu0 %v1666
      %2220 = vmatpush1.bf16.msra.mxu0 %v1665
      %2221 = vmatprep.subr.bf16.mxu0 %v1668
      %2222 = vmatpush1.bf16.msra.mxu0 %v1667
      %2223 = vmatprep.subr.bf16.mxu0 %v1670
      %2224 = vmatpush1.bf16.msra.mxu0 %v1669
      %2225 = vmatprep.mubr.bf16.mxu0 %v748
      %2226 = vmatmul.mubr.bf16.gmra.mrb[0].mxu0 %v747
      %v2227 = vpop.f32.mrb[0].mxu0
      %v2228 = vadd.f32 %v2175, %v2227
      %v2229 = vpop.f32.mrb[0].mxu0
      %v2230 = vadd.f32 %v2177, %v2229
      %v2231 = vpop.f32.mrb[0].mxu0
      %v2232 = vadd.f32 %v2179, %v2231
      %v2233 = vpop.f32.mrb[0].mxu0
      %v2234 = vadd.f32 %v2181, %v2233
      %2235 = vmatprep.mubr.bf16.mxu0 %v764
      %2236 = vmatmul.mubr.bf16.gmra.mrb[0].mxu0 %v763
      %v2237 = vpop.f32.mrb[0].mxu0
      %v2238 = vadd.f32 %v2185, %v2237
      %v2239 = vpop.f32.mrb[0].mxu0
      %v2240 = vadd.f32 %v2187, %v2239
      %v2241 = vpop.f32.mrb[0].mxu0
      %v2242 = vadd.f32 %v2189, %v2241
      %v2243 = vpop.f32.mrb[0].mxu0
      %v2244 = vadd.f32 %v2191, %v2243
      %2245 = vdwg.mxu0
      %2246 = vmatprep.subr.bf16.mxu0 %v1672
      %2247 = vmatpush1.bf16.msra.mxu0 %v1671
      %2248 = vmatprep.subr.bf16.mxu0 %v1674
      %2249 = vmatpush1.bf16.msra.mxu0 %v1673
      %2250 = vmatprep.subr.bf16.mxu0 %v1676
      %2251 = vmatpush1.bf16.msra.mxu0 %v1675
      %2252 = vmatprep.subr.bf16.mxu0 %v1678
      %2253 = vmatpush1.bf16.msra.mxu0 %v1677
      %2254 = vmatprep.subr.bf16.mxu0 %v1680
      %2255 = vmatpush1.bf16.msra.mxu0 %v1679
      %2256 = vmatprep.subr.bf16.mxu0 %v1682
      %2257 = vmatpush1.bf16.msra.mxu0 %v1681
      %2258 = vmatprep.subr.bf16.mxu0 %v1684
      %2259 = vmatpush1.bf16.msra.mxu0 %v1683
      %2260 = vmatprep.subr.bf16.mxu0 %v1686
      %2261 = vmatpush1.bf16.msra.mxu0 %v1685
      %2262 = vmatprep.subr.bf16.mxu0 %v1688
      %2263 = vmatpush1.bf16.msra.mxu0 %v1687
      %2264 = vmatprep.subr.bf16.mxu0 %v1690
      %2265 = vmatpush1.bf16.msra.mxu0 %v1689
      %2266 = vmatprep.subr.bf16.mxu0 %v1692
      %2267 = vmatpush1.bf16.msra.mxu0 %v1691
      %2268 = vmatprep.subr.bf16.mxu0 %v1694
      %2269 = vmatpush1.bf16.msra.mxu0 %v1693
      %2270 = vmatprep.subr.bf16.mxu0 %v1696
      %2271 = vmatpush1.bf16.msra.mxu0 %v1695
      %2272 = vmatprep.subr.bf16.mxu0 %v1698
      %2273 = vmatpush1.bf16.msra.mxu0 %v1697
      %2274 = vmatprep.subr.bf16.mxu0 %v1700
      %2275 = vmatpush1.bf16.msra.mxu0 %v1699
      %2276 = vmatprep.subr.bf16.mxu0 %v1702
      %2277 = vmatpush1.bf16.msra.mxu0 %v1701
      %2278 = vmatprep.mubr.bf16.mxu0 %v750
      %2279 = vmatmul.mubr.bf16.gmra.mrb[0].mxu0 %v749
      %v2280 = vpop.f32.mrb[0].mxu0
      %v2281 = vadd.f32 %v2228, %v2280
      %v2282 = vpop.f32.mrb[0].mxu0
      %v2283 = vadd.f32 %v2230, %v2282
      %v2284 = vpop.f32.mrb[0].mxu0
      %v2285 = vadd.f32 %v2232, %v2284
      %v2286 = vpop.f32.mrb[0].mxu0
      %v2287 = vadd.f32 %v2234, %v2286
      %2288 = vmatprep.mubr.bf16.mxu0 %v766
      %2289 = vmatmul.mubr.bf16.gmra.mrb[0].mxu0 %v765
      %v2290 = vpop.f32.mrb[0].mxu0
      %v2291 = vadd.f32 %v2238, %v2290
      %v2292 = vpop.f32.mrb[0].mxu0
      %v2293 = vadd.f32 %v2240, %v2292
      %v2294 = vpop.f32.mrb[0].mxu0
      %v2295 = vadd.f32 %v2242, %v2294
      %v2296 = vpop.f32.mrb[0].mxu0
      %v2297 = vadd.f32 %v2244, %v2296
      %2298 = vdwg.mxu0
      %2299 = vmatprep.subr.bf16.mxu0 %v1704
      %2300 = vmatpush1.bf16.msra.mxu0 %v1703
      %2301 = vmatprep.subr.bf16.mxu0 %v1706
      %2302 = vmatpush1.bf16.msra.mxu0 %v1705
      %2303 = vmatprep.subr.bf16.mxu0 %v1708
      %2304 = vmatpush1.bf16.msra.mxu0 %v1707
      %2305 = vmatprep.subr.bf16.mxu0 %v1710
      %2306 = vmatpush1.bf16.msra.mxu0 %v1709
      %2307 = vmatprep.subr.bf16.mxu0 %v1712
      %2308 = vmatpush1.bf16.msra.mxu0 %v1711
      %2309 = vmatprep.subr.bf16.mxu0 %v1714
      %2310 = vmatpush1.bf16.msra.mxu0 %v1713
      %2311 = vmatprep.subr.bf16.mxu0 %v1716
      %2312 = vmatpush1.bf16.msra.mxu0 %v1715
      %2313 = vmatprep.subr.bf16.mxu0 %v1718
      %2314 = vmatpush1.bf16.msra.mxu0 %v1717
      %2315 = vmatprep.subr.bf16.mxu0 %v1720
      %2316 = vmatpush1.bf16.msra.mxu0 %v1719
      %2317 = vmatprep.subr.bf16.mxu0 %v1722
      %2318 = vmatpush1.bf16.msra.mxu0 %v1721
      %2319 = vmatprep.subr.bf16.mxu0 %v1724
      %2320 = vmatpush1.bf16.msra.mxu0 %v1723
      %2321 = vmatprep.subr.bf16.mxu0 %v1726
      %2322 = vmatpush1.bf16.msra.mxu0 %v1725
      %2323 = vmatprep.subr.bf16.mxu0 %v1728
      %2324 = vmatpush1.bf16.msra.mxu0 %v1727
      %2325 = vmatprep.subr.bf16.mxu0 %v1730
      %2326 = vmatpush1.bf16.msra.mxu0 %v1729
      %2327 = vmatprep.subr.bf16.mxu0 %v1732
      %2328 = vmatpush1.bf16.msra.mxu0 %v1731
      %2329 = vmatprep.subr.bf16.mxu0 %v1734
      %2330 = vmatpush1.bf16.msra.mxu0 %v1733
      %2331 = vmatprep.mubr.bf16.mxu0 %v752
      %2332 = vmatmul.mubr.bf16.gmra.mrb[0].mxu0 %v751
      %v2333 = vpop.f32.mrb[0].mxu0
      %v2334 = vadd.f32 %v2281, %v2333
      %v2335 = vpop.f32.mrb[0].mxu0
      %v2336 = vadd.f32 %v2283, %v2335
      %v2337 = vpop.f32.mrb[0].mxu0
      %v2338 = vadd.f32 %v2285, %v2337
      %v2339 = vpop.f32.mrb[0].mxu0
      %v2340 = vadd.f32 %v2287, %v2339
      %2341 = vmatprep.mubr.bf16.mxu0 %v768
      %2342 = vmatmul.mubr.bf16.gmra.mrb[0].mxu0 %v767
      %v2343 = vpop.f32.mrb[0].mxu0
      %v2344 = vadd.f32 %v2291, %v2343
      %v2345 = vpop.f32.mrb[0].mxu0
      %v2346 = vadd.f32 %v2293, %v2345
      %v2347 = vpop.f32.mrb[0].mxu0
      %v2348 = vadd.f32 %v2295, %v2347
      %v2349 = vpop.f32.mrb[0].mxu0
      %v2350 = vadd.f32 %v2297, %v2349
      %2351 = vdwg.mxu0
      %2352 = vmatprep.subr.bf16.mxu0 %v1736
      %2353 = vmatpush1.bf16.msra.mxu0 %v1735
      %2354 = vmatprep.subr.bf16.mxu0 %v1738
      %2355 = vmatpush1.bf16.msra.mxu0 %v1737
      %2356 = vmatprep.subr.bf16.mxu0 %v1740
      %2357 = vmatpush1.bf16.msra.mxu0 %v1739
      %2358 = vmatprep.subr.bf16.mxu0 %v1742
      %2359 = vmatpush1.bf16.msra.mxu0 %v1741
      %2360 = vmatprep.subr.bf16.mxu0 %v1744
      %2361 = vmatpush1.bf16.msra.mxu0 %v1743
      %2362 = vmatprep.subr.bf16.mxu0 %v1746
      %2363 = vmatpush1.bf16.msra.mxu0 %v1745
      %2364 = vmatprep.subr.bf16.mxu0 %v1748
      %2365 = vmatpush1.bf16.msra.mxu0 %v1747
      %2366 = vmatprep.subr.bf16.mxu0 %v1750
      %2367 = vmatpush1.bf16.msra.mxu0 %v1749
      %2368 = vmatprep.subr.bf16.mxu0 %v1752
      %2369 = vmatpush1.bf16.msra.mxu0 %v1751
      %2370 = vmatprep.subr.bf16.mxu0 %v1754
      %2371 = vmatpush1.bf16.msra.mxu0 %v1753
      %2372 = vmatprep.subr.bf16.mxu0 %v1756
      %2373 = vmatpush1.bf16.msra.mxu0 %v1755
      %2374 = vmatprep.subr.bf16.mxu0 %v1758
      %2375 = vmatpush1.bf16.msra.mxu0 %v1757
      %2376 = vmatprep.subr.bf16.mxu0 %v1760
      %2377 = vmatpush1.bf16.msra.mxu0 %v1759
      %2378 = vmatprep.subr.bf16.mxu0 %v1762
      %2379 = vmatpush1.bf16.msra.mxu0 %v1761
      %2380 = vmatprep.subr.bf16.mxu0 %v1764
      %2381 = vmatpush1.bf16.msra.mxu0 %v1763
      %2382 = vmatprep.subr.bf16.mxu0 %v1766
      %2383 = vmatpush1.bf16.msra.mxu0 %v1765
      %2384 = vmatprep.mubr.bf16.mxu0 %v754
      %2385 = vmatmul.mubr.bf16.gmra.mrb[0].mxu0 %v753
      %v2386 = vpop.f32.mrb[0].mxu0
      %v2387 = vadd.f32 %v2334, %v2386
      %v2388 = vpop.f32.mrb[0].mxu0
      %v2389 = vadd.f32 %v2336, %v2388
      %v2390 = vpop.f32.mrb[0].mxu0
      %v2391 = vadd.f32 %v2338, %v2390
      %v2392 = vpop.f32.mrb[0].mxu0
      %v2393 = vadd.f32 %v2340, %v2392
      %2394 = vmatprep.mubr.bf16.mxu0 %v770
      %2395 = vmatmul.mubr.bf16.gmra.mrb[0].mxu0 %v769
      %v2396 = vpop.f32.mrb[0].mxu0
      %v2397 = vadd.f32 %v2344, %v2396
      %v2398 = vpop.f32.mrb[0].mxu0
      %v2399 = vadd.f32 %v2346, %v2398
      %v2400 = vpop.f32.mrb[0].mxu0
      %v2401 = vadd.f32 %v2348, %v2400
      %v2402 = vpop.f32.mrb[0].mxu0
      %v2403 = vadd.f32 %v2350, %v2402
      %2404 = vdwg.mxu0
      %2405 = vmatprep.subr.bf16.mxu0 %v1768
      %2406 = vmatpush1.bf16.msra.mxu0 %v1767
      %2407 = vmatprep.subr.bf16.mxu0 %v1770
      %2408 = vmatpush1.bf16.msra.mxu0 %v1769
      %2409 = vmatprep.subr.bf16.mxu0 %v1772
      %2410 = vmatpush1.bf16.msra.mxu0 %v1771
      %2411 = vmatprep.subr.bf16.mxu0 %v1774
      %2412 = vmatpush1.bf16.msra.mxu0 %v1773
      %2413 = vmatprep.subr.bf16.mxu0 %v1776
      %2414 = vmatpush1.bf16.msra.mxu0 %v1775
      %2415 = vmatprep.subr.bf16.mxu0 %v1778
      %2416 = vmatpush1.bf16.msra.mxu0 %v1777
      %2417 = vmatprep.subr.bf16.mxu0 %v1780
      %2418 = vmatpush1.bf16.msra.mxu0 %v1779
      %2419 = vmatprep.subr.bf16.mxu0 %v1782
      %2420 = vmatpush1.bf16.msra.mxu0 %v1781
      %2421 = vmatprep.subr.bf16.mxu0 %v1784
      %2422 = vmatpush1.bf16.msra.mxu0 %v1783
      %2423 = vmatprep.subr.bf16.mxu0 %v1786
      %2424 = vmatpush1.bf16.msra.mxu0 %v1785
      %2425 = vmatprep.subr.bf16.mxu0 %v1788
      %2426 = vmatpush1.bf16.msra.mxu0 %v1787
      %2427 = vmatprep.subr.bf16.mxu0 %v1790
      %2428 = vmatpush1.bf16.msra.mxu0 %v1789
      %2429 = vmatprep.subr.bf16.mxu0 %v1792
      %2430 = vmatpush1.bf16.msra.mxu0 %v1791
      %2431 = vmatprep.subr.bf16.mxu0 %v1794
      %2432 = vmatpush1.bf16.msra.mxu0 %v1793
      %2433 = vmatprep.subr.bf16.mxu0 %v1796
      %2434 = vmatpush1.bf16.msra.mxu0 %v1795
      %2435 = vmatprep.subr.bf16.mxu0 %v1798
      %2436 = vmatpush1.bf16.msra.mxu0 %v1797
      %2437 = vmatprep.mubr.bf16.mxu0 %v756
      %2438 = vmatmul.mubr.bf16.gmra.mrb[0].mxu0 %v755
      %v2439 = vpop.f32.mrb[0].mxu0
      %v2440 = vadd.f32 %v2387, %v2439
      %v2441 = vpop.f32.mrb[0].mxu0
      %v2442 = vadd.f32 %v2389, %v2441
      %v2443 = vpop.f32.mrb[0].mxu0
      %v2444 = vadd.f32 %v2391, %v2443
      %v2445 = vpop.f32.mrb[0].mxu0
      %v2446 = vadd.f32 %v2393, %v2445
      %2447 = vmatprep.mubr.bf16.mxu0 %v772
      %2448 = vmatmul.mubr.bf16.gmra.mrb[0].mxu0 %v771
      %v2449 = vpop.f32.mrb[0].mxu0
      %v2450 = vadd.f32 %v2397, %v2449
      %v2451 = vpop.f32.mrb[0].mxu0
      %v2452 = vadd.f32 %v2399, %v2451
      %v2453 = vpop.f32.mrb[0].mxu0
      %v2454 = vadd.f32 %v2401, %v2453
      %v2455 = vpop.f32.mrb[0].mxu0
      %v2456 = vadd.f32 %v2403, %v2455
      %2457 = vdwg.mxu0
      %2458 = vmatprep.subr.bf16.mxu0 %v1800
      %2459 = vmatpush1.bf16.msra.mxu0 %v1799
      %2460 = vmatprep.subr.bf16.mxu0 %v1802
      %2461 = vmatpush1.bf16.msra.mxu0 %v1801
      %2462 = vmatprep.subr.bf16.mxu0 %v1804
      %2463 = vmatpush1.bf16.msra.mxu0 %v1803
      %2464 = vmatprep.subr.bf16.mxu0 %v1806
      %2465 = vmatpush1.bf16.msra.mxu0 %v1805
      %2466 = vmatprep.subr.bf16.mxu0 %v1808
      %2467 = vmatpush1.bf16.msra.mxu0 %v1807
      %2468 = vmatprep.subr.bf16.mxu0 %v1810
      %2469 = vmatpush1.bf16.msra.mxu0 %v1809
      %2470 = vmatprep.subr.bf16.mxu0 %v1812
      %2471 = vmatpush1.bf16.msra.mxu0 %v1811
      %2472 = vmatprep.subr.bf16.mxu0 %v1814
      %2473 = vmatpush1.bf16.msra.mxu0 %v1813
      %2474 = vmatprep.subr.bf16.mxu0 %v1816
      %2475 = vmatpush1.bf16.msra.mxu0 %v1815
      %2476 = vmatprep.subr.bf16.mxu0 %v1818
      %2477 = vmatpush1.bf16.msra.mxu0 %v1817
      %2478 = vmatprep.subr.bf16.mxu0 %v1820
      %2479 = vmatpush1.bf16.msra.mxu0 %v1819
      %2480 = vmatprep.subr.bf16.mxu0 %v1822
      %2481 = vmatpush1.bf16.msra.mxu0 %v1821
      %2482 = vmatprep.subr.bf16.mxu0 %v1824
      %2483 = vmatpush1.bf16.msra.mxu0 %v1823
      %2484 = vmatprep.subr.bf16.mxu0 %v1826
      %2485 = vmatpush1.bf16.msra.mxu0 %v1825
      %2486 = vmatprep.subr.bf16.mxu0 %v1828
      %2487 = vmatpush1.bf16.msra.mxu0 %v1827
      %2488 = vmatprep.subr.bf16.mxu0 %v1830
      %2489 = vmatpush1.bf16.msra.mxu0 %v1829
      %2490 = vmatprep.mubr.bf16.mxu0 %v758
      %2491 = vmatmul.mubr.bf16.gmra.mrb[0].mxu0 %v757
      %v2492 = vpop.f32.mrb[0].mxu0
      %v2493 = vadd.f32 %v2440, %v2492
      %v2494 = vpop.f32.mrb[0].mxu0
      %v2495 = vadd.f32 %v2442, %v2494
      %v2496 = vpop.f32.mrb[0].mxu0
      %v2497 = vadd.f32 %v2444, %v2496
      %v2498 = vpop.f32.mrb[0].mxu0
      %v2499 = vadd.f32 %v2446, %v2498
      %2500 = vmatprep.mubr.bf16.mxu0 %v774
      %2501 = vmatmul.mubr.bf16.gmra.mrb[0].mxu0 %v773
      %v2502 = vpop.f32.mrb[0].mxu0
      %v2503 = vadd.f32 %v2450, %v2502
      %v2504 = vpop.f32.mrb[0].mxu0
      %v2505 = vadd.f32 %v2452, %v2504
      %v2506 = vpop.f32.mrb[0].mxu0
      %v2507 = vadd.f32 %v2454, %v2506
      %v2508 = vpop.f32.mrb[0].mxu0
      %v2509 = vadd.f32 %v2456, %v2508
      %2510 = vdwg.mxu0
      %2511 = vst [vmem:[%s330] sm:$0xff] %v2493
      %2512 = vst [vmem:[%s330 + $0x8] sm:$0xff] %v2495
      %2513 = vst [vmem:[%s330 + $0x10] sm:$0xff] %v2497
      %2514 = vst [vmem:[%s330 + $0x18] sm:$0xff] %v2499
      %2515 = vst [vmem:[%s330 + $0x20] sm:$0xff] %v2503
      %2516 = vst [vmem:[%s330 + $0x28] sm:$0xff] %v2505
      %2517 = vst [vmem:[%s330 + $0x30] sm:$0xff] %v2507
      %2518 = vst [vmem:[%s330 + $0x38] sm:$0xff] %v2509
      %v2519 = vld [vmem:[%s330] sm:$0xff]
      %v2520 = vld [vmem:[%s330 + $0x8] sm:$0xff]
      %v2521 = vld [vmem:[%s330 + $0x10] sm:$0xff]
      %v2522 = vld [vmem:[%s330 + $0x18] sm:$0xff]
      %v2523 = vld [vmem:[%s330 + $0x20] sm:$0xff]
      %v2524 = vld [vmem:[%s330 + $0x28] sm:$0xff]
      %v2525 = vld [vmem:[%s330 + $0x30] sm:$0xff]
      %v2526 = vld [vmem:[%s330 + $0x38] sm:$0xff]
      %v2527 = vadd.f32 %v2519, %v2521
      %v2528 = vadd.f32 %v2527, %v2523
      %v2529 = vadd.f32 %v2528, %v2525
      %v2530 = vrot.slane %v2529, 4
      %v2531 = vadd.f32 %v2529, %v2530
      %v2532 = vrot.slane %v2531, 2
      %v2533 = vadd.f32 %v2531, %v2532
      %v2534 = vrot.slane %v2533, 1
      %v2535 = vadd.f32 %v2533, %v2534
      %v2536 = vadd.f32 %v2520, %v2522
      %v2537 = vadd.f32 %v2536, %v2524
      %v2538 = vadd.f32 %v2537, %v2526
      %v2539 = vrot.slane %v2538, 4
      %v2540 = vadd.f32 %v2538, %v2539
      %v2541 = vrot.slane %v2540, 2
      %v2542 = vadd.f32 %v2540, %v2541
      %v2543 = vrot.slane %v2542, 1
      %v2544 = vadd.f32 %v2542, %v2543
      %v2547 = vcombine.low %v2535, %v2544
      %v2549 = vunpack.c.l.s4 1966171168
      %v2550 = vunpack.c.0.s8 %v2549
      %v2551 = vlaneseq
      %v2552 = vshrl.u32 %v2551, 7
      %v2553 = vsub.s32 %v2550, %v2552
      %v2554 = vrot.slane %v2547, %v2553
      %v2556 = vunpack.c.l.s4 1966171168
      %v2557 = vunpack.c.0.s8 %v2556
      %v2558 = vlaneseq
      %v2559 = vshrl.u32 %v2558, 7
      %v2560 = vsub.s32 %v2557, %v2559
      %v2561 = vrot.slane %v2554, %v2560
      %v2563 = vlaneseq
      %vm2564 = vcmp.ge.s32.totalorder %v2563, 0
      %vm2565 = vcmp.lt.s32.totalorder %v2563, 256
      %vm2566 = vmand %vm2564, %vm2565
      %2567 = vst.msk [vmem:[%s344] sm:$0x3] %vm2566, %v2561
      %v2568 = vmul.f32 %v2519, %v2519
      %v2569 = vmul.f32 %v2520, %v2520
      %v2570 = vmul.f32 %v2521, %v2521
      %v2571 = vmul.f32 %v2522, %v2522
      %v2572 = vmul.f32 %v2523, %v2523
      %v2573 = vmul.f32 %v2524, %v2524
      %v2574 = vmul.f32 %v2525, %v2525
      %v2575 = vmul.f32 %v2526, %v2526
      %v2576 = vadd.f32 %v2568, %v2570
      %v2577 = vadd.f32 %v2576, %v2572
      %v2578 = vadd.f32 %v2577, %v2574
      %v2579 = vrot.slane %v2578, 4
      %v2580 = vadd.f32 %v2578, %v2579
      %v2581 = vrot.slane %v2580, 2
      %v2582 = vadd.f32 %v2580, %v2581
      %v2583 = vrot.slane %v2582, 1
      %v2584 = vadd.f32 %v2582, %v2583
      %v2585 = vadd.f32 %v2569, %v2571
      %v2586 = vadd.f32 %v2585, %v2573
      %v2587 = vadd.f32 %v2586, %v2575
      %v2588 = vrot.slane %v2587, 4
      %v2589 = vadd.f32 %v2587, %v2588
      %v2590 = vrot.slane %v2589, 2
      %v2591 = vadd.f32 %v2589, %v2590
      %v2592 = vrot.slane %v2591, 1
      %v2593 = vadd.f32 %v2591, %v2592
      %v2596 = vcombine.low %v2584, %v2593
      %v2598 = vunpack.c.l.s4 1966171168
      %v2599 = vunpack.c.0.s8 %v2598
      %v2600 = vlaneseq
      %v2601 = vshrl.u32 %v2600, 7
      %v2602 = vsub.s32 %v2599, %v2601
      %v2603 = vrot.slane %v2596, %v2602
      %v2605 = vunpack.c.l.s4 1966171168
      %v2606 = vunpack.c.0.s8 %v2605
      %v2607 = vlaneseq
      %v2608 = vshrl.u32 %v2607, 7
      %v2609 = vsub.s32 %v2606, %v2608
      %v2610 = vrot.slane %v2603, %v2609
      %2612 = vst.msk [vmem:[%s357] sm:$0x3] %vm2566, %v2610
      %s2613 = smul.u32 4, %s22
      %s2614 = smul.u32 2, %s23
      %p2615 = scmp.lt.s32.totalorder %s21, 3
      %s2616 = scalar_select %p2615, %s21, 3
      %p2617 = scmp.lt.s32.totalorder %s2613, 3
      %s2618 = scalar_select %p2617, %s2613, 3
      %p2619 = scmp.lt.s32.totalorder %s2614, 1
      %s2620 = scalar_select %p2619, %s2614, 1
      %s2621 = smul.addr %s2618, 2
      %s2622 = sadd.s32 %s2620, %s2621
      %s2623 = smul.addr %s2616, 8
      %s2624 = sadd.s32 %s2622, %s2623
      %s2625 = smul.addr %s2624, 8
      %s2626 = scalar_lea.vmem %s2, %s2625
      %s2627 = smul.u32 2, %s23
      %p2628 = scmp.lt.s32.totalorder %s21, 3
      %s2629 = scalar_select %p2628, %s21, 3
      %p2630 = scmp.lt.s32.totalorder %s22, 0
      %s2631 = scalar_select %p2630, %s22, 0
      %p2632 = scmp.lt.s32.totalorder %s2627, 1
      %s2633 = scalar_select %p2632, %s2627, 1
      %s2634 = smul.addr %s2631, 2
      %s2635 = sadd.s32 %s2633, %s2634
      %s2636 = smul.addr %s2629, 2
      %s2637 = sadd.s32 %s2635, %s2636
      %s2638 = scalar_lea.vmem %s3, %s2637
      %s2639 = smul.u32 2, %s23
      %p2640 = scmp.lt.s32.totalorder %s21, 3
      %s2641 = scalar_select %p2640, %s21, 3
      %p2642 = scmp.lt.s32.totalorder %s22, 0
      %s2643 = scalar_select %p2642, %s22, 0
      %p2644 = scmp.lt.s32.totalorder %s2639, 1
      %s2645 = scalar_select %p2644, %s2639, 1
      %s2646 = smul.addr %s2643, 2
      %s2647 = sadd.s32 %s2645, %s2646
      %s2648 = smul.addr %s2641, 2
      %s2649 = sadd.s32 %s2647, %s2648
      %s2650 = scalar_lea.vmem %s4, %s2649
      // Predicated region
      $region29: #{generator_forward.9} parent=27 // pred_check
        %p2651 = pneg %p113
      $region30: #{generator_forward.9} parent=27 // pred_check_branch
        %2653 = sbr.rel (%p2651) target = $region32
      $region31: #{generator_forward.9} parent=27 // pred_region
        %s2654 = smul.u32 4, %s22
        %s2655 = smul.u32 2, %s23
      $region32: #{generator_forward.9} parent=27 // pred_fallthru
        _
      // Predicated region
      $region33: #{generator_forward.9} parent=27 // pred_check
        %p2656 = pneg %p143
      $region34: #{generator_forward.9} parent=27 // pred_check_branch
        %2658 = sbr.rel (%p2656) target = $region36
      $region35: #{generator_forward.9} parent=27 // pred_region
        %s2659 = smul.u32 2, %s23
      $region36: #{generator_forward.9} parent=27 // pred_fallthru
        _
      // Predicated region
      $region37: #{generator_forward.9} parent=27 // pred_check
        %p2660 = pneg %p173
      $region38: #{generator_forward.9} parent=27 // pred_check_branch
        %2662 = sbr.rel (%p2660) target = $region40
      $region39: #{generator_forward.9} parent=27 // pred_region
        %s2663 = smul.u32 2, %s23
      $region40: #{generator_forward.9} parent=27 // pred_fallthru
        _
    $region28: #{generator_forward.9} parent=5 // pred_fallthru
      _
    %p2664 = scmp.le.s32.totalorder 2, %s11
    // Predicated region
    $region41: #{generator_forward.9} parent=5 // pred_check
      %p2665 = pneg %p2664
    $region42: #{generator_forward.9} parent=5 // pred_check_branch
      %2667 = sbr.rel (%p2665) target = $region44
    $region43: #{generator_forward.9} parent=5 // pred_region
      %s2668 = ssub.s32 %s11, 2
      // Predicated region
      $region45: #{generator_forward.9} parent=43 // pred_check
        %p2669 = pneg %p119
      $region46: #{generator_forward.9} parent=43 // pred_check_branch
        %2671 = sbr.rel (%p2669) target = $region48
      $region47: #{generator_forward.9} parent=43 // pred_region
        %s2672 = smul.u32 4, %s25
        %s2673 = smul.u32 2, %s26
        %p2674 = scmp.lt.s32.totalorder %s24, 3
        %s2675 = scalar_select %p2674, %s24, 3
        %p2676 = scmp.lt.s32.totalorder %s2672, 3
        %s2677 = scalar_select %p2676, %s2672, 3
        %p2678 = scmp.lt.s32.totalorder %s2673, 1
        %s2679 = scalar_select %p2678, %s2673, 1
        %s2680 = smul.addr %s2677, 2
        %s2681 = sadd.s32 %s2679, %s2680
        %s2682 = smul.addr %s2675, 8
        %s2683 = sadd.s32 %s2681, %s2682
        %s2684 = smul.addr %s2683, 8
        %s2685 = scalar_lea.vmem %s2, %s2684
      $region48: #{generator_forward.9} parent=43 // pred_fallthru
        _
      // Predicated region
      $region49: #{generator_forward.9} parent=43 // pred_check
        %p2686 = pneg %p149
      $region50: #{generator_forward.9} parent=43 // pred_check_branch
        %2688 = sbr.rel (%p2686) target = $region52
      $region51: #{generator_forward.9} parent=43 // pred_region
        %s2689 = smul.u32 2, %s26
        %p2690 = scmp.lt.s32.totalorder %s24, 3
        %s2691 = scalar_select %p2690, %s24, 3
        %p2692 = scmp.lt.s32.totalorder %s25, 0
        %s2693 = scalar_select %p2692, %s25, 0
        %p2694 = scmp.lt.s32.totalorder %s2689, 1
        %s2695 = scalar_select %p2694, %s2689, 1
        %s2696 = smul.addr %s2693, 2
        %s2697 = sadd.s32 %s2695, %s2696
        %s2698 = smul.addr %s2691, 2
        %s2699 = sadd.s32 %s2697, %s2698
        %s2700 = scalar_lea.vmem %s3, %s2699
      $region52: #{generator_forward.9} parent=43 // pred_fallthru
        _
      // Predicated region
      $region53: #{generator_forward.9} parent=43 // pred_check
        %p2701 = pneg %p179
      $region54: #{generator_forward.9} parent=43 // pred_check_branch
        %2703 = sbr.rel (%p2701) target = $region56
      $region55: #{generator_forward.9} parent=43 // pred_region
        %s2704 = smul.u32 2, %s26
        %p2705 = scmp.lt.s32.totalorder %s24, 3
        %s2706 = scalar_select %p2705, %s24, 3
        %p2707 = scmp.lt.s32.totalorder %s25, 0
        %s2708 = scalar_select %p2707, %s25, 0
        %p2709 = scmp.lt.s32.totalorder %s2704, 1
        %s2710 = scalar_select %p2709, %s2704, 1
        %s2711 = smul.addr %s2708, 2
        %s2712 = sadd.s32 %s2710, %s2711
        %s2713 = smul.addr %s2706, 2
        %s2714 = sadd.s32 %s2712, %s2713
        %s2715 = scalar_lea.vmem %s4, %s2714
      $region56: #{generator_forward.9} parent=43 // pred_fallthru
        _
    $region44: #{generator_forward.9} parent=5 // pred_fallthru
      _
  $region6: #{generator_forward.9} parent=0 // loop_footer
    %s15 = sadd.s32 1, %s11
  $region7: #{generator_forward.9} parent=0 // loop_footer_branch
    %10 = sbr.rel target = $region3
  $region8: #{generator_forward.9} parent=0 // loop_exit
    _

// kernel: generator_forward.11
$region0: #{generator_forward.11}
  #allocation0 [shape = 'u32[]', space=smem, size = 0x4, offset = 0x4, fixed_abs, tag = 'smem constant byte address 0x4 - core index']
  #allocation1 [shape = 'u32[144,128]{1,0:T(1,128)}', space=vmem, size = 0x12000, scoped, tag = 'internal scratch']
  %s0 = inlined_call_operand.vmem [shape: bf16[4,128,1024], index: 0, kind: input, shape index: {}]
  %s1 = inlined_call_operand.vmem [shape: bf16[4,1024,128], index: 1, kind: input, shape index: {}]
  %s2 = inlined_call_operand.vmem [shape: f32[4,128,128], index: 2, kind: output, shape index: {0}]
  %s3 = inlined_call_operand.vmem [shape: f32[4,1,1,128], index: 3, kind: output, shape index: {1}]
  %s4 = inlined_call_operand.vmem [shape: f32[4,1,1,128], index: 4, kind: output, shape index: {2}]
  %5 = xla_tuple %s2, %s3, %s4
  %s6 = sld [smem:[#allocation0]]
  $region57: #{generator_forward.11} parent=0
    _
  %s8 = ssub.s32 1, %s6
  %s9 = scalar_select 0, %s8, %s6
  loop: start=0, step=1, limit=6
  $region2: #{generator_forward.11} parent=0 // loop_pre_header
    _
  $region3: #{generator_forward.11} parent=0 // loop_header
    %s11 = sphi 0, %s15
    %p12 = scmp.ge.s32.totalorder %s11, 6
    %s18 = sphi 0, %s37
    %s19 = sphi 0, %s33
    %s20 = sphi 0, %s29
    %s21 = sphi 0, %s18
    %s22 = sphi 0, %s19
    %s23 = sphi 0, %s20
    %s24 = sphi 0, %s21
    %s25 = sphi 0, %s22
    %s26 = sphi 0, %s23
    %s42 = sphi 0, %s44
    %s45 = sphi 0, %s42
    %s46 = sphi 0, %s45
    %s62 = sphi 0, %s46
    %s70 = sphi 0, %s72
    %s73 = sphi 0, %s70
    %s74 = sphi 0, %s73
    %s90 = sphi 0, %s74
    %s100 = sphi 0, %s102
    %s103 = sphi 0, %s100
    %s104 = sphi 0, %s103
    %s120 = sphi 0, %s104
    %s130 = sphi 0, %s132
    %s133 = sphi 0, %s130
    %s134 = sphi 0, %s133
    %s150 = sphi 0, %s134
    %s160 = sphi 0, %s162
    %s163 = sphi 0, %s160
    %s164 = sphi 0, %s163
    %s180 = sphi 0, %s164
  $region4: #{generator_forward.11} parent=0 // loop_header_branch
    %14 = sbr.rel (%p12) target = $region8
  $region5: #{generator_forward.11} parent=0 // loop_body
    %s16 = ssub.s32 %s11, 1
    %s17 = ssub.s32 %s11, 2
    %s27 = sadd.s32 1, %s20
    %p28 = scmp.ge.s32.totalorder %s27, 1
    %s29 = scalar_select %p28, 0, %s27
    %s30 = sadd.s32 1, %s19
    %s31 = scalar_select %p28, %s30, %s19
    %p32 = scmp.ge.s32.totalorder %s31, 1
    %s33 = scalar_select %p32, 0, %s31
    %s34 = sadd.s32 1, %s18
    %s35 = scalar_select %p32, %s34, %s18
    %p36 = scmp.ge.s32.totalorder %s35, 4
    %s37 = scalar_select %p36, 0, %s35
    %s38 = ssub.s32 %s18, %s37
    %s39 = ssub.s32 %s19, %s33
    %s40 = sor.u32 %s38, %s39
    %p41 = scmp.eq.s32.totalorder %s40, 0
    %s43 = sadd.s32 %s42, 1
    %s44 = scalar_select %p41, %s42, %s43
    %p47 = pneg %p41
    %p48 = scmp.eq.s32.totalorder %s11, 3
    %p49 = por %p47, %p48
    %p50 = scmp.ne.s32.totalorder %s42, %s45
    %p51 = scmp.eq.s32.totalorder %s11, 0
    %p52 = por %p50, %p51
    %p53 = scmp.ne.s32.totalorder %s42, %s45
    %p54 = scmp.eq.s32.totalorder %s16, 3
    %p55 = por %p53, %p54
    %p56 = scmp.ne.s32.totalorder %s45, %s46
    %p57 = scmp.eq.s32.totalorder %s16, 0
    %p58 = por %p56, %p57
    %p59 = scmp.ne.s32.totalorder %s45, %s46
    %p60 = scmp.eq.s32.totalorder %s17, 3
    %p61 = por %p59, %p60
    %p63 = scmp.ne.s32.totalorder %s46, %s62
    %p64 = scmp.eq.s32.totalorder %s17, 0
    %p65 = por %p63, %p64
    %s66 = ssub.s32 %s18, %s37
    %s67 = ssub.s32 %s20, %s29
    %s68 = sor.u32 %s66, %s67
    %p69 = scmp.eq.s32.totalorder %s68, 0
    %s71 = sadd.s32 %s70, 1
    %s72 = scalar_select %p69, %s70, %s71
    %p75 = pneg %p69
    %p76 = scmp.eq.s32.totalorder %s11, 3
    %p77 = por %p75, %p76
    %p78 = scmp.ne.s32.totalorder %s70, %s73
    %p79 = scmp.eq.s32.totalorder %s11, 0
    %p80 = por %p78, %p79
    %p81 = scmp.ne.s32.totalorder %s70, %s73
    %p82 = scmp.eq.s32.totalorder %s16, 3
    %p83 = por %p81, %p82
    %p84 = scmp.ne.s32.totalorder %s73, %s74
    %p85 = scmp.eq.s32.totalorder %s16, 0
    %p86 = por %p84, %p85
    %p87 = scmp.ne.s32.totalorder %s73, %s74
    %p88 = scmp.eq.s32.totalorder %s17, 3
    %p89 = por %p87, %p88
    %p91 = scmp.ne.s32.totalorder %s74, %s90
    %p92 = scmp.eq.s32.totalorder %s17, 0
    %p93 = por %p91, %p92
    %s94 = ssub.s32 %s18, %s37
    %s95 = ssub.s32 %s19, %s33
    %s96 = sor.u32 %s94, %s95
    %s97 = ssub.s32 %s20, %s29
    %s98 = sor.u32 %s96, %s97
    %p99 = scmp.eq.s32.totalorder %s98, 0
    %s101 = sadd.s32 %s100, 1
    %s102 = scalar_select %p99, %s100, %s101
    %p105 = pneg %p99
    %p106 = scmp.eq.s32.totalorder %s11, 3
    %p107 = por %p105, %p106
    %p108 = scmp.ne.s32.totalorder %s100, %s103
    %p109 = scmp.eq.s32.totalorder %s11, 0
    %p110 = por %p108, %p109
    %p111 = scmp.ne.s32.totalorder %s100, %s103
    %p112 = scmp.eq.s32.totalorder %s16, 3
    %p113 = por %p111, %p112
    %p114 = scmp.ne.s32.totalorder %s103, %s104
    %p115 = scmp.eq.s32.totalorder %s16, 0
    %p116 = por %p114, %p115
    %p117 = scmp.ne.s32.totalorder %s103, %s104
    %p118 = scmp.eq.s32.totalorder %s17, 3
    %p119 = por %p117, %p118
    %p121 = scmp.ne.s32.totalorder %s104, %s120
    %p122 = scmp.eq.s32.totalorder %s17, 0
    %p123 = por %p121, %p122
    %s124 = ssub.s32 %s18, %s37
    %s125 = ssub.s32 %s19, %s33
    %s126 = sor.u32 %s124, %s125
    %s127 = ssub.s32 %s20, %s29
    %s128 = sor.u32 %s126, %s127
    %p129 = scmp.eq.s32.totalorder %s128, 0
    %s131 = sadd.s32 %s130, 1
    %s132 = scalar_select %p129, %s130, %s131
    %p135 = pneg %p129
    %p136 = scmp.eq.s32.totalorder %s11, 3
    %p137 = por %p135, %p136
    %p138 = scmp.ne.s32.totalorder %s130, %s133
    %p139 = scmp.eq.s32.totalorder %s11, 0
    %p140 = por %p138, %p139
    %p141 = scmp.ne.s32.totalorder %s130, %s133
    %p142 = scmp.eq.s32.totalorder %s16, 3
    %p143 = por %p141, %p142
    %p144 = scmp.ne.s32.totalorder %s133, %s134
    %p145 = scmp.eq.s32.totalorder %s16, 0
    %p146 = por %p144, %p145
    %p147 = scmp.ne.s32.totalorder %s133, %s134
    %p148 = scmp.eq.s32.totalorder %s17, 3
    %p149 = por %p147, %p148
    %p151 = scmp.ne.s32.totalorder %s134, %s150
    %p152 = scmp.eq.s32.totalorder %s17, 0
    %p153 = por %p151, %p152
    %s154 = ssub.s32 %s18, %s37
    %s155 = ssub.s32 %s19, %s33
    %s156 = sor.u32 %s154, %s155
    %s157 = ssub.s32 %s20, %s29
    %s158 = sor.u32 %s156, %s157
    %p159 = scmp.eq.s32.totalorder %s158, 0
    %s161 = sadd.s32 %s160, 1
    %s162 = scalar_select %p159, %s160, %s161
    %p165 = pneg %p159
    %p166 = scmp.eq.s32.totalorder %s11, 3
    %p167 = por %p165, %p166
    %p168 = scmp.ne.s32.totalorder %s160, %s163
    %p169 = scmp.eq.s32.totalorder %s11, 0
    %p170 = por %p168, %p169
    %p171 = scmp.ne.s32.totalorder %s160, %s163
    %p172 = scmp.eq.s32.totalorder %s16, 3
    %p173 = por %p171, %p172
    %p174 = scmp.ne.s32.totalorder %s163, %s164
    %p175 = scmp.eq.s32.totalorder %s16, 0
    %p176 = por %p174, %p175
    %p177 = scmp.ne.s32.totalorder %s163, %s164
    %p178 = scmp.eq.s32.totalorder %s17, 3
    %p179 = por %p177, %p178
    %p181 = scmp.ne.s32.totalorder %s164, %s180
    %p182 = scmp.eq.s32.totalorder %s17, 0
    %p183 = por %p181, %p182
    %p184 = scmp.le.s32.totalorder 1, %s11
    %p185 = scmp.lt.s32.totalorder %s11, 5
    %p186 = pnand %p184, %p185
    %p187 = pneg %p186
    // Predicated region
    $region9: #{generator_forward.11} parent=5 // pred_check
      _
    $region10: #{generator_forward.11} parent=5 // pred_check_branch
      %189 = sbr.rel (%p186) target = $region12
    $region11: #{generator_forward.11} parent=5 // pred_region
      %s190 = ssub.s32 %s11, 1
    $region12: #{generator_forward.11} parent=5 // pred_fallthru
      _
    %p191 = scmp.lt.s32.totalorder %s11, 4
    // Predicated region
    $region13: #{generator_forward.11} parent=5 // pred_check
      %p192 = pneg %p191
    $region14: #{generator_forward.11} parent=5 // pred_check_branch
      %194 = sbr.rel (%p192) target = $region16
    $region15: #{generator_forward.11} parent=5 // pred_region
      // Predicated region
      $region17: #{generator_forward.11} parent=15 // pred_check
        %p195 = pneg %p52
      $region18: #{generator_forward.11} parent=15 // pred_check_branch
        %197 = sbr.rel (%p195) target = $region20
      $region19: #{generator_forward.11} parent=15 // pred_region
        %s198 = smul.u32 16, %s19
        %p199 = scmp.lt.s32.totalorder %s18, 3
        %s200 = scalar_select %p199, %s18, 3
        %p201 = scmp.lt.s32.totalorder %s198, 15
        %s202 = scalar_select %p201, %s198, 15
        %s203 = smul.addr %s202, 8
        %s204 = smul.addr %s200, 128
        %s205 = sadd.s32 %s203, %s204
        %s206 = smul.addr %s205, 4
        %s207 = scalar_lea.vmem %s0, %s206
        %s208 = smul.u32 16, %s19
      $region20: #{generator_forward.11} parent=15 // pred_fallthru
        _
      // Predicated region
      $region21: #{generator_forward.11} parent=15 // pred_check
        %p209 = pneg %p80
      $region22: #{generator_forward.11} parent=15 // pred_check_branch
        %211 = sbr.rel (%p209) target = $region24
      $region23: #{generator_forward.11} parent=15 // pred_region
        %p212 = scmp.lt.s32.totalorder %s18, 3
        %s213 = scalar_select %p212, %s18, 3
        %p214 = scmp.lt.s32.totalorder %s20, 0
        %s215 = scalar_select %p214, %s20, 0
        %s216 = smul.addr %s213, 128
        %s217 = sadd.s32 %s215, %s216
        %s218 = smul.addr %s217, 4
        %s219 = scalar_lea.vmem %s1, %s218
      $region24: #{generator_forward.11} parent=15 // pred_fallthru
        _
    $region16: #{generator_forward.11} parent=5 // pred_fallthru
      _
    %p220 = scmp.le.s32.totalorder 1, %s11
    %p221 = scmp.lt.s32.totalorder %s11, 5
    %p222 = pnand %p220, %p221
    %p223 = pneg %p222
    // Predicated region
    $region25: #{generator_forward.11} parent=5 // pred_check
      _
    $region26: #{generator_forward.11} parent=5 // pred_check_branch
      %225 = sbr.rel (%p222) target = $region28
    $region27: #{generator_forward.11} parent=5 // pred_region
      %s226 = ssub.s32 %s11, 1
      %s227 = smul.u32 16, %s22
      %p228 = scmp.lt.s32.totalorder %s21, 3
      %s229 = scalar_select %p228, %s21, 3
      %p230 = scmp.lt.s32.totalorder %s227, 15
      %s231 = scalar_select %p230, %s227, 15
      %s232 = smul.addr %s231, 8
      %s233 = smul.addr %s229, 128
      %s234 = sadd.s32 %s232, %s233
      %s235 = smul.addr %s234, 4
      %s236 = scalar_lea.vmem %s0, %s235
      %p237 = pneg %p58
      %p238 = pneg %p55
      %p239 = scmp.lt.s32.totalorder %s21, 3
      %s240 = scalar_select %p239, %s21, 3
      %p241 = scmp.lt.s32.totalorder %s23, 0
      %s242 = scalar_select %p241, %s23, 0
      %s243 = smul.addr %s240, 128
      %s244 = sadd.s32 %s242, %s243
      %s245 = smul.addr %s244, 4
      %s246 = scalar_lea.vmem %s1, %s245
      %p247 = pneg %p86
      %p248 = pneg %p83
      %p249 = pneg %p116
      %p250 = pneg %p113
      %s251 = smul.u32 16, %s22
      %p252 = scmp.lt.s32.totalorder %s21, 3
      %s253 = scalar_select %p252, %s21, 3
      %p254 = scmp.lt.s32.totalorder %s251, 15
      %s255 = scalar_select %p254, %s251, 15
      %p256 = scmp.lt.s32.totalorder %s23, 0
      %s257 = scalar_select %p256, %s23, 0
      %s258 = sadd.s32 %s257, %s255
      %s259 = smul.addr %s253, 16
      %s260 = sadd.s32 %s258, %s259
      %s261 = smul.addr %s260, 8
      %s262 = scalar_lea.vmem %s2, %s261
      %p263 = pneg %p146
      %p264 = pneg %p143
      %p265 = scmp.lt.s32.totalorder %s21, 3
      %s266 = scalar_select %p265, %s21, 3
      %p267 = scmp.lt.s32.totalorder %s22, 0
      %s268 = scalar_select %p267, %s22, 0
      %p269 = scmp.lt.s32.totalorder %s23, 0
      %s270 = scalar_select %p269, %s23, 0
      %s271 = sadd.s32 %s270, %s268
      %s272 = sadd.s32 %s271, %s266
      %s273 = scalar_lea.vmem %s3, %s272
      %p274 = pneg %p176
      %p275 = pneg %p173
      %p276 = scmp.lt.s32.totalorder %s21, 3
      %s277 = scalar_select %p276, %s21, 3
      %p278 = scmp.lt.s32.totalorder %s22, 0
      %s279 = scalar_select %p278, %s22, 0
      %p280 = scmp.lt.s32.totalorder %s23, 0
      %s281 = scalar_select %p280, %s23, 0
      %s282 = sadd.s32 %s281, %s279
      %s283 = sadd.s32 %s282, %s277
      %s284 = scalar_lea.vmem %s4, %s283
      %s285 = smul.u32 16, %s22
      %p286 = scmp.lt.s32.totalorder %s21, 3
      %s287 = scalar_select %p286, %s21, 3
      %p288 = scmp.lt.s32.totalorder %s285, 15
      %s289 = scalar_select %p288, %s285, 15
      %s290 = smul.addr %s289, 8
      %s291 = smul.addr %s287, 128
      %s292 = sadd.s32 %s290, %s291
      %s293 = smul.addr %s292, 4
      %s294 = scalar_lea.vmem %s0, %s293
      %s295 = smul.u32 16, %s22
      %p296 = scmp.lt.s32.totalorder %s21, 3
      %s297 = scalar_select %p296, %s21, 3
      %p298 = scmp.lt.s32.totalorder %s23, 0
      %s299 = scalar_select %p298, %s23, 0
      %s300 = smul.addr %s297, 128
      %s301 = sadd.s32 %s299, %s300
      %s302 = smul.addr %s301, 4
      %s303 = scalar_lea.vmem %s1, %s302
      %s304 = smul.u32 16, %s22
      %p305 = scmp.lt.s32.totalorder %s21, 3
      %s306 = scalar_select %p305, %s21, 3
      %p307 = scmp.lt.s32.totalorder %s304, 15
      %s308 = scalar_select %p307, %s304, 15
      %p309 = scmp.lt.s32.totalorder %s23, 0
      %s310 = scalar_select %p309, %s23, 0
      %s311 = sadd.s32 %s310, %s308
      %s312 = smul.addr %s306, 16
      %s313 = sadd.s32 %s311, %s312
      %s314 = smul.addr %s313, 8
      %s315 = scalar_lea.vmem %s2, %s314
      %s316 = smul.u32 16, %s22
      %p317 = scmp.lt.s32.totalorder %s21, 3
      %s318 = scalar_select %p317, %s21, 3
      %p319 = scmp.lt.s32.totalorder %s22, 0
      %s320 = scalar_select %p319, %s22, 0
      %p321 = scmp.lt.s32.totalorder %s23, 0
      %s322 = scalar_select %p321, %s23, 0
      %s323 = sadd.s32 %s322, %s320
      %s324 = sadd.s32 %s323, %s318
      %s325 = scalar_lea.vmem %s3, %s324
      %p326 = scmp.lt.s32.totalorder %s21, 3
      %s327 = scalar_select %p326, %s21, 3
      %p328 = scmp.lt.s32.totalorder %s22, 0
      %s329 = scalar_select %p328, %s22, 0
      %p330 = scmp.lt.s32.totalorder %s23, 0
      %s331 = scalar_select %p330, %s23, 0
      %s332 = sadd.s32 %s331, %s329
      %s333 = sadd.s32 %s332, %s327
      %s334 = scalar_lea.vmem %s4, %s333
      %v336 = vld [vmem:[%s294] sm:$0xff]
      %v337 = vld [vmem:[%s294 + $0x8] sm:$0xff]
      %v338 = vld [vmem:[%s294 + $0x10] sm:$0xff]
      %v339 = vld [vmem:[%s294 + $0x18] sm:$0xff]
      %v340 = vld [vmem:[%s294 + $0x20] sm:$0xff]
      %v341 = vld [vmem:[%s294 + $0x28] sm:$0xff]
      %v342 = vld [vmem:[%s294 + $0x30] sm:$0xff]
      %v343 = vld [vmem:[%s294 + $0x38] sm:$0xff]
      %v344 = vld [vmem:[%s294 + $0x40] sm:$0xff]
      %v345 = vld [vmem:[%s294 + $0x48] sm:$0xff]
      %v346 = vld [vmem:[%s294 + $0x50] sm:$0xff]
      %v347 = vld [vmem:[%s294 + $0x58] sm:$0xff]
      %v348 = vld [vmem:[%s294 + $0x60] sm:$0xff]
      %v349 = vld [vmem:[%s294 + $0x68] sm:$0xff]
      %v350 = vld [vmem:[%s294 + $0x70] sm:$0xff]
      %v351 = vld [vmem:[%s294 + $0x78] sm:$0xff]
      %v352 = vld [vmem:[%s294 + $0x80] sm:$0xff]
      %v353 = vld [vmem:[%s294 + $0x88] sm:$0xff]
      %v354 = vld [vmem:[%s294 + $0x90] sm:$0xff]
      %v355 = vld [vmem:[%s294 + $0x98] sm:$0xff]
      %v356 = vld [vmem:[%s294 + $0xa0] sm:$0xff]
      %v357 = vld [vmem:[%s294 + $0xa8] sm:$0xff]
      %v358 = vld [vmem:[%s294 + $0xb0] sm:$0xff]
      %v359 = vld [vmem:[%s294 + $0xb8] sm:$0xff]
      %v360 = vld [vmem:[%s294 + $0xc0] sm:$0xff]
      %v361 = vld [vmem:[%s294 + $0xc8] sm:$0xff]
      %v362 = vld [vmem:[%s294 + $0xd0] sm:$0xff]
      %v363 = vld [vmem:[%s294 + $0xd8] sm:$0xff]
      %v364 = vld [vmem:[%s294 + $0xe0] sm:$0xff]
      %v365 = vld [vmem:[%s294 + $0xe8] sm:$0xff]
      %v366 = vld [vmem:[%s294 + $0xf0] sm:$0xff]
      %v367 = vld [vmem:[%s294 + $0xf8] sm:$0xff]
      %v368 = vld [vmem:[%s294 + $0x100] sm:$0xff]
      %v369 = vld [vmem:[%s294 + $0x108] sm:$0xff]
      %v370 = vld [vmem:[%s294 + $0x110] sm:$0xff]
      %v371 = vld [vmem:[%s294 + $0x118] sm:$0xff]
      %v372 = vld [vmem:[%s294 + $0x120] sm:$0xff]
      %v373 = vld [vmem:[%s294 + $0x128] sm:$0xff]
      %v374 = vld [vmem:[%s294 + $0x130] sm:$0xff]
      %v375 = vld [vmem:[%s294 + $0x138] sm:$0xff]
      %v376 = vld [vmem:[%s294 + $0x140] sm:$0xff]
      %v377 = vld [vmem:[%s294 + $0x148] sm:$0xff]
      %v378 = vld [vmem:[%s294 + $0x150] sm:$0xff]
      %v379 = vld [vmem:[%s294 + $0x158] sm:$0xff]
      %v380 = vld [vmem:[%s294 + $0x160] sm:$0xff]
      %v381 = vld [vmem:[%s294 + $0x168] sm:$0xff]
      %v382 = vld [vmem:[%s294 + $0x170] sm:$0xff]
      %v383 = vld [vmem:[%s294 + $0x178] sm:$0xff]
      %v384 = vld [vmem:[%s294 + $0x180] sm:$0xff]
      %v385 = vld [vmem:[%s294 + $0x188] sm:$0xff]
      %v386 = vld [vmem:[%s294 + $0x190] sm:$0xff]
      %v387 = vld [vmem:[%s294 + $0x198] sm:$0xff]
      %v388 = vld [vmem:[%s294 + $0x1a0] sm:$0xff]
      %v389 = vld [vmem:[%s294 + $0x1a8] sm:$0xff]
      %v390 = vld [vmem:[%s294 + $0x1b0] sm:$0xff]
      %v391 = vld [vmem:[%s294 + $0x1b8] sm:$0xff]
      %v392 = vld [vmem:[%s294 + $0x1c0] sm:$0xff]
      %v393 = vld [vmem:[%s294 + $0x1c8] sm:$0xff]
      %v394 = vld [vmem:[%s294 + $0x1d0] sm:$0xff]
      %v395 = vld [vmem:[%s294 + $0x1d8] sm:$0xff]
      %v396 = vld [vmem:[%s294 + $0x1e0] sm:$0xff]
      %v397 = vld [vmem:[%s294 + $0x1e8] sm:$0xff]
      %v398 = vld [vmem:[%s294 + $0x1f0] sm:$0xff]
      %v399 = vld [vmem:[%s294 + $0x1f8] sm:$0xff]
      %v400 = vld [vmem:[%s303] sm:$0xf]
      %v401 = vld [vmem:[%s303 + $0x4] sm:$0xf]
      %v402 = vld [vmem:[%s303 + $0x8] sm:$0xf]
      %v403 = vld [vmem:[%s303 + $0xc] sm:$0xf]
      %v404 = vld [vmem:[%s303 + $0x10] sm:$0xf]
      %v405 = vld [vmem:[%s303 + $0x14] sm:$0xf]
      %v406 = vld [vmem:[%s303 + $0x18] sm:$0xf]
      %v407 = vld [vmem:[%s303 + $0x1c] sm:$0xf]
      %v408 = vld [vmem:[%s303 + $0x20] sm:$0xf]
      %v409 = vld [vmem:[%s303 + $0x24] sm:$0xf]
      %v410 = vld [vmem:[%s303 + $0x28] sm:$0xf]
      %v411 = vld [vmem:[%s303 + $0x2c] sm:$0xf]
      %v412 = vld [vmem:[%s303 + $0x30] sm:$0xf]
      %v413 = vld [vmem:[%s303 + $0x34] sm:$0xf]
      %v414 = vld [vmem:[%s303 + $0x38] sm:$0xf]
      %v415 = vld [vmem:[%s303 + $0x3c] sm:$0xf]
      %v416 = vld [vmem:[%s303 + $0x40] sm:$0xf]
      %v417 = vld [vmem:[%s303 + $0x44] sm:$0xf]
      %v418 = vld [vmem:[%s303 + $0x48] sm:$0xf]
      %v419 = vld [vmem:[%s303 + $0x4c] sm:$0xf]
      %v420 = vld [vmem:[%s303 + $0x50] sm:$0xf]
      %v421 = vld [vmem:[%s303 + $0x54] sm:$0xf]
      %v422 = vld [vmem:[%s303 + $0x58] sm:$0xf]
      %v423 = vld [vmem:[%s303 + $0x5c] sm:$0xf]
      %v424 = vld [vmem:[%s303 + $0x60] sm:$0xf]
      %v425 = vld [vmem:[%s303 + $0x64] sm:$0xf]
      %v426 = vld [vmem:[%s303 + $0x68] sm:$0xf]
      %v427 = vld [vmem:[%s303 + $0x6c] sm:$0xf]
      %v428 = vld [vmem:[%s303 + $0x70] sm:$0xf]
      %v429 = vld [vmem:[%s303 + $0x74] sm:$0xf]
      %v430 = vld [vmem:[%s303 + $0x78] sm:$0xf]
      %v431 = vld [vmem:[%s303 + $0x7c] sm:$0xf]
      %v432 = vld [vmem:[%s303 + $0x80] sm:$0xf]
      %v433 = vld [vmem:[%s303 + $0x84] sm:$0xf]
      %v434 = vld [vmem:[%s303 + $0x88] sm:$0xf]
      %v435 = vld [vmem:[%s303 + $0x8c] sm:$0xf]
      %v436 = vld [vmem:[%s303 + $0x90] sm:$0xf]
      %v437 = vld [vmem:[%s303 + $0x94] sm:$0xf]
      %v438 = vld [vmem:[%s303 + $0x98] sm:$0xf]
      %v439 = vld [vmem:[%s303 + $0x9c] sm:$0xf]
      %v440 = vld [vmem:[%s303 + $0xa0] sm:$0xf]
      %v441 = vld [vmem:[%s303 + $0xa4] sm:$0xf]
      %v442 = vld [vmem:[%s303 + $0xa8] sm:$0xf]
      %v443 = vld [vmem:[%s303 + $0xac] sm:$0xf]
      %v444 = vld [vmem:[%s303 + $0xb0] sm:$0xf]
      %v445 = vld [vmem:[%s303 + $0xb4] sm:$0xf]
      %v446 = vld [vmem:[%s303 + $0xb8] sm:$0xf]
      %v447 = vld [vmem:[%s303 + $0xbc] sm:$0xf]
      %v448 = vld [vmem:[%s303 + $0xc0] sm:$0xf]
      %v449 = vld [vmem:[%s303 + $0xc4] sm:$0xf]
      %v450 = vld [vmem:[%s303 + $0xc8] sm:$0xf]
      %v451 = vld [vmem:[%s303 + $0xcc] sm:$0xf]
      %v452 = vld [vmem:[%s303 + $0xd0] sm:$0xf]
      %v453 = vld [vmem:[%s303 + $0xd4] sm:$0xf]
      %v454 = vld [vmem:[%s303 + $0xd8] sm:$0xf]
      %v455 = vld [vmem:[%s303 + $0xdc] sm:$0xf]
      %v456 = vld [vmem:[%s303 + $0xe0] sm:$0xf]
      %v457 = vld [vmem:[%s303 + $0xe4] sm:$0xf]
      %v458 = vld [vmem:[%s303 + $0xe8] sm:$0xf]
      %v459 = vld [vmem:[%s303 + $0xec] sm:$0xf]
      %v460 = vld [vmem:[%s303 + $0xf0] sm:$0xf]
      %v461 = vld [vmem:[%s303 + $0xf4] sm:$0xf]
      %v462 = vld [vmem:[%s303 + $0xf8] sm:$0xf]
      %v463 = vld [vmem:[%s303 + $0xfc] sm:$0xf]
      %v464 = vld [vmem:[%s303 + $0x100] sm:$0xf]
      %v465 = vld [vmem:[%s303 + $0x104] sm:$0xf]
      %v466 = vld [vmem:[%s303 + $0x108] sm:$0xf]
      %v467 = vld [vmem:[%s303 + $0x10c] sm:$0xf]
      %v468 = vld [vmem:[%s303 + $0x110] sm:$0xf]
      %v469 = vld [vmem:[%s303 + $0x114] sm:$0xf]
      %v470 = vld [vmem:[%s303 + $0x118] sm:$0xf]
      %v471 = vld [vmem:[%s303 + $0x11c] sm:$0xf]
      %v472 = vld [vmem:[%s303 + $0x120] sm:$0xf]
      %v473 = vld [vmem:[%s303 + $0x124] sm:$0xf]
      %v474 = vld [vmem:[%s303 + $0x128] sm:$0xf]
      %v475 = vld [vmem:[%s303 + $0x12c] sm:$0xf]
      %v476 = vld [vmem:[%s303 + $0x130] sm:$0xf]
      %v477 = vld [vmem:[%s303 + $0x134] sm:$0xf]
      %v478 = vld [vmem:[%s303 + $0x138] sm:$0xf]
      %v479 = vld [vmem:[%s303 + $0x13c] sm:$0xf]
      %v480 = vld [vmem:[%s303 + $0x140] sm:$0xf]
      %v481 = vld [vmem:[%s303 + $0x144] sm:$0xf]
      %v482 = vld [vmem:[%s303 + $0x148] sm:$0xf]
      %v483 = vld [vmem:[%s303 + $0x14c] sm:$0xf]
      %v484 = vld [vmem:[%s303 + $0x150] sm:$0xf]
      %v485 = vld [vmem:[%s303 + $0x154] sm:$0xf]
      %v486 = vld [vmem:[%s303 + $0x158] sm:$0xf]
      %v487 = vld [vmem:[%s303 + $0x15c] sm:$0xf]
      %v488 = vld [vmem:[%s303 + $0x160] sm:$0xf]
      %v489 = vld [vmem:[%s303 + $0x164] sm:$0xf]
      %v490 = vld [vmem:[%s303 + $0x168] sm:$0xf]
      %v491 = vld [vmem:[%s303 + $0x16c] sm:$0xf]
      %v492 = vld [vmem:[%s303 + $0x170] sm:$0xf]
      %v493 = vld [vmem:[%s303 + $0x174] sm:$0xf]
      %v494 = vld [vmem:[%s303 + $0x178] sm:$0xf]
      %v495 = vld [vmem:[%s303 + $0x17c] sm:$0xf]
      %v496 = vld [vmem:[%s303 + $0x180] sm:$0xf]
      %v497 = vld [vmem:[%s303 + $0x184] sm:$0xf]
      %v498 = vld [vmem:[%s303 + $0x188] sm:$0xf]
      %v499 = vld [vmem:[%s303 + $0x18c] sm:$0xf]
      %v500 = vld [vmem:[%s303 + $0x190] sm:$0xf]
      %v501 = vld [vmem:[%s303 + $0x194] sm:$0xf]
      %v502 = vld [vmem:[%s303 + $0x198] sm:$0xf]
      %v503 = vld [vmem:[%s303 + $0x19c] sm:$0xf]
      %v504 = vld [vmem:[%s303 + $0x1a0] sm:$0xf]
      %v505 = vld [vmem:[%s303 + $0x1a4] sm:$0xf]
      %v506 = vld [vmem:[%s303 + $0x1a8] sm:$0xf]
      %v507 = vld [vmem:[%s303 + $0x1ac] sm:$0xf]
      %v508 = vld [vmem:[%s303 + $0x1b0] sm:$0xf]
      %v509 = vld [vmem:[%s303 + $0x1b4] sm:$0xf]
      %v510 = vld [vmem:[%s303 + $0x1b8] sm:$0xf]
      %v511 = vld [vmem:[%s303 + $0x1bc] sm:$0xf]
      %v512 = vld [vmem:[%s303 + $0x1c0] sm:$0xf]
      %v513 = vld [vmem:[%s303 + $0x1c4] sm:$0xf]
      %v514 = vld [vmem:[%s303 + $0x1c8] sm:$0xf]
      %v515 = vld [vmem:[%s303 + $0x1cc] sm:$0xf]
      %v516 = vld [vmem:[%s303 + $0x1d0] sm:$0xf]
      %v517 = vld [vmem:[%s303 + $0x1d4] sm:$0xf]
      %v518 = vld [vmem:[%s303 + $0x1d8] sm:$0xf]
      %v519 = vld [vmem:[%s303 + $0x1dc] sm:$0xf]
      %v520 = vld [vmem:[%s303 + $0x1e0] sm:$0xf]
      %v521 = vld [vmem:[%s303 + $0x1e4] sm:$0xf]
      %v522 = vld [vmem:[%s303 + $0x1e8] sm:$0xf]
      %v523 = vld [vmem:[%s303 + $0x1ec] sm:$0xf]
      %v524 = vld [vmem:[%s303 + $0x1f0] sm:$0xf]
      %v525 = vld [vmem:[%s303 + $0x1f4] sm:$0xf]
      %v526 = vld [vmem:[%s303 + $0x1f8] sm:$0xf]
      %v527 = vld [vmem:[%s303 + $0x1fc] sm:$0xf]
      %v592 = vunpack.c.l.b16 %v336
      %v593 = vunpack.c.h.b16 %v336
      %v594 = vunpack.c.l.b16 %v337
      %v595 = vunpack.c.h.b16 %v337
      %v596 = vunpack.c.l.b16 %v338
      %v597 = vunpack.c.h.b16 %v338
      %v598 = vunpack.c.l.b16 %v339
      %v599 = vunpack.c.h.b16 %v339
      %v600 = vunpack.c.l.b16 %v340
      %v601 = vunpack.c.h.b16 %v340
      %v602 = vunpack.c.l.b16 %v341
      %v603 = vunpack.c.h.b16 %v341
      %v604 = vunpack.c.l.b16 %v342
      %v605 = vunpack.c.h.b16 %v342
      %v606 = vunpack.c.l.b16 %v343
      %v607 = vunpack.c.h.b16 %v343
      %v608 = vunpack.c.l.b16 %v344
      %v609 = vunpack.c.h.b16 %v344
      %v610 = vunpack.c.l.b16 %v345
      %v611 = vunpack.c.h.b16 %v345
      %v612 = vunpack.c.l.b16 %v346
      %v613 = vunpack.c.h.b16 %v346
      %v614 = vunpack.c.l.b16 %v347
      %v615 = vunpack.c.h.b16 %v347
      %v616 = vunpack.c.l.b16 %v348
      %v617 = vunpack.c.h.b16 %v348
      %v618 = vunpack.c.l.b16 %v349
      %v619 = vunpack.c.h.b16 %v349
      %v620 = vunpack.c.l.b16 %v350
      %v621 = vunpack.c.h.b16 %v350
      %v622 = vunpack.c.l.b16 %v351
      %v623 = vunpack.c.h.b16 %v351
      %v624 = vunpack.c.l.b16 %v352
      %v625 = vunpack.c.h.b16 %v352
      %v626 = vunpack.c.l.b16 %v353
      %v627 = vunpack.c.h.b16 %v353
      %v628 = vunpack.c.l.b16 %v354
      %v629 = vunpack.c.h.b16 %v354
      %v630 = vunpack.c.l.b16 %v355
      %v631 = vunpack.c.h.b16 %v355
      %v632 = vunpack.c.l.b16 %v356
      %v633 = vunpack.c.h.b16 %v356
      %v634 = vunpack.c.l.b16 %v357
      %v635 = vunpack.c.h.b16 %v357
      %v636 = vunpack.c.l.b16 %v358
      %v637 = vunpack.c.h.b16 %v358
      %v638 = vunpack.c.l.b16 %v359
      %v639 = vunpack.c.h.b16 %v359
      %v640 = vunpack.c.l.b16 %v360
      %v641 = vunpack.c.h.b16 %v360
      %v642 = vunpack.c.l.b16 %v361
      %v643 = vunpack.c.h.b16 %v361
      %v644 = vunpack.c.l.b16 %v362
      %v645 = vunpack.c.h.b16 %v362
      %v646 = vunpack.c.l.b16 %v363
      %v647 = vunpack.c.h.b16 %v363
      %v648 = vunpack.c.l.b16 %v364
      %v649 = vunpack.c.h.b16 %v364
      %v650 = vunpack.c.l.b16 %v365
      %v651 = vunpack.c.h.b16 %v365
      %v652 = vunpack.c.l.b16 %v366
      %v653 = vunpack.c.h.b16 %v366
      %v654 = vunpack.c.l.b16 %v367
      %v655 = vunpack.c.h.b16 %v367
      %v656 = vunpack.c.l.b16 %v368
      %v657 = vunpack.c.h.b16 %v368
      %v658 = vunpack.c.l.b16 %v369
      %v659 = vunpack.c.h.b16 %v369
      %v660 = vunpack.c.l.b16 %v370
      %v661 = vunpack.c.h.b16 %v370
      %v662 = vunpack.c.l.b16 %v371
      %v663 = vunpack.c.h.b16 %v371
      %v664 = vunpack.c.l.b16 %v372
      %v665 = vunpack.c.h.b16 %v372
      %v666 = vunpack.c.l.b16 %v373
      %v667 = vunpack.c.h.b16 %v373
      %v668 = vunpack.c.l.b16 %v374
      %v669 = vunpack.c.h.b16 %v374
      %v670 = vunpack.c.l.b16 %v375
      %v671 = vunpack.c.h.b16 %v375
      %v672 = vunpack.c.l.b16 %v376
      %v673 = vunpack.c.h.b16 %v376
      %v674 = vunpack.c.l.b16 %v377
      %v675 = vunpack.c.h.b16 %v377
      %v676 = vunpack.c.l.b16 %v378
      %v677 = vunpack.c.h.b16 %v378
      %v678 = vunpack.c.l.b16 %v379
      %v679 = vunpack.c.h.b16 %v379
      %v680 = vunpack.c.l.b16 %v380
      %v681 = vunpack.c.h.b16 %v380
      %v682 = vunpack.c.l.b16 %v381
      %v683 = vunpack.c.h.b16 %v381
      %v684 = vunpack.c.l.b16 %v382
      %v685 = vunpack.c.h.b16 %v382
      %v686 = vunpack.c.l.b16 %v383
      %v687 = vunpack.c.h.b16 %v383
      %v688 = vunpack.c.l.b16 %v384
      %v689 = vunpack.c.h.b16 %v384
      %v690 = vunpack.c.l.b16 %v385
      %v691 = vunpack.c.h.b16 %v385
      %v692 = vunpack.c.l.b16 %v386
      %v693 = vunpack.c.h.b16 %v386
      %v694 = vunpack.c.l.b16 %v387
      %v695 = vunpack.c.h.b16 %v387
      %v696 = vunpack.c.l.b16 %v388
      %v697 = vunpack.c.h.b16 %v388
      %v698 = vunpack.c.l.b16 %v389
      %v699 = vunpack.c.h.b16 %v389
      %v700 = vunpack.c.l.b16 %v390
      %v701 = vunpack.c.h.b16 %v390
      %v702 = vunpack.c.l.b16 %v391
      %v703 = vunpack.c.h.b16 %v391
      %v704 = vunpack.c.l.b16 %v392
      %v705 = vunpack.c.h.b16 %v392
      %v706 = vunpack.c.l.b16 %v393
      %v707 = vunpack.c.h.b16 %v393
      %v708 = vunpack.c.l.b16 %v394
      %v709 = vunpack.c.h.b16 %v394
      %v710 = vunpack.c.l.b16 %v395
      %v711 = vunpack.c.h.b16 %v395
      %v712 = vunpack.c.l.b16 %v396
      %v713 = vunpack.c.h.b16 %v396
      %v714 = vunpack.c.l.b16 %v397
      %v715 = vunpack.c.h.b16 %v397
      %v716 = vunpack.c.l.b16 %v398
      %v717 = vunpack.c.h.b16 %v398
      %v718 = vunpack.c.l.b16 %v399
      %v719 = vunpack.c.h.b16 %v399
      %v720 = vpack.c.b16 %v600, %v592
      %v721 = vpack.c.b16 %v601, %v593
      %v722 = vpack.c.b16 %v602, %v594
      %v723 = vpack.c.b16 %v603, %v595
      %v724 = vpack.c.b16 %v604, %v596
      %v725 = vpack.c.b16 %v605, %v597
      %v726 = vpack.c.b16 %v606, %v598
      %v727 = vpack.c.b16 %v607, %v599
      %v728 = vpack.c.b16 %v616, %v608
      %v729 = vpack.c.b16 %v617, %v609
      %v730 = vpack.c.b16 %v618, %v610
      %v731 = vpack.c.b16 %v619, %v611
      %v732 = vpack.c.b16 %v620, %v612
      %v733 = vpack.c.b16 %v621, %v613
      %v734 = vpack.c.b16 %v622, %v614
      %v735 = vpack.c.b16 %v623, %v615
      %v736 = vpack.c.b16 %v632, %v624
      %v737 = vpack.c.b16 %v633, %v625
      %v738 = vpack.c.b16 %v634, %v626
      %v739 = vpack.c.b16 %v635, %v627
      %v740 = vpack.c.b16 %v636, %v628
      %v741 = vpack.c.b16 %v637, %v629
      %v742 = vpack.c.b16 %v638, %v630
      %v743 = vpack.c.b16 %v639, %v631
      %v744 = vpack.c.b16 %v648, %v640
      %v745 = vpack.c.b16 %v649, %v641
      %v746 = vpack.c.b16 %v650, %v642
      %v747 = vpack.c.b16 %v651, %v643
      %v748 = vpack.c.b16 %v652, %v644
      %v749 = vpack.c.b16 %v653, %v645
      %v750 = vpack.c.b16 %v654, %v646
      %v751 = vpack.c.b16 %v655, %v647
      %v752 = vpack.c.b16 %v664, %v656
      %v753 = vpack.c.b16 %v665, %v657
      %v754 = vpack.c.b16 %v666, %v658
      %v755 = vpack.c.b16 %v667, %v659
      %v756 = vpack.c.b16 %v668, %v660
      %v757 = vpack.c.b16 %v669, %v661
      %v758 = vpack.c.b16 %v670, %v662
      %v759 = vpack.c.b16 %v671, %v663
      %v760 = vpack.c.b16 %v680, %v672
      %v761 = vpack.c.b16 %v681, %v673
      %v762 = vpack.c.b16 %v682, %v674
      %v763 = vpack.c.b16 %v683, %v675
      %v764 = vpack.c.b16 %v684, %v676
      %v765 = vpack.c.b16 %v685, %v677
      %v766 = vpack.c.b16 %v686, %v678
      %v767 = vpack.c.b16 %v687, %v679
      %v768 = vpack.c.b16 %v696, %v688
      %v769 = vpack.c.b16 %v697, %v689
      %v770 = vpack.c.b16 %v698, %v690
      %v771 = vpack.c.b16 %v699, %v691
      %v772 = vpack.c.b16 %v700, %v692
      %v773 = vpack.c.b16 %v701, %v693
      %v774 = vpack.c.b16 %v702, %v694
      %v775 = vpack.c.b16 %v703, %v695
      %v776 = vpack.c.b16 %v712, %v704
      %v777 = vpack.c.b16 %v713, %v705
      %v778 = vpack.c.b16 %v714, %v706
      %v779 = vpack.c.b16 %v715, %v707
      %v780 = vpack.c.b16 %v716, %v708
      %v781 = vpack.c.b16 %v717, %v709
      %v782 = vpack.c.b16 %v718, %v710
      %v783 = vpack.c.b16 %v719, %v711
      %v976 = vunpack.c.l.b16 %v400
      %v977 = vunpack.c.l.b16 %v401
      %v978 = vunpack.c.l.b16 %v402
      %v979 = vunpack.c.l.b16 %v403
      %v980 = vunpack.c.l.b16 %v404
      %v981 = vunpack.c.l.b16 %v405
      %v982 = vunpack.c.l.b16 %v406
      %v983 = vunpack.c.l.b16 %v407
      %v984 = vunpack.c.l.b16 %v408
      %v985 = vunpack.c.l.b16 %v409
      %v986 = vunpack.c.l.b16 %v410
      %v987 = vunpack.c.l.b16 %v411
      %v988 = vunpack.c.l.b16 %v412
      %v989 = vunpack.c.l.b16 %v413
      %v990 = vunpack.c.l.b16 %v414
      %v991 = vunpack.c.l.b16 %v415
      %v992 = vunpack.c.l.b16 %v416
      %v993 = vunpack.c.l.b16 %v417
      %v994 = vunpack.c.l.b16 %v418
      %v995 = vunpack.c.l.b16 %v419
      %v996 = vunpack.c.l.b16 %v420
      %v997 = vunpack.c.l.b16 %v421
      %v998 = vunpack.c.l.b16 %v422
      %v999 = vunpack.c.l.b16 %v423
      %v1000 = vunpack.c.l.b16 %v424
      %v1001 = vunpack.c.l.b16 %v425
      %v1002 = vunpack.c.l.b16 %v426
      %v1003 = vunpack.c.l.b16 %v427
      %v1004 = vunpack.c.l.b16 %v428
      %v1005 = vunpack.c.l.b16 %v429
      %v1006 = vunpack.c.l.b16 %v430
      %v1007 = vunpack.c.l.b16 %v431
      %v1008 = vunpack.c.l.b16 %v432
      %v1009 = vunpack.c.l.b16 %v433
      %v1010 = vunpack.c.l.b16 %v434
      %v1011 = vunpack.c.l.b16 %v435
      %v1012 = vunpack.c.l.b16 %v436
      %v1013 = vunpack.c.l.b16 %v437
      %v1014 = vunpack.c.l.b16 %v438
      %v1015 = vunpack.c.l.b16 %v439
      %v1016 = vunpack.c.l.b16 %v440
      %v1017 = vunpack.c.l.b16 %v441
      %v1018 = vunpack.c.l.b16 %v442
      %v1019 = vunpack.c.l.b16 %v443
      %v1020 = vunpack.c.l.b16 %v444
      %v1021 = vunpack.c.l.b16 %v445
      %v1022 = vunpack.c.l.b16 %v446
      %v1023 = vunpack.c.l.b16 %v447
      %v1024 = vunpack.c.l.b16 %v448
      %v1025 = vunpack.c.l.b16 %v449
      %v1026 = vunpack.c.l.b16 %v450
      %v1027 = vunpack.c.l.b16 %v451
      %v1028 = vunpack.c.l.b16 %v452
      %v1029 = vunpack.c.l.b16 %v453
      %v1030 = vunpack.c.l.b16 %v454
      %v1031 = vunpack.c.l.b16 %v455
      %v1032 = vunpack.c.l.b16 %v456
      %v1033 = vunpack.c.l.b16 %v457
      %v1034 = vunpack.c.l.b16 %v458
      %v1035 = vunpack.c.l.b16 %v459
      %v1036 = vunpack.c.l.b16 %v460
      %v1037 = vunpack.c.l.b16 %v461
      %v1038 = vunpack.c.l.b16 %v462
      %v1039 = vunpack.c.l.b16 %v463
      %v1040 = vunpack.c.l.b16 %v464
      %v1041 = vunpack.c.l.b16 %v465
      %v1042 = vunpack.c.l.b16 %v466
      %v1043 = vunpack.c.l.b16 %v467
      %v1044 = vunpack.c.l.b16 %v468
      %v1045 = vunpack.c.l.b16 %v469
      %v1046 = vunpack.c.l.b16 %v470
      %v1047 = vunpack.c.l.b16 %v471
      %v1048 = vunpack.c.l.b16 %v472
      %v1049 = vunpack.c.l.b16 %v473
      %v1050 = vunpack.c.l.b16 %v474
      %v1051 = vunpack.c.l.b16 %v475
      %v1052 = vunpack.c.l.b16 %v476
      %v1053 = vunpack.c.l.b16 %v477
      %v1054 = vunpack.c.l.b16 %v478
      %v1055 = vunpack.c.l.b16 %v479
      %v1056 = vunpack.c.l.b16 %v480
      %v1057 = vunpack.c.l.b16 %v481
      %v1058 = vunpack.c.l.b16 %v482
      %v1059 = vunpack.c.l.b16 %v483
      %v1060 = vunpack.c.l.b16 %v484
      %v1061 = vunpack.c.l.b16 %v485
      %v1062 = vunpack.c.l.b16 %v486
      %v1063 = vunpack.c.l.b16 %v487
      %v1064 = vunpack.c.l.b16 %v488
      %v1065 = vunpack.c.l.b16 %v489
      %v1066 = vunpack.c.l.b16 %v490
      %v1067 = vunpack.c.l.b16 %v491
      %v1068 = vunpack.c.l.b16 %v492
      %v1069 = vunpack.c.l.b16 %v493
      %v1070 = vunpack.c.l.b16 %v494
      %v1071 = vunpack.c.l.b16 %v495
      %v1072 = vunpack.c.l.b16 %v496
      %v1073 = vunpack.c.l.b16 %v497
      %v1074 = vunpack.c.l.b16 %v498
      %v1075 = vunpack.c.l.b16 %v499
      %v1076 = vunpack.c.l.b16 %v500
      %v1077 = vunpack.c.l.b16 %v501
      %v1078 = vunpack.c.l.b16 %v502
      %v1079 = vunpack.c.l.b16 %v503
      %v1080 = vunpack.c.l.b16 %v504
      %v1081 = vunpack.c.l.b16 %v505
      %v1082 = vunpack.c.l.b16 %v506
      %v1083 = vunpack.c.l.b16 %v507
      %v1084 = vunpack.c.l.b16 %v508
      %v1085 = vunpack.c.l.b16 %v509
      %v1086 = vunpack.c.l.b16 %v510
      %v1087 = vunpack.c.l.b16 %v511
      %v1088 = vunpack.c.l.b16 %v512
      %v1089 = vunpack.c.l.b16 %v513
      %v1090 = vunpack.c.l.b16 %v514
      %v1091 = vunpack.c.l.b16 %v515
      %v1092 = vunpack.c.l.b16 %v516
      %v1093 = vunpack.c.l.b16 %v517
      %v1094 = vunpack.c.l.b16 %v518
      %v1095 = vunpack.c.l.b16 %v519
      %v1096 = vunpack.c.l.b16 %v520
      %v1097 = vunpack.c.l.b16 %v521
      %v1098 = vunpack.c.l.b16 %v522
      %v1099 = vunpack.c.l.b16 %v523
      %v1100 = vunpack.c.l.b16 %v524
      %v1101 = vunpack.c.l.b16 %v525
      %v1102 = vunpack.c.l.b16 %v526
      %v1103 = vunpack.c.l.b16 %v527
      %v1104 = vpack.c.b16 %v977, %v976
      %v1105 = vpack.c.b16 %v979, %v978
      %v1106 = vpack.c.b16 %v981, %v980
      %v1107 = vpack.c.b16 %v983, %v982
      %v1108 = vpack.c.b16 %v985, %v984
      %v1109 = vpack.c.b16 %v987, %v986
      %v1110 = vpack.c.b16 %v989, %v988
      %v1111 = vpack.c.b16 %v991, %v990
      %v1112 = vpack.c.b16 %v993, %v992
      %v1113 = vpack.c.b16 %v995, %v994
      %v1114 = vpack.c.b16 %v997, %v996
      %v1115 = vpack.c.b16 %v999, %v998
      %v1116 = vpack.c.b16 %v1001, %v1000
      %v1117 = vpack.c.b16 %v1003, %v1002
      %v1118 = vpack.c.b16 %v1005, %v1004
      %v1119 = vpack.c.b16 %v1007, %v1006
      %v1120 = vpack.c.b16 %v1009, %v1008
      %v1121 = vpack.c.b16 %v1011, %v1010
      %v1122 = vpack.c.b16 %v1013, %v1012
      %v1123 = vpack.c.b16 %v1015, %v1014
      %v1124 = vpack.c.b16 %v1017, %v1016
      %v1125 = vpack.c.b16 %v1019, %v1018
      %v1126 = vpack.c.b16 %v1021, %v1020
      %v1127 = vpack.c.b16 %v1023, %v1022
      %v1128 = vpack.c.b16 %v1025, %v1024
      %v1129 = vpack.c.b16 %v1027, %v1026
      %v1130 = vpack.c.b16 %v1029, %v1028
      %v1131 = vpack.c.b16 %v1031, %v1030
      %v1132 = vpack.c.b16 %v1033, %v1032
      %v1133 = vpack.c.b16 %v1035, %v1034
      %v1134 = vpack.c.b16 %v1037, %v1036
      %v1135 = vpack.c.b16 %v1039, %v1038
      %v1136 = vpack.c.b16 %v1041, %v1040
      %v1137 = vpack.c.b16 %v1043, %v1042
      %v1138 = vpack.c.b16 %v1045, %v1044
      %v1139 = vpack.c.b16 %v1047, %v1046
      %v1140 = vpack.c.b16 %v1049, %v1048
      %v1141 = vpack.c.b16 %v1051, %v1050
      %v1142 = vpack.c.b16 %v1053, %v1052
      %v1143 = vpack.c.b16 %v1055, %v1054
      %v1144 = vpack.c.b16 %v1057, %v1056
      %v1145 = vpack.c.b16 %v1059, %v1058
      %v1146 = vpack.c.b16 %v1061, %v1060
      %v1147 = vpack.c.b16 %v1063, %v1062
      %v1148 = vpack.c.b16 %v1065, %v1064
      %v1149 = vpack.c.b16 %v1067, %v1066
      %v1150 = vpack.c.b16 %v1069, %v1068
      %v1151 = vpack.c.b16 %v1071, %v1070
      %v1152 = vpack.c.b16 %v1073, %v1072
      %v1153 = vpack.c.b16 %v1075, %v1074
      %v1154 = vpack.c.b16 %v1077, %v1076
      %v1155 = vpack.c.b16 %v1079, %v1078
      %v1156 = vpack.c.b16 %v1081, %v1080
      %v1157 = vpack.c.b16 %v1083, %v1082
      %v1158 = vpack.c.b16 %v1085, %v1084
      %v1159 = vpack.c.b16 %v1087, %v1086
      %v1160 = vpack.c.b16 %v1089, %v1088
      %v1161 = vpack.c.b16 %v1091, %v1090
      %v1162 = vpack.c.b16 %v1093, %v1092
      %v1163 = vpack.c.b16 %v1095, %v1094
      %v1164 = vpack.c.b16 %v1097, %v1096
      %v1165 = vpack.c.b16 %v1099, %v1098
      %v1166 = vpack.c.b16 %v1101, %v1100
      %v1167 = vpack.c.b16 %v1103, %v1102
      %1232 = vmatprep.subr.bf16.mxu0 0
      %1233 = vmatpush1.bf16.msra.mxu0 %v1104
      %1234 = vmatprep.subr.bf16.mxu0 0
      %1235 = vmatpush1.bf16.msra.mxu0 %v1105
      %1236 = vmatprep.subr.bf16.mxu0 0
      %1237 = vmatpush1.bf16.msra.mxu0 %v1106
      %1238 = vmatprep.subr.bf16.mxu0 0
      %1239 = vmatpush1.bf16.msra.mxu0 %v1107
      %1240 = vmatprep.subr.bf16.mxu0 0
      %1241 = vmatpush1.bf16.msra.mxu0 %v1108
      %1242 = vmatprep.subr.bf16.mxu0 0
      %1243 = vmatpush1.bf16.msra.mxu0 %v1109
      %1244 = vmatprep.subr.bf16.mxu0 0
      %1245 = vmatpush1.bf16.msra.mxu0 %v1110
      %1246 = vmatprep.subr.bf16.mxu0 0
      %1247 = vmatpush1.bf16.msra.mxu0 %v1111
      %1248 = vmatprep.subr.bf16.mxu0 0
      %1249 = vmatpush1.bf16.msra.mxu0 %v1112
      %1250 = vmatprep.subr.bf16.mxu0 0
      %1251 = vmatpush1.bf16.msra.mxu0 %v1113
      %1252 = vmatprep.subr.bf16.mxu0 0
      %1253 = vmatpush1.bf16.msra.mxu0 %v1114
      %1254 = vmatprep.subr.bf16.mxu0 0
      %1255 = vmatpush1.bf16.msra.mxu0 %v1115
      %1256 = vmatprep.subr.bf16.mxu0 0
      %1257 = vmatpush1.bf16.msra.mxu0 %v1116
      %1258 = vmatprep.subr.bf16.mxu0 0
      %1259 = vmatpush1.bf16.msra.mxu0 %v1117
      %1260 = vmatprep.subr.bf16.mxu0 0
      %1261 = vmatpush1.bf16.msra.mxu0 %v1118
      %1262 = vmatprep.subr.bf16.mxu0 0
      %1263 = vmatpush1.bf16.msra.mxu0 %v1119
      %1264 = vmatprep.mubr.bf16.mxu0 %v721
      %1265 = vmatmul.mubr.bf16.gmra.mrb[0].mxu0 %v720
      %v1266 = vpop.f32.mrb[0].mxu0
      %v1267 = vadd.f32 0.0, %v1266
      %v1268 = vpop.f32.mrb[0].mxu0
      %v1269 = vpop.f32.mrb[0].mxu0
      %v1270 = vadd.f32 0.0, %v1269
      %v1271 = vpop.f32.mrb[0].mxu0
      %1272 = vmatprep.mubr.bf16.mxu0 %v729
      %1273 = vmatmul.mubr.bf16.gmra.mrb[0].mxu0 %v728
      %v1274 = vpop.f32.mrb[0].mxu0
      %v1275 = vadd.f32 0.0, %v1274
      %v1276 = vpop.f32.mrb[0].mxu0
      %v1277 = vpop.f32.mrb[0].mxu0
      %v1278 = vadd.f32 0.0, %v1277
      %v1279 = vpop.f32.mrb[0].mxu0
      %1280 = vmatprep.mubr.bf16.mxu0 %v737
      %1281 = vmatmul.mubr.bf16.gmra.mrb[0].mxu0 %v736
      %v1282 = vpop.f32.mrb[0].mxu0
      %v1283 = vadd.f32 0.0, %v1282
      %v1284 = vpop.f32.mrb[0].mxu0
      %v1285 = vpop.f32.mrb[0].mxu0
      %v1286 = vadd.f32 0.0, %v1285
      %v1287 = vpop.f32.mrb[0].mxu0
      %1288 = vmatprep.mubr.bf16.mxu0 %v745
      %1289 = vmatmul.mubr.bf16.gmra.mrb[0].mxu0 %v744
      %v1290 = vpop.f32.mrb[0].mxu0
      %v1291 = vadd.f32 0.0, %v1290
      %v1292 = vpop.f32.mrb[0].mxu0
      %v1293 = vpop.f32.mrb[0].mxu0
      %v1294 = vadd.f32 0.0, %v1293
      %v1295 = vpop.f32.mrb[0].mxu0
      %1296 = vmatprep.mubr.bf16.mxu0 %v753
      %1297 = vmatmul.mubr.bf16.gmra.mrb[0].mxu0 %v752
      %v1298 = vpop.f32.mrb[0].mxu0
      %v1299 = vadd.f32 0.0, %v1298
      %v1300 = vpop.f32.mrb[0].mxu0
      %v1301 = vpop.f32.mrb[0].mxu0
      %v1302 = vadd.f32 0.0, %v1301
      %v1303 = vpop.f32.mrb[0].mxu0
      %1304 = vmatprep.mubr.bf16.mxu0 %v761
      %1305 = vmatmul.mubr.bf16.gmra.mrb[0].mxu0 %v760
      %v1306 = vpop.f32.mrb[0].mxu0
      %v1307 = vadd.f32 0.0, %v1306
      %v1308 = vpop.f32.mrb[0].mxu0
      %v1309 = vpop.f32.mrb[0].mxu0
      %v1310 = vadd.f32 0.0, %v1309
      %v1311 = vpop.f32.mrb[0].mxu0
      %1312 = vmatprep.mubr.bf16.mxu0 %v769
      %1313 = vmatmul.mubr.bf16.gmra.mrb[0].mxu0 %v768
      %v1314 = vpop.f32.mrb[0].mxu0
      %v1315 = vadd.f32 0.0, %v1314
      %v1316 = vpop.f32.mrb[0].mxu0
      %v1317 = vpop.f32.mrb[0].mxu0
      %v1318 = vadd.f32 0.0, %v1317
      %v1319 = vpop.f32.mrb[0].mxu0
      %1320 = vmatprep.mubr.bf16.mxu0 %v777
      %1321 = vmatmul.mubr.bf16.gmra.mrb[0].mxu0 %v776
      %v1322 = vpop.f32.mrb[0].mxu0
      %v1323 = vadd.f32 0.0, %v1322
      %v1324 = vpop.f32.mrb[0].mxu0
      %v1325 = vpop.f32.mrb[0].mxu0
      %v1326 = vadd.f32 0.0, %v1325
      %v1327 = vpop.f32.mrb[0].mxu0
      %1328 = vdwg.mxu0
      %1329 = vmatprep.subr.bf16.mxu0 0
      %1330 = vmatpush1.bf16.msra.mxu0 %v1120
      %1331 = vmatprep.subr.bf16.mxu0 0
      %1332 = vmatpush1.bf16.msra.mxu0 %v1121
      %1333 = vmatprep.subr.bf16.mxu0 0
      %1334 = vmatpush1.bf16.msra.mxu0 %v1122
      %1335 = vmatprep.subr.bf16.mxu0 0
      %1336 = vmatpush1.bf16.msra.mxu0 %v1123
      %1337 = vmatprep.subr.bf16.mxu0 0
      %1338 = vmatpush1.bf16.msra.mxu0 %v1124
      %1339 = vmatprep.subr.bf16.mxu0 0
      %1340 = vmatpush1.bf16.msra.mxu0 %v1125
      %1341 = vmatprep.subr.bf16.mxu0 0
      %1342 = vmatpush1.bf16.msra.mxu0 %v1126
      %1343 = vmatprep.subr.bf16.mxu0 0
      %1344 = vmatpush1.bf16.msra.mxu0 %v1127
      %1345 = vmatprep.subr.bf16.mxu0 0
      %1346 = vmatpush1.bf16.msra.mxu0 %v1128
      %1347 = vmatprep.subr.bf16.mxu0 0
      %1348 = vmatpush1.bf16.msra.mxu0 %v1129
      %1349 = vmatprep.subr.bf16.mxu0 0
      %1350 = vmatpush1.bf16.msra.mxu0 %v1130
      %1351 = vmatprep.subr.bf16.mxu0 0
      %1352 = vmatpush1.bf16.msra.mxu0 %v1131
      %1353 = vmatprep.subr.bf16.mxu0 0
      %1354 = vmatpush1.bf16.msra.mxu0 %v1132
      %1355 = vmatprep.subr.bf16.mxu0 0
      %1356 = vmatpush1.bf16.msra.mxu0 %v1133
      %1357 = vmatprep.subr.bf16.mxu0 0
      %1358 = vmatpush1.bf16.msra.mxu0 %v1134
      %1359 = vmatprep.subr.bf16.mxu0 0
      %1360 = vmatpush1.bf16.msra.mxu0 %v1135
      %1361 = vmatprep.mubr.bf16.mxu0 %v723
      %1362 = vmatmul.mubr.bf16.gmra.mrb[0].mxu0 %v722
      %v1363 = vpop.f32.mrb[0].mxu0
      %v1364 = vadd.f32 %v1267, %v1363
      %v1365 = vpop.f32.mrb[0].mxu0
      %v1366 = vpop.f32.mrb[0].mxu0
      %v1367 = vadd.f32 %v1270, %v1366
      %v1368 = vpop.f32.mrb[0].mxu0
      %1369 = vmatprep.mubr.bf16.mxu0 %v731
      %1370 = vmatmul.mubr.bf16.gmra.mrb[0].mxu0 %v730
      %v1371 = vpop.f32.mrb[0].mxu0
      %v1372 = vadd.f32 %v1275, %v1371
      %v1373 = vpop.f32.mrb[0].mxu0
      %v1374 = vpop.f32.mrb[0].mxu0
      %v1375 = vadd.f32 %v1278, %v1374
      %v1376 = vpop.f32.mrb[0].mxu0
      %1377 = vmatprep.mubr.bf16.mxu0 %v739
      %1378 = vmatmul.mubr.bf16.gmra.mrb[0].mxu0 %v738
      %v1379 = vpop.f32.mrb[0].mxu0
      %v1380 = vadd.f32 %v1283, %v1379
      %v1381 = vpop.f32.mrb[0].mxu0
      %v1382 = vpop.f32.mrb[0].mxu0
      %v1383 = vadd.f32 %v1286, %v1382
      %v1384 = vpop.f32.mrb[0].mxu0
      %1385 = vmatprep.mubr.bf16.mxu0 %v747
      %1386 = vmatmul.mubr.bf16.gmra.mrb[0].mxu0 %v746
      %v1387 = vpop.f32.mrb[0].mxu0
      %v1388 = vadd.f32 %v1291, %v1387
      %v1389 = vpop.f32.mrb[0].mxu0
      %v1390 = vpop.f32.mrb[0].mxu0
      %v1391 = vadd.f32 %v1294, %v1390
      %v1392 = vpop.f32.mrb[0].mxu0
      %1393 = vmatprep.mubr.bf16.mxu0 %v755
      %1394 = vmatmul.mubr.bf16.gmra.mrb[0].mxu0 %v754
      %v1395 = vpop.f32.mrb[0].mxu0
      %v1396 = vadd.f32 %v1299, %v1395
      %v1397 = vpop.f32.mrb[0].mxu0
      %v1398 = vpop.f32.mrb[0].mxu0
      %v1399 = vadd.f32 %v1302, %v1398
      %v1400 = vpop.f32.mrb[0].mxu0
      %1401 = vmatprep.mubr.bf16.mxu0 %v763
      %1402 = vmatmul.mubr.bf16.gmra.mrb[0].mxu0 %v762
      %v1403 = vpop.f32.mrb[0].mxu0
      %v1404 = vadd.f32 %v1307, %v1403
      %v1405 = vpop.f32.mrb[0].mxu0
      %v1406 = vpop.f32.mrb[0].mxu0
      %v1407 = vadd.f32 %v1310, %v1406
      %v1408 = vpop.f32.mrb[0].mxu0
      %1409 = vmatprep.mubr.bf16.mxu0 %v771
      %1410 = vmatmul.mubr.bf16.gmra.mrb[0].mxu0 %v770
      %v1411 = vpop.f32.mrb[0].mxu0
      %v1412 = vadd.f32 %v1315, %v1411
      %v1413 = vpop.f32.mrb[0].mxu0
      %v1414 = vpop.f32.mrb[0].mxu0
      %v1415 = vadd.f32 %v1318, %v1414
      %v1416 = vpop.f32.mrb[0].mxu0
      %1417 = vmatprep.mubr.bf16.mxu0 %v779
      %1418 = vmatmul.mubr.bf16.gmra.mrb[0].mxu0 %v778
      %v1419 = vpop.f32.mrb[0].mxu0
      %v1420 = vadd.f32 %v1323, %v1419
      %v1421 = vpop.f32.mrb[0].mxu0
      %v1422 = vpop.f32.mrb[0].mxu0
      %v1423 = vadd.f32 %v1326, %v1422
      %v1424 = vpop.f32.mrb[0].mxu0
      %1425 = vdwg.mxu0
      %1426 = vmatprep.subr.bf16.mxu0 0
      %1427 = vmatpush1.bf16.msra.mxu0 %v1136
      %1428 = vmatprep.subr.bf16.mxu0 0
      %1429 = vmatpush1.bf16.msra.mxu0 %v1137
      %1430 = vmatprep.subr.bf16.mxu0 0
      %1431 = vmatpush1.bf16.msra.mxu0 %v1138
      %1432 = vmatprep.subr.bf16.mxu0 0
      %1433 = vmatpush1.bf16.msra.mxu0 %v1139
      %1434 = vmatprep.subr.bf16.mxu0 0
      %1435 = vmatpush1.bf16.msra.mxu0 %v1140
      %1436 = vmatprep.subr.bf16.mxu0 0
      %1437 = vmatpush1.bf16.msra.mxu0 %v1141
      %1438 = vmatprep.subr.bf16.mxu0 0
      %1439 = vmatpush1.bf16.msra.mxu0 %v1142
      %1440 = vmatprep.subr.bf16.mxu0 0
      %1441 = vmatpush1.bf16.msra.mxu0 %v1143
      %1442 = vmatprep.subr.bf16.mxu0 0
      %1443 = vmatpush1.bf16.msra.mxu0 %v1144
      %1444 = vmatprep.subr.bf16.mxu0 0
      %1445 = vmatpush1.bf16.msra.mxu0 %v1145
      %1446 = vmatprep.subr.bf16.mxu0 0
      %1447 = vmatpush1.bf16.msra.mxu0 %v1146
      %1448 = vmatprep.subr.bf16.mxu0 0
      %1449 = vmatpush1.bf16.msra.mxu0 %v1147
      %1450 = vmatprep.subr.bf16.mxu0 0
      %1451 = vmatpush1.bf16.msra.mxu0 %v1148
      %1452 = vmatprep.subr.bf16.mxu0 0
      %1453 = vmatpush1.bf16.msra.mxu0 %v1149
      %1454 = vmatprep.subr.bf16.mxu0 0
      %1455 = vmatpush1.bf16.msra.mxu0 %v1150
      %1456 = vmatprep.subr.bf16.mxu0 0
      %1457 = vmatpush1.bf16.msra.mxu0 %v1151
      %1458 = vmatprep.mubr.bf16.mxu0 %v725
      %1459 = vmatmul.mubr.bf16.gmra.mrb[0].mxu0 %v724
      %v1460 = vpop.f32.mrb[0].mxu0
      %v1461 = vadd.f32 %v1364, %v1460
      %v1462 = vpop.f32.mrb[0].mxu0
      %v1463 = vpop.f32.mrb[0].mxu0
      %v1464 = vadd.f32 %v1367, %v1463
      %v1465 = vpop.f32.mrb[0].mxu0
      %1466 = vmatprep.mubr.bf16.mxu0 %v733
      %1467 = vmatmul.mubr.bf16.gmra.mrb[0].mxu0 %v732
      %v1468 = vpop.f32.mrb[0].mxu0
      %v1469 = vadd.f32 %v1372, %v1468
      %v1470 = vpop.f32.mrb[0].mxu0
      %v1471 = vpop.f32.mrb[0].mxu0
      %v1472 = vadd.f32 %v1375, %v1471
      %v1473 = vpop.f32.mrb[0].mxu0
      %1474 = vmatprep.mubr.bf16.mxu0 %v741
      %1475 = vmatmul.mubr.bf16.gmra.mrb[0].mxu0 %v740
      %v1476 = vpop.f32.mrb[0].mxu0
      %v1477 = vadd.f32 %v1380, %v1476
      %v1478 = vpop.f32.mrb[0].mxu0
      %v1479 = vpop.f32.mrb[0].mxu0
      %v1480 = vadd.f32 %v1383, %v1479
      %v1481 = vpop.f32.mrb[0].mxu0
      %1482 = vmatprep.mubr.bf16.mxu0 %v749
      %1483 = vmatmul.mubr.bf16.gmra.mrb[0].mxu0 %v748
      %v1484 = vpop.f32.mrb[0].mxu0
      %v1485 = vadd.f32 %v1388, %v1484
      %v1486 = vpop.f32.mrb[0].mxu0
      %v1487 = vpop.f32.mrb[0].mxu0
      %v1488 = vadd.f32 %v1391, %v1487
      %v1489 = vpop.f32.mrb[0].mxu0
      %1490 = vmatprep.mubr.bf16.mxu0 %v757
      %1491 = vmatmul.mubr.bf16.gmra.mrb[0].mxu0 %v756
      %v1492 = vpop.f32.mrb[0].mxu0
      %v1493 = vadd.f32 %v1396, %v1492
      %v1494 = vpop.f32.mrb[0].mxu0
      %v1495 = vpop.f32.mrb[0].mxu0
      %v1496 = vadd.f32 %v1399, %v1495
      %v1497 = vpop.f32.mrb[0].mxu0
      %1498 = vmatprep.mubr.bf16.mxu0 %v765
      %1499 = vmatmul.mubr.bf16.gmra.mrb[0].mxu0 %v764
      %v1500 = vpop.f32.mrb[0].mxu0
      %v1501 = vadd.f32 %v1404, %v1500
      %v1502 = vpop.f32.mrb[0].mxu0
      %v1503 = vpop.f32.mrb[0].mxu0
      %v1504 = vadd.f32 %v1407, %v1503
      %v1505 = vpop.f32.mrb[0].mxu0
      %1506 = vmatprep.mubr.bf16.mxu0 %v773
      %1507 = vmatmul.mubr.bf16.gmra.mrb[0].mxu0 %v772
      %v1508 = vpop.f32.mrb[0].mxu0
      %v1509 = vadd.f32 %v1412, %v1508
      %v1510 = vpop.f32.mrb[0].mxu0
      %v1511 = vpop.f32.mrb[0].mxu0
      %v1512 = vadd.f32 %v1415, %v1511
      %v1513 = vpop.f32.mrb[0].mxu0
      %1514 = vmatprep.mubr.bf16.mxu0 %v781
      %1515 = vmatmul.mubr.bf16.gmra.mrb[0].mxu0 %v780
      %v1516 = vpop.f32.mrb[0].mxu0
      %v1517 = vadd.f32 %v1420, %v1516
      %v1518 = vpop.f32.mrb[0].mxu0
      %v1519 = vpop.f32.mrb[0].mxu0
      %v1520 = vadd.f32 %v1423, %v1519
      %v1521 = vpop.f32.mrb[0].mxu0
      %1522 = vdwg.mxu0
      %1523 = vmatprep.subr.bf16.mxu0 0
      %1524 = vmatpush1.bf16.msra.mxu0 %v1152
      %1525 = vmatprep.subr.bf16.mxu0 0
      %1526 = vmatpush1.bf16.msra.mxu0 %v1153
      %1527 = vmatprep.subr.bf16.mxu0 0
      %1528 = vmatpush1.bf16.msra.mxu0 %v1154
      %1529 = vmatprep.subr.bf16.mxu0 0
      %1530 = vmatpush1.bf16.msra.mxu0 %v1155
      %1531 = vmatprep.subr.bf16.mxu0 0
      %1532 = vmatpush1.bf16.msra.mxu0 %v1156
      %1533 = vmatprep.subr.bf16.mxu0 0
      %1534 = vmatpush1.bf16.msra.mxu0 %v1157
      %1535 = vmatprep.subr.bf16.mxu0 0
      %1536 = vmatpush1.bf16.msra.mxu0 %v1158
      %1537 = vmatprep.subr.bf16.mxu0 0
      %1538 = vmatpush1.bf16.msra.mxu0 %v1159
      %1539 = vmatprep.subr.bf16.mxu0 0
      %1540 = vmatpush1.bf16.msra.mxu0 %v1160
      %1541 = vmatprep.subr.bf16.mxu0 0
      %1542 = vmatpush1.bf16.msra.mxu0 %v1161
      %1543 = vmatprep.subr.bf16.mxu0 0
      %1544 = vmatpush1.bf16.msra.mxu0 %v1162
      %1545 = vmatprep.subr.bf16.mxu0 0
      %1546 = vmatpush1.bf16.msra.mxu0 %v1163
      %1547 = vmatprep.subr.bf16.mxu0 0
      %1548 = vmatpush1.bf16.msra.mxu0 %v1164
      %1549 = vmatprep.subr.bf16.mxu0 0
      %1550 = vmatpush1.bf16.msra.mxu0 %v1165
      %1551 = vmatprep.subr.bf16.mxu0 0
      %1552 = vmatpush1.bf16.msra.mxu0 %v1166
      %1553 = vmatprep.subr.bf16.mxu0 0
      %1554 = vmatpush1.bf16.msra.mxu0 %v1167
      %1555 = vmatprep.mubr.bf16.mxu0 %v727
      %1556 = vmatmul.mubr.bf16.gmra.mrb[0].mxu0 %v726
      %v1557 = vpop.f32.mrb[0].mxu0
      %v1558 = vadd.f32 %v1461, %v1557
      %v1559 = vpop.f32.mrb[0].mxu0
      %v1560 = vpop.f32.mrb[0].mxu0
      %v1561 = vadd.f32 %v1464, %v1560
      %v1562 = vpop.f32.mrb[0].mxu0
      %1563 = vmatprep.mubr.bf16.mxu0 %v735
      %1564 = vmatmul.mubr.bf16.gmra.mrb[0].mxu0 %v734
      %v1565 = vpop.f32.mrb[0].mxu0
      %v1566 = vadd.f32 %v1469, %v1565
      %v1567 = vpop.f32.mrb[0].mxu0
      %v1568 = vpop.f32.mrb[0].mxu0
      %v1569 = vadd.f32 %v1472, %v1568
      %v1570 = vpop.f32.mrb[0].mxu0
      %1571 = vmatprep.mubr.bf16.mxu0 %v743
      %1572 = vmatmul.mubr.bf16.gmra.mrb[0].mxu0 %v742
      %v1573 = vpop.f32.mrb[0].mxu0
      %v1574 = vadd.f32 %v1477, %v1573
      %v1575 = vpop.f32.mrb[0].mxu0
      %v1576 = vpop.f32.mrb[0].mxu0
      %v1577 = vadd.f32 %v1480, %v1576
      %v1578 = vpop.f32.mrb[0].mxu0
      %1579 = vmatprep.mubr.bf16.mxu0 %v751
      %1580 = vmatmul.mubr.bf16.gmra.mrb[0].mxu0 %v750
      %v1581 = vpop.f32.mrb[0].mxu0
      %v1582 = vadd.f32 %v1485, %v1581
      %v1583 = vpop.f32.mrb[0].mxu0
      %v1584 = vpop.f32.mrb[0].mxu0
      %v1585 = vadd.f32 %v1488, %v1584
      %v1586 = vpop.f32.mrb[0].mxu0
      %1587 = vmatprep.mubr.bf16.mxu0 %v759
      %1588 = vmatmul.mubr.bf16.gmra.mrb[0].mxu0 %v758
      %v1589 = vpop.f32.mrb[0].mxu0
      %v1590 = vadd.f32 %v1493, %v1589
      %v1591 = vpop.f32.mrb[0].mxu0
      %v1592 = vpop.f32.mrb[0].mxu0
      %v1593 = vadd.f32 %v1496, %v1592
      %v1594 = vpop.f32.mrb[0].mxu0
      %1595 = vmatprep.mubr.bf16.mxu0 %v767
      %1596 = vmatmul.mubr.bf16.gmra.mrb[0].mxu0 %v766
      %v1597 = vpop.f32.mrb[0].mxu0
      %v1598 = vadd.f32 %v1501, %v1597
      %v1599 = vpop.f32.mrb[0].mxu0
      %v1600 = vpop.f32.mrb[0].mxu0
      %v1601 = vadd.f32 %v1504, %v1600
      %v1602 = vpop.f32.mrb[0].mxu0
      %1603 = vmatprep.mubr.bf16.mxu0 %v775
      %1604 = vmatmul.mubr.bf16.gmra.mrb[0].mxu0 %v774
      %v1605 = vpop.f32.mrb[0].mxu0
      %v1606 = vadd.f32 %v1509, %v1605
      %v1607 = vpop.f32.mrb[0].mxu0
      %v1608 = vpop.f32.mrb[0].mxu0
      %v1609 = vadd.f32 %v1512, %v1608
      %v1610 = vpop.f32.mrb[0].mxu0
      %1611 = vmatprep.mubr.bf16.mxu0 %v783
      %1612 = vmatmul.mubr.bf16.gmra.mrb[0].mxu0 %v782
      %v1613 = vpop.f32.mrb[0].mxu0
      %v1614 = vadd.f32 %v1517, %v1613
      %v1615 = vpop.f32.mrb[0].mxu0
      %v1616 = vpop.f32.mrb[0].mxu0
      %v1617 = vadd.f32 %v1520, %v1616
      %v1618 = vpop.f32.mrb[0].mxu0
      %1619 = vdwg.mxu0
      %1620 = vst [vmem:[%s315] sm:$0xff] %v1558
      %1621 = vst [vmem:[%s315 + $0x8] sm:$0xff] %v1561
      %1622 = vst [vmem:[%s315 + $0x10] sm:$0xff] %v1566
      %1623 = vst [vmem:[%s315 + $0x18] sm:$0xff] %v1569
      %1624 = vst [vmem:[%s315 + $0x20] sm:$0xff] %v1574
      %1625 = vst [vmem:[%s315 + $0x28] sm:$0xff] %v1577
      %1626 = vst [vmem:[%s315 + $0x30] sm:$0xff] %v1582
      %1627 = vst [vmem:[%s315 + $0x38] sm:$0xff] %v1585
      %1628 = vst [vmem:[%s315 + $0x40] sm:$0xff] %v1590
      %1629 = vst [vmem:[%s315 + $0x48] sm:$0xff] %v1593
      %1630 = vst [vmem:[%s315 + $0x50] sm:$0xff] %v1598
      %1631 = vst [vmem:[%s315 + $0x58] sm:$0xff] %v1601
      %1632 = vst [vmem:[%s315 + $0x60] sm:$0xff] %v1606
      %1633 = vst [vmem:[%s315 + $0x68] sm:$0xff] %v1609
      %1634 = vst [vmem:[%s315 + $0x70] sm:$0xff] %v1614
      %1635 = vst [vmem:[%s315 + $0x78] sm:$0xff] %v1617
      %v1636 = vld [vmem:[%s315] sm:$0xff]
      %v1637 = vld [vmem:[%s315 + $0x8] sm:$0xff]
      %v1638 = vld [vmem:[%s315 + $0x10] sm:$0xff]
      %v1639 = vld [vmem:[%s315 + $0x18] sm:$0xff]
      %v1640 = vld [vmem:[%s315 + $0x20] sm:$0xff]
      %v1641 = vld [vmem:[%s315 + $0x28] sm:$0xff]
      %v1642 = vld [vmem:[%s315 + $0x30] sm:$0xff]
      %v1643 = vld [vmem:[%s315 + $0x38] sm:$0xff]
      %v1644 = vld [vmem:[%s315 + $0x40] sm:$0xff]
      %v1645 = vld [vmem:[%s315 + $0x48] sm:$0xff]
      %v1646 = vld [vmem:[%s315 + $0x50] sm:$0xff]
      %v1647 = vld [vmem:[%s315 + $0x58] sm:$0xff]
      %v1648 = vld [vmem:[%s315 + $0x60] sm:$0xff]
      %v1649 = vld [vmem:[%s315 + $0x68] sm:$0xff]
      %v1650 = vld [vmem:[%s315 + $0x70] sm:$0xff]
      %v1651 = vld [vmem:[%s315 + $0x78] sm:$0xff]
      %v1652 = vadd.f32 %v1636, %v1637
      %v1653 = vadd.f32 %v1652, %v1638
      %v1654 = vadd.f32 %v1653, %v1639
      %v1655 = vadd.f32 %v1654, %v1640
      %v1656 = vadd.f32 %v1655, %v1641
      %v1657 = vadd.f32 %v1656, %v1642
      %v1658 = vadd.f32 %v1657, %v1643
      %v1659 = vadd.f32 %v1658, %v1644
      %v1660 = vadd.f32 %v1659, %v1645
      %v1661 = vadd.f32 %v1660, %v1646
      %v1662 = vadd.f32 %v1661, %v1647
      %v1663 = vadd.f32 %v1662, %v1648
      %v1664 = vadd.f32 %v1663, %v1649
      %v1665 = vadd.f32 %v1664, %v1650
      %v1666 = vadd.f32 %v1665, %v1651
      %v1667 = vrot.slane %v1666, 4
      %v1668 = vadd.f32 %v1666, %v1667
      %v1669 = vrot.slane %v1668, 2
      %v1670 = vadd.f32 %v1668, %v1669
      %v1671 = vrot.slane %v1670, 1
      %v1672 = vadd.f32 %v1670, %v1671
      %1673 = vst [vmem:[%s325] sm:$0x1] %v1672
      %v1674 = vmul.f32 %v1636, %v1636
      %v1675 = vmul.f32 %v1637, %v1637
      %v1676 = vmul.f32 %v1638, %v1638
      %v1677 = vmul.f32 %v1639, %v1639
      %v1678 = vmul.f32 %v1640, %v1640
      %v1679 = vmul.f32 %v1641, %v1641
      %v1680 = vmul.f32 %v1642, %v1642
      %v1681 = vmul.f32 %v1643, %v1643
      %v1682 = vmul.f32 %v1644, %v1644
      %v1683 = vmul.f32 %v1645, %v1645
      %v1684 = vmul.f32 %v1646, %v1646
      %v1685 = vmul.f32 %v1647, %v1647
      %v1686 = vmul.f32 %v1648, %v1648
      %v1687 = vmul.f32 %v1649, %v1649
      %v1688 = vmul.f32 %v1650, %v1650
      %v1689 = vmul.f32 %v1651, %v1651
      %v1690 = vadd.f32 %v1674, %v1675
      %v1691 = vadd.f32 %v1690, %v1676
      %v1692 = vadd.f32 %v1691, %v1677
      %v1693 = vadd.f32 %v1692, %v1678
      %v1694 = vadd.f32 %v1693, %v1679
      %v1695 = vadd.f32 %v1694, %v1680
      %v1696 = vadd.f32 %v1695, %v1681
      %v1697 = vadd.f32 %v1696, %v1682
      %v1698 = vadd.f32 %v1697, %v1683
      %v1699 = vadd.f32 %v1698, %v1684
      %v1700 = vadd.f32 %v1699, %v1685
      %v1701 = vadd.f32 %v1700, %v1686
      %v1702 = vadd.f32 %v1701, %v1687
      %v1703 = vadd.f32 %v1702, %v1688
      %v1704 = vadd.f32 %v1703, %v1689
      %v1705 = vrot.slane %v1704, 4
      %v1706 = vadd.f32 %v1704, %v1705
      %v1707 = vrot.slane %v1706, 2
      %v1708 = vadd.f32 %v1706, %v1707
      %v1709 = vrot.slane %v1708, 1
      %v1710 = vadd.f32 %v1708, %v1709
      %1711 = vst [vmem:[%s334] sm:$0x1] %v1710
      %s1712 = smul.u32 16, %s22
      %p1713 = scmp.lt.s32.totalorder %s21, 3
      %s1714 = scalar_select %p1713, %s21, 3
      %p1715 = scmp.lt.s32.totalorder %s1712, 15
      %s1716 = scalar_select %p1715, %s1712, 15
      %p1717 = scmp.lt.s32.totalorder %s23, 0
      %s1718 = scalar_select %p1717, %s23, 0
      %s1719 = sadd.s32 %s1718, %s1716
      %s1720 = smul.addr %s1714, 16
      %s1721 = sadd.s32 %s1719, %s1720
      %s1722 = smul.addr %s1721, 8
      %s1723 = scalar_lea.vmem %s2, %s1722
      %p1724 = scmp.lt.s32.totalorder %s21, 3
      %s1725 = scalar_select %p1724, %s21, 3
      %p1726 = scmp.lt.s32.totalorder %s22, 0
      %s1727 = scalar_select %p1726, %s22, 0
      %p1728 = scmp.lt.s32.totalorder %s23, 0
      %s1729 = scalar_select %p1728, %s23, 0
      %s1730 = sadd.s32 %s1729, %s1727
      %s1731 = sadd.s32 %s1730, %s1725
      %s1732 = scalar_lea.vmem %s3, %s1731
      %p1733 = scmp.lt.s32.totalorder %s21, 3
      %s1734 = scalar_select %p1733, %s21, 3
      %p1735 = scmp.lt.s32.totalorder %s22, 0
      %s1736 = scalar_select %p1735, %s22, 0
      %p1737 = scmp.lt.s32.totalorder %s23, 0
      %s1738 = scalar_select %p1737, %s23, 0
      %s1739 = sadd.s32 %s1738, %s1736
      %s1740 = sadd.s32 %s1739, %s1734
      %s1741 = scalar_lea.vmem %s4, %s1740
      // Predicated region
      $region29: #{generator_forward.11} parent=27 // pred_check
        %p1742 = pneg %p113
      $region30: #{generator_forward.11} parent=27 // pred_check_branch
        %1744 = sbr.rel (%p1742) target = $region32
      $region31: #{generator_forward.11} parent=27 // pred_region
        %s1745 = smul.u32 16, %s22
      $region32: #{generator_forward.11} parent=27 // pred_fallthru
        _
      // Predicated region
      $region33: #{generator_forward.11} parent=27 // pred_check
        %p1746 = pneg %p143
      $region34: #{generator_forward.11} parent=27 // pred_check_branch
        %1748 = sbr.rel (%p1746) target = $region36
      $region35: #{generator_forward.11} parent=27 // pred_region
        _
      $region36: #{generator_forward.11} parent=27 // pred_fallthru
        _
      // Predicated region
      $region37: #{generator_forward.11} parent=27 // pred_check
        %p1749 = pneg %p173
      $region38: #{generator_forward.11} parent=27 // pred_check_branch
        %1751 = sbr.rel (%p1749) target = $region40
      $region39: #{generator_forward.11} parent=27 // pred_region
        _
      $region40: #{generator_forward.11} parent=27 // pred_fallthru
        _
    $region28: #{generator_forward.11} parent=5 // pred_fallthru
      _
    %p1752 = scmp.le.s32.totalorder 2, %s11
    // Predicated region
    $region41: #{generator_forward.11} parent=5 // pred_check
      %p1753 = pneg %p1752
    $region42: #{generator_forward.11} parent=5 // pred_check_branch
      %1755 = sbr.rel (%p1753) target = $region44
    $region43: #{generator_forward.11} parent=5 // pred_region
      %s1756 = ssub.s32 %s11, 2
      // Predicated region
      $region45: #{generator_forward.11} parent=43 // pred_check
        %p1757 = pneg %p119
      $region46: #{generator_forward.11} parent=43 // pred_check_branch
        %1759 = sbr.rel (%p1757) target = $region48
      $region47: #{generator_forward.11} parent=43 // pred_region
        %s1760 = smul.u32 16, %s25
        %p1761 = scmp.lt.s32.totalorder %s24, 3
        %s1762 = scalar_select %p1761, %s24, 3
        %p1763 = scmp.lt.s32.totalorder %s1760, 15
        %s1764 = scalar_select %p1763, %s1760, 15
        %p1765 = scmp.lt.s32.totalorder %s26, 0
        %s1766 = scalar_select %p1765, %s26, 0
        %s1767 = sadd.s32 %s1766, %s1764
        %s1768 = smul.addr %s1762, 16
        %s1769 = sadd.s32 %s1767, %s1768
        %s1770 = smul.addr %s1769, 8
        %s1771 = scalar_lea.vmem %s2, %s1770
      $region48: #{generator_forward.11} parent=43 // pred_fallthru
        _
      // Predicated region
      $region49: #{generator_forward.11} parent=43 // pred_check
        %p1772 = pneg %p149
      $region50: #{generator_forward.11} parent=43 // pred_check_branch
        %1774 = sbr.rel (%p1772) target = $region52
      $region51: #{generator_forward.11} parent=43 // pred_region
        %p1775 = scmp.lt.s32.totalorder %s24, 3
        %s1776 = scalar_select %p1775, %s24, 3
        %p1777 = scmp.lt.s32.totalorder %s25, 0
        %s1778 = scalar_select %p1777, %s25, 0
        %p1779 = scmp.lt.s32.totalorder %s26, 0
        %s1780 = scalar_select %p1779, %s26, 0
        %s1781 = sadd.s32 %s1780, %s1778
        %s1782 = sadd.s32 %s1781, %s1776
        %s1783 = scalar_lea.vmem %s3, %s1782
      $region52: #{generator_forward.11} parent=43 // pred_fallthru
        _
      // Predicated region
      $region53: #{generator_forward.11} parent=43 // pred_check
        %p1784 = pneg %p179
      $region54: #{generator_forward.11} parent=43 // pred_check_branch
        %1786 = sbr.rel (%p1784) target = $region56
      $region55: #{generator_forward.11} parent=43 // pred_region
        %p1787 = scmp.lt.s32.totalorder %s24, 3
        %s1788 = scalar_select %p1787, %s24, 3
        %p1789 = scmp.lt.s32.totalorder %s25, 0
        %s1790 = scalar_select %p1789, %s25, 0
        %p1791 = scmp.lt.s32.totalorder %s26, 0
        %s1792 = scalar_select %p1791, %s26, 0
        %s1793 = sadd.s32 %s1792, %s1790
        %s1794 = sadd.s32 %s1793, %s1788
        %s1795 = scalar_lea.vmem %s4, %s1794
      $region56: #{generator_forward.11} parent=43 // pred_fallthru
        _
    $region44: #{generator_forward.11} parent=5 // pred_fallthru
      _
  $region6: #{generator_forward.11} parent=0 // loop_footer
    %s15 = sadd.s32 1, %s11
  $region7: #{generator_forward.11} parent=0 // loop_footer_branch
    %10 = sbr.rel target = $region3
  $region8: #{generator_forward.11} parent=0 // loop_exit
    _

// kernel: generator_forward.12
$region0: #{generator_forward.12}
  #allocation0 [shape = 'u32[]', space=smem, size = 0x4, offset = 0x4, fixed_abs, tag = 'smem constant byte address 0x4 - core index']
  #allocation1 [shape = 'u32[144,128]{1,0:T(1,128)}', space=vmem, size = 0x12000, scoped, tag = 'internal scratch']
  %s0 = inlined_call_operand.vmem [shape: f32[4,128,128], index: 0, kind: input, shape index: {}]
  %s1 = inlined_call_operand.vmem [shape: f32[1,128], index: 1, kind: input, shape index: {}]
  %s2 = inlined_call_operand.vmem [shape: f32[1,128], index: 2, kind: input, shape index: {}]
  %s3 = inlined_call_operand.vmem [shape: bf16[4,128,128], index: 3, kind: output, shape index: {}]
  %s4 = sld [smem:[#allocation0]]
  $region45: #{generator_forward.12} parent=0
    _
  %s6 = ssub.s32 1, %s4
  %s7 = scalar_select 0, %s6, %s4
  loop: start=0, step=1, limit=6
  $region2: #{generator_forward.12} parent=0 // loop_pre_header
    _
  $region3: #{generator_forward.12} parent=0 // loop_header
    %s9 = sphi 0, %s13
    %p10 = scmp.ge.s32.totalorder %s9, 6
    %s16 = sphi 0, %s28
    %s17 = sphi 0, %s24
    %s18 = sphi 0, %s16
    %s19 = sphi 0, %s17
    %s20 = sphi 0, %s18
    %s21 = sphi 0, %s19
    %s33 = sphi 0, %s35
    %s36 = sphi 0, %s33
    %s37 = sphi 0, %s36
    %s53 = sphi 0, %s37
    %s57 = sphi 0, %s57
    %s59 = sphi 0, %s57
    %s60 = sphi 0, %s59
    %s74 = sphi 0, %s60
    %s78 = sphi 0, %s78
    %s80 = sphi 0, %s78
    %s81 = sphi 0, %s80
    %s95 = sphi 0, %s81
    %s103 = sphi 0, %s105
    %s106 = sphi 0, %s103
    %s107 = sphi 0, %s106
    %s123 = sphi 0, %s107
  $region4: #{generator_forward.12} parent=0 // loop_header_branch
    %12 = sbr.rel (%p10) target = $region8
  $region5: #{generator_forward.12} parent=0 // loop_body
    %s14 = ssub.s32 %s9, 1
    %s15 = ssub.s32 %s9, 2
    %s22 = sadd.s32 1, %s17
    %p23 = scmp.ge.s32.totalorder %s22, 1
    %s24 = scalar_select %p23, 0, %s22
    %s25 = sadd.s32 1, %s16
    %s26 = scalar_select %p23, %s25, %s16
    %p27 = scmp.ge.s32.totalorder %s26, 4
    %s28 = scalar_select %p27, 0, %s26
    %s29 = ssub.s32 %s16, %s28
    %s30 = ssub.s32 %s17, %s24
    %s31 = sor.u32 %s29, %s30
    %p32 = scmp.eq.s32.totalorder %s31, 0
    %s34 = sadd.s32 %s33, 1
    %s35 = scalar_select %p32, %s33, %s34
    %p38 = pneg %p32
    %p39 = scmp.eq.s32.totalorder %s9, 3
    %p40 = por %p38, %p39
    %p41 = scmp.ne.s32.totalorder %s33, %s36
    %p42 = scmp.eq.s32.totalorder %s9, 0
    %p43 = por %p41, %p42
    %p44 = scmp.ne.s32.totalorder %s33, %s36
    %p45 = scmp.eq.s32.totalorder %s14, 3
    %p46 = por %p44, %p45
    %p47 = scmp.ne.s32.totalorder %s36, %s37
    %p48 = scmp.eq.s32.totalorder %s14, 0
    %p49 = por %p47, %p48
    %p50 = scmp.ne.s32.totalorder %s36, %s37
    %p51 = scmp.eq.s32.totalorder %s15, 3
    %p52 = por %p50, %p51
    %p54 = scmp.ne.s32.totalorder %s37, %s53
    %p55 = scmp.eq.s32.totalorder %s15, 0
    %p56 = por %p54, %p55
    %s58 = sadd.s32 %s57, 1
    %p61 = scmp.eq.s32.totalorder %s9, 3
    %p62 = scmp.ne.s32.totalorder %s57, %s59
    %p63 = scmp.eq.s32.totalorder %s9, 0
    %p64 = por %p62, %p63
    %p65 = scmp.ne.s32.totalorder %s57, %s59
    %p66 = scmp.eq.s32.totalorder %s14, 3
    %p67 = por %p65, %p66
    %p68 = scmp.ne.s32.totalorder %s59, %s60
    %p69 = scmp.eq.s32.totalorder %s14, 0
    %p70 = por %p68, %p69
    %p71 = scmp.ne.s32.totalorder %s59, %s60
    %p72 = scmp.eq.s32.totalorder %s15, 3
    %p73 = por %p71, %p72
    %p75 = scmp.ne.s32.totalorder %s60, %s74
    %p76 = scmp.eq.s32.totalorder %s15, 0
    %p77 = por %p75, %p76
    %s79 = sadd.s32 %s78, 1
    %p82 = scmp.eq.s32.totalorder %s9, 3
    %p83 = scmp.ne.s32.totalorder %s78, %s80
    %p84 = scmp.eq.s32.totalorder %s9, 0
    %p85 = por %p83, %p84
    %p86 = scmp.ne.s32.totalorder %s78, %s80
    %p87 = scmp.eq.s32.totalorder %s14, 3
    %p88 = por %p86, %p87
    %p89 = scmp.ne.s32.totalorder %s80, %s81
    %p90 = scmp.eq.s32.totalorder %s14, 0
    %p91 = por %p89, %p90
    %p92 = scmp.ne.s32.totalorder %s80, %s81
    %p93 = scmp.eq.s32.totalorder %s15, 3
    %p94 = por %p92, %p93
    %p96 = scmp.ne.s32.totalorder %s81, %s95
    %p97 = scmp.eq.s32.totalorder %s15, 0
    %p98 = por %p96, %p97
    %s99 = ssub.s32 %s16, %s28
    %s100 = ssub.s32 %s17, %s24
    %s101 = sor.u32 %s99, %s100
    %p102 = scmp.eq.s32.totalorder %s101, 0
    %s104 = sadd.s32 %s103, 1
    %s105 = scalar_select %p102, %s103, %s104
    %p108 = pneg %p102
    %p109 = scmp.eq.s32.totalorder %s9, 3
    %p110 = por %p108, %p109
    %p111 = scmp.ne.s32.totalorder %s103, %s106
    %p112 = scmp.eq.s32.totalorder %s9, 0
    %p113 = por %p111, %p112
    %p114 = scmp.ne.s32.totalorder %s103, %s106
    %p115 = scmp.eq.s32.totalorder %s14, 3
    %p116 = por %p114, %p115
    %p117 = scmp.ne.s32.totalorder %s106, %s107
    %p118 = scmp.eq.s32.totalorder %s14, 0
    %p119 = por %p117, %p118
    %p120 = scmp.ne.s32.totalorder %s106, %s107
    %p121 = scmp.eq.s32.totalorder %s15, 3
    %p122 = por %p120, %p121
    %p124 = scmp.ne.s32.totalorder %s107, %s123
    %p125 = scmp.eq.s32.totalorder %s15, 0
    %p126 = por %p124, %p125
    %p127 = scmp.le.s32.totalorder 1, %s9
    %p128 = scmp.lt.s32.totalorder %s9, 5
    %p129 = pnand %p127, %p128
    %p130 = pneg %p129
    // Predicated region
    $region9: #{generator_forward.12} parent=5 // pred_check
      _
    $region10: #{generator_forward.12} parent=5 // pred_check_branch
      %132 = sbr.rel (%p129) target = $region12
    $region11: #{generator_forward.12} parent=5 // pred_region
      %s133 = ssub.s32 %s9, 1
      // Predicated region
      $region13: #{generator_forward.12} parent=11 // pred_check
        %p134 = pneg %p70
      $region14: #{generator_forward.12} parent=11 // pred_check_branch
        %136 = sbr.rel (%p134) target = $region16
      $region15: #{generator_forward.12} parent=11 // pred_region
        _
      $region16: #{generator_forward.12} parent=11 // pred_fallthru
        _
      // Predicated region
      $region17: #{generator_forward.12} parent=11 // pred_check
        %p137 = pneg %p91
      $region18: #{generator_forward.12} parent=11 // pred_check_branch
        %139 = sbr.rel (%p137) target = $region20
      $region19: #{generator_forward.12} parent=11 // pred_region
        _
      $region20: #{generator_forward.12} parent=11 // pred_fallthru
        _
    $region12: #{generator_forward.12} parent=5 // pred_fallthru
      _
    %p140 = scmp.lt.s32.totalorder %s9, 4
    // Predicated region
    $region21: #{generator_forward.12} parent=5 // pred_check
      %p141 = pneg %p140
    $region22: #{generator_forward.12} parent=5 // pred_check_branch
      %143 = sbr.rel (%p141) target = $region24
    $region23: #{generator_forward.12} parent=5 // pred_region
      // Predicated region
      $region25: #{generator_forward.12} parent=23 // pred_check
        %p144 = pneg %p43
      $region26: #{generator_forward.12} parent=23 // pred_check_branch
        %146 = sbr.rel (%p144) target = $region28
      $region27: #{generator_forward.12} parent=23 // pred_region
        %s147 = smul.u32 16, %s17
        %p148 = scmp.lt.s32.totalorder %s16, 3
        %s149 = scalar_select %p148, %s16, 3
        %p150 = scmp.lt.s32.totalorder %s147, 15
        %s151 = scalar_select %p150, %s147, 15
        %s152 = smul.addr %s149, 16
        %s153 = sadd.s32 %s151, %s152
        %s154 = smul.addr %s153, 8
        %s155 = scalar_lea.vmem %s0, %s154
        %s156 = smul.u32 16, %s17
      $region28: #{generator_forward.12} parent=23 // pred_fallthru
        _
    $region24: #{generator_forward.12} parent=5 // pred_fallthru
      _
    %p157 = scmp.le.s32.totalorder 1, %s9
    %p158 = scmp.lt.s32.totalorder %s9, 5
    %p159 = pnand %p157, %p158
    %p160 = pneg %p159
    // Predicated region
    $region29: #{generator_forward.12} parent=5 // pred_check
      _
    $region30: #{generator_forward.12} parent=5 // pred_check_branch
      %162 = sbr.rel (%p159) target = $region32
    $region31: #{generator_forward.12} parent=5 // pred_region
      %s163 = ssub.s32 %s9, 1
      %s164 = smul.u32 16, %s19
      %p165 = scmp.lt.s32.totalorder %s18, 3
      %s166 = scalar_select %p165, %s18, 3
      %p167 = scmp.lt.s32.totalorder %s164, 15
      %s168 = scalar_select %p167, %s164, 15
      %s169 = smul.addr %s166, 16
      %s170 = sadd.s32 %s168, %s169
      %s171 = smul.addr %s170, 8
      %s172 = scalar_lea.vmem %s0, %s171
      %p173 = pneg %p49
      %p174 = pneg %p46
      %p175 = pneg %p70
      %p176 = pneg %p67
      %p177 = pneg %p91
      %p178 = pneg %p88
      %p179 = pneg %p119
      %p180 = pneg %p116
      %s181 = smul.u32 16, %s19
      %p182 = scmp.lt.s32.totalorder %s18, 3
      %s183 = scalar_select %p182, %s18, 3
      %p184 = scmp.lt.s32.totalorder %s181, 15
      %s185 = scalar_select %p184, %s181, 15
      %s186 = smul.addr %s183, 16
      %s187 = sadd.s32 %s185, %s186
      %s188 = smul.addr %s187, 4
      %s189 = scalar_lea.vmem %s3, %s188
      %s190 = smul.u32 16, %s19
      %p191 = scmp.lt.s32.totalorder %s18, 3
      %s192 = scalar_select %p191, %s18, 3
      %p193 = scmp.lt.s32.totalorder %s190, 15
      %s194 = scalar_select %p193, %s190, 15
      %s195 = smul.addr %s192, 16
      %s196 = sadd.s32 %s194, %s195
      %s197 = smul.addr %s196, 8
      %s198 = scalar_lea.vmem %s0, %s197
      %s199 = smul.u32 16, %s19
      %s200 = smul.u32 16, %s19
      %p201 = scmp.lt.s32.totalorder %s18, 3
      %s202 = scalar_select %p201, %s18, 3
      %p203 = scmp.lt.s32.totalorder %s200, 15
      %s204 = scalar_select %p203, %s200, 15
      %s205 = smul.addr %s202, 16
      %s206 = sadd.s32 %s204, %s205
      %s207 = smul.addr %s206, 4
      %s208 = scalar_lea.vmem %s3, %s207
      %s209 = smul.u32 16, %s19
      %v210 = vld [vmem:[%s198] sm:$0xff]
      %v211 = vld [vmem:[%s198 + $0x8] sm:$0xff]
      %v212 = vld [vmem:[%s198 + $0x10] sm:$0xff]
      %v213 = vld [vmem:[%s198 + $0x18] sm:$0xff]
      %v214 = vld [vmem:[%s198 + $0x20] sm:$0xff]
      %v215 = vld [vmem:[%s198 + $0x28] sm:$0xff]
      %v216 = vld [vmem:[%s198 + $0x30] sm:$0xff]
      %v217 = vld [vmem:[%s198 + $0x38] sm:$0xff]
      %v218 = vld [vmem:[%s198 + $0x40] sm:$0xff]
      %v219 = vld [vmem:[%s198 + $0x48] sm:$0xff]
      %v220 = vld [vmem:[%s198 + $0x50] sm:$0xff]
      %v221 = vld [vmem:[%s198 + $0x58] sm:$0xff]
      %v222 = vld [vmem:[%s198 + $0x60] sm:$0xff]
      %v223 = vld [vmem:[%s198 + $0x68] sm:$0xff]
      %v224 = vld [vmem:[%s198 + $0x70] sm:$0xff]
      %v225 = vld [vmem:[%s198 + $0x78] sm:$0xff]
      %v226 = vld [vmem:[%s1] sm:$0x1]
      %v228 = vlaneseq
      %v229 = vshrl.u32 %v228, 7
      %v230 = vsub.s32 0, %v229
      %v231 = vrot.slane %v226, %v230
      %v233 = vmul.f32 %v210, %v231
      %v234 = vmul.f32 %v211, %v231
      %v235 = vmul.f32 %v212, %v231
      %v236 = vmul.f32 %v213, %v231
      %v237 = vmul.f32 %v214, %v231
      %v238 = vmul.f32 %v215, %v231
      %v239 = vmul.f32 %v216, %v231
      %v240 = vmul.f32 %v217, %v231
      %v241 = vmul.f32 %v218, %v231
      %v242 = vmul.f32 %v219, %v231
      %v243 = vmul.f32 %v220, %v231
      %v244 = vmul.f32 %v221, %v231
      %v245 = vmul.f32 %v222, %v231
      %v246 = vmul.f32 %v223, %v231
      %v247 = vmul.f32 %v224, %v231
      %v248 = vmul.f32 %v225, %v231
      %v249 = vld [vmem:[%s2] sm:$0x1]
      %v251 = vlaneseq
      %v252 = vshrl.u32 %v251, 7
      %v253 = vsub.s32 0, %v252
      %v254 = vrot.slane %v249, %v253
      %v256 = vadd.f32 %v233, %v254
      %v257 = vadd.f32 %v234, %v254
      %v258 = vadd.f32 %v235, %v254
      %v259 = vadd.f32 %v236, %v254
      %v260 = vadd.f32 %v237, %v254
      %v261 = vadd.f32 %v238, %v254
      %v262 = vadd.f32 %v239, %v254
      %v263 = vadd.f32 %v240, %v254
      %v264 = vadd.f32 %v241, %v254
      %v265 = vadd.f32 %v242, %v254
      %v266 = vadd.f32 %v243, %v254
      %v267 = vadd.f32 %v244, %v254
      %v268 = vadd.f32 %v245, %v254
      %v269 = vadd.f32 %v246, %v254
      %v270 = vadd.f32 %v247, %v254
      %v271 = vadd.f32 %v248, %v254
      %v272 = vmax.f32 %v256, 0.0
      %v273 = vmax.f32 %v257, 0.0
      %v274 = vmax.f32 %v258, 0.0
      %v275 = vmax.f32 %v259, 0.0
      %v276 = vmax.f32 %v260, 0.0
      %v277 = vmax.f32 %v261, 0.0
      %v278 = vmax.f32 %v262, 0.0
      %v279 = vmax.f32 %v263, 0.0
      %v280 = vmax.f32 %v264, 0.0
      %v281 = vmax.f32 %v265, 0.0
      %v282 = vmax.f32 %v266, 0.0
      %v283 = vmax.f32 %v267, 0.0
      %v284 = vmax.f32 %v268, 0.0
      %v285 = vmax.f32 %v269, 0.0
      %v286 = vmax.f32 %v270, 0.0
      %v287 = vmax.f32 %v271, 0.0
      %v288 = vpack.c.bf16 %v273, %v272
      %v289 = vpack.c.bf16 %v275, %v274
      %v290 = vpack.c.bf16 %v277, %v276
      %v291 = vpack.c.bf16 %v279, %v278
      %v292 = vpack.c.bf16 %v281, %v280
      %v293 = vpack.c.bf16 %v283, %v282
      %v294 = vpack.c.bf16 %v285, %v284
      %v295 = vpack.c.bf16 %v287, %v286
      %v304 = vunpack.c.l.b16 %v288
      %v305 = vunpack.c.h.b16 %v288
      %v306 = vunpack.c.l.b16 %v289
      %v307 = vunpack.c.h.b16 %v289
      %v308 = vunpack.c.l.b16 %v290
      %v309 = vunpack.c.h.b16 %v290
      %v310 = vunpack.c.l.b16 %v291
      %v311 = vunpack.c.h.b16 %v291
      %v312 = vunpack.c.l.b16 %v292
      %v313 = vunpack.c.h.b16 %v292
      %v314 = vunpack.c.l.b16 %v293
      %v315 = vunpack.c.h.b16 %v293
      %v316 = vunpack.c.l.b16 %v294
      %v317 = vunpack.c.h.b16 %v294
      %v318 = vunpack.c.l.b16 %v295
      %v319 = vunpack.c.h.b16 %v295
      %v320 = vpack.c.b16 %v304, %v304
      %v321 = vpack.c.b16 %v305, %v305
      %v322 = vpack.c.b16 %v306, %v306
      %v323 = vpack.c.b16 %v307, %v307
      %v324 = vpack.c.b16 %v308, %v308
      %v325 = vpack.c.b16 %v309, %v309
      %v326 = vpack.c.b16 %v310, %v310
      %v327 = vpack.c.b16 %v311, %v311
      %v328 = vpack.c.b16 %v312, %v312
      %v329 = vpack.c.b16 %v313, %v313
      %v330 = vpack.c.b16 %v314, %v314
      %v331 = vpack.c.b16 %v315, %v315
      %v332 = vpack.c.b16 %v316, %v316
      %v333 = vpack.c.b16 %v317, %v317
      %v334 = vpack.c.b16 %v318, %v318
      %v335 = vpack.c.b16 %v319, %v319
      %352 = vst [vmem:[%s208] sm:$0xf] %v320
      %353 = vst [vmem:[%s208 + $0x4] sm:$0xf] %v321
      %354 = vst [vmem:[%s208 + $0x8] sm:$0xf] %v322
      %355 = vst [vmem:[%s208 + $0xc] sm:$0xf] %v323
      %356 = vst [vmem:[%s208 + $0x10] sm:$0xf] %v324
      %357 = vst [vmem:[%s208 + $0x14] sm:$0xf] %v325
      %358 = vst [vmem:[%s208 + $0x18] sm:$0xf] %v326
      %359 = vst [vmem:[%s208 + $0x1c] sm:$0xf] %v327
      %360 = vst [vmem:[%s208 + $0x20] sm:$0xf] %v328
      %361 = vst [vmem:[%s208 + $0x24] sm:$0xf] %v329
      %362 = vst [vmem:[%s208 + $0x28] sm:$0xf] %v330
      %363 = vst [vmem:[%s208 + $0x2c] sm:$0xf] %v331
      %364 = vst [vmem:[%s208 + $0x30] sm:$0xf] %v332
      %365 = vst [vmem:[%s208 + $0x34] sm:$0xf] %v333
      %366 = vst [vmem:[%s208 + $0x38] sm:$0xf] %v334
      %367 = vst [vmem:[%s208 + $0x3c] sm:$0xf] %v335
      %s368 = smul.u32 16, %s19
      %p369 = scmp.lt.s32.totalorder %s18, 3
      %s370 = scalar_select %p369, %s18, 3
      %p371 = scmp.lt.s32.totalorder %s368, 15
      %s372 = scalar_select %p371, %s368, 15
      %s373 = smul.addr %s370, 16
      %s374 = sadd.s32 %s372, %s373
      %s375 = smul.addr %s374, 4
      %s376 = scalar_lea.vmem %s3, %s375
      // Predicated region
      $region33: #{generator_forward.12} parent=31 // pred_check
        %p377 = pneg %p116
      $region34: #{generator_forward.12} parent=31 // pred_check_branch
        %379 = sbr.rel (%p377) target = $region36
      $region35: #{generator_forward.12} parent=31 // pred_region
        %s380 = smul.u32 16, %s19
      $region36: #{generator_forward.12} parent=31 // pred_fallthru
        _
    $region32: #{generator_forward.12} parent=5 // pred_fallthru
      _
    %p381 = scmp.le.s32.totalorder 2, %s9
    // Predicated region
    $region37: #{generator_forward.12} parent=5 // pred_check
      %p382 = pneg %p381
    $region38: #{generator_forward.12} parent=5 // pred_check_branch
      %384 = sbr.rel (%p382) target = $region40
    $region39: #{generator_forward.12} parent=5 // pred_region
      %s385 = ssub.s32 %s9, 2
      // Predicated region
      $region41: #{generator_forward.12} parent=39 // pred_check
        %p386 = pneg %p122
      $region42: #{generator_forward.12} parent=39 // pred_check_branch
        %388 = sbr.rel (%p386) target = $region44
      $region43: #{generator_forward.12} parent=39 // pred_region
        %s389 = smul.u32 16, %s21
        %p390 = scmp.lt.s32.totalorder %s20, 3
        %s391 = scalar_select %p390, %s20, 3
        %p392 = scmp.lt.s32.totalorder %s389, 15
        %s393 = scalar_select %p392, %s389, 15
        %s394 = smul.addr %s391, 16
        %s395 = sadd.s32 %s393, %s394
        %s396 = smul.addr %s395, 4
        %s397 = scalar_lea.vmem %s3, %s396
      $region44: #{generator_forward.12} parent=39 // pred_fallthru
        _
    $region40: #{generator_forward.12} parent=5 // pred_fallthru
      _
  $region6: #{generator_forward.12} parent=0 // loop_footer
    %s13 = sadd.s32 1, %s9
  $region7: #{generator_forward.12} parent=0 // loop_footer_branch
    %8 = sbr.rel target = $region3
  $region8: #{generator_forward.12} parent=0 // loop_exit
    _

// kernel: generator_forward.13
$region0: #{generator_forward.13}
  #allocation0 [shape = 'u32[]', space=smem, size = 0x4, offset = 0x4, fixed_abs, tag = 'smem constant byte address 0x4 - core index']
  #allocation1 [shape = 'u32[144,128]{1,0:T(1,128)}', space=vmem, size = 0x12000, scoped, tag = 'internal scratch']
  %s0 = inlined_call_operand.vmem [shape: bf16[4,512,512], index: 0, kind: input, shape index: {}]
  %s1 = inlined_call_operand.vmem [shape: bf16[4,512,128], index: 1, kind: input, shape index: {}]
  %s2 = inlined_call_operand.vmem [shape: f32[1,128], index: 2, kind: input, shape index: {}]
  %s3 = inlined_call_operand.vmem [shape: bf16[4,512,128], index: 3, kind: output, shape index: {}]
  %s4 = sld [smem:[#allocation0]]
  $region45: #{generator_forward.13} parent=0
    _
  %s6 = ssub.s32 1, %s4
  %s7 = scalar_select 0, %s6, %s4
  loop: start=0, step=1, limit=10
  $region2: #{generator_forward.13} parent=0 // loop_pre_header
    _
  $region3: #{generator_forward.13} parent=0 // loop_header
    %s9 = sphi 0, %s13
    %p10 = scmp.ge.s32.totalorder %s9, 10
    %s16 = sphi 0, %s35
    %s17 = sphi 0, %s31
    %s18 = sphi 0, %s27
    %s19 = sphi 0, %s16
    %s20 = sphi 0, %s17
    %s21 = sphi 0, %s18
    %s22 = sphi 0, %s19
    %s23 = sphi 0, %s20
    %s24 = sphi 0, %s21
    %s40 = sphi 0, %s42
    %s43 = sphi 0, %s40
    %s44 = sphi 0, %s43
    %s60 = sphi 0, %s44
    %s68 = sphi 0, %s70
    %s71 = sphi 0, %s68
    %s72 = sphi 0, %s71
    %s88 = sphi 0, %s72
    %s94 = sphi 0, %s96
    %s97 = sphi 0, %s94
    %s98 = sphi 0, %s97
    %s114 = sphi 0, %s98
    %s124 = sphi 0, %s126
    %s127 = sphi 0, %s124
    %s128 = sphi 0, %s127
    %s144 = sphi 0, %s128
  $region4: #{generator_forward.13} parent=0 // loop_header_branch
    %12 = sbr.rel (%p10) target = $region8
  $region5: #{generator_forward.13} parent=0 // loop_body
    %s14 = ssub.s32 %s9, 1
    %s15 = ssub.s32 %s9, 2
    %s25 = sadd.s32 1, %s18
    %p26 = scmp.ge.s32.totalorder %s25, 1
    %s27 = scalar_select %p26, 0, %s25
    %s28 = sadd.s32 1, %s17
    %s29 = scalar_select %p26, %s28, %s17
    %p30 = scmp.ge.s32.totalorder %s29, 2
    %s31 = scalar_select %p30, 0, %s29
    %s32 = sadd.s32 1, %s16
    %s33 = scalar_select %p30, %s32, %s16
    %p34 = scmp.ge.s32.totalorder %s33, 4
    %s35 = scalar_select %p34, 0, %s33
    %s36 = ssub.s32 %s16, %s35
    %s37 = ssub.s32 %s17, %s31
    %s38 = sor.u32 %s36, %s37
    %p39 = scmp.eq.s32.totalorder %s38, 0
    %s41 = sadd.s32 %s40, 1
    %s42 = scalar_select %p39, %s40, %s41
    %p45 = pneg %p39
    %p46 = scmp.eq.s32.totalorder %s9, 7
    %p47 = por %p45, %p46
    %p48 = scmp.ne.s32.totalorder %s40, %s43
    %p49 = scmp.eq.s32.totalorder %s9, 0
    %p50 = por %p48, %p49
    %p51 = scmp.ne.s32.totalorder %s40, %s43
    %p52 = scmp.eq.s32.totalorder %s14, 7
    %p53 = por %p51, %p52
    %p54 = scmp.ne.s32.totalorder %s43, %s44
    %p55 = scmp.eq.s32.totalorder %s14, 0
    %p56 = por %p54, %p55
    %p57 = scmp.ne.s32.totalorder %s43, %s44
    %p58 = scmp.eq.s32.totalorder %s15, 7
    %p59 = por %p57, %p58
    %p61 = scmp.ne.s32.totalorder %s44, %s60
    %p62 = scmp.eq.s32.totalorder %s15, 0
    %p63 = por %p61, %p62
    %s64 = ssub.s32 %s16, %s35
    %s65 = ssub.s32 %s18, %s27
    %s66 = sor.u32 %s64, %s65
    %p67 = scmp.eq.s32.totalorder %s66, 0
    %s69 = sadd.s32 %s68, 1
    %s70 = scalar_select %p67, %s68, %s69
    %p73 = pneg %p67
    %p74 = scmp.eq.s32.totalorder %s9, 7
    %p75 = por %p73, %p74
    %p76 = scmp.ne.s32.totalorder %s68, %s71
    %p77 = scmp.eq.s32.totalorder %s9, 0
    %p78 = por %p76, %p77
    %p79 = scmp.ne.s32.totalorder %s68, %s71
    %p80 = scmp.eq.s32.totalorder %s14, 7
    %p81 = por %p79, %p80
    %p82 = scmp.ne.s32.totalorder %s71, %s72
    %p83 = scmp.eq.s32.totalorder %s14, 0
    %p84 = por %p82, %p83
    %p85 = scmp.ne.s32.totalorder %s71, %s72
    %p86 = scmp.eq.s32.totalorder %s15, 7
    %p87 = por %p85, %p86
    %p89 = scmp.ne.s32.totalorder %s72, %s88
    %p90 = scmp.eq.s32.totalorder %s15, 0
    %p91 = por %p89, %p90
    %s92 = ssub.s32 %s18, %s27
    %p93 = scmp.eq.s32.totalorder %s92, 0
    %s95 = sadd.s32 %s94, 1
    %s96 = scalar_select %p93, %s94, %s95
    %p99 = pneg %p93
    %p100 = scmp.eq.s32.totalorder %s9, 7
    %p101 = por %p99, %p100
    %p102 = scmp.ne.s32.totalorder %s94, %s97
    %p103 = scmp.eq.s32.totalorder %s9, 0
    %p104 = por %p102, %p103
    %p105 = scmp.ne.s32.totalorder %s94, %s97
    %p106 = scmp.eq.s32.totalorder %s14, 7
    %p107 = por %p105, %p106
    %p108 = scmp.ne.s32.totalorder %s97, %s98
    %p109 = scmp.eq.s32.totalorder %s14, 0
    %p110 = por %p108, %p109
    %p111 = scmp.ne.s32.totalorder %s97, %s98
    %p112 = scmp.eq.s32.totalorder %s15, 7
    %p113 = por %p111, %p112
    %p115 = scmp.ne.s32.totalorder %s98, %s114
    %p116 = scmp.eq.s32.totalorder %s15, 0
    %p117 = por %p115, %p116
    %s118 = ssub.s32 %s16, %s35
    %s119 = ssub.s32 %s17, %s31
    %s120 = sor.u32 %s118, %s119
    %s121 = ssub.s32 %s18, %s27
    %s122 = sor.u32 %s120, %s121
    %p123 = scmp.eq.s32.totalorder %s122, 0
    %s125 = sadd.s32 %s124, 1
    %s126 = scalar_select %p123, %s124, %s125
    %p129 = pneg %p123
    %p130 = scmp.eq.s32.totalorder %s9, 7
    %p131 = por %p129, %p130
    %p132 = scmp.ne.s32.totalorder %s124, %s127
    %p133 = scmp.eq.s32.totalorder %s9, 0
    %p134 = por %p132, %p133
    %p135 = scmp.ne.s32.totalorder %s124, %s127
    %p136 = scmp.eq.s32.totalorder %s14, 7
    %p137 = por %p135, %p136
    %p138 = scmp.ne.s32.totalorder %s127, %s128
    %p139 = scmp.eq.s32.totalorder %s14, 0
    %p140 = por %p138, %p139
    %p141 = scmp.ne.s32.totalorder %s127, %s128
    %p142 = scmp.eq.s32.totalorder %s15, 7
    %p143 = por %p141, %p142
    %p145 = scmp.ne.s32.totalorder %s128, %s144
    %p146 = scmp.eq.s32.totalorder %s15, 0
    %p147 = por %p145, %p146
    %p148 = scmp.le.s32.totalorder 1, %s9
    %p149 = scmp.lt.s32.totalorder %s9, 9
    %p150 = pnand %p148, %p149
    %p151 = pneg %p150
    // Predicated region
    $region9: #{generator_forward.13} parent=5 // pred_check
      _
    $region10: #{generator_forward.13} parent=5 // pred_check_branch
      %153 = sbr.rel (%p150) target = $region12
    $region11: #{generator_forward.13} parent=5 // pred_region
      %s154 = ssub.s32 %s9, 1
      // Predicated region
      $region13: #{generator_forward.13} parent=11 // pred_check
        %p155 = pneg %p110
      $region14: #{generator_forward.13} parent=11 // pred_check_branch
        %157 = sbr.rel (%p155) target = $region16
      $region15: #{generator_forward.13} parent=11 // pred_region
        %p158 = scmp.lt.s32.totalorder %s21, 0
        %s159 = scalar_select %p158, %s21, 0
        %s160 = scalar_lea.vmem %s2, %s159
      $region16: #{generator_forward.13} parent=11 // pred_fallthru
        _
    $region12: #{generator_forward.13} parent=5 // pred_fallthru
      _
    %p161 = scmp.lt.s32.totalorder %s9, 8
    // Predicated region
    $region17: #{generator_forward.13} parent=5 // pred_check
      %p162 = pneg %p161
    $region18: #{generator_forward.13} parent=5 // pred_check_branch
      %164 = sbr.rel (%p162) target = $region20
    $region19: #{generator_forward.13} parent=5 // pred_region
      // Predicated region
      $region21: #{generator_forward.13} parent=19 // pred_check
        %p165 = pneg %p50
      $region22: #{generator_forward.13} parent=19 // pred_check_branch
        %167 = sbr.rel (%p165) target = $region24
      $region23: #{generator_forward.13} parent=19 // pred_region
        %s168 = smul.u32 32, %s17
        %p169 = scmp.lt.s32.totalorder %s16, 3
        %s170 = scalar_select %p169, %s16, 3
        %p171 = scmp.lt.s32.totalorder %s168, 63
        %s172 = scalar_select %p171, %s168, 63
        %s173 = smul.addr %s172, 4
        %s174 = smul.addr %s170, 256
        %s175 = sadd.s32 %s173, %s174
        %s176 = smul.addr %s175, 4
        %s177 = scalar_lea.vmem %s0, %s176
        %s178 = smul.u32 32, %s17
      $region24: #{generator_forward.13} parent=19 // pred_fallthru
        _
      // Predicated region
      $region25: #{generator_forward.13} parent=19 // pred_check
        %p179 = pneg %p78
      $region26: #{generator_forward.13} parent=19 // pred_check_branch
        %181 = sbr.rel (%p179) target = $region28
      $region27: #{generator_forward.13} parent=19 // pred_region
        %p182 = scmp.lt.s32.totalorder %s16, 3
        %s183 = scalar_select %p182, %s16, 3
        %p184 = scmp.lt.s32.totalorder %s18, 0
        %s185 = scalar_select %p184, %s18, 0
        %s186 = smul.addr %s183, 64
        %s187 = sadd.s32 %s185, %s186
        %s188 = smul.addr %s187, 4
        %s189 = scalar_lea.vmem %s1, %s188
      $region28: #{generator_forward.13} parent=19 // pred_fallthru
        _
    $region20: #{generator_forward.13} parent=5 // pred_fallthru
      _
    %p190 = scmp.le.s32.totalorder 1, %s9
    %p191 = scmp.lt.s32.totalorder %s9, 9
    %p192 = pnand %p190, %p191
    %p193 = pneg %p192
    // Predicated region
    $region29: #{generator_forward.13} parent=5 // pred_check
      _
    $region30: #{generator_forward.13} parent=5 // pred_check_branch
      %195 = sbr.rel (%p192) target = $region32
    $region31: #{generator_forward.13} parent=5 // pred_region
      %s196 = ssub.s32 %s9, 1
      %s197 = smul.u32 32, %s20
      %p198 = scmp.lt.s32.totalorder %s19, 3
      %s199 = scalar_select %p198, %s19, 3
      %p200 = scmp.lt.s32.totalorder %s197, 63
      %s201 = scalar_select %p200, %s197, 63
      %s202 = smul.addr %s201, 4
      %s203 = smul.addr %s199, 256
      %s204 = sadd.s32 %s202, %s203
      %s205 = smul.addr %s204, 4
      %s206 = scalar_lea.vmem %s0, %s205
      %p207 = pneg %p56
      %p208 = pneg %p53
      %p209 = scmp.lt.s32.totalorder %s19, 3
      %s210 = scalar_select %p209, %s19, 3
      %p211 = scmp.lt.s32.totalorder %s21, 0
      %s212 = scalar_select %p211, %s21, 0
      %s213 = smul.addr %s210, 64
      %s214 = sadd.s32 %s212, %s213
      %s215 = smul.addr %s214, 4
      %s216 = scalar_lea.vmem %s1, %s215
      %p217 = pneg %p84
      %p218 = pneg %p81
      %p219 = scmp.lt.s32.totalorder %s21, 0
      %s220 = scalar_select %p219, %s21, 0
      %s221 = scalar_lea.vmem %s2, %s220
      %p222 = pneg %p110
      %p223 = pneg %p107
      %p224 = pneg %p140
      %p225 = pneg %p137
      %s226 = smul.u32 32, %s20
      %p227 = scmp.lt.s32.totalorder %s19, 3
      %s228 = scalar_select %p227, %s19, 3
      %p229 = scmp.lt.s32.totalorder %s226, 63
      %s230 = scalar_select %p229, %s226, 63
      %p231 = scmp.lt.s32.totalorder %s21, 0
      %s232 = scalar_select %p231, %s21, 0
      %s233 = sadd.s32 %s232, %s230
      %s234 = smul.addr %s228, 64
      %s235 = sadd.s32 %s233, %s234
      %s236 = smul.addr %s235, 4
      %s237 = scalar_lea.vmem %s3, %s236
      %s238 = smul.u32 32, %s20
      %p239 = scmp.lt.s32.totalorder %s19, 3
      %s240 = scalar_select %p239, %s19, 3
      %p241 = scmp.lt.s32.totalorder %s238, 63
      %s242 = scalar_select %p241, %s238, 63
      %s243 = smul.addr %s242, 4
      %s244 = smul.addr %s240, 256
      %s245 = sadd.s32 %s243, %s244
      %s246 = smul.addr %s245, 4
      %s247 = scalar_lea.vmem %s0, %s246
      %s248 = smul.u32 32, %s20
      %p249 = scmp.lt.s32.totalorder %s19, 3
      %s250 = scalar_select %p249, %s19, 3
      %p251 = scmp.lt.s32.totalorder %s21, 0
      %s252 = scalar_select %p251, %s21, 0
      %s253 = smul.addr %s250, 64
      %s254 = sadd.s32 %s252, %s253
      %s255 = smul.addr %s254, 4
      %s256 = scalar_lea.vmem %s1, %s255
      %p257 = scmp.lt.s32.totalorder %s21, 0
      %s258 = scalar_select %p257, %s21, 0
      %s259 = scalar_lea.vmem %s2, %s258
      %s260 = smul.u32 32, %s20
      %p261 = scmp.lt.s32.totalorder %s19, 3
      %s262 = scalar_select %p261, %s19, 3
      %p263 = scmp.lt.s32.totalorder %s260, 63
      %s264 = scalar_select %p263, %s260, 63
      %p265 = scmp.lt.s32.totalorder %s21, 0
      %s266 = scalar_select %p265, %s21, 0
      %s267 = sadd.s32 %s266, %s264
      %s268 = smul.addr %s262, 64
      %s269 = sadd.s32 %s267, %s268
      %s270 = smul.addr %s269, 4
      %s271 = scalar_lea.vmem %s3, %s270
      %s272 = smul.u32 32, %s20
      %v274 = vld [vmem:[%s247] sm:$0xff]
      %v275 = vld [vmem:[%s247 + $0x8] sm:$0xff]
      %v276 = vld [vmem:[%s247 + $0x10] sm:$0xff]
      %v277 = vld [vmem:[%s247 + $0x18] sm:$0xff]
      %v278 = vld [vmem:[%s247 + $0x20] sm:$0xff]
      %v279 = vld [vmem:[%s247 + $0x28] sm:$0xff]
      %v280 = vld [vmem:[%s247 + $0x30] sm:$0xff]
      %v281 = vld [vmem:[%s247 + $0x38] sm:$0xff]
      %v282 = vld [vmem:[%s247 + $0x40] sm:$0xff]
      %v283 = vld [vmem:[%s247 + $0x48] sm:$0xff]
      %v284 = vld [vmem:[%s247 + $0x50] sm:$0xff]
      %v285 = vld [vmem:[%s247 + $0x58] sm:$0xff]
      %v286 = vld [vmem:[%s247 + $0x60] sm:$0xff]
      %v287 = vld [vmem:[%s247 + $0x68] sm:$0xff]
      %v288 = vld [vmem:[%s247 + $0x70] sm:$0xff]
      %v289 = vld [vmem:[%s247 + $0x78] sm:$0xff]
      %v290 = vld [vmem:[%s247 + $0x80] sm:$0xff]
      %v291 = vld [vmem:[%s247 + $0x88] sm:$0xff]
      %v292 = vld [vmem:[%s247 + $0x90] sm:$0xff]
      %v293 = vld [vmem:[%s247 + $0x98] sm:$0xff]
      %v294 = vld [vmem:[%s247 + $0xa0] sm:$0xff]
      %v295 = vld [vmem:[%s247 + $0xa8] sm:$0xff]
      %v296 = vld [vmem:[%s247 + $0xb0] sm:$0xff]
      %v297 = vld [vmem:[%s247 + $0xb8] sm:$0xff]
      %v298 = vld [vmem:[%s247 + $0xc0] sm:$0xff]
      %v299 = vld [vmem:[%s247 + $0xc8] sm:$0xff]
      %v300 = vld [vmem:[%s247 + $0xd0] sm:$0xff]
      %v301 = vld [vmem:[%s247 + $0xd8] sm:$0xff]
      %v302 = vld [vmem:[%s247 + $0xe0] sm:$0xff]
      %v303 = vld [vmem:[%s247 + $0xe8] sm:$0xff]
      %v304 = vld [vmem:[%s247 + $0xf0] sm:$0xff]
      %v305 = vld [vmem:[%s247 + $0xf8] sm:$0xff]
      %v306 = vld [vmem:[%s247 + $0x100] sm:$0xff]
      %v307 = vld [vmem:[%s247 + $0x108] sm:$0xff]
      %v308 = vld [vmem:[%s247 + $0x110] sm:$0xff]
      %v309 = vld [vmem:[%s247 + $0x118] sm:$0xff]
      %v310 = vld [vmem:[%s247 + $0x120] sm:$0xff]
      %v311 = vld [vmem:[%s247 + $0x128] sm:$0xff]
      %v312 = vld [vmem:[%s247 + $0x130] sm:$0xff]
      %v313 = vld [vmem:[%s247 + $0x138] sm:$0xff]
      %v314 = vld [vmem:[%s247 + $0x140] sm:$0xff]
      %v315 = vld [vmem:[%s247 + $0x148] sm:$0xff]
      %v316 = vld [vmem:[%s247 + $0x150] sm:$0xff]
      %v317 = vld [vmem:[%s247 + $0x158] sm:$0xff]
      %v318 = vld [vmem:[%s247 + $0x160] sm:$0xff]
      %v319 = vld [vmem:[%s247 + $0x168] sm:$0xff]
      %v320 = vld [vmem:[%s247 + $0x170] sm:$0xff]
      %v321 = vld [vmem:[%s247 + $0x178] sm:$0xff]
      %v322 = vld [vmem:[%s247 + $0x180] sm:$0xff]
      %v323 = vld [vmem:[%s247 + $0x188] sm:$0xff]
      %v324 = vld [vmem:[%s247 + $0x190] sm:$0xff]
      %v325 = vld [vmem:[%s247 + $0x198] sm:$0xff]
      %v326 = vld [vmem:[%s247 + $0x1a0] sm:$0xff]
      %v327 = vld [vmem:[%s247 + $0x1a8] sm:$0xff]
      %v328 = vld [vmem:[%s247 + $0x1b0] sm:$0xff]
      %v329 = vld [vmem:[%s247 + $0x1b8] sm:$0xff]
      %v330 = vld [vmem:[%s247 + $0x1c0] sm:$0xff]
      %v331 = vld [vmem:[%s247 + $0x1c8] sm:$0xff]
      %v332 = vld [vmem:[%s247 + $0x1d0] sm:$0xff]
      %v333 = vld [vmem:[%s247 + $0x1d8] sm:$0xff]
      %v334 = vld [vmem:[%s247 + $0x1e0] sm:$0xff]
      %v335 = vld [vmem:[%s247 + $0x1e8] sm:$0xff]
      %v336 = vld [vmem:[%s247 + $0x1f0] sm:$0xff]
      %v337 = vld [vmem:[%s247 + $0x1f8] sm:$0xff]
      %v338 = vld [vmem:[%s256] sm:$0xf]
      %v339 = vld [vmem:[%s256 + $0x4] sm:$0xf]
      %v340 = vld [vmem:[%s256 + $0x8] sm:$0xf]
      %v341 = vld [vmem:[%s256 + $0xc] sm:$0xf]
      %v342 = vld [vmem:[%s256 + $0x10] sm:$0xf]
      %v343 = vld [vmem:[%s256 + $0x14] sm:$0xf]
      %v344 = vld [vmem:[%s256 + $0x18] sm:$0xf]
      %v345 = vld [vmem:[%s256 + $0x1c] sm:$0xf]
      %v346 = vld [vmem:[%s256 + $0x20] sm:$0xf]
      %v347 = vld [vmem:[%s256 + $0x24] sm:$0xf]
      %v348 = vld [vmem:[%s256 + $0x28] sm:$0xf]
      %v349 = vld [vmem:[%s256 + $0x2c] sm:$0xf]
      %v350 = vld [vmem:[%s256 + $0x30] sm:$0xf]
      %v351 = vld [vmem:[%s256 + $0x34] sm:$0xf]
      %v352 = vld [vmem:[%s256 + $0x38] sm:$0xf]
      %v353 = vld [vmem:[%s256 + $0x3c] sm:$0xf]
      %v354 = vld [vmem:[%s256 + $0x40] sm:$0xf]
      %v355 = vld [vmem:[%s256 + $0x44] sm:$0xf]
      %v356 = vld [vmem:[%s256 + $0x48] sm:$0xf]
      %v357 = vld [vmem:[%s256 + $0x4c] sm:$0xf]
      %v358 = vld [vmem:[%s256 + $0x50] sm:$0xf]
      %v359 = vld [vmem:[%s256 + $0x54] sm:$0xf]
      %v360 = vld [vmem:[%s256 + $0x58] sm:$0xf]
      %v361 = vld [vmem:[%s256 + $0x5c] sm:$0xf]
      %v362 = vld [vmem:[%s256 + $0x60] sm:$0xf]
      %v363 = vld [vmem:[%s256 + $0x64] sm:$0xf]
      %v364 = vld [vmem:[%s256 + $0x68] sm:$0xf]
      %v365 = vld [vmem:[%s256 + $0x6c] sm:$0xf]
      %v366 = vld [vmem:[%s256 + $0x70] sm:$0xf]
      %v367 = vld [vmem:[%s256 + $0x74] sm:$0xf]
      %v368 = vld [vmem:[%s256 + $0x78] sm:$0xf]
      %v369 = vld [vmem:[%s256 + $0x7c] sm:$0xf]
      %v370 = vld [vmem:[%s256 + $0x80] sm:$0xf]
      %v371 = vld [vmem:[%s256 + $0x84] sm:$0xf]
      %v372 = vld [vmem:[%s256 + $0x88] sm:$0xf]
      %v373 = vld [vmem:[%s256 + $0x8c] sm:$0xf]
      %v374 = vld [vmem:[%s256 + $0x90] sm:$0xf]
      %v375 = vld [vmem:[%s256 + $0x94] sm:$0xf]
      %v376 = vld [vmem:[%s256 + $0x98] sm:$0xf]
      %v377 = vld [vmem:[%s256 + $0x9c] sm:$0xf]
      %v378 = vld [vmem:[%s256 + $0xa0] sm:$0xf]
      %v379 = vld [vmem:[%s256 + $0xa4] sm:$0xf]
      %v380 = vld [vmem:[%s256 + $0xa8] sm:$0xf]
      %v381 = vld [vmem:[%s256 + $0xac] sm:$0xf]
      %v382 = vld [vmem:[%s256 + $0xb0] sm:$0xf]
      %v383 = vld [vmem:[%s256 + $0xb4] sm:$0xf]
      %v384 = vld [vmem:[%s256 + $0xb8] sm:$0xf]
      %v385 = vld [vmem:[%s256 + $0xbc] sm:$0xf]
      %v386 = vld [vmem:[%s256 + $0xc0] sm:$0xf]
      %v387 = vld [vmem:[%s256 + $0xc4] sm:$0xf]
      %v388 = vld [vmem:[%s256 + $0xc8] sm:$0xf]
      %v389 = vld [vmem:[%s256 + $0xcc] sm:$0xf]
      %v390 = vld [vmem:[%s256 + $0xd0] sm:$0xf]
      %v391 = vld [vmem:[%s256 + $0xd4] sm:$0xf]
      %v392 = vld [vmem:[%s256 + $0xd8] sm:$0xf]
      %v393 = vld [vmem:[%s256 + $0xdc] sm:$0xf]
      %v394 = vld [vmem:[%s256 + $0xe0] sm:$0xf]
      %v395 = vld [vmem:[%s256 + $0xe4] sm:$0xf]
      %v396 = vld [vmem:[%s256 + $0xe8] sm:$0xf]
      %v397 = vld [vmem:[%s256 + $0xec] sm:$0xf]
      %v398 = vld [vmem:[%s256 + $0xf0] sm:$0xf]
      %v399 = vld [vmem:[%s256 + $0xf4] sm:$0xf]
      %v400 = vld [vmem:[%s256 + $0xf8] sm:$0xf]
      %v401 = vld [vmem:[%s256 + $0xfc] sm:$0xf]
      %v402 = vld [vmem:[%s259] sm:$0x1]
      %v404 = vlaneseq
      %v405 = vshrl.u32 %v404, 7
      %v406 = vsub.s32 0, %v405
      %v407 = vrot.slane %v402, %v406
      %v473 = vunpack.c.l.b16 %v274
      %v474 = vunpack.c.h.b16 %v274
      %v475 = vunpack.c.l.b16 %v275
      %v476 = vunpack.c.h.b16 %v275
      %v477 = vunpack.c.l.b16 %v276
      %v478 = vunpack.c.h.b16 %v276
      %v479 = vunpack.c.l.b16 %v277
      %v480 = vunpack.c.h.b16 %v277
      %v481 = vunpack.c.l.b16 %v278
      %v482 = vunpack.c.h.b16 %v278
      %v483 = vunpack.c.l.b16 %v279
      %v484 = vunpack.c.h.b16 %v279
      %v485 = vunpack.c.l.b16 %v280
      %v486 = vunpack.c.h.b16 %v280
      %v487 = vunpack.c.l.b16 %v281
      %v488 = vunpack.c.h.b16 %v281
      %v489 = vunpack.c.l.b16 %v282
      %v490 = vunpack.c.h.b16 %v282
      %v491 = vunpack.c.l.b16 %v283
      %v492 = vunpack.c.h.b16 %v283
      %v493 = vunpack.c.l.b16 %v284
      %v494 = vunpack.c.h.b16 %v284
      %v495 = vunpack.c.l.b16 %v285
      %v496 = vunpack.c.h.b16 %v285
      %v497 = vunpack.c.l.b16 %v286
      %v498 = vunpack.c.h.b16 %v286
      %v499 = vunpack.c.l.b16 %v287
      %v500 = vunpack.c.h.b16 %v287
      %v501 = vunpack.c.l.b16 %v288
      %v502 = vunpack.c.h.b16 %v288
      %v503 = vunpack.c.l.b16 %v289
      %v504 = vunpack.c.h.b16 %v289
      %v505 = vunpack.c.l.b16 %v290
      %v506 = vunpack.c.h.b16 %v290
      %v507 = vunpack.c.l.b16 %v291
      %v508 = vunpack.c.h.b16 %v291
      %v509 = vunpack.c.l.b16 %v292
      %v510 = vunpack.c.h.b16 %v292
      %v511 = vunpack.c.l.b16 %v293
      %v512 = vunpack.c.h.b16 %v293
      %v513 = vunpack.c.l.b16 %v294
      %v514 = vunpack.c.h.b16 %v294
      %v515 = vunpack.c.l.b16 %v295
      %v516 = vunpack.c.h.b16 %v295
      %v517 = vunpack.c.l.b16 %v296
      %v518 = vunpack.c.h.b16 %v296
      %v519 = vunpack.c.l.b16 %v297
      %v520 = vunpack.c.h.b16 %v297
      %v521 = vunpack.c.l.b16 %v298
      %v522 = vunpack.c.h.b16 %v298
      %v523 = vunpack.c.l.b16 %v299
      %v524 = vunpack.c.h.b16 %v299
      %v525 = vunpack.c.l.b16 %v300
      %v526 = vunpack.c.h.b16 %v300
      %v527 = vunpack.c.l.b16 %v301
      %v528 = vunpack.c.h.b16 %v301
      %v529 = vunpack.c.l.b16 %v302
      %v530 = vunpack.c.h.b16 %v302
      %v531 = vunpack.c.l.b16 %v303
      %v532 = vunpack.c.h.b16 %v303
      %v533 = vunpack.c.l.b16 %v304
      %v534 = vunpack.c.h.b16 %v304
      %v535 = vunpack.c.l.b16 %v305
      %v536 = vunpack.c.h.b16 %v305
      %v537 = vunpack.c.l.b16 %v306
      %v538 = vunpack.c.h.b16 %v306
      %v539 = vunpack.c.l.b16 %v307
      %v540 = vunpack.c.h.b16 %v307
      %v541 = vunpack.c.l.b16 %v308
      %v542 = vunpack.c.h.b16 %v308
      %v543 = vunpack.c.l.b16 %v309
      %v544 = vunpack.c.h.b16 %v309
      %v545 = vunpack.c.l.b16 %v310
      %v546 = vunpack.c.h.b16 %v310
      %v547 = vunpack.c.l.b16 %v311
      %v548 = vunpack.c.h.b16 %v311
      %v549 = vunpack.c.l.b16 %v312
      %v550 = vunpack.c.h.b16 %v312
      %v551 = vunpack.c.l.b16 %v313
      %v552 = vunpack.c.h.b16 %v313
      %v553 = vunpack.c.l.b16 %v314
      %v554 = vunpack.c.h.b16 %v314
      %v555 = vunpack.c.l.b16 %v315
      %v556 = vunpack.c.h.b16 %v315
      %v557 = vunpack.c.l.b16 %v316
      %v558 = vunpack.c.h.b16 %v316
      %v559 = vunpack.c.l.b16 %v317
      %v560 = vunpack.c.h.b16 %v317
      %v561 = vunpack.c.l.b16 %v318
      %v562 = vunpack.c.h.b16 %v318
      %v563 = vunpack.c.l.b16 %v319
      %v564 = vunpack.c.h.b16 %v319
      %v565 = vunpack.c.l.b16 %v320
      %v566 = vunpack.c.h.b16 %v320
      %v567 = vunpack.c.l.b16 %v321
      %v568 = vunpack.c.h.b16 %v321
      %v569 = vunpack.c.l.b16 %v322
      %v570 = vunpack.c.h.b16 %v322
      %v571 = vunpack.c.l.b16 %v323
      %v572 = vunpack.c.h.b16 %v323
      %v573 = vunpack.c.l.b16 %v324
      %v574 = vunpack.c.h.b16 %v324
      %v575 = vunpack.c.l.b16 %v325
      %v576 = vunpack.c.h.b16 %v325
      %v577 = vunpack.c.l.b16 %v326
      %v578 = vunpack.c.h.b16 %v326
      %v579 = vunpack.c.l.b16 %v327
      %v580 = vunpack.c.h.b16 %v327
      %v581 = vunpack.c.l.b16 %v328
      %v582 = vunpack.c.h.b16 %v328
      %v583 = vunpack.c.l.b16 %v329
      %v584 = vunpack.c.h.b16 %v329
      %v585 = vunpack.c.l.b16 %v330
      %v586 = vunpack.c.h.b16 %v330
      %v587 = vunpack.c.l.b16 %v331
      %v588 = vunpack.c.h.b16 %v331
      %v589 = vunpack.c.l.b16 %v332
      %v590 = vunpack.c.h.b16 %v332
      %v591 = vunpack.c.l.b16 %v333
      %v592 = vunpack.c.h.b16 %v333
      %v593 = vunpack.c.l.b16 %v334
      %v594 = vunpack.c.h.b16 %v334
      %v595 = vunpack.c.l.b16 %v335
      %v596 = vunpack.c.h.b16 %v335
      %v597 = vunpack.c.l.b16 %v336
      %v598 = vunpack.c.h.b16 %v336
      %v599 = vunpack.c.l.b16 %v337
      %v600 = vunpack.c.h.b16 %v337
      %v601 = vpack.c.b16 %v477, %v473
      %v602 = vpack.c.b16 %v478, %v474
      %v603 = vpack.c.b16 %v479, %v475
      %v604 = vpack.c.b16 %v480, %v476
      %v605 = vpack.c.b16 %v485, %v481
      %v606 = vpack.c.b16 %v486, %v482
      %v607 = vpack.c.b16 %v487, %v483
      %v608 = vpack.c.b16 %v488, %v484
      %v609 = vpack.c.b16 %v493, %v489
      %v610 = vpack.c.b16 %v494, %v490
      %v611 = vpack.c.b16 %v495, %v491
      %v612 = vpack.c.b16 %v496, %v492
      %v613 = vpack.c.b16 %v501, %v497
      %v614 = vpack.c.b16 %v502, %v498
      %v615 = vpack.c.b16 %v503, %v499
      %v616 = vpack.c.b16 %v504, %v500
      %v617 = vpack.c.b16 %v509, %v505
      %v618 = vpack.c.b16 %v510, %v506
      %v619 = vpack.c.b16 %v511, %v507
      %v620 = vpack.c.b16 %v512, %v508
      %v621 = vpack.c.b16 %v517, %v513
      %v622 = vpack.c.b16 %v518, %v514
      %v623 = vpack.c.b16 %v519, %v515
      %v624 = vpack.c.b16 %v520, %v516
      %v625 = vpack.c.b16 %v525, %v521
      %v626 = vpack.c.b16 %v526, %v522
      %v627 = vpack.c.b16 %v527, %v523
      %v628 = vpack.c.b16 %v528, %v524
      %v629 = vpack.c.b16 %v533, %v529
      %v630 = vpack.c.b16 %v534, %v530
      %v631 = vpack.c.b16 %v535, %v531
      %v632 = vpack.c.b16 %v536, %v532
      %v633 = vpack.c.b16 %v541, %v537
      %v634 = vpack.c.b16 %v542, %v538
      %v635 = vpack.c.b16 %v543, %v539
      %v636 = vpack.c.b16 %v544, %v540
      %v637 = vpack.c.b16 %v549, %v545
      %v638 = vpack.c.b16 %v550, %v546
      %v639 = vpack.c.b16 %v551, %v547
      %v640 = vpack.c.b16 %v552, %v548
      %v641 = vpack.c.b16 %v557, %v553
      %v642 = vpack.c.b16 %v558, %v554
      %v643 = vpack.c.b16 %v559, %v555
      %v644 = vpack.c.b16 %v560, %v556
      %v645 = vpack.c.b16 %v565, %v561
      %v646 = vpack.c.b16 %v566, %v562
      %v647 = vpack.c.b16 %v567, %v563
      %v648 = vpack.c.b16 %v568, %v564
      %v649 = vpack.c.b16 %v573, %v569
      %v650 = vpack.c.b16 %v574, %v570
      %v651 = vpack.c.b16 %v575, %v571
      %v652 = vpack.c.b16 %v576, %v572
      %v653 = vpack.c.b16 %v581, %v577
      %v654 = vpack.c.b16 %v582, %v578
      %v655 = vpack.c.b16 %v583, %v579
      %v656 = vpack.c.b16 %v584, %v580
      %v657 = vpack.c.b16 %v589, %v585
      %v658 = vpack.c.b16 %v590, %v586
      %v659 = vpack.c.b16 %v591, %v587
      %v660 = vpack.c.b16 %v592, %v588
      %v661 = vpack.c.b16 %v597, %v593
      %v662 = vpack.c.b16 %v598, %v594
      %v663 = vpack.c.b16 %v599, %v595
      %v664 = vpack.c.b16 %v600, %v596
      %v793 = vunpack.c.l.b16 %v338
      %v794 = vunpack.c.l.b16 %v339
      %v795 = vunpack.c.l.b16 %v340
      %v796 = vunpack.c.l.b16 %v341
      %v797 = vunpack.c.l.b16 %v342
      %v798 = vunpack.c.l.b16 %v343
      %v799 = vunpack.c.l.b16 %v344
      %v800 = vunpack.c.l.b16 %v345
      %v801 = vunpack.c.l.b16 %v346
      %v802 = vunpack.c.l.b16 %v347
      %v803 = vunpack.c.l.b16 %v348
      %v804 = vunpack.c.l.b16 %v349
      %v805 = vunpack.c.l.b16 %v350
      %v806 = vunpack.c.l.b16 %v351
      %v807 = vunpack.c.l.b16 %v352
      %v808 = vunpack.c.l.b16 %v353
      %v809 = vunpack.c.l.b16 %v354
      %v810 = vunpack.c.l.b16 %v355
      %v811 = vunpack.c.l.b16 %v356
      %v812 = vunpack.c.l.b16 %v357
      %v813 = vunpack.c.l.b16 %v358
      %v814 = vunpack.c.l.b16 %v359
      %v815 = vunpack.c.l.b16 %v360
      %v816 = vunpack.c.l.b16 %v361
      %v817 = vunpack.c.l.b16 %v362
      %v818 = vunpack.c.l.b16 %v363
      %v819 = vunpack.c.l.b16 %v364
      %v820 = vunpack.c.l.b16 %v365
      %v821 = vunpack.c.l.b16 %v366
      %v822 = vunpack.c.l.b16 %v367
      %v823 = vunpack.c.l.b16 %v368
      %v824 = vunpack.c.l.b16 %v369
      %v825 = vunpack.c.l.b16 %v370
      %v826 = vunpack.c.l.b16 %v371
      %v827 = vunpack.c.l.b16 %v372
      %v828 = vunpack.c.l.b16 %v373
      %v829 = vunpack.c.l.b16 %v374
      %v830 = vunpack.c.l.b16 %v375
      %v831 = vunpack.c.l.b16 %v376
      %v832 = vunpack.c.l.b16 %v377
      %v833 = vunpack.c.l.b16 %v378
      %v834 = vunpack.c.l.b16 %v379
      %v835 = vunpack.c.l.b16 %v380
      %v836 = vunpack.c.l.b16 %v381
      %v837 = vunpack.c.l.b16 %v382
      %v838 = vunpack.c.l.b16 %v383
      %v839 = vunpack.c.l.b16 %v384
      %v840 = vunpack.c.l.b16 %v385
      %v841 = vunpack.c.l.b16 %v386
      %v842 = vunpack.c.l.b16 %v387
      %v843 = vunpack.c.l.b16 %v388
      %v844 = vunpack.c.l.b16 %v389
      %v845 = vunpack.c.l.b16 %v390
      %v846 = vunpack.c.l.b16 %v391
      %v847 = vunpack.c.l.b16 %v392
      %v848 = vunpack.c.l.b16 %v393
      %v849 = vunpack.c.l.b16 %v394
      %v850 = vunpack.c.l.b16 %v395
      %v851 = vunpack.c.l.b16 %v396
      %v852 = vunpack.c.l.b16 %v397
      %v853 = vunpack.c.l.b16 %v398
      %v854 = vunpack.c.l.b16 %v399
      %v855 = vunpack.c.l.b16 %v400
      %v856 = vunpack.c.l.b16 %v401
      %v857 = vpack.c.b16 %v794, %v793
      %v858 = vpack.c.b16 %v796, %v795
      %v859 = vpack.c.b16 %v798, %v797
      %v860 = vpack.c.b16 %v800, %v799
      %v861 = vpack.c.b16 %v802, %v801
      %v862 = vpack.c.b16 %v804, %v803
      %v863 = vpack.c.b16 %v806, %v805
      %v864 = vpack.c.b16 %v808, %v807
      %v865 = vpack.c.b16 %v810, %v809
      %v866 = vpack.c.b16 %v812, %v811
      %v867 = vpack.c.b16 %v814, %v813
      %v868 = vpack.c.b16 %v816, %v815
      %v869 = vpack.c.b16 %v818, %v817
      %v870 = vpack.c.b16 %v820, %v819
      %v871 = vpack.c.b16 %v822, %v821
      %v872 = vpack.c.b16 %v824, %v823
      %v873 = vpack.c.b16 %v826, %v825
      %v874 = vpack.c.b16 %v828, %v827
      %v875 = vpack.c.b16 %v830, %v829
      %v876 = vpack.c.b16 %v832, %v831
      %v877 = vpack.c.b16 %v834, %v833
      %v878 = vpack.c.b16 %v836, %v835
      %v879 = vpack.c.b16 %v838, %v837
      %v880 = vpack.c.b16 %v840, %v839
      %v881 = vpack.c.b16 %v842, %v841
      %v882 = vpack.c.b16 %v844, %v843
      %v883 = vpack.c.b16 %v846, %v845
      %v884 = vpack.c.b16 %v848, %v847
      %v885 = vpack.c.b16 %v850, %v849
      %v886 = vpack.c.b16 %v852, %v851
      %v887 = vpack.c.b16 %v854, %v853
      %v888 = vpack.c.b16 %v856, %v855
      %921 = vmatprep.subr.bf16.mxu0 0
      %922 = vmatpush1.bf16.msra.mxu0 %v857
      %923 = vmatprep.subr.bf16.mxu0 0
      %924 = vmatpush1.bf16.msra.mxu0 %v858
      %925 = vmatprep.subr.bf16.mxu0 0
      %926 = vmatpush1.bf16.msra.mxu0 %v859
      %927 = vmatprep.subr.bf16.mxu0 0
      %928 = vmatpush1.bf16.msra.mxu0 %v860
      %929 = vmatprep.subr.bf16.mxu0 0
      %930 = vmatpush1.bf16.msra.mxu0 %v861
      %931 = vmatprep.subr.bf16.mxu0 0
      %932 = vmatpush1.bf16.msra.mxu0 %v862
      %933 = vmatprep.subr.bf16.mxu0 0
      %934 = vmatpush1.bf16.msra.mxu0 %v863
      %935 = vmatprep.subr.bf16.mxu0 0
      %936 = vmatpush1.bf16.msra.mxu0 %v864
      %937 = vmatprep.subr.bf16.mxu0 0
      %938 = vmatpush1.bf16.msra.mxu0 %v865
      %939 = vmatprep.subr.bf16.mxu0 0
      %940 = vmatpush1.bf16.msra.mxu0 %v866
      %941 = vmatprep.subr.bf16.mxu0 0
      %942 = vmatpush1.bf16.msra.mxu0 %v867
      %943 = vmatprep.subr.bf16.mxu0 0
      %944 = vmatpush1.bf16.msra.mxu0 %v868
      %945 = vmatprep.subr.bf16.mxu0 0
      %946 = vmatpush1.bf16.msra.mxu0 %v869
      %947 = vmatprep.subr.bf16.mxu0 0
      %948 = vmatpush1.bf16.msra.mxu0 %v870
      %949 = vmatprep.subr.bf16.mxu0 0
      %950 = vmatpush1.bf16.msra.mxu0 %v871
      %951 = vmatprep.subr.bf16.mxu0 0
      %952 = vmatpush1.bf16.msra.mxu0 %v872
      %953 = vmatprep.mubr.bf16.mxu0 %v602
      %954 = vmatmul.mubr.bf16.gmra.mrb[0].mxu0 %v601
      %v955 = vpop.f32.mrb[0].mxu0
      %v956 = vadd.f32 %v407, %v955
      %v957 = vpop.f32.mrb[0].mxu0
      %v958 = vpop.f32.mrb[0].mxu0
      %v959 = vadd.f32 %v407, %v958
      %v960 = vpop.f32.mrb[0].mxu0
      %961 = vmatprep.mubr.bf16.mxu0 %v606
      %962 = vmatmul.mubr.bf16.gmra.mrb[0].mxu0 %v605
      %v963 = vpop.f32.mrb[0].mxu0
      %v964 = vadd.f32 %v407, %v963
      %v965 = vpop.f32.mrb[0].mxu0
      %v966 = vpop.f32.mrb[0].mxu0
      %v967 = vadd.f32 %v407, %v966
      %v968 = vpop.f32.mrb[0].mxu0
      %969 = vmatprep.mubr.bf16.mxu0 %v610
      %970 = vmatmul.mubr.bf16.gmra.mrb[0].mxu0 %v609
      %v971 = vpop.f32.mrb[0].mxu0
      %v972 = vadd.f32 %v407, %v971
      %v973 = vpop.f32.mrb[0].mxu0
      %v974 = vpop.f32.mrb[0].mxu0
      %v975 = vadd.f32 %v407, %v974
      %v976 = vpop.f32.mrb[0].mxu0
      %977 = vmatprep.mubr.bf16.mxu0 %v614
      %978 = vmatmul.mubr.bf16.gmra.mrb[0].mxu0 %v613
      %v979 = vpop.f32.mrb[0].mxu0
      %v980 = vadd.f32 %v407, %v979
      %v981 = vpop.f32.mrb[0].mxu0
      %v982 = vpop.f32.mrb[0].mxu0
      %v983 = vadd.f32 %v407, %v982
      %v984 = vpop.f32.mrb[0].mxu0
      %985 = vmatprep.mubr.bf16.mxu0 %v618
      %986 = vmatmul.mubr.bf16.gmra.mrb[0].mxu0 %v617
      %v987 = vpop.f32.mrb[0].mxu0
      %v988 = vadd.f32 %v407, %v987
      %v989 = vpop.f32.mrb[0].mxu0
      %v990 = vpop.f32.mrb[0].mxu0
      %v991 = vadd.f32 %v407, %v990
      %v992 = vpop.f32.mrb[0].mxu0
      %993 = vmatprep.mubr.bf16.mxu0 %v622
      %994 = vmatmul.mubr.bf16.gmra.mrb[0].mxu0 %v621
      %v995 = vpop.f32.mrb[0].mxu0
      %v996 = vadd.f32 %v407, %v995
      %v997 = vpop.f32.mrb[0].mxu0
      %v998 = vpop.f32.mrb[0].mxu0
      %v999 = vadd.f32 %v407, %v998
      %v1000 = vpop.f32.mrb[0].mxu0
      %1001 = vmatprep.mubr.bf16.mxu0 %v626
      %1002 = vmatmul.mubr.bf16.gmra.mrb[0].mxu0 %v625
      %v1003 = vpop.f32.mrb[0].mxu0
      %v1004 = vadd.f32 %v407, %v1003
      %v1005 = vpop.f32.mrb[0].mxu0
      %v1006 = vpop.f32.mrb[0].mxu0
      %v1007 = vadd.f32 %v407, %v1006
      %v1008 = vpop.f32.mrb[0].mxu0
      %1009 = vmatprep.mubr.bf16.mxu0 %v630
      %1010 = vmatmul.mubr.bf16.gmra.mrb[0].mxu0 %v629
      %v1011 = vpop.f32.mrb[0].mxu0
      %v1012 = vadd.f32 %v407, %v1011
      %v1013 = vpop.f32.mrb[0].mxu0
      %v1014 = vpop.f32.mrb[0].mxu0
      %v1015 = vadd.f32 %v407, %v1014
      %v1016 = vpop.f32.mrb[0].mxu0
      %1017 = vmatprep.mubr.bf16.mxu0 %v634
      %1018 = vmatmul.mubr.bf16.gmra.mrb[0].mxu0 %v633
      %v1019 = vpop.f32.mrb[0].mxu0
      %v1020 = vadd.f32 %v407, %v1019
      %v1021 = vpop.f32.mrb[0].mxu0
      %v1022 = vpop.f32.mrb[0].mxu0
      %v1023 = vadd.f32 %v407, %v1022
      %v1024 = vpop.f32.mrb[0].mxu0
      %1025 = vmatprep.mubr.bf16.mxu0 %v638
      %1026 = vmatmul.mubr.bf16.gmra.mrb[0].mxu0 %v637
      %v1027 = vpop.f32.mrb[0].mxu0
      %v1028 = vadd.f32 %v407, %v1027
      %v1029 = vpop.f32.mrb[0].mxu0
      %v1030 = vpop.f32.mrb[0].mxu0
      %v1031 = vadd.f32 %v407, %v1030
      %v1032 = vpop.f32.mrb[0].mxu0
      %1033 = vmatprep.mubr.bf16.mxu0 %v642
      %1034 = vmatmul.mubr.bf16.gmra.mrb[0].mxu0 %v641
      %v1035 = vpop.f32.mrb[0].mxu0
      %v1036 = vadd.f32 %v407, %v1035
      %v1037 = vpop.f32.mrb[0].mxu0
      %v1038 = vpop.f32.mrb[0].mxu0
      %v1039 = vadd.f32 %v407, %v1038
      %v1040 = vpop.f32.mrb[0].mxu0
      %1041 = vmatprep.mubr.bf16.mxu0 %v646
      %1042 = vmatmul.mubr.bf16.gmra.mrb[0].mxu0 %v645
      %v1043 = vpop.f32.mrb[0].mxu0
      %v1044 = vadd.f32 %v407, %v1043
      %v1045 = vpop.f32.mrb[0].mxu0
      %v1046 = vpop.f32.mrb[0].mxu0
      %v1047 = vadd.f32 %v407, %v1046
      %v1048 = vpop.f32.mrb[0].mxu0
      %1049 = vmatprep.mubr.bf16.mxu0 %v650
      %1050 = vmatmul.mubr.bf16.gmra.mrb[0].mxu0 %v649
      %v1051 = vpop.f32.mrb[0].mxu0
      %v1052 = vadd.f32 %v407, %v1051
      %v1053 = vpop.f32.mrb[0].mxu0
      %v1054 = vpop.f32.mrb[0].mxu0
      %v1055 = vadd.f32 %v407, %v1054
      %v1056 = vpop.f32.mrb[0].mxu0
      %1057 = vmatprep.mubr.bf16.mxu0 %v654
      %1058 = vmatmul.mubr.bf16.gmra.mrb[0].mxu0 %v653
      %v1059 = vpop.f32.mrb[0].mxu0
      %v1060 = vadd.f32 %v407, %v1059
      %v1061 = vpop.f32.mrb[0].mxu0
      %v1062 = vpop.f32.mrb[0].mxu0
      %v1063 = vadd.f32 %v407, %v1062
      %v1064 = vpop.f32.mrb[0].mxu0
      %1065 = vmatprep.mubr.bf16.mxu0 %v658
      %1066 = vmatmul.mubr.bf16.gmra.mrb[0].mxu0 %v657
      %v1067 = vpop.f32.mrb[0].mxu0
      %v1068 = vadd.f32 %v407, %v1067
      %v1069 = vpop.f32.mrb[0].mxu0
      %v1070 = vpop.f32.mrb[0].mxu0
      %v1071 = vadd.f32 %v407, %v1070
      %v1072 = vpop.f32.mrb[0].mxu0
      %1073 = vmatprep.mubr.bf16.mxu0 %v662
      %1074 = vmatmul.mubr.bf16.gmra.mrb[0].mxu0 %v661
      %v1075 = vpop.f32.mrb[0].mxu0
      %v1076 = vadd.f32 %v407, %v1075
      %v1077 = vpop.f32.mrb[0].mxu0
      %v1078 = vpop.f32.mrb[0].mxu0
      %v1079 = vadd.f32 %v407, %v1078
      %v1080 = vpop.f32.mrb[0].mxu0
      %1081 = vdwg.mxu0
      %1082 = vmatprep.subr.bf16.mxu0 0
      %1083 = vmatpush1.bf16.msra.mxu0 %v873
      %1084 = vmatprep.subr.bf16.mxu0 0
      %1085 = vmatpush1.bf16.msra.mxu0 %v874
      %1086 = vmatprep.subr.bf16.mxu0 0
      %1087 = vmatpush1.bf16.msra.mxu0 %v875
      %1088 = vmatprep.subr.bf16.mxu0 0
      %1089 = vmatpush1.bf16.msra.mxu0 %v876
      %1090 = vmatprep.subr.bf16.mxu0 0
      %1091 = vmatpush1.bf16.msra.mxu0 %v877
      %1092 = vmatprep.subr.bf16.mxu0 0
      %1093 = vmatpush1.bf16.msra.mxu0 %v878
      %1094 = vmatprep.subr.bf16.mxu0 0
      %1095 = vmatpush1.bf16.msra.mxu0 %v879
      %1096 = vmatprep.subr.bf16.mxu0 0
      %1097 = vmatpush1.bf16.msra.mxu0 %v880
      %1098 = vmatprep.subr.bf16.mxu0 0
      %1099 = vmatpush1.bf16.msra.mxu0 %v881
      %1100 = vmatprep.subr.bf16.mxu0 0
      %1101 = vmatpush1.bf16.msra.mxu0 %v882
      %1102 = vmatprep.subr.bf16.mxu0 0
      %1103 = vmatpush1.bf16.msra.mxu0 %v883
      %1104 = vmatprep.subr.bf16.mxu0 0
      %1105 = vmatpush1.bf16.msra.mxu0 %v884
      %1106 = vmatprep.subr.bf16.mxu0 0
      %1107 = vmatpush1.bf16.msra.mxu0 %v885
      %1108 = vmatprep.subr.bf16.mxu0 0
      %1109 = vmatpush1.bf16.msra.mxu0 %v886
      %1110 = vmatprep.subr.bf16.mxu0 0
      %1111 = vmatpush1.bf16.msra.mxu0 %v887
      %1112 = vmatprep.subr.bf16.mxu0 0
      %1113 = vmatpush1.bf16.msra.mxu0 %v888
      %1114 = vmatprep.mubr.bf16.mxu0 %v604
      %1115 = vmatmul.mubr.bf16.gmra.mrb[0].mxu0 %v603
      %v1116 = vpop.f32.mrb[0].mxu0
      %v1117 = vadd.f32 %v956, %v1116
      %v1118 = vpop.f32.mrb[0].mxu0
      %v1119 = vpop.f32.mrb[0].mxu0
      %v1120 = vadd.f32 %v959, %v1119
      %v1121 = vpop.f32.mrb[0].mxu0
      %1122 = vmatprep.mubr.bf16.mxu0 %v608
      %1123 = vmatmul.mubr.bf16.gmra.mrb[0].mxu0 %v607
      %v1124 = vpop.f32.mrb[0].mxu0
      %v1125 = vadd.f32 %v964, %v1124
      %v1126 = vpop.f32.mrb[0].mxu0
      %v1127 = vpop.f32.mrb[0].mxu0
      %v1128 = vadd.f32 %v967, %v1127
      %v1129 = vpop.f32.mrb[0].mxu0
      %1130 = vmatprep.mubr.bf16.mxu0 %v612
      %1131 = vmatmul.mubr.bf16.gmra.mrb[0].mxu0 %v611
      %v1132 = vpop.f32.mrb[0].mxu0
      %v1133 = vadd.f32 %v972, %v1132
      %v1134 = vpop.f32.mrb[0].mxu0
      %v1135 = vpop.f32.mrb[0].mxu0
      %v1136 = vadd.f32 %v975, %v1135
      %v1137 = vpop.f32.mrb[0].mxu0
      %1138 = vmatprep.mubr.bf16.mxu0 %v616
      %1139 = vmatmul.mubr.bf16.gmra.mrb[0].mxu0 %v615
      %v1140 = vpop.f32.mrb[0].mxu0
      %v1141 = vadd.f32 %v980, %v1140
      %v1142 = vpop.f32.mrb[0].mxu0
      %v1143 = vpop.f32.mrb[0].mxu0
      %v1144 = vadd.f32 %v983, %v1143
      %v1145 = vpop.f32.mrb[0].mxu0
      %1146 = vmatprep.mubr.bf16.mxu0 %v620
      %1147 = vmatmul.mubr.bf16.gmra.mrb[0].mxu0 %v619
      %v1148 = vpop.f32.mrb[0].mxu0
      %v1149 = vadd.f32 %v988, %v1148
      %v1150 = vpop.f32.mrb[0].mxu0
      %v1151 = vpop.f32.mrb[0].mxu0
      %v1152 = vadd.f32 %v991, %v1151
      %v1153 = vpop.f32.mrb[0].mxu0
      %1154 = vmatprep.mubr.bf16.mxu0 %v624
      %1155 = vmatmul.mubr.bf16.gmra.mrb[0].mxu0 %v623
      %v1156 = vpop.f32.mrb[0].mxu0
      %v1157 = vadd.f32 %v996, %v1156
      %v1158 = vpop.f32.mrb[0].mxu0
      %v1159 = vpop.f32.mrb[0].mxu0
      %v1160 = vadd.f32 %v999, %v1159
      %v1161 = vpop.f32.mrb[0].mxu0
      %1162 = vmatprep.mubr.bf16.mxu0 %v628
      %1163 = vmatmul.mubr.bf16.gmra.mrb[0].mxu0 %v627
      %v1164 = vpop.f32.mrb[0].mxu0
      %v1165 = vadd.f32 %v1004, %v1164
      %v1166 = vpop.f32.mrb[0].mxu0
      %v1167 = vpop.f32.mrb[0].mxu0
      %v1168 = vadd.f32 %v1007, %v1167
      %v1169 = vpop.f32.mrb[0].mxu0
      %1170 = vmatprep.mubr.bf16.mxu0 %v632
      %1171 = vmatmul.mubr.bf16.gmra.mrb[0].mxu0 %v631
      %v1172 = vpop.f32.mrb[0].mxu0
      %v1173 = vadd.f32 %v1012, %v1172
      %v1174 = vpop.f32.mrb[0].mxu0
      %v1175 = vpop.f32.mrb[0].mxu0
      %v1176 = vadd.f32 %v1015, %v1175
      %v1177 = vpop.f32.mrb[0].mxu0
      %1178 = vmatprep.mubr.bf16.mxu0 %v636
      %1179 = vmatmul.mubr.bf16.gmra.mrb[0].mxu0 %v635
      %v1180 = vpop.f32.mrb[0].mxu0
      %v1181 = vadd.f32 %v1020, %v1180
      %v1182 = vpop.f32.mrb[0].mxu0
      %v1183 = vpop.f32.mrb[0].mxu0
      %v1184 = vadd.f32 %v1023, %v1183
      %v1185 = vpop.f32.mrb[0].mxu0
      %1186 = vmatprep.mubr.bf16.mxu0 %v640
      %1187 = vmatmul.mubr.bf16.gmra.mrb[0].mxu0 %v639
      %v1188 = vpop.f32.mrb[0].mxu0
      %v1189 = vadd.f32 %v1028, %v1188
      %v1190 = vpop.f32.mrb[0].mxu0
      %v1191 = vpop.f32.mrb[0].mxu0
      %v1192 = vadd.f32 %v1031, %v1191
      %v1193 = vpop.f32.mrb[0].mxu0
      %1194 = vmatprep.mubr.bf16.mxu0 %v644
      %1195 = vmatmul.mubr.bf16.gmra.mrb[0].mxu0 %v643
      %v1196 = vpop.f32.mrb[0].mxu0
      %v1197 = vadd.f32 %v1036, %v1196
      %v1198 = vpop.f32.mrb[0].mxu0
      %v1199 = vpop.f32.mrb[0].mxu0
      %v1200 = vadd.f32 %v1039, %v1199
      %v1201 = vpop.f32.mrb[0].mxu0
      %1202 = vmatprep.mubr.bf16.mxu0 %v648
      %1203 = vmatmul.mubr.bf16.gmra.mrb[0].mxu0 %v647
      %v1204 = vpop.f32.mrb[0].mxu0
      %v1205 = vadd.f32 %v1044, %v1204
      %v1206 = vpop.f32.mrb[0].mxu0
      %v1207 = vpop.f32.mrb[0].mxu0
      %v1208 = vadd.f32 %v1047, %v1207
      %v1209 = vpop.f32.mrb[0].mxu0
      %1210 = vmatprep.mubr.bf16.mxu0 %v652
      %1211 = vmatmul.mubr.bf16.gmra.mrb[0].mxu0 %v651
      %v1212 = vpop.f32.mrb[0].mxu0
      %v1213 = vadd.f32 %v1052, %v1212
      %v1214 = vpop.f32.mrb[0].mxu0
      %v1215 = vpop.f32.mrb[0].mxu0
      %v1216 = vadd.f32 %v1055, %v1215
      %v1217 = vpop.f32.mrb[0].mxu0
      %1218 = vmatprep.mubr.bf16.mxu0 %v656
      %1219 = vmatmul.mubr.bf16.gmra.mrb[0].mxu0 %v655
      %v1220 = vpop.f32.mrb[0].mxu0
      %v1221 = vadd.f32 %v1060, %v1220
      %v1222 = vpop.f32.mrb[0].mxu0
      %v1223 = vpop.f32.mrb[0].mxu0
      %v1224 = vadd.f32 %v1063, %v1223
      %v1225 = vpop.f32.mrb[0].mxu0
      %1226 = vmatprep.mubr.bf16.mxu0 %v660
      %1227 = vmatmul.mubr.bf16.gmra.mrb[0].mxu0 %v659
      %v1228 = vpop.f32.mrb[0].mxu0
      %v1229 = vadd.f32 %v1068, %v1228
      %v1230 = vpop.f32.mrb[0].mxu0
      %v1231 = vpop.f32.mrb[0].mxu0
      %v1232 = vadd.f32 %v1071, %v1231
      %v1233 = vpop.f32.mrb[0].mxu0
      %1234 = vmatprep.mubr.bf16.mxu0 %v664
      %1235 = vmatmul.mubr.bf16.gmra.mrb[0].mxu0 %v663
      %v1236 = vpop.f32.mrb[0].mxu0
      %v1237 = vadd.f32 %v1076, %v1236
      %v1238 = vpop.f32.mrb[0].mxu0
      %v1239 = vpop.f32.mrb[0].mxu0
      %v1240 = vadd.f32 %v1079, %v1239
      %v1241 = vpop.f32.mrb[0].mxu0
      %1242 = vdwg.mxu0
      %v1243 = vtanh.pop %v1117
      %v1244 = vtanh.pop %v1120
      %v1245 = vtanh.pop %v1125
      %v1246 = vtanh.pop %v1128
      %v1247 = vtanh.pop %v1133
      %v1248 = vtanh.pop %v1136
      %v1249 = vtanh.pop %v1141
      %v1250 = vtanh.pop %v1144
      %v1251 = vtanh.pop %v1149
      %v1252 = vtanh.pop %v1152
      %v1253 = vtanh.pop %v1157
      %v1254 = vtanh.pop %v1160
      %v1255 = vtanh.pop %v1165
      %v1256 = vtanh.pop %v1168
      %v1257 = vtanh.pop %v1173
      %v1258 = vtanh.pop %v1176
      %v1259 = vtanh.pop %v1181
      %v1260 = vtanh.pop %v1184
      %v1261 = vtanh.pop %v1189
      %v1262 = vtanh.pop %v1192
      %v1263 = vtanh.pop %v1197
      %v1264 = vtanh.pop %v1200
      %v1265 = vtanh.pop %v1205
      %v1266 = vtanh.pop %v1208
      %v1267 = vtanh.pop %v1213
      %v1268 = vtanh.pop %v1216
      %v1269 = vtanh.pop %v1221
      %v1270 = vtanh.pop %v1224
      %v1271 = vtanh.pop %v1229
      %v1272 = vtanh.pop %v1232
      %v1273 = vtanh.pop %v1237
      %v1274 = vtanh.pop %v1240
      %v1275 = vpack.c.bf16 %v1244, %v1243
      %v1276 = vpack.c.bf16 %v1246, %v1245
      %v1277 = vpack.c.bf16 %v1248, %v1247
      %v1278 = vpack.c.bf16 %v1250, %v1249
      %v1279 = vpack.c.bf16 %v1252, %v1251
      %v1280 = vpack.c.bf16 %v1254, %v1253
      %v1281 = vpack.c.bf16 %v1256, %v1255
      %v1282 = vpack.c.bf16 %v1258, %v1257
      %v1283 = vpack.c.bf16 %v1260, %v1259
      %v1284 = vpack.c.bf16 %v1262, %v1261
      %v1285 = vpack.c.bf16 %v1264, %v1263
      %v1286 = vpack.c.bf16 %v1266, %v1265
      %v1287 = vpack.c.bf16 %v1268, %v1267
      %v1288 = vpack.c.bf16 %v1270, %v1269
      %v1289 = vpack.c.bf16 %v1272, %v1271
      %v1290 = vpack.c.bf16 %v1274, %v1273
      %v1307 = vunpack.c.l.b16 %v1275
      %v1308 = vunpack.c.h.b16 %v1275
      %v1309 = vunpack.c.l.b16 %v1276
      %v1310 = vunpack.c.h.b16 %v1276
      %v1311 = vunpack.c.l.b16 %v1277
      %v1312 = vunpack.c.h.b16 %v1277
      %v1313 = vunpack.c.l.b16 %v1278
      %v1314 = vunpack.c.h.b16 %v1278
      %v1315 = vunpack.c.l.b16 %v1279
      %v1316 = vunpack.c.h.b16 %v1279
      %v1317 = vunpack.c.l.b16 %v1280
      %v1318 = vunpack.c.h.b16 %v1280
      %v1319 = vunpack.c.l.b16 %v1281
      %v1320 = vunpack.c.h.b16 %v1281
      %v1321 = vunpack.c.l.b16 %v1282
      %v1322 = vunpack.c.h.b16 %v1282
      %v1323 = vunpack.c.l.b16 %v1283
      %v1324 = vunpack.c.h.b16 %v1283
      %v1325 = vunpack.c.l.b16 %v1284
      %v1326 = vunpack.c.h.b16 %v1284
      %v1327 = vunpack.c.l.b16 %v1285
      %v1328 = vunpack.c.h.b16 %v1285
      %v1329 = vunpack.c.l.b16 %v1286
      %v1330 = vunpack.c.h.b16 %v1286
      %v1331 = vunpack.c.l.b16 %v1287
      %v1332 = vunpack.c.h.b16 %v1287
      %v1333 = vunpack.c.l.b16 %v1288
      %v1334 = vunpack.c.h.b16 %v1288
      %v1335 = vunpack.c.l.b16 %v1289
      %v1336 = vunpack.c.h.b16 %v1289
      %v1337 = vunpack.c.l.b16 %v1290
      %v1338 = vunpack.c.h.b16 %v1290
      %v1339 = vpack.c.b16 %v1307, %v1307
      %v1340 = vpack.c.b16 %v1308, %v1308
      %v1341 = vpack.c.b16 %v1309, %v1309
      %v1342 = vpack.c.b16 %v1310, %v1310
      %v1343 = vpack.c.b16 %v1311, %v1311
      %v1344 = vpack.c.b16 %v1312, %v1312
      %v1345 = vpack.c.b16 %v1313, %v1313
      %v1346 = vpack.c.b16 %v1314, %v1314
      %v1347 = vpack.c.b16 %v1315, %v1315
      %v1348 = vpack.c.b16 %v1316, %v1316
      %v1349 = vpack.c.b16 %v1317, %v1317
      %v1350 = vpack.c.b16 %v1318, %v1318
      %v1351 = vpack.c.b16 %v1319, %v1319
      %v1352 = vpack.c.b16 %v1320, %v1320
      %v1353 = vpack.c.b16 %v1321, %v1321
      %v1354 = vpack.c.b16 %v1322, %v1322
      %v1355 = vpack.c.b16 %v1323, %v1323
      %v1356 = vpack.c.b16 %v1324, %v1324
      %v1357 = vpack.c.b16 %v1325, %v1325
      %v1358 = vpack.c.b16 %v1326, %v1326
      %v1359 = vpack.c.b16 %v1327, %v1327
      %v1360 = vpack.c.b16 %v1328, %v1328
      %v1361 = vpack.c.b16 %v1329, %v1329
      %v1362 = vpack.c.b16 %v1330, %v1330
      %v1363 = vpack.c.b16 %v1331, %v1331
      %v1364 = vpack.c.b16 %v1332, %v1332
      %v1365 = vpack.c.b16 %v1333, %v1333
      %v1366 = vpack.c.b16 %v1334, %v1334
      %v1367 = vpack.c.b16 %v1335, %v1335
      %v1368 = vpack.c.b16 %v1336, %v1336
      %v1369 = vpack.c.b16 %v1337, %v1337
      %v1370 = vpack.c.b16 %v1338, %v1338
      %1403 = vst [vmem:[%s271] sm:$0xf] %v1339
      %1404 = vst [vmem:[%s271 + $0x4] sm:$0xf] %v1340
      %1405 = vst [vmem:[%s271 + $0x8] sm:$0xf] %v1341
      %1406 = vst [vmem:[%s271 + $0xc] sm:$0xf] %v1342
      %1407 = vst [vmem:[%s271 + $0x10] sm:$0xf] %v1343
      %1408 = vst [vmem:[%s271 + $0x14] sm:$0xf] %v1344
      %1409 = vst [vmem:[%s271 + $0x18] sm:$0xf] %v1345
      %1410 = vst [vmem:[%s271 + $0x1c] sm:$0xf] %v1346
      %1411 = vst [vmem:[%s271 + $0x20] sm:$0xf] %v1347
      %1412 = vst [vmem:[%s271 + $0x24] sm:$0xf] %v1348
      %1413 = vst [vmem:[%s271 + $0x28] sm:$0xf] %v1349
      %1414 = vst [vmem:[%s271 + $0x2c] sm:$0xf] %v1350
      %1415 = vst [vmem:[%s271 + $0x30] sm:$0xf] %v1351
      %1416 = vst [vmem:[%s271 + $0x34] sm:$0xf] %v1352
      %1417 = vst [vmem:[%s271 + $0x38] sm:$0xf] %v1353
      %1418 = vst [vmem:[%s271 + $0x3c] sm:$0xf] %v1354
      %1419 = vst [vmem:[%s271 + $0x40] sm:$0xf] %v1355
      %1420 = vst [vmem:[%s271 + $0x44] sm:$0xf] %v1356
      %1421 = vst [vmem:[%s271 + $0x48] sm:$0xf] %v1357
      %1422 = vst [vmem:[%s271 + $0x4c] sm:$0xf] %v1358
      %1423 = vst [vmem:[%s271 + $0x50] sm:$0xf] %v1359
      %1424 = vst [vmem:[%s271 + $0x54] sm:$0xf] %v1360
      %1425 = vst [vmem:[%s271 + $0x58] sm:$0xf] %v1361
      %1426 = vst [vmem:[%s271 + $0x5c] sm:$0xf] %v1362
      %1427 = vst [vmem:[%s271 + $0x60] sm:$0xf] %v1363
      %1428 = vst [vmem:[%s271 + $0x64] sm:$0xf] %v1364
      %1429 = vst [vmem:[%s271 + $0x68] sm:$0xf] %v1365
      %1430 = vst [vmem:[%s271 + $0x6c] sm:$0xf] %v1366
      %1431 = vst [vmem:[%s271 + $0x70] sm:$0xf] %v1367
      %1432 = vst [vmem:[%s271 + $0x74] sm:$0xf] %v1368
      %1433 = vst [vmem:[%s271 + $0x78] sm:$0xf] %v1369
      %1434 = vst [vmem:[%s271 + $0x7c] sm:$0xf] %v1370
      %s1435 = smul.u32 32, %s20
      %p1436 = scmp.lt.s32.totalorder %s19, 3
      %s1437 = scalar_select %p1436, %s19, 3
      %p1438 = scmp.lt.s32.totalorder %s1435, 63
      %s1439 = scalar_select %p1438, %s1435, 63
      %p1440 = scmp.lt.s32.totalorder %s21, 0
      %s1441 = scalar_select %p1440, %s21, 0
      %s1442 = sadd.s32 %s1441, %s1439
      %s1443 = smul.addr %s1437, 64
      %s1444 = sadd.s32 %s1442, %s1443
      %s1445 = smul.addr %s1444, 4
      %s1446 = scalar_lea.vmem %s3, %s1445
      // Predicated region
      $region33: #{generator_forward.13} parent=31 // pred_check
        %p1447 = pneg %p137
      $region34: #{generator_forward.13} parent=31 // pred_check_branch
        %1449 = sbr.rel (%p1447) target = $region36
      $region35: #{generator_forward.13} parent=31 // pred_region
        %s1450 = smul.u32 32, %s20
      $region36: #{generator_forward.13} parent=31 // pred_fallthru
        _
    $region32: #{generator_forward.13} parent=5 // pred_fallthru
      _
    %p1451 = scmp.le.s32.totalorder 2, %s9
    // Predicated region
    $region37: #{generator_forward.13} parent=5 // pred_check
      %p1452 = pneg %p1451
    $region38: #{generator_forward.13} parent=5 // pred_check_branch
      %1454 = sbr.rel (%p1452) target = $region40
    $region39: #{generator_forward.13} parent=5 // pred_region
      %s1455 = ssub.s32 %s9, 2
      // Predicated region
      $region41: #{generator_forward.13} parent=39 // pred_check
        %p1456 = pneg %p143
      $region42: #{generator_forward.13} parent=39 // pred_check_branch
        %1458 = sbr.rel (%p1456) target = $region44
      $region43: #{generator_forward.13} parent=39 // pred_region
        %s1459 = smul.u32 32, %s23
        %p1460 = scmp.lt.s32.totalorder %s22, 3
        %s1461 = scalar_select %p1460, %s22, 3
        %p1462 = scmp.lt.s32.totalorder %s1459, 63
        %s1463 = scalar_select %p1462, %s1459, 63
        %p1464 = scmp.lt.s32.totalorder %s24, 0
        %s1465 = scalar_select %p1464, %s24, 0
        %s1466 = sadd.s32 %s1465, %s1463
        %s1467 = smul.addr %s1461, 64
        %s1468 = sadd.s32 %s1466, %s1467
        %s1469 = smul.addr %s1468, 4
        %s1470 = scalar_lea.vmem %s3, %s1469
      $region44: #{generator_forward.13} parent=39 // pred_fallthru
        _
    $region40: #{generator_forward.13} parent=5 // pred_fallthru
      _
  $region6: #{generator_forward.13} parent=0 // loop_footer
    %s13 = sadd.s32 1, %s9
  $region7: #{generator_forward.13} parent=0 // loop_footer_branch
    %8 = sbr.rel target = $region3
  $region8: #{generator_forward.13} parent=0 // loop_exit
    _

</llo_original>
